<compile_context>
chip_gen: v7x
topology: tpu7x:2x2x1
jax: 0.10.0
libtpu: 0.0.40
codegen_flags: <defaults>
</compile_context>

<pallas_src>
import jax
import jax.numpy as jnp
from jax import lax
from jax.experimental import pallas as pl
from jax.experimental.pallas import tpu as pltpu


def generator_kernel(emb_ref,
                     wcomb_ref, bcomb_ref,
                     whhf_ref, whhb_ref,
                     whw_ref, bhw_ref,
                     wlin_ref, blin_ref,
                     gum_ref,
                     pred_ref,
                     xw_sc, lstm_sc):
    T, BB, HD = emb_ref.shape
    H = whhf_ref.shape[0]          # padded hz
    NC = pred_ref.shape[2]         # padded n_chars
    rows = T * BB
    f32, bf16 = jnp.float32, jnp.bfloat16

    # ---- fused trans + hoisted LSTM input projection (both directions) ------
    emb2d = emb_ref[...].reshape(rows, HD)                              # bf16
    xw = jnp.dot(emb2d, wcomb_ref[...],
                 preferred_element_type=f32) + bcomb_ref[...]           # (rows, 8H)
    xw_sc[...] = xw.astype(bf16).reshape(T, BB, 8 * H)

    # ---- bidirectional LSTM: both directions in one partially-unrolled loop -
    def lstm_step(xg, h, c, whh_ref):
        gates = xg.astype(f32) + jnp.dot(h.astype(bf16), whh_ref[...],
                                         preferred_element_type=f32)    # (BB, 4H)
        i_g = jax.nn.sigmoid(gates[:, 0 * H:1 * H])
        f_g = jax.nn.sigmoid(gates[:, 1 * H:2 * H])
        g_g = jnp.tanh(gates[:, 2 * H:3 * H])
        o_g = jax.nn.sigmoid(gates[:, 3 * H:4 * H])
        c_new = f_g * c + i_g * g_g
        h_new = o_g * jnp.tanh(c_new)
        return h_new, c_new

    def body(i, carry):
        hf, cf, hb, cb = carry
        tf = i
        tb = T - 1 - i
        xw_f = xw_sc[tf]                          # (BB, 8H) bf16
        xw_b = xw_sc[tb]
        hf, cf = lstm_step(xw_f[:, 0:4 * H], hf, cf, whhf_ref)
        hb, cb = lstm_step(xw_b[:, 4 * H:8 * H], hb, cb, whhb_ref)
        lstm_sc[tf, :, 0:H] = hf                  # fwd half of fused scratch
        lstm_sc[tb, :, H:2 * H] = hb              # bwd half of fused scratch
        return hf, cf, hb, cb

    zero = jnp.zeros((BB, H), f32)
    lax.fori_loop(0, T, body, (zero, zero, zero, zero), unroll=min(T, 8))

    # ---- highway gate --------------------------------------------------------
    lstm_out = lstm_sc[...].reshape(rows, 2 * H)                        # f32
    hw = jnp.dot(lstm_out.astype(bf16), whw_ref[...],
                 preferred_element_type=f32) + bhw_ref[...]
    sig = jax.nn.sigmoid(hw)
    out = sig * jnp.maximum(hw, 0.0) + (1.0 - sig) * lstm_out
    # dropout(p=0.3): eval-mode identity

    # ---- final linear --------------------------------------------------------
    logits = jnp.dot(out.astype(bf16), wlin_ref[...],
                     preferred_element_type=f32) + blin_ref[...]

    # ---- soft gumbel-softmax, tau = 0.5 (noise streamed from host) -----------
    y = (logits + gum_ref[...].reshape(rows, NC)) * 2.0   # divide by tau = 0.5
    y = y - jnp.max(y, axis=-1, keepdims=True)
    e = jnp.exp(y)
    s = jnp.sum(e, axis=-1, keepdims=True)
    pred_ref[...] = (e / s).reshape(T, BB, NC)


def _round_up(x, m):
    return ((x + m - 1) // m) * m


def init_params(key, vocab, hidden, hz, n_chars):
    """All params uniform(-0.05, 0.05), matching init_params() in the module."""
    def u(k, shape):
        return jax.random.uniform(k, shape, jnp.float32, -0.05, 0.05)
    ks = jax.random.split(key, 15)
    return dict(
        emb_table=u(ks[0], (vocab, hidden)),              # BERT substitute
        w_trans=u(ks[1], (hz, hidden)), b_trans=u(ks[2], (hz,)),
        w_ih_f=u(ks[3], (4 * hz, hz)), w_hh_f=u(ks[4], (4 * hz, hz)),
        b_ih_f=u(ks[5], (4 * hz,)),    b_hh_f=u(ks[6], (4 * hz,)),
        w_ih_b=u(ks[7], (4 * hz, hz)), w_hh_b=u(ks[8], (4 * hz, hz)),
        b_ih_b=u(ks[9], (4 * hz,)),    b_hh_b=u(ks[10], (4 * hz,)),
        w_hw=u(ks[11], (2 * hz, 2 * hz)), b_hw=u(ks[12], (2 * hz,)),
        w_lin=u(ks[13], (n_chars, 2 * hz)), b_lin=u(ks[14], (n_chars,)),
    )


def generator_forward(seq, params, noise_key):
    B, T = seq.shape
    hidden = params['emb_table'].shape[1]
    hz = params['w_trans'].shape[0]
    n_chars = params['w_lin'].shape[0]

    LANE = 128
    H = _round_up(hz, LANE)
    NC = _round_up(n_chars, LANE)
    HD = _round_up(hidden, LANE)
    BB = min(128, _round_up(B, 16))           # bf16 min sublane tile; fill MXU rows
    Bp = _round_up(B, BB)

    f32, bf16 = jnp.float32, jnp.bfloat16

    # ---- BERT substitute: embedding lookup; pad batch/hidden; time-major ----
    emb = params['emb_table'][seq]                                   # (B,T,hidden)
    emb = jnp.pad(emb, ((0, Bp - B), (0, 0), (0, HD - hidden)))
    emb_tm = jnp.transpose(emb, (1, 0, 2)).astype(bf16)              # (T,Bp,HD)

    # ---- weight packing: PyTorch (out,in) -> (in,out), zero-padded to 128 ----
    def pack_gates(w):            # (4hz, hz) -> (H, 4H) f32, gate order i,f,g,o
        wt = jnp.transpose(w).reshape(hz, 4, hz)
        out = jnp.zeros((H, 4, H), f32).at[:hz, :, :hz].set(wt)
        return out.reshape(H, 4 * H)

    def pack_gate_bias(b):        # (4hz,) -> (1, 4H) f32
        out = jnp.zeros((4, H), f32).at[:, :hz].set(b.reshape(4, hz))
        return out.reshape(1, 4 * H)

    w_trans = jnp.zeros((HD, H), f32).at[:hidden, :hz].set(
        jnp.transpose(params['w_trans']))
    b_trans = jnp.zeros((1, H), f32).at[0, :hz].set(params['b_trans'])

    wcat = jnp.concatenate(
        [pack_gates(params['w_ih_f']), pack_gates(params['w_ih_b'])], axis=1)
    b_all = jnp.concatenate(
        [pack_gate_bias(params['b_ih_f'] + params['b_hh_f']),
         pack_gate_bias(params['b_ih_b'] + params['b_hh_b'])], axis=1)

    # fold the `trans` linear into the input projection (f32 product, bf16 cast)
    w_comb = jnp.dot(w_trans, wcat).astype(bf16)                      # (HD, 8H)
    b_comb = jnp.dot(b_trans, wcat) + b_all                           # (1, 8H) f32

    whh_f = pack_gates(params['w_hh_f']).astype(bf16)
    whh_b = pack_gates(params['w_hh_b']).astype(bf16)

    w_hw4 = jnp.transpose(params['w_hw']).reshape(2, hz, 2, hz)
    w_hw = jnp.zeros((2, H, 2, H), f32).at[:, :hz, :, :hz].set(
        w_hw4).reshape(2 * H, 2 * H).astype(bf16)
    b_hw = jnp.zeros((2, H), f32).at[:, :hz].set(
        params['b_hw'].reshape(2, hz)).reshape(1, 2 * H)

    w_lin3 = jnp.transpose(params['w_lin']).reshape(2, hz, n_chars)
    w_lin = jnp.zeros((2, H, NC), f32).at[:, :hz, :n_chars].set(
        w_lin3).reshape(2 * H, NC).astype(bf16)
    # padded logit lanes get a large negative bias -> exp() == 0 in the softmax
    b_lin = jnp.full((1, NC), -1e9, f32).at[0, :n_chars].set(params['b_lin'])

    # host-generated gumbel noise, time-major to match the output block layout
    gumbel = jax.random.gumbel(noise_key, (T, Bp, NC), f32)

    wspec = lambda shape: pl.BlockSpec(shape, lambda b: (0,) * len(shape))

    grid_spec = pltpu.PrefetchScalarGridSpec(
        num_scalar_prefetch=0,
        grid=(Bp // BB,),
        in_specs=[
            pl.BlockSpec((T, BB, HD), lambda b: (0, b, 0)),      # emb (time-major)
            wspec((HD, 8 * H)), wspec((1, 8 * H)),               # fused [trans|Wih] W, b
            wspec((H, 4 * H)), wspec((H, 4 * H)),                # Whh fwd, bwd
            wspec((2 * H, 2 * H)), wspec((1, 2 * H)),            # highway W, b
            wspec((2 * H, NC)), wspec((1, NC)),                  # lin W, b
            pl.BlockSpec((T, BB, NC), lambda b: (0, b, 0)),      # gumbel noise
        ],
        out_specs=pl.BlockSpec((T, BB, NC), lambda b: (0, b, 0)),
        scratch_shapes=[
            pltpu.VMEM((T, BB, 8 * H), bf16),   # hoisted input projection
            pltpu.VMEM((T, BB, 2 * H), f32),    # fused fwd|bwd LSTM outputs
        ],
    )

    pred_tm = pl.pallas_call(
        generator_kernel,
        out_shape=jax.ShapeDtypeStruct((T, Bp, NC), f32),
        grid_spec=grid_spec,
        compiler_params=pltpu.CompilerParams(
            dimension_semantics=("parallel",),
            vmem_limit_bytes=48 * 1024 * 1024),
    )(emb_tm, w_comb, b_comb, whh_f, whh_b, w_hw, b_hw, w_lin, b_lin, gumbel)

    # back to PyTorch row ordering: (B*T, n_chars), batch-major, padding sliced
    pred = jnp.transpose(pred_tm, (1, 0, 2))[:B, :, :n_chars]
    return pred.reshape(B * T, n_chars)


if __name__ == "__main__":
    # small, module-consistent shapes
    B, T = 2, 8          # batch_size, train_len
    hidden = 32          # BERT hidden
    hz = 32              # GAN hidden_size
    vocab = 32           # n_chars

    key = jax.random.PRNGKey(0)
    pkey, skey, nkey = jax.random.split(key, 3)
    params = init_params(pkey, vocab, hidden, hz, vocab)
    seq = jax.random.randint(skey, (B, T), 0, vocab, dtype=jnp.int32)

    pred = generator_forward(seq, params, nkey)
    pred = jax.block_until_ready(pred)

    assert pred.shape == (B * T, vocab)
    assert bool(jnp.all(jnp.isfinite(pred)))
    assert bool(jnp.all(pred >= 0.0))
    # rows of a softmax sum to 1
    assert bool(jnp.all(jnp.abs(jnp.sum(pred, axis=-1) - 1.0) < 1e-3))
    print("KERNEL_OK")
</pallas_src>

<mosaic_0001>
module attributes {stable_mosaic.version = 11 : i64} {
  func.func @generator_kernel(%arg0: i32, %arg1: memref<8x16x128xbf16, #tpu.memory_space<vmem>>, %arg2: memref<128x1024xbf16, #tpu.memory_space<vmem>>, %arg3: memref<1x1024xf32, #tpu.memory_space<vmem>>, %arg4: memref<128x512xbf16, #tpu.memory_space<vmem>>, %arg5: memref<128x512xbf16, #tpu.memory_space<vmem>>, %arg6: memref<256x256xbf16, #tpu.memory_space<vmem>>, %arg7: memref<1x256xf32, #tpu.memory_space<vmem>>, %arg8: memref<256x128xbf16, #tpu.memory_space<vmem>>, %arg9: memref<1x128xf32, #tpu.memory_space<vmem>>, %arg10: memref<8x16x128xf32, #tpu.memory_space<vmem>>, %arg11: memref<8x16x128xf32, #tpu.memory_space<vmem>>, %arg12: memref<8x16x1024xbf16, #tpu.memory_space<vmem>>, %arg13: memref<8x16x256xf32, #tpu.memory_space<vmem>>) attributes {dimension_semantics = [#tpu.dimension_semantics<parallel>], iteration_bounds = array<i64: 1>, scalar_prefetch = 0 : i64, scratch_operands = 2 : i64, tpu.core_type = #tpu.core_type<tc>, window_params = [{transform_indices = @transform_0, window_bounds = array<i64: 8, 16, 128>}, {pipeline_mode = #tpu.pipeline_mode<synchronous>, transform_indices = @transform_1, window_bounds = array<i64: 128, 1024>}, {pipeline_mode = #tpu.pipeline_mode<synchronous>, transform_indices = @transform_2, window_bounds = array<i64: 1, 1024>}, {pipeline_mode = #tpu.pipeline_mode<synchronous>, transform_indices = @transform_3, window_bounds = array<i64: 128, 512>}, {pipeline_mode = #tpu.pipeline_mode<synchronous>, transform_indices = @transform_4, window_bounds = array<i64: 128, 512>}, {pipeline_mode = #tpu.pipeline_mode<synchronous>, transform_indices = @transform_5, window_bounds = array<i64: 256, 256>}, {pipeline_mode = #tpu.pipeline_mode<synchronous>, transform_indices = @transform_6, window_bounds = array<i64: 1, 256>}, {pipeline_mode = #tpu.pipeline_mode<synchronous>, transform_indices = @transform_7, window_bounds = array<i64: 256, 128>}, {pipeline_mode = #tpu.pipeline_mode<synchronous>, transform_indices = @transform_8, window_bounds = array<i64: 1, 128>}, {transform_indices = @transform_9, window_bounds = array<i64: 8, 16, 128>}, {transform_indices = @transform_10, window_bounds = array<i64: 8, 16, 128>}]} {
    %c0 = arith.constant 0 : index
    %c0_0 = arith.constant 0 : index
    %c0_1 = arith.constant 0 : index
    %0 = vector.load %arg1[%c0, %c0_0, %c0_1] : memref<8x16x128xbf16, #tpu.memory_space<vmem>>, vector<8x16x128xbf16>
    %1 = vector.shape_cast %0 : vector<8x16x128xbf16> to vector<128x128xbf16>
    %c0_2 = arith.constant 0 : index
    %c0_3 = arith.constant 0 : index
    %2 = vector.load %arg2[%c0_2, %c0_3] : memref<128x1024xbf16, #tpu.memory_space<vmem>>, vector<128x1024xbf16>
    %cst = arith.constant dense<0.000000e+00> : vector<128x1024xf32>
    %3 = tpu.matmul %1, %2, %cst {dimension_numbers = #tpu.dot_dimension_numbers<[1], [0], [0], [1], [0, 0, 1, 1], [], []>} : vector<128x128xbf16>, vector<128x1024xbf16>, vector<128x1024xf32> -> vector<128x1024xf32>
    %c0_4 = arith.constant 0 : index
    %c0_5 = arith.constant 0 : index
    %4 = vector.load %arg3[%c0_4, %c0_5] : memref<1x1024xf32, #tpu.memory_space<vmem>>, vector<1x1024xf32>
    %5 = vector.broadcast %4 : vector<1x1024xf32> to vector<128x1024xf32>
    %6 = arith.addf %3, %5 : vector<128x1024xf32>
    %7 = arith.truncf %6 : vector<128x1024xf32> to vector<128x1024xbf16>
    %8 = vector.shape_cast %7 : vector<128x1024xbf16> to vector<8x16x1024xbf16>
    %c0_6 = arith.constant 0 : index
    %c0_7 = arith.constant 0 : index
    %c0_8 = arith.constant 0 : index
    %9 = vector.load %arg12[%c0_6, %c0_7, %c0_8] : memref<8x16x1024xbf16, #tpu.memory_space<vmem>>, vector<8x16x1024xbf16>
    tpu.vector_store %arg12[%c0_6, %c0_7, %c0_8], %8 {strides = array<i32>} : memref<8x16x1024xbf16, #tpu.memory_space<vmem>>, vector<8x16x1024xbf16>,
    %cst_9 = arith.constant 0.000000e+00 : f32
    %10 = vector.broadcast %cst_9 : f32 to vector<16x128xf32>
    %c0_i32 = arith.constant 0 : i32
    %c7_i32 = arith.constant 7 : i32
    %11 = arith.subi %c7_i32, %c0_i32 : i32
    %12 = arith.index_cast %c0_i32 : i32 to index
    %c0_10 = arith.constant 0 : index
    %c0_11 = arith.constant 0 : index
    %13 = vector.load %arg12[%12, %c0_10, %c0_11] : memref<8x16x1024xbf16, #tpu.memory_space<vmem>>, vector<1x16x1024xbf16>
    %14 = vector.shape_cast %13 : vector<1x16x1024xbf16> to vector<16x1024xbf16>
    %15 = arith.index_cast %11 : i32 to index
    %c0_12 = arith.constant 0 : index
    %c0_13 = arith.constant 0 : index
    %16 = vector.load %arg12[%15, %c0_12, %c0_13] : memref<8x16x1024xbf16, #tpu.memory_space<vmem>>, vector<1x16x1024xbf16>
    %17 = vector.shape_cast %16 : vector<1x16x1024xbf16> to vector<16x1024xbf16>
    %18 = vector.extract_strided_slice %14 {offsets = [0, 0], sizes = [16, 512], strides = [1, 1]} : vector<16x1024xbf16> to vector<16x512xbf16>
    %19 = arith.extf %18 : vector<16x512xbf16> to vector<16x512xf32>
    %20 = arith.truncf %10 : vector<16x128xf32> to vector<16x128xbf16>
    %c0_14 = arith.constant 0 : index
    %c0_15 = arith.constant 0 : index
    %21 = vector.load %arg4[%c0_14, %c0_15] : memref<128x512xbf16, #tpu.memory_space<vmem>>, vector<128x512xbf16>
    %cst_16 = arith.constant dense<0.000000e+00> : vector<16x512xf32>
    %22 = tpu.matmul %20, %21, %cst_16 {dimension_numbers = #tpu.dot_dimension_numbers<[1], [0], [0], [1], [0, 0, 1, 1], [], []>} : vector<16x128xbf16>, vector<128x512xbf16>, vector<16x512xf32> -> vector<16x512xf32>
    %23 = arith.addf %19, %22 : vector<16x512xf32>
    %24 = vector.extract_strided_slice %23 {offsets = [0, 0], sizes = [16, 128], strides = [1, 1]} : vector<16x512xf32> to vector<16x128xf32>
    %25 = arith.negf %24 : vector<16x128xf32>
    %26 = math.exp %25 : vector<16x128xf32>
    %cst_17 = arith.constant 1.000000e+00 : f32
    %27 = vector.broadcast %cst_17 : f32 to vector<16x128xf32>
    %28 = arith.addf %27, %26 : vector<16x128xf32>
    %29 = arith.divf %27, %28 : vector<16x128xf32>
    %30 = vector.extract_strided_slice %23 {offsets = [0, 128], sizes = [16, 128], strides = [1, 1]} : vector<16x512xf32> to vector<16x128xf32>
    %31 = arith.negf %30 : vector<16x128xf32>
    %32 = math.exp %31 : vector<16x128xf32>
    %cst_18 = arith.constant 1.000000e+00 : f32
    %33 = vector.broadcast %cst_18 : f32 to vector<16x128xf32>
    %34 = arith.addf %33, %32 : vector<16x128xf32>
    %35 = arith.divf %33, %34 : vector<16x128xf32>
    %36 = vector.extract_strided_slice %23 {offsets = [0, 256], sizes = [16, 128], strides = [1, 1]} : vector<16x512xf32> to vector<16x128xf32>
    %37 = math.tanh %36 : vector<16x128xf32>
    %38 = vector.extract_strided_slice %23 {offsets = [0, 384], sizes = [16, 128], strides = [1, 1]} : vector<16x512xf32> to vector<16x128xf32>
    %39 = arith.negf %38 : vector<16x128xf32>
    %40 = math.exp %39 : vector<16x128xf32>
    %cst_19 = arith.constant 1.000000e+00 : f32
    %41 = vector.broadcast %cst_19 : f32 to vector<16x128xf32>
    %42 = arith.addf %41, %40 : vector<16x128xf32>
    %43 = arith.divf %41, %42 : vector<16x128xf32>
    %44 = arith.mulf %35, %10 : vector<16x128xf32>
    %45 = arith.mulf %29, %37 : vector<16x128xf32>
    %46 = arith.addf %44, %45 : vector<16x128xf32>
    %47 = math.tanh %46 : vector<16x128xf32>
    %48 = arith.mulf %43, %47 : vector<16x128xf32>
    %49 = vector.extract_strided_slice %17 {offsets = [0, 512], sizes = [16, 512], strides = [1, 1]} : vector<16x1024xbf16> to vector<16x512xbf16>
    %50 = arith.extf %49 : vector<16x512xbf16> to vector<16x512xf32>
    %51 = arith.truncf %10 : vector<16x128xf32> to vector<16x128xbf16>
    %c0_20 = arith.constant 0 : index
    %c0_21 = arith.constant 0 : index
    %52 = vector.load %arg5[%c0_20, %c0_21] : memref<128x512xbf16, #tpu.memory_space<vmem>>, vector<128x512xbf16>
    %cst_22 = arith.constant dense<0.000000e+00> : vector<16x512xf32>
    %53 = tpu.matmul %51, %52, %cst_22 {dimension_numbers = #tpu.dot_dimension_numbers<[1], [0], [0], [1], [0, 0, 1, 1], [], []>} : vector<16x128xbf16>, vector<128x512xbf16>, vector<16x512xf32> -> vector<16x512xf32>
    %54 = arith.addf %50, %53 : vector<16x512xf32>
    %55 = vector.extract_strided_slice %54 {offsets = [0, 0], sizes = [16, 128], strides = [1, 1]} : vector<16x512xf32> to vector<16x128xf32>
    %56 = arith.negf %55 : vector<16x128xf32>
    %57 = math.exp %56 : vector<16x128xf32>
    %cst_23 = arith.constant 1.000000e+00 : f32
    %58 = vector.broadcast %cst_23 : f32 to vector<16x128xf32>
    %59 = arith.addf %58, %57 : vector<16x128xf32>
    %60 = arith.divf %58, %59 : vector<16x128xf32>
    %61 = vector.extract_strided_slice %54 {offsets = [0, 128], sizes = [16, 128], strides = [1, 1]} : vector<16x512xf32> to vector<16x128xf32>
    %62 = arith.negf %61 : vector<16x128xf32>
    %63 = math.exp %62 : vector<16x128xf32>
    %cst_24 = arith.constant 1.000000e+00 : f32
    %64 = vector.broadcast %cst_24 : f32 to vector<16x128xf32>
    %65 = arith.addf %64, %63 : vector<16x128xf32>
    %66 = arith.divf %64, %65 : vector<16x128xf32>
    %67 = vector.extract_strided_slice %54 {offsets = [0, 256], sizes = [16, 128], strides = [1, 1]} : vector<16x512xf32> to vector<16x128xf32>
    %68 = math.tanh %67 : vector<16x128xf32>
    %69 = vector.extract_strided_slice %54 {offsets = [0, 384], sizes = [16, 128], strides = [1, 1]} : vector<16x512xf32> to vector<16x128xf32>
    %70 = arith.negf %69 : vector<16x128xf32>
    %71 = math.exp %70 : vector<16x128xf32>
    %cst_25 = arith.constant 1.000000e+00 : f32
    %72 = vector.broadcast %cst_25 : f32 to vector<16x128xf32>
    %73 = arith.addf %72, %71 : vector<16x128xf32>
    %74 = arith.divf %72, %73 : vector<16x128xf32>
    %75 = arith.mulf %66, %10 : vector<16x128xf32>
    %76 = arith.mulf %60, %68 : vector<16x128xf32>
    %77 = arith.addf %75, %76 : vector<16x128xf32>
    %78 = math.tanh %77 : vector<16x128xf32>
    %79 = arith.mulf %74, %78 : vector<16x128xf32>
    %80 = arith.index_cast %c0_i32 : i32 to index
    %c0_26 = arith.constant 0 : index
    %c0_27 = arith.constant 0 : index
    %81 = vector.load %arg13[%80, %c0_26, %c0_27] : memref<8x16x256xf32, #tpu.memory_space<vmem>>, vector<1x16x128xf32>
    %82 = vector.shape_cast %81 : vector<1x16x128xf32> to vector<16x128xf32>
    %83 = vector.shape_cast %48 : vector<16x128xf32> to vector<1x16x128xf32>
    tpu.vector_store %arg13[%80, %c0_26, %c0_27], %83 {strides = array<i32>} : memref<8x16x256xf32, #tpu.memory_space<vmem>>, vector<1x16x128xf32>,
    %84 = arith.index_cast %11 : i32 to index
    %c0_28 = arith.constant 0 : index
    %c128 = arith.constant 128 : index
    %85 = vector.load %arg13[%84, %c0_28, %c128] : memref<8x16x256xf32, #tpu.memory_space<vmem>>, vector<1x16x128xf32>
    %86 = vector.shape_cast %85 : vector<1x16x128xf32> to vector<16x128xf32>
    %87 = vector.shape_cast %79 : vector<16x128xf32> to vector<1x16x128xf32>
    tpu.vector_store %arg13[%84, %c0_28, %c128], %87 {strides = array<i32>} : memref<8x16x256xf32, #tpu.memory_space<vmem>>, vector<1x16x128xf32>,
    %c1_i32 = arith.constant 1 : i32
    %c7_i32_29 = arith.constant 7 : i32
    %88 = arith.subi %c7_i32_29, %c1_i32 : i32
    %89 = arith.index_cast %c1_i32 : i32 to index
    %c0_30 = arith.constant 0 : index
    %c0_31 = arith.constant 0 : index
    %90 = vector.load %arg12[%89, %c0_30, %c0_31] : memref<8x16x1024xbf16, #tpu.memory_space<vmem>>, vector<1x16x1024xbf16>
    %91 = vector.shape_cast %90 : vector<1x16x1024xbf16> to vector<16x1024xbf16>
    %92 = arith.index_cast %88 : i32 to index
    %c0_32 = arith.constant 0 : index
    %c0_33 = arith.constant 0 : index
    %93 = vector.load %arg12[%92, %c0_32, %c0_33] : memref<8x16x1024xbf16, #tpu.memory_space<vmem>>, vector<1x16x1024xbf16>
    %94 = vector.shape_cast %93 : vector<1x16x1024xbf16> to vector<16x1024xbf16>
    %95 = vector.extract_strided_slice %91 {offsets = [0, 0], sizes = [16, 512], strides = [1, 1]} : vector<16x1024xbf16> to vector<16x512xbf16>
    %96 = arith.extf %95 : vector<16x512xbf16> to vector<16x512xf32>
    %97 = arith.truncf %48 : vector<16x128xf32> to vector<16x128xbf16>
    %c0_34 = arith.constant 0 : index
    %c0_35 = arith.constant 0 : index
    %98 = vector.load %arg4[%c0_34, %c0_35] : memref<128x512xbf16, #tpu.memory_space<vmem>>, vector<128x512xbf16>
    %cst_36 = arith.constant dense<0.000000e+00> : vector<16x512xf32>
    %99 = tpu.matmul %97, %98, %cst_36 {dimension_numbers = #tpu.dot_dimension_numbers<[1], [0], [0], [1], [0, 0, 1, 1], [], []>} : vector<16x128xbf16>, vector<128x512xbf16>, vector<16x512xf32> -> vector<16x512xf32>
    %100 = arith.addf %96, %99 : vector<16x512xf32>
    %101 = vector.extract_strided_slice %100 {offsets = [0, 0], sizes = [16, 128], strides = [1, 1]} : vector<16x512xf32> to vector<16x128xf32>
    %102 = arith.negf %101 : vector<16x128xf32>
    %103 = math.exp %102 : vector<16x128xf32>
    %cst_37 = arith.constant 1.000000e+00 : f32
    %104 = vector.broadcast %cst_37 : f32 to vector<16x128xf32>
    %105 = arith.addf %104, %103 : vector<16x128xf32>
    %106 = arith.divf %104, %105 : vector<16x128xf32>
    %107 = vector.extract_strided_slice %100 {offsets = [0, 128], sizes = [16, 128], strides = [1, 1]} : vector<16x512xf32> to vector<16x128xf32>
    %108 = arith.negf %107 : vector<16x128xf32>
    %109 = math.exp %108 : vector<16x128xf32>
    %cst_38 = arith.constant 1.000000e+00 : f32
    %110 = vector.broadcast %cst_38 : f32 to vector<16x128xf32>
    %111 = arith.addf %110, %109 : vector<16x128xf32>
    %112 = arith.divf %110, %111 : vector<16x128xf32>
    %113 = vector.extract_strided_slice %100 {offsets = [0, 256], sizes = [16, 128], strides = [1, 1]} : vector<16x512xf32> to vector<16x128xf32>
    %114 = math.tanh %113 : vector<16x128xf32>
    %115 = vector.extract_strided_slice %100 {offsets = [0, 384], sizes = [16, 128], strides = [1, 1]} : vector<16x512xf32> to vector<16x128xf32>
    %116 = arith.negf %115 : vector<16x128xf32>
    %117 = math.exp %116 : vector<16x128xf32>
    %cst_39 = arith.constant 1.000000e+00 : f32
    %118 = vector.broadcast %cst_39 : f32 to vector<16x128xf32>
    %119 = arith.addf %118, %117 : vector<16x128xf32>
    %120 = arith.divf %118, %119 : vector<16x128xf32>
    %121 = arith.mulf %112, %46 : vector<16x128xf32>
    %122 = arith.mulf %106, %114 : vector<16x128xf32>
    %123 = arith.addf %121, %122 : vector<16x128xf32>
    %124 = math.tanh %123 : vector<16x128xf32>
    %125 = arith.mulf %120, %124 : vector<16x128xf32>
    %126 = vector.extract_strided_slice %94 {offsets = [0, 512], sizes = [16, 512], strides = [1, 1]} : vector<16x1024xbf16> to vector<16x512xbf16>
    %127 = arith.extf %126 : vector<16x512xbf16> to vector<16x512xf32>
    %128 = arith.truncf %79 : vector<16x128xf32> to vector<16x128xbf16>
    %c0_40 = arith.constant 0 : index
    %c0_41 = arith.constant 0 : index
    %129 = vector.load %arg5[%c0_40, %c0_41] : memref<128x512xbf16, #tpu.memory_space<vmem>>, vector<128x512xbf16>
    %cst_42 = arith.constant dense<0.000000e+00> : vector<16x512xf32>
    %130 = tpu.matmul %128, %129, %cst_42 {dimension_numbers = #tpu.dot_dimension_numbers<[1], [0], [0], [1], [0, 0, 1, 1], [], []>} : vector<16x128xbf16>, vector<128x512xbf16>, vector<16x512xf32> -> vector<16x512xf32>
    %131 = arith.addf %127, %130 : vector<16x512xf32>
    %132 = vector.extract_strided_slice %131 {offsets = [0, 0], sizes = [16, 128], strides = [1, 1]} : vector<16x512xf32> to vector<16x128xf32>
    %133 = arith.negf %132 : vector<16x128xf32>
    %134 = math.exp %133 : vector<16x128xf32>
    %cst_43 = arith.constant 1.000000e+00 : f32
    %135 = vector.broadcast %cst_43 : f32 to vector<16x128xf32>
    %136 = arith.addf %135, %134 : vector<16x128xf32>
    %137 = arith.divf %135, %136 : vector<16x128xf32>
    %138 = vector.extract_strided_slice %131 {offsets = [0, 128], sizes = [16, 128], strides = [1, 1]} : vector<16x512xf32> to vector<16x128xf32>
    %139 = arith.negf %138 : vector<16x128xf32>
    %140 = math.exp %139 : vector<16x128xf32>
    %cst_44 = arith.constant 1.000000e+00 : f32
    %141 = vector.broadcast %cst_44 : f32 to vector<16x128xf32>
    %142 = arith.addf %141, %140 : vector<16x128xf32>
    %143 = arith.divf %141, %142 : vector<16x128xf32>
    %144 = vector.extract_strided_slice %131 {offsets = [0, 256], sizes = [16, 128], strides = [1, 1]} : vector<16x512xf32> to vector<16x128xf32>
    %145 = math.tanh %144 : vector<16x128xf32>
    %146 = vector.extract_strided_slice %131 {offsets = [0, 384], sizes = [16, 128], strides = [1, 1]} : vector<16x512xf32> to vector<16x128xf32>
    %147 = arith.negf %146 : vector<16x128xf32>
    %148 = math.exp %147 : vector<16x128xf32>
    %cst_45 = arith.constant 1.000000e+00 : f32
    %149 = vector.broadcast %cst_45 : f32 to vector<16x128xf32>
    %150 = arith.addf %149, %148 : vector<16x128xf32>
    %151 = arith.divf %149, %150 : vector<16x128xf32>
    %152 = arith.mulf %143, %77 : vector<16x128xf32>
    %153 = arith.mulf %137, %145 : vector<16x128xf32>
    %154 = arith.addf %152, %153 : vector<16x128xf32>
    %155 = math.tanh %154 : vector<16x128xf32>
    %156 = arith.mulf %151, %155 : vector<16x128xf32>
    %157 = arith.index_cast %c1_i32 : i32 to index
    %c0_46 = arith.constant 0 : index
    %c0_47 = arith.constant 0 : index
    %158 = vector.load %arg13[%157, %c0_46, %c0_47] : memref<8x16x256xf32, #tpu.memory_space<vmem>>, vector<1x16x128xf32>
    %159 = vector.shape_cast %158 : vector<1x16x128xf32> to vector<16x128xf32>
    %160 = vector.shape_cast %125 : vector<16x128xf32> to vector<1x16x128xf32>
    tpu.vector_store %arg13[%157, %c0_46, %c0_47], %160 {strides = array<i32>} : memref<8x16x256xf32, #tpu.memory_space<vmem>>, vector<1x16x128xf32>,
    %161 = arith.index_cast %88 : i32 to index
    %c0_48 = arith.constant 0 : index
    %c128_49 = arith.constant 128 : index
    %162 = vector.load %arg13[%161, %c0_48, %c128_49] : memref<8x16x256xf32, #tpu.memory_space<vmem>>, vector<1x16x128xf32>
    %163 = vector.shape_cast %162 : vector<1x16x128xf32> to vector<16x128xf32>
    %164 = vector.shape_cast %156 : vector<16x128xf32> to vector<1x16x128xf32>
    tpu.vector_store %arg13[%161, %c0_48, %c128_49], %164 {strides = array<i32>} : memref<8x16x256xf32, #tpu.memory_space<vmem>>, vector<1x16x128xf32>,
    %c2_i32 = arith.constant 2 : i32
    %c7_i32_50 = arith.constant 7 : i32
    %165 = arith.subi %c7_i32_50, %c2_i32 : i32
    %166 = arith.index_cast %c2_i32 : i32 to index
    %c0_51 = arith.constant 0 : index
    %c0_52 = arith.constant 0 : index
    %167 = vector.load %arg12[%166, %c0_51, %c0_52] : memref<8x16x1024xbf16, #tpu.memory_space<vmem>>, vector<1x16x1024xbf16>
    %168 = vector.shape_cast %167 : vector<1x16x1024xbf16> to vector<16x1024xbf16>
    %169 = arith.index_cast %165 : i32 to index
    %c0_53 = arith.constant 0 : index
    %c0_54 = arith.constant 0 : index
    %170 = vector.load %arg12[%169, %c0_53, %c0_54] : memref<8x16x1024xbf16, #tpu.memory_space<vmem>>, vector<1x16x1024xbf16>
    %171 = vector.shape_cast %170 : vector<1x16x1024xbf16> to vector<16x1024xbf16>
    %172 = vector.extract_strided_slice %168 {offsets = [0, 0], sizes = [16, 512], strides = [1, 1]} : vector<16x1024xbf16> to vector<16x512xbf16>
    %173 = arith.extf %172 : vector<16x512xbf16> to vector<16x512xf32>
    %174 = arith.truncf %125 : vector<16x128xf32> to vector<16x128xbf16>
    %c0_55 = arith.constant 0 : index
    %c0_56 = arith.constant 0 : index
    %175 = vector.load %arg4[%c0_55, %c0_56] : memref<128x512xbf16, #tpu.memory_space<vmem>>, vector<128x512xbf16>
    %cst_57 = arith.constant dense<0.000000e+00> : vector<16x512xf32>
    %176 = tpu.matmul %174, %175, %cst_57 {dimension_numbers = #tpu.dot_dimension_numbers<[1], [0], [0], [1], [0, 0, 1, 1], [], []>} : vector<16x128xbf16>, vector<128x512xbf16>, vector<16x512xf32> -> vector<16x512xf32>
    %177 = arith.addf %173, %176 : vector<16x512xf32>
    %178 = vector.extract_strided_slice %177 {offsets = [0, 0], sizes = [16, 128], strides = [1, 1]} : vector<16x512xf32> to vector<16x128xf32>
    %179 = arith.negf %178 : vector<16x128xf32>
    %180 = math.exp %179 : vector<16x128xf32>
    %cst_58 = arith.constant 1.000000e+00 : f32
    %181 = vector.broadcast %cst_58 : f32 to vector<16x128xf32>
    %182 = arith.addf %181, %180 : vector<16x128xf32>
    %183 = arith.divf %181, %182 : vector<16x128xf32>
    %184 = vector.extract_strided_slice %177 {offsets = [0, 128], sizes = [16, 128], strides = [1, 1]} : vector<16x512xf32> to vector<16x128xf32>
    %185 = arith.negf %184 : vector<16x128xf32>
    %186 = math.exp %185 : vector<16x128xf32>
    %cst_59 = arith.constant 1.000000e+00 : f32
    %187 = vector.broadcast %cst_59 : f32 to vector<16x128xf32>
    %188 = arith.addf %187, %186 : vector<16x128xf32>
    %189 = arith.divf %187, %188 : vector<16x128xf32>
    %190 = vector.extract_strided_slice %177 {offsets = [0, 256], sizes = [16, 128], strides = [1, 1]} : vector<16x512xf32> to vector<16x128xf32>
    %191 = math.tanh %190 : vector<16x128xf32>
    %192 = vector.extract_strided_slice %177 {offsets = [0, 384], sizes = [16, 128], strides = [1, 1]} : vector<16x512xf32> to vector<16x128xf32>
    %193 = arith.negf %192 : vector<16x128xf32>
    %194 = math.exp %193 : vector<16x128xf32>
    %cst_60 = arith.constant 1.000000e+00 : f32
    %195 = vector.broadcast %cst_60 : f32 to vector<16x128xf32>
    %196 = arith.addf %195, %194 : vector<16x128xf32>
    %197 = arith.divf %195, %196 : vector<16x128xf32>
    %198 = arith.mulf %189, %123 : vector<16x128xf32>
    %199 = arith.mulf %183, %191 : vector<16x128xf32>
    %200 = arith.addf %198, %199 : vector<16x128xf32>
    %201 = math.tanh %200 : vector<16x128xf32>
    %202 = arith.mulf %197, %201 : vector<16x128xf32>
    %203 = vector.extract_strided_slice %171 {offsets = [0, 512], sizes = [16, 512], strides = [1, 1]} : vector<16x1024xbf16> to vector<16x512xbf16>
    %204 = arith.extf %203 : vector<16x512xbf16> to vector<16x512xf32>
    %205 = arith.truncf %156 : vector<16x128xf32> to vector<16x128xbf16>
    %c0_61 = arith.constant 0 : index
    %c0_62 = arith.constant 0 : index
    %206 = vector.load %arg5[%c0_61, %c0_62] : memref<128x512xbf16, #tpu.memory_space<vmem>>, vector<128x512xbf16>
    %cst_63 = arith.constant dense<0.000000e+00> : vector<16x512xf32>
    %207 = tpu.matmul %205, %206, %cst_63 {dimension_numbers = #tpu.dot_dimension_numbers<[1], [0], [0], [1], [0, 0, 1, 1], [], []>} : vector<16x128xbf16>, vector<128x512xbf16>, vector<16x512xf32> -> vector<16x512xf32>
    %208 = arith.addf %204, %207 : vector<16x512xf32>
    %209 = vector.extract_strided_slice %208 {offsets = [0, 0], sizes = [16, 128], strides = [1, 1]} : vector<16x512xf32> to vector<16x128xf32>
    %210 = arith.negf %209 : vector<16x128xf32>
    %211 = math.exp %210 : vector<16x128xf32>
    %cst_64 = arith.constant 1.000000e+00 : f32
    %212 = vector.broadcast %cst_64 : f32 to vector<16x128xf32>
    %213 = arith.addf %212, %211 : vector<16x128xf32>
    %214 = arith.divf %212, %213 : vector<16x128xf32>
    %215 = vector.extract_strided_slice %208 {offsets = [0, 128], sizes = [16, 128], strides = [1, 1]} : vector<16x512xf32> to vector<16x128xf32>
    %216 = arith.negf %215 : vector<16x128xf32>
    %217 = math.exp %216 : vector<16x128xf32>
    %cst_65 = arith.constant 1.000000e+00 : f32
    %218 = vector.broadcast %cst_65 : f32 to vector<16x128xf32>
    %219 = arith.addf %218, %217 : vector<16x128xf32>
    %220 = arith.divf %218, %219 : vector<16x128xf32>
    %221 = vector.extract_strided_slice %208 {offsets = [0, 256], sizes = [16, 128], strides = [1, 1]} : vector<16x512xf32> to vector<16x128xf32>
    %222 = math.tanh %221 : vector<16x128xf32>
    %223 = vector.extract_strided_slice %208 {offsets = [0, 384], sizes = [16, 128], strides = [1, 1]} : vector<16x512xf32> to vector<16x128xf32>
    %224 = arith.negf %223 : vector<16x128xf32>
    %225 = math.exp %224 : vector<16x128xf32>
    %cst_66 = arith.constant 1.000000e+00 : f32
    %226 = vector.broadcast %cst_66 : f32 to vector<16x128xf32>
    %227 = arith.addf %226, %225 : vector<16x128xf32>
    %228 = arith.divf %226, %227 : vector<16x128xf32>
    %229 = arith.mulf %220, %154 : vector<16x128xf32>
    %230 = arith.mulf %214, %222 : vector<16x128xf32>
    %231 = arith.addf %229, %230 : vector<16x128xf32>
    %232 = math.tanh %231 : vector<16x128xf32>
    %233 = arith.mulf %228, %232 : vector<16x128xf32>
    %234 = arith.index_cast %c2_i32 : i32 to index
    %c0_67 = arith.constant 0 : index
    %c0_68 = arith.constant 0 : index
    %235 = vector.load %arg13[%234, %c0_67, %c0_68] : memref<8x16x256xf32, #tpu.memory_space<vmem>>, vector<1x16x128xf32>
    %236 = vector.shape_cast %235 : vector<1x16x128xf32> to vector<16x128xf32>
    %237 = vector.shape_cast %202 : vector<16x128xf32> to vector<1x16x128xf32>
    tpu.vector_store %arg13[%234, %c0_67, %c0_68], %237 {strides = array<i32>} : memref<8x16x256xf32, #tpu.memory_space<vmem>>, vector<1x16x128xf32>,
    %238 = arith.index_cast %165 : i32 to index
    %c0_69 = arith.constant 0 : index
    %c128_70 = arith.constant 128 : index
    %239 = vector.load %arg13[%238, %c0_69, %c128_70] : memref<8x16x256xf32, #tpu.memory_space<vmem>>, vector<1x16x128xf32>
    %240 = vector.shape_cast %239 : vector<1x16x128xf32> to vector<16x128xf32>
    %241 = vector.shape_cast %233 : vector<16x128xf32> to vector<1x16x128xf32>
    tpu.vector_store %arg13[%238, %c0_69, %c128_70], %241 {strides = array<i32>} : memref<8x16x256xf32, #tpu.memory_space<vmem>>, vector<1x16x128xf32>,
    %c3_i32 = arith.constant 3 : i32
    %c7_i32_71 = arith.constant 7 : i32
    %242 = arith.subi %c7_i32_71, %c3_i32 : i32
    %243 = arith.index_cast %c3_i32 : i32 to index
    %c0_72 = arith.constant 0 : index
    %c0_73 = arith.constant 0 : index
    %244 = vector.load %arg12[%243, %c0_72, %c0_73] : memref<8x16x1024xbf16, #tpu.memory_space<vmem>>, vector<1x16x1024xbf16>
    %245 = vector.shape_cast %244 : vector<1x16x1024xbf16> to vector<16x1024xbf16>
    %246 = arith.index_cast %242 : i32 to index
    %c0_74 = arith.constant 0 : index
    %c0_75 = arith.constant 0 : index
    %247 = vector.load %arg12[%246, %c0_74, %c0_75] : memref<8x16x1024xbf16, #tpu.memory_space<vmem>>, vector<1x16x1024xbf16>
    %248 = vector.shape_cast %247 : vector<1x16x1024xbf16> to vector<16x1024xbf16>
    %249 = vector.extract_strided_slice %245 {offsets = [0, 0], sizes = [16, 512], strides = [1, 1]} : vector<16x1024xbf16> to vector<16x512xbf16>
    %250 = arith.extf %249 : vector<16x512xbf16> to vector<16x512xf32>
    %251 = arith.truncf %202 : vector<16x128xf32> to vector<16x128xbf16>
    %c0_76 = arith.constant 0 : index
    %c0_77 = arith.constant 0 : index
    %252 = vector.load %arg4[%c0_76, %c0_77] : memref<128x512xbf16, #tpu.memory_space<vmem>>, vector<128x512xbf16>
    %cst_78 = arith.constant dense<0.000000e+00> : vector<16x512xf32>
    %253 = tpu.matmul %251, %252, %cst_78 {dimension_numbers = #tpu.dot_dimension_numbers<[1], [0], [0], [1], [0, 0, 1, 1], [], []>} : vector<16x128xbf16>, vector<128x512xbf16>, vector<16x512xf32> -> vector<16x512xf32>
    %254 = arith.addf %250, %253 : vector<16x512xf32>
    %255 = vector.extract_strided_slice %254 {offsets = [0, 0], sizes = [16, 128], strides = [1, 1]} : vector<16x512xf32> to vector<16x128xf32>
    %256 = arith.negf %255 : vector<16x128xf32>
    %257 = math.exp %256 : vector<16x128xf32>
    %cst_79 = arith.constant 1.000000e+00 : f32
    %258 = vector.broadcast %cst_79 : f32 to vector<16x128xf32>
    %259 = arith.addf %258, %257 : vector<16x128xf32>
    %260 = arith.divf %258, %259 : vector<16x128xf32>
    %261 = vector.extract_strided_slice %254 {offsets = [0, 128], sizes = [16, 128], strides = [1, 1]} : vector<16x512xf32> to vector<16x128xf32>
    %262 = arith.negf %261 : vector<16x128xf32>
    %263 = math.exp %262 : vector<16x128xf32>
    %cst_80 = arith.constant 1.000000e+00 : f32
    %264 = vector.broadcast %cst_80 : f32 to vector<16x128xf32>
    %265 = arith.addf %264, %263 : vector<16x128xf32>
    %266 = arith.divf %264, %265 : vector<16x128xf32>
    %267 = vector.extract_strided_slice %254 {offsets = [0, 256], sizes = [16, 128], strides = [1, 1]} : vector<16x512xf32> to vector<16x128xf32>
    %268 = math.tanh %267 : vector<16x128xf32>
    %269 = vector.extract_strided_slice %254 {offsets = [0, 384], sizes = [16, 128], strides = [1, 1]} : vector<16x512xf32> to vector<16x128xf32>
    %270 = arith.negf %269 : vector<16x128xf32>
    %271 = math.exp %270 : vector<16x128xf32>
    %cst_81 = arith.constant 1.000000e+00 : f32
    %272 = vector.broadcast %cst_81 : f32 to vector<16x128xf32>
    %273 = arith.addf %272, %271 : vector<16x128xf32>
    %274 = arith.divf %272, %273 : vector<16x128xf32>
    %275 = arith.mulf %266, %200 : vector<16x128xf32>
    %276 = arith.mulf %260, %268 : vector<16x128xf32>
    %277 = arith.addf %275, %276 : vector<16x128xf32>
    %278 = math.tanh %277 : vector<16x128xf32>
    %279 = arith.mulf %274, %278 : vector<16x128xf32>
    %280 = vector.extract_strided_slice %248 {offsets = [0, 512], sizes = [16, 512], strides = [1, 1]} : vector<16x1024xbf16> to vector<16x512xbf16>
    %281 = arith.extf %280 : vector<16x512xbf16> to vector<16x512xf32>
    %282 = arith.truncf %233 : vector<16x128xf32> to vector<16x128xbf16>
    %c0_82 = arith.constant 0 : index
    %c0_83 = arith.constant 0 : index
    %283 = vector.load %arg5[%c0_82, %c0_83] : memref<128x512xbf16, #tpu.memory_space<vmem>>, vector<128x512xbf16>
    %cst_84 = arith.constant dense<0.000000e+00> : vector<16x512xf32>
    %284 = tpu.matmul %282, %283, %cst_84 {dimension_numbers = #tpu.dot_dimension_numbers<[1], [0], [0], [1], [0, 0, 1, 1], [], []>} : vector<16x128xbf16>, vector<128x512xbf16>, vector<16x512xf32> -> vector<16x512xf32>
    %285 = arith.addf %281, %284 : vector<16x512xf32>
    %286 = vector.extract_strided_slice %285 {offsets = [0, 0], sizes = [16, 128], strides = [1, 1]} : vector<16x512xf32> to vector<16x128xf32>
    %287 = arith.negf %286 : vector<16x128xf32>
    %288 = math.exp %287 : vector<16x128xf32>
    %cst_85 = arith.constant 1.000000e+00 : f32
    %289 = vector.broadcast %cst_85 : f32 to vector<16x128xf32>
    %290 = arith.addf %289, %288 : vector<16x128xf32>
    %291 = arith.divf %289, %290 : vector<16x128xf32>
    %292 = vector.extract_strided_slice %285 {offsets = [0, 128], sizes = [16, 128], strides = [1, 1]} : vector<16x512xf32> to vector<16x128xf32>
    %293 = arith.negf %292 : vector<16x128xf32>
    %294 = math.exp %293 : vector<16x128xf32>
    %cst_86 = arith.constant 1.000000e+00 : f32
    %295 = vector.broadcast %cst_86 : f32 to vector<16x128xf32>
    %296 = arith.addf %295, %294 : vector<16x128xf32>
    %297 = arith.divf %295, %296 : vector<16x128xf32>
    %298 = vector.extract_strided_slice %285 {offsets = [0, 256], sizes = [16, 128], strides = [1, 1]} : vector<16x512xf32> to vector<16x128xf32>
    %299 = math.tanh %298 : vector<16x128xf32>
    %300 = vector.extract_strided_slice %285 {offsets = [0, 384], sizes = [16, 128], strides = [1, 1]} : vector<16x512xf32> to vector<16x128xf32>
    %301 = arith.negf %300 : vector<16x128xf32>
    %302 = math.exp %301 : vector<16x128xf32>
    %cst_87 = arith.constant 1.000000e+00 : f32
    %303 = vector.broadcast %cst_87 : f32 to vector<16x128xf32>
    %304 = arith.addf %303, %302 : vector<16x128xf32>
    %305 = arith.divf %303, %304 : vector<16x128xf32>
    %306 = arith.mulf %297, %231 : vector<16x128xf32>
    %307 = arith.mulf %291, %299 : vector<16x128xf32>
    %308 = arith.addf %306, %307 : vector<16x128xf32>
    %309 = math.tanh %308 : vector<16x128xf32>
    %310 = arith.mulf %305, %309 : vector<16x128xf32>
    %311 = arith.index_cast %c3_i32 : i32 to index
    %c0_88 = arith.constant 0 : index
    %c0_89 = arith.constant 0 : index
    %312 = vector.load %arg13[%311, %c0_88, %c0_89] : memref<8x16x256xf32, #tpu.memory_space<vmem>>, vector<1x16x128xf32>
    %313 = vector.shape_cast %312 : vector<1x16x128xf32> to vector<16x128xf32>
    %314 = vector.shape_cast %279 : vector<16x128xf32> to vector<1x16x128xf32>
    tpu.vector_store %arg13[%311, %c0_88, %c0_89], %314 {strides = array<i32>} : memref<8x16x256xf32, #tpu.memory_space<vmem>>, vector<1x16x128xf32>,
    %315 = arith.index_cast %242 : i32 to index
    %c0_90 = arith.constant 0 : index
    %c128_91 = arith.constant 128 : index
    %316 = vector.load %arg13[%315, %c0_90, %c128_91] : memref<8x16x256xf32, #tpu.memory_space<vmem>>, vector<1x16x128xf32>
    %317 = vector.shape_cast %316 : vector<1x16x128xf32> to vector<16x128xf32>
    %318 = vector.shape_cast %310 : vector<16x128xf32> to vector<1x16x128xf32>
    tpu.vector_store %arg13[%315, %c0_90, %c128_91], %318 {strides = array<i32>} : memref<8x16x256xf32, #tpu.memory_space<vmem>>, vector<1x16x128xf32>,
    %c4_i32 = arith.constant 4 : i32
    %c7_i32_92 = arith.constant 7 : i32
    %319 = arith.subi %c7_i32_92, %c4_i32 : i32
    %320 = arith.index_cast %c4_i32 : i32 to index
    %c0_93 = arith.constant 0 : index
    %c0_94 = arith.constant 0 : index
    %321 = vector.load %arg12[%320, %c0_93, %c0_94] : memref<8x16x1024xbf16, #tpu.memory_space<vmem>>, vector<1x16x1024xbf16>
    %322 = vector.shape_cast %321 : vector<1x16x1024xbf16> to vector<16x1024xbf16>
    %323 = arith.index_cast %319 : i32 to index
    %c0_95 = arith.constant 0 : index
    %c0_96 = arith.constant 0 : index
    %324 = vector.load %arg12[%323, %c0_95, %c0_96] : memref<8x16x1024xbf16, #tpu.memory_space<vmem>>, vector<1x16x1024xbf16>
    %325 = vector.shape_cast %324 : vector<1x16x1024xbf16> to vector<16x1024xbf16>
    %326 = vector.extract_strided_slice %322 {offsets = [0, 0], sizes = [16, 512], strides = [1, 1]} : vector<16x1024xbf16> to vector<16x512xbf16>
    %327 = arith.extf %326 : vector<16x512xbf16> to vector<16x512xf32>
    %328 = arith.truncf %279 : vector<16x128xf32> to vector<16x128xbf16>
    %c0_97 = arith.constant 0 : index
    %c0_98 = arith.constant 0 : index
    %329 = vector.load %arg4[%c0_97, %c0_98] : memref<128x512xbf16, #tpu.memory_space<vmem>>, vector<128x512xbf16>
    %cst_99 = arith.constant dense<0.000000e+00> : vector<16x512xf32>
    %330 = tpu.matmul %328, %329, %cst_99 {dimension_numbers = #tpu.dot_dimension_numbers<[1], [0], [0], [1], [0, 0, 1, 1], [], []>} : vector<16x128xbf16>, vector<128x512xbf16>, vector<16x512xf32> -> vector<16x512xf32>
    %331 = arith.addf %327, %330 : vector<16x512xf32>
    %332 = vector.extract_strided_slice %331 {offsets = [0, 0], sizes = [16, 128], strides = [1, 1]} : vector<16x512xf32> to vector<16x128xf32>
    %333 = arith.negf %332 : vector<16x128xf32>
    %334 = math.exp %333 : vector<16x128xf32>
    %cst_100 = arith.constant 1.000000e+00 : f32
    %335 = vector.broadcast %cst_100 : f32 to vector<16x128xf32>
    %336 = arith.addf %335, %334 : vector<16x128xf32>
    %337 = arith.divf %335, %336 : vector<16x128xf32>
    %338 = vector.extract_strided_slice %331 {offsets = [0, 128], sizes = [16, 128], strides = [1, 1]} : vector<16x512xf32> to vector<16x128xf32>
    %339 = arith.negf %338 : vector<16x128xf32>
    %340 = math.exp %339 : vector<16x128xf32>
    %cst_101 = arith.constant 1.000000e+00 : f32
    %341 = vector.broadcast %cst_101 : f32 to vector<16x128xf32>
    %342 = arith.addf %341, %340 : vector<16x128xf32>
    %343 = arith.divf %341, %342 : vector<16x128xf32>
    %344 = vector.extract_strided_slice %331 {offsets = [0, 256], sizes = [16, 128], strides = [1, 1]} : vector<16x512xf32> to vector<16x128xf32>
    %345 = math.tanh %344 : vector<16x128xf32>
    %346 = vector.extract_strided_slice %331 {offsets = [0, 384], sizes = [16, 128], strides = [1, 1]} : vector<16x512xf32> to vector<16x128xf32>
    %347 = arith.negf %346 : vector<16x128xf32>
    %348 = math.exp %347 : vector<16x128xf32>
    %cst_102 = arith.constant 1.000000e+00 : f32
    %349 = vector.broadcast %cst_102 : f32 to vector<16x128xf32>
    %350 = arith.addf %349, %348 : vector<16x128xf32>
    %351 = arith.divf %349, %350 : vector<16x128xf32>
    %352 = arith.mulf %343, %277 : vector<16x128xf32>
    %353 = arith.mulf %337, %345 : vector<16x128xf32>
    %354 = arith.addf %352, %353 : vector<16x128xf32>
    %355 = math.tanh %354 : vector<16x128xf32>
    %356 = arith.mulf %351, %355 : vector<16x128xf32>
    %357 = vector.extract_strided_slice %325 {offsets = [0, 512], sizes = [16, 512], strides = [1, 1]} : vector<16x1024xbf16> to vector<16x512xbf16>
    %358 = arith.extf %357 : vector<16x512xbf16> to vector<16x512xf32>
    %359 = arith.truncf %310 : vector<16x128xf32> to vector<16x128xbf16>
    %c0_103 = arith.constant 0 : index
    %c0_104 = arith.constant 0 : index
    %360 = vector.load %arg5[%c0_103, %c0_104] : memref<128x512xbf16, #tpu.memory_space<vmem>>, vector<128x512xbf16>
    %cst_105 = arith.constant dense<0.000000e+00> : vector<16x512xf32>
    %361 = tpu.matmul %359, %360, %cst_105 {dimension_numbers = #tpu.dot_dimension_numbers<[1], [0], [0], [1], [0, 0, 1, 1], [], []>} : vector<16x128xbf16>, vector<128x512xbf16>, vector<16x512xf32> -> vector<16x512xf32>
    %362 = arith.addf %358, %361 : vector<16x512xf32>
    %363 = vector.extract_strided_slice %362 {offsets = [0, 0], sizes = [16, 128], strides = [1, 1]} : vector<16x512xf32> to vector<16x128xf32>
    %364 = arith.negf %363 : vector<16x128xf32>
    %365 = math.exp %364 : vector<16x128xf32>
    %cst_106 = arith.constant 1.000000e+00 : f32
    %366 = vector.broadcast %cst_106 : f32 to vector<16x128xf32>
    %367 = arith.addf %366, %365 : vector<16x128xf32>
    %368 = arith.divf %366, %367 : vector<16x128xf32>
    %369 = vector.extract_strided_slice %362 {offsets = [0, 128], sizes = [16, 128], strides = [1, 1]} : vector<16x512xf32> to vector<16x128xf32>
    %370 = arith.negf %369 : vector<16x128xf32>
    %371 = math.exp %370 : vector<16x128xf32>
    %cst_107 = arith.constant 1.000000e+00 : f32
    %372 = vector.broadcast %cst_107 : f32 to vector<16x128xf32>
    %373 = arith.addf %372, %371 : vector<16x128xf32>
    %374 = arith.divf %372, %373 : vector<16x128xf32>
    %375 = vector.extract_strided_slice %362 {offsets = [0, 256], sizes = [16, 128], strides = [1, 1]} : vector<16x512xf32> to vector<16x128xf32>
    %376 = math.tanh %375 : vector<16x128xf32>
    %377 = vector.extract_strided_slice %362 {offsets = [0, 384], sizes = [16, 128], strides = [1, 1]} : vector<16x512xf32> to vector<16x128xf32>
    %378 = arith.negf %377 : vector<16x128xf32>
    %379 = math.exp %378 : vector<16x128xf32>
    %cst_108 = arith.constant 1.000000e+00 : f32
    %380 = vector.broadcast %cst_108 : f32 to vector<16x128xf32>
    %381 = arith.addf %380, %379 : vector<16x128xf32>
    %382 = arith.divf %380, %381 : vector<16x128xf32>
    %383 = arith.mulf %374, %308 : vector<16x128xf32>
    %384 = arith.mulf %368, %376 : vector<16x128xf32>
    %385 = arith.addf %383, %384 : vector<16x128xf32>
    %386 = math.tanh %385 : vector<16x128xf32>
    %387 = arith.mulf %382, %386 : vector<16x128xf32>
    %388 = arith.index_cast %c4_i32 : i32 to index
    %c0_109 = arith.constant 0 : index
    %c0_110 = arith.constant 0 : index
    %389 = vector.load %arg13[%388, %c0_109, %c0_110] : memref<8x16x256xf32, #tpu.memory_space<vmem>>, vector<1x16x128xf32>
    %390 = vector.shape_cast %389 : vector<1x16x128xf32> to vector<16x128xf32>
    %391 = vector.shape_cast %356 : vector<16x128xf32> to vector<1x16x128xf32>
    tpu.vector_store %arg13[%388, %c0_109, %c0_110], %391 {strides = array<i32>} : memref<8x16x256xf32, #tpu.memory_space<vmem>>, vector<1x16x128xf32>,
    %392 = arith.index_cast %319 : i32 to index
    %c0_111 = arith.constant 0 : index
    %c128_112 = arith.constant 128 : index
    %393 = vector.load %arg13[%392, %c0_111, %c128_112] : memref<8x16x256xf32, #tpu.memory_space<vmem>>, vector<1x16x128xf32>
    %394 = vector.shape_cast %393 : vector<1x16x128xf32> to vector<16x128xf32>
    %395 = vector.shape_cast %387 : vector<16x128xf32> to vector<1x16x128xf32>
    tpu.vector_store %arg13[%392, %c0_111, %c128_112], %395 {strides = array<i32>} : memref<8x16x256xf32, #tpu.memory_space<vmem>>, vector<1x16x128xf32>,
    %c5_i32 = arith.constant 5 : i32
    %c7_i32_113 = arith.constant 7 : i32
    %396 = arith.subi %c7_i32_113, %c5_i32 : i32
    %397 = arith.index_cast %c5_i32 : i32 to index
    %c0_114 = arith.constant 0 : index
    %c0_115 = arith.constant 0 : index
    %398 = vector.load %arg12[%397, %c0_114, %c0_115] : memref<8x16x1024xbf16, #tpu.memory_space<vmem>>, vector<1x16x1024xbf16>
    %399 = vector.shape_cast %398 : vector<1x16x1024xbf16> to vector<16x1024xbf16>
    %400 = arith.index_cast %396 : i32 to index
    %c0_116 = arith.constant 0 : index
    %c0_117 = arith.constant 0 : index
    %401 = vector.load %arg12[%400, %c0_116, %c0_117] : memref<8x16x1024xbf16, #tpu.memory_space<vmem>>, vector<1x16x1024xbf16>
    %402 = vector.shape_cast %401 : vector<1x16x1024xbf16> to vector<16x1024xbf16>
    %403 = vector.extract_strided_slice %399 {offsets = [0, 0], sizes = [16, 512], strides = [1, 1]} : vector<16x1024xbf16> to vector<16x512xbf16>
    %404 = arith.extf %403 : vector<16x512xbf16> to vector<16x512xf32>
    %405 = arith.truncf %356 : vector<16x128xf32> to vector<16x128xbf16>
    %c0_118 = arith.constant 0 : index
    %c0_119 = arith.constant 0 : index
    %406 = vector.load %arg4[%c0_118, %c0_119] : memref<128x512xbf16, #tpu.memory_space<vmem>>, vector<128x512xbf16>
    %cst_120 = arith.constant dense<0.000000e+00> : vector<16x512xf32>
    %407 = tpu.matmul %405, %406, %cst_120 {dimension_numbers = #tpu.dot_dimension_numbers<[1], [0], [0], [1], [0, 0, 1, 1], [], []>} : vector<16x128xbf16>, vector<128x512xbf16>, vector<16x512xf32> -> vector<16x512xf32>
    %408 = arith.addf %404, %407 : vector<16x512xf32>
    %409 = vector.extract_strided_slice %408 {offsets = [0, 0], sizes = [16, 128], strides = [1, 1]} : vector<16x512xf32> to vector<16x128xf32>
    %410 = arith.negf %409 : vector<16x128xf32>
    %411 = math.exp %410 : vector<16x128xf32>
    %cst_121 = arith.constant 1.000000e+00 : f32
    %412 = vector.broadcast %cst_121 : f32 to vector<16x128xf32>
    %413 = arith.addf %412, %411 : vector<16x128xf32>
    %414 = arith.divf %412, %413 : vector<16x128xf32>
    %415 = vector.extract_strided_slice %408 {offsets = [0, 128], sizes = [16, 128], strides = [1, 1]} : vector<16x512xf32> to vector<16x128xf32>
    %416 = arith.negf %415 : vector<16x128xf32>
    %417 = math.exp %416 : vector<16x128xf32>
    %cst_122 = arith.constant 1.000000e+00 : f32
    %418 = vector.broadcast %cst_122 : f32 to vector<16x128xf32>
    %419 = arith.addf %418, %417 : vector<16x128xf32>
    %420 = arith.divf %418, %419 : vector<16x128xf32>
    %421 = vector.extract_strided_slice %408 {offsets = [0, 256], sizes = [16, 128], strides = [1, 1]} : vector<16x512xf32> to vector<16x128xf32>
    %422 = math.tanh %421 : vector<16x128xf32>
    %423 = vector.extract_strided_slice %408 {offsets = [0, 384], sizes = [16, 128], strides = [1, 1]} : vector<16x512xf32> to vector<16x128xf32>
    %424 = arith.negf %423 : vector<16x128xf32>
    %425 = math.exp %424 : vector<16x128xf32>
    %cst_123 = arith.constant 1.000000e+00 : f32
    %426 = vector.broadcast %cst_123 : f32 to vector<16x128xf32>
    %427 = arith.addf %426, %425 : vector<16x128xf32>
    %428 = arith.divf %426, %427 : vector<16x128xf32>
    %429 = arith.mulf %420, %354 : vector<16x128xf32>
    %430 = arith.mulf %414, %422 : vector<16x128xf32>
    %431 = arith.addf %429, %430 : vector<16x128xf32>
    %432 = math.tanh %431 : vector<16x128xf32>
    %433 = arith.mulf %428, %432 : vector<16x128xf32>
    %434 = vector.extract_strided_slice %402 {offsets = [0, 512], sizes = [16, 512], strides = [1, 1]} : vector<16x1024xbf16> to vector<16x512xbf16>
    %435 = arith.extf %434 : vector<16x512xbf16> to vector<16x512xf32>
    %436 = arith.truncf %387 : vector<16x128xf32> to vector<16x128xbf16>
    %c0_124 = arith.constant 0 : index
    %c0_125 = arith.constant 0 : index
    %437 = vector.load %arg5[%c0_124, %c0_125] : memref<128x512xbf16, #tpu.memory_space<vmem>>, vector<128x512xbf16>
    %cst_126 = arith.constant dense<0.000000e+00> : vector<16x512xf32>
    %438 = tpu.matmul %436, %437, %cst_126 {dimension_numbers = #tpu.dot_dimension_numbers<[1], [0], [0], [1], [0, 0, 1, 1], [], []>} : vector<16x128xbf16>, vector<128x512xbf16>, vector<16x512xf32> -> vector<16x512xf32>
    %439 = arith.addf %435, %438 : vector<16x512xf32>
    %440 = vector.extract_strided_slice %439 {offsets = [0, 0], sizes = [16, 128], strides = [1, 1]} : vector<16x512xf32> to vector<16x128xf32>
    %441 = arith.negf %440 : vector<16x128xf32>
    %442 = math.exp %441 : vector<16x128xf32>
    %cst_127 = arith.constant 1.000000e+00 : f32
    %443 = vector.broadcast %cst_127 : f32 to vector<16x128xf32>
    %444 = arith.addf %443, %442 : vector<16x128xf32>
    %445 = arith.divf %443, %444 : vector<16x128xf32>
    %446 = vector.extract_strided_slice %439 {offsets = [0, 128], sizes = [16, 128], strides = [1, 1]} : vector<16x512xf32> to vector<16x128xf32>
    %447 = arith.negf %446 : vector<16x128xf32>
    %448 = math.exp %447 : vector<16x128xf32>
    %cst_128 = arith.constant 1.000000e+00 : f32
    %449 = vector.broadcast %cst_128 : f32 to vector<16x128xf32>
    %450 = arith.addf %449, %448 : vector<16x128xf32>
    %451 = arith.divf %449, %450 : vector<16x128xf32>
    %452 = vector.extract_strided_slice %439 {offsets = [0, 256], sizes = [16, 128], strides = [1, 1]} : vector<16x512xf32> to vector<16x128xf32>
    %453 = math.tanh %452 : vector<16x128xf32>
    %454 = vector.extract_strided_slice %439 {offsets = [0, 384], sizes = [16, 128], strides = [1, 1]} : vector<16x512xf32> to vector<16x128xf32>
    %455 = arith.negf %454 : vector<16x128xf32>
    %456 = math.exp %455 : vector<16x128xf32>
    %cst_129 = arith.constant 1.000000e+00 : f32
    %457 = vector.broadcast %cst_129 : f32 to vector<16x128xf32>
    %458 = arith.addf %457, %456 : vector<16x128xf32>
    %459 = arith.divf %457, %458 : vector<16x128xf32>
    %460 = arith.mulf %451, %385 : vector<16x128xf32>
    %461 = arith.mulf %445, %453 : vector<16x128xf32>
    %462 = arith.addf %460, %461 : vector<16x128xf32>
    %463 = math.tanh %462 : vector<16x128xf32>
    %464 = arith.mulf %459, %463 : vector<16x128xf32>
    %465 = arith.index_cast %c5_i32 : i32 to index
    %c0_130 = arith.constant 0 : index
    %c0_131 = arith.constant 0 : index
    %466 = vector.load %arg13[%465, %c0_130, %c0_131] : memref<8x16x256xf32, #tpu.memory_space<vmem>>, vector<1x16x128xf32>
    %467 = vector.shape_cast %466 : vector<1x16x128xf32> to vector<16x128xf32>
    %468 = vector.shape_cast %433 : vector<16x128xf32> to vector<1x16x128xf32>
    tpu.vector_store %arg13[%465, %c0_130, %c0_131], %468 {strides = array<i32>} : memref<8x16x256xf32, #tpu.memory_space<vmem>>, vector<1x16x128xf32>,
    %469 = arith.index_cast %396 : i32 to index
    %c0_132 = arith.constant 0 : index
    %c128_133 = arith.constant 128 : index
    %470 = vector.load %arg13[%469, %c0_132, %c128_133] : memref<8x16x256xf32, #tpu.memory_space<vmem>>, vector<1x16x128xf32>
    %471 = vector.shape_cast %470 : vector<1x16x128xf32> to vector<16x128xf32>
    %472 = vector.shape_cast %464 : vector<16x128xf32> to vector<1x16x128xf32>
    tpu.vector_store %arg13[%469, %c0_132, %c128_133], %472 {strides = array<i32>} : memref<8x16x256xf32, #tpu.memory_space<vmem>>, vector<1x16x128xf32>,
    %c6_i32 = arith.constant 6 : i32
    %c7_i32_134 = arith.constant 7 : i32
    %473 = arith.subi %c7_i32_134, %c6_i32 : i32
    %474 = arith.index_cast %c6_i32 : i32 to index
    %c0_135 = arith.constant 0 : index
    %c0_136 = arith.constant 0 : index
    %475 = vector.load %arg12[%474, %c0_135, %c0_136] : memref<8x16x1024xbf16, #tpu.memory_space<vmem>>, vector<1x16x1024xbf16>
    %476 = vector.shape_cast %475 : vector<1x16x1024xbf16> to vector<16x1024xbf16>
    %477 = arith.index_cast %473 : i32 to index
    %c0_137 = arith.constant 0 : index
    %c0_138 = arith.constant 0 : index
    %478 = vector.load %arg12[%477, %c0_137, %c0_138] : memref<8x16x1024xbf16, #tpu.memory_space<vmem>>, vector<1x16x1024xbf16>
    %479 = vector.shape_cast %478 : vector<1x16x1024xbf16> to vector<16x1024xbf16>
    %480 = vector.extract_strided_slice %476 {offsets = [0, 0], sizes = [16, 512], strides = [1, 1]} : vector<16x1024xbf16> to vector<16x512xbf16>
    %481 = arith.extf %480 : vector<16x512xbf16> to vector<16x512xf32>
    %482 = arith.truncf %433 : vector<16x128xf32> to vector<16x128xbf16>
    %c0_139 = arith.constant 0 : index
    %c0_140 = arith.constant 0 : index
    %483 = vector.load %arg4[%c0_139, %c0_140] : memref<128x512xbf16, #tpu.memory_space<vmem>>, vector<128x512xbf16>
    %cst_141 = arith.constant dense<0.000000e+00> : vector<16x512xf32>
    %484 = tpu.matmul %482, %483, %cst_141 {dimension_numbers = #tpu.dot_dimension_numbers<[1], [0], [0], [1], [0, 0, 1, 1], [], []>} : vector<16x128xbf16>, vector<128x512xbf16>, vector<16x512xf32> -> vector<16x512xf32>
    %485 = arith.addf %481, %484 : vector<16x512xf32>
    %486 = vector.extract_strided_slice %485 {offsets = [0, 0], sizes = [16, 128], strides = [1, 1]} : vector<16x512xf32> to vector<16x128xf32>
    %487 = arith.negf %486 : vector<16x128xf32>
    %488 = math.exp %487 : vector<16x128xf32>
    %cst_142 = arith.constant 1.000000e+00 : f32
    %489 = vector.broadcast %cst_142 : f32 to vector<16x128xf32>
    %490 = arith.addf %489, %488 : vector<16x128xf32>
    %491 = arith.divf %489, %490 : vector<16x128xf32>
    %492 = vector.extract_strided_slice %485 {offsets = [0, 128], sizes = [16, 128], strides = [1, 1]} : vector<16x512xf32> to vector<16x128xf32>
    %493 = arith.negf %492 : vector<16x128xf32>
    %494 = math.exp %493 : vector<16x128xf32>
    %cst_143 = arith.constant 1.000000e+00 : f32
    %495 = vector.broadcast %cst_143 : f32 to vector<16x128xf32>
    %496 = arith.addf %495, %494 : vector<16x128xf32>
    %497 = arith.divf %495, %496 : vector<16x128xf32>
    %498 = vector.extract_strided_slice %485 {offsets = [0, 256], sizes = [16, 128], strides = [1, 1]} : vector<16x512xf32> to vector<16x128xf32>
    %499 = math.tanh %498 : vector<16x128xf32>
    %500 = vector.extract_strided_slice %485 {offsets = [0, 384], sizes = [16, 128], strides = [1, 1]} : vector<16x512xf32> to vector<16x128xf32>
    %501 = arith.negf %500 : vector<16x128xf32>
    %502 = math.exp %501 : vector<16x128xf32>
    %cst_144 = arith.constant 1.000000e+00 : f32
    %503 = vector.broadcast %cst_144 : f32 to vector<16x128xf32>
    %504 = arith.addf %503, %502 : vector<16x128xf32>
    %505 = arith.divf %503, %504 : vector<16x128xf32>
    %506 = arith.mulf %497, %431 : vector<16x128xf32>
    %507 = arith.mulf %491, %499 : vector<16x128xf32>
    %508 = arith.addf %506, %507 : vector<16x128xf32>
    %509 = math.tanh %508 : vector<16x128xf32>
    %510 = arith.mulf %505, %509 : vector<16x128xf32>
    %511 = vector.extract_strided_slice %479 {offsets = [0, 512], sizes = [16, 512], strides = [1, 1]} : vector<16x1024xbf16> to vector<16x512xbf16>
    %512 = arith.extf %511 : vector<16x512xbf16> to vector<16x512xf32>
    %513 = arith.truncf %464 : vector<16x128xf32> to vector<16x128xbf16>
    %c0_145 = arith.constant 0 : index
    %c0_146 = arith.constant 0 : index
    %514 = vector.load %arg5[%c0_145, %c0_146] : memref<128x512xbf16, #tpu.memory_space<vmem>>, vector<128x512xbf16>
    %cst_147 = arith.constant dense<0.000000e+00> : vector<16x512xf32>
    %515 = tpu.matmul %513, %514, %cst_147 {dimension_numbers = #tpu.dot_dimension_numbers<[1], [0], [0], [1], [0, 0, 1, 1], [], []>} : vector<16x128xbf16>, vector<128x512xbf16>, vector<16x512xf32> -> vector<16x512xf32>
    %516 = arith.addf %512, %515 : vector<16x512xf32>
    %517 = vector.extract_strided_slice %516 {offsets = [0, 0], sizes = [16, 128], strides = [1, 1]} : vector<16x512xf32> to vector<16x128xf32>
    %518 = arith.negf %517 : vector<16x128xf32>
    %519 = math.exp %518 : vector<16x128xf32>
    %cst_148 = arith.constant 1.000000e+00 : f32
    %520 = vector.broadcast %cst_148 : f32 to vector<16x128xf32>
    %521 = arith.addf %520, %519 : vector<16x128xf32>
    %522 = arith.divf %520, %521 : vector<16x128xf32>
    %523 = vector.extract_strided_slice %516 {offsets = [0, 128], sizes = [16, 128], strides = [1, 1]} : vector<16x512xf32> to vector<16x128xf32>
    %524 = arith.negf %523 : vector<16x128xf32>
    %525 = math.exp %524 : vector<16x128xf32>
    %cst_149 = arith.constant 1.000000e+00 : f32
    %526 = vector.broadcast %cst_149 : f32 to vector<16x128xf32>
    %527 = arith.addf %526, %525 : vector<16x128xf32>
    %528 = arith.divf %526, %527 : vector<16x128xf32>
    %529 = vector.extract_strided_slice %516 {offsets = [0, 256], sizes = [16, 128], strides = [1, 1]} : vector<16x512xf32> to vector<16x128xf32>
    %530 = math.tanh %529 : vector<16x128xf32>
    %531 = vector.extract_strided_slice %516 {offsets = [0, 384], sizes = [16, 128], strides = [1, 1]} : vector<16x512xf32> to vector<16x128xf32>
    %532 = arith.negf %531 : vector<16x128xf32>
    %533 = math.exp %532 : vector<16x128xf32>
    %cst_150 = arith.constant 1.000000e+00 : f32
    %534 = vector.broadcast %cst_150 : f32 to vector<16x128xf32>
    %535 = arith.addf %534, %533 : vector<16x128xf32>
    %536 = arith.divf %534, %535 : vector<16x128xf32>
    %537 = arith.mulf %528, %462 : vector<16x128xf32>
    %538 = arith.mulf %522, %530 : vector<16x128xf32>
    %539 = arith.addf %537, %538 : vector<16x128xf32>
    %540 = math.tanh %539 : vector<16x128xf32>
    %541 = arith.mulf %536, %540 : vector<16x128xf32>
    %542 = arith.index_cast %c6_i32 : i32 to index
    %c0_151 = arith.constant 0 : index
    %c0_152 = arith.constant 0 : index
    %543 = vector.load %arg13[%542, %c0_151, %c0_152] : memref<8x16x256xf32, #tpu.memory_space<vmem>>, vector<1x16x128xf32>
    %544 = vector.shape_cast %543 : vector<1x16x128xf32> to vector<16x128xf32>
    %545 = vector.shape_cast %510 : vector<16x128xf32> to vector<1x16x128xf32>
    tpu.vector_store %arg13[%542, %c0_151, %c0_152], %545 {strides = array<i32>} : memref<8x16x256xf32, #tpu.memory_space<vmem>>, vector<1x16x128xf32>,
    %546 = arith.index_cast %473 : i32 to index
    %c0_153 = arith.constant 0 : index
    %c128_154 = arith.constant 128 : index
    %547 = vector.load %arg13[%546, %c0_153, %c128_154] : memref<8x16x256xf32, #tpu.memory_space<vmem>>, vector<1x16x128xf32>
    %548 = vector.shape_cast %547 : vector<1x16x128xf32> to vector<16x128xf32>
    %549 = vector.shape_cast %541 : vector<16x128xf32> to vector<1x16x128xf32>
    tpu.vector_store %arg13[%546, %c0_153, %c128_154], %549 {strides = array<i32>} : memref<8x16x256xf32, #tpu.memory_space<vmem>>, vector<1x16x128xf32>,
    %c7_i32_155 = arith.constant 7 : i32
    %c7_i32_156 = arith.constant 7 : i32
    %550 = arith.subi %c7_i32_156, %c7_i32_155 : i32
    %551 = arith.index_cast %c7_i32_155 : i32 to index
    %c0_157 = arith.constant 0 : index
    %c0_158 = arith.constant 0 : index
    %552 = vector.load %arg12[%551, %c0_157, %c0_158] : memref<8x16x1024xbf16, #tpu.memory_space<vmem>>, vector<1x16x1024xbf16>
    %553 = vector.shape_cast %552 : vector<1x16x1024xbf16> to vector<16x1024xbf16>
    %554 = arith.index_cast %550 : i32 to index
    %c0_159 = arith.constant 0 : index
    %c0_160 = arith.constant 0 : index
    %555 = vector.load %arg12[%554, %c0_159, %c0_160] : memref<8x16x1024xbf16, #tpu.memory_space<vmem>>, vector<1x16x1024xbf16>
    %556 = vector.shape_cast %555 : vector<1x16x1024xbf16> to vector<16x1024xbf16>
    %557 = vector.extract_strided_slice %553 {offsets = [0, 0], sizes = [16, 512], strides = [1, 1]} : vector<16x1024xbf16> to vector<16x512xbf16>
    %558 = arith.extf %557 : vector<16x512xbf16> to vector<16x512xf32>
    %559 = arith.truncf %510 : vector<16x128xf32> to vector<16x128xbf16>
    %c0_161 = arith.constant 0 : index
    %c0_162 = arith.constant 0 : index
    %560 = vector.load %arg4[%c0_161, %c0_162] : memref<128x512xbf16, #tpu.memory_space<vmem>>, vector<128x512xbf16>
    %cst_163 = arith.constant dense<0.000000e+00> : vector<16x512xf32>
    %561 = tpu.matmul %559, %560, %cst_163 {dimension_numbers = #tpu.dot_dimension_numbers<[1], [0], [0], [1], [0, 0, 1, 1], [], []>} : vector<16x128xbf16>, vector<128x512xbf16>, vector<16x512xf32> -> vector<16x512xf32>
    %562 = arith.addf %558, %561 : vector<16x512xf32>
    %563 = vector.extract_strided_slice %562 {offsets = [0, 0], sizes = [16, 128], strides = [1, 1]} : vector<16x512xf32> to vector<16x128xf32>
    %564 = arith.negf %563 : vector<16x128xf32>
    %565 = math.exp %564 : vector<16x128xf32>
    %cst_164 = arith.constant 1.000000e+00 : f32
    %566 = vector.broadcast %cst_164 : f32 to vector<16x128xf32>
    %567 = arith.addf %566, %565 : vector<16x128xf32>
    %568 = arith.divf %566, %567 : vector<16x128xf32>
    %569 = vector.extract_strided_slice %562 {offsets = [0, 128], sizes = [16, 128], strides = [1, 1]} : vector<16x512xf32> to vector<16x128xf32>
    %570 = arith.negf %569 : vector<16x128xf32>
    %571 = math.exp %570 : vector<16x128xf32>
    %cst_165 = arith.constant 1.000000e+00 : f32
    %572 = vector.broadcast %cst_165 : f32 to vector<16x128xf32>
    %573 = arith.addf %572, %571 : vector<16x128xf32>
    %574 = arith.divf %572, %573 : vector<16x128xf32>
    %575 = vector.extract_strided_slice %562 {offsets = [0, 256], sizes = [16, 128], strides = [1, 1]} : vector<16x512xf32> to vector<16x128xf32>
    %576 = math.tanh %575 : vector<16x128xf32>
    %577 = vector.extract_strided_slice %562 {offsets = [0, 384], sizes = [16, 128], strides = [1, 1]} : vector<16x512xf32> to vector<16x128xf32>
    %578 = arith.negf %577 : vector<16x128xf32>
    %579 = math.exp %578 : vector<16x128xf32>
    %cst_166 = arith.constant 1.000000e+00 : f32
    %580 = vector.broadcast %cst_166 : f32 to vector<16x128xf32>
    %581 = arith.addf %580, %579 : vector<16x128xf32>
    %582 = arith.divf %580, %581 : vector<16x128xf32>
    %583 = arith.mulf %574, %508 : vector<16x128xf32>
    %584 = arith.mulf %568, %576 : vector<16x128xf32>
    %585 = arith.addf %583, %584 : vector<16x128xf32>
    %586 = math.tanh %585 : vector<16x128xf32>
    %587 = arith.mulf %582, %586 : vector<16x128xf32>
    %588 = vector.extract_strided_slice %556 {offsets = [0, 512], sizes = [16, 512], strides = [1, 1]} : vector<16x1024xbf16> to vector<16x512xbf16>
    %589 = arith.extf %588 : vector<16x512xbf16> to vector<16x512xf32>
    %590 = arith.truncf %541 : vector<16x128xf32> to vector<16x128xbf16>
    %c0_167 = arith.constant 0 : index
    %c0_168 = arith.constant 0 : index
    %591 = vector.load %arg5[%c0_167, %c0_168] : memref<128x512xbf16, #tpu.memory_space<vmem>>, vector<128x512xbf16>
    %cst_169 = arith.constant dense<0.000000e+00> : vector<16x512xf32>
    %592 = tpu.matmul %590, %591, %cst_169 {dimension_numbers = #tpu.dot_dimension_numbers<[1], [0], [0], [1], [0, 0, 1, 1], [], []>} : vector<16x128xbf16>, vector<128x512xbf16>, vector<16x512xf32> -> vector<16x512xf32>
    %593 = arith.addf %589, %592 : vector<16x512xf32>
    %594 = vector.extract_strided_slice %593 {offsets = [0, 0], sizes = [16, 128], strides = [1, 1]} : vector<16x512xf32> to vector<16x128xf32>
    %595 = arith.negf %594 : vector<16x128xf32>
    %596 = math.exp %595 : vector<16x128xf32>
    %cst_170 = arith.constant 1.000000e+00 : f32
    %597 = vector.broadcast %cst_170 : f32 to vector<16x128xf32>
    %598 = arith.addf %597, %596 : vector<16x128xf32>
    %599 = arith.divf %597, %598 : vector<16x128xf32>
    %600 = vector.extract_strided_slice %593 {offsets = [0, 128], sizes = [16, 128], strides = [1, 1]} : vector<16x512xf32> to vector<16x128xf32>
    %601 = arith.negf %600 : vector<16x128xf32>
    %602 = math.exp %601 : vector<16x128xf32>
    %cst_171 = arith.constant 1.000000e+00 : f32
    %603 = vector.broadcast %cst_171 : f32 to vector<16x128xf32>
    %604 = arith.addf %603, %602 : vector<16x128xf32>
    %605 = arith.divf %603, %604 : vector<16x128xf32>
    %606 = vector.extract_strided_slice %593 {offsets = [0, 256], sizes = [16, 128], strides = [1, 1]} : vector<16x512xf32> to vector<16x128xf32>
    %607 = math.tanh %606 : vector<16x128xf32>
    %608 = vector.extract_strided_slice %593 {offsets = [0, 384], sizes = [16, 128], strides = [1, 1]} : vector<16x512xf32> to vector<16x128xf32>
    %609 = arith.negf %608 : vector<16x128xf32>
    %610 = math.exp %609 : vector<16x128xf32>
    %cst_172 = arith.constant 1.000000e+00 : f32
    %611 = vector.broadcast %cst_172 : f32 to vector<16x128xf32>
    %612 = arith.addf %611, %610 : vector<16x128xf32>
    %613 = arith.divf %611, %612 : vector<16x128xf32>
    %614 = arith.mulf %605, %539 : vector<16x128xf32>
    %615 = arith.mulf %599, %607 : vector<16x128xf32>
    %616 = arith.addf %614, %615 : vector<16x128xf32>
    %617 = math.tanh %616 : vector<16x128xf32>
    %618 = arith.mulf %613, %617 : vector<16x128xf32>
    %619 = arith.index_cast %c7_i32_155 : i32 to index
    %c0_173 = arith.constant 0 : index
    %c0_174 = arith.constant 0 : index
    %620 = vector.load %arg13[%619, %c0_173, %c0_174] : memref<8x16x256xf32, #tpu.memory_space<vmem>>, vector<1x16x128xf32>
    %621 = vector.shape_cast %620 : vector<1x16x128xf32> to vector<16x128xf32>
    %622 = vector.shape_cast %587 : vector<16x128xf32> to vector<1x16x128xf32>
    tpu.vector_store %arg13[%619, %c0_173, %c0_174], %622 {strides = array<i32>} : memref<8x16x256xf32, #tpu.memory_space<vmem>>, vector<1x16x128xf32>,
    %623 = arith.index_cast %550 : i32 to index
    %c0_175 = arith.constant 0 : index
    %c128_176 = arith.constant 128 : index
    %624 = vector.load %arg13[%623, %c0_175, %c128_176] : memref<8x16x256xf32, #tpu.memory_space<vmem>>, vector<1x16x128xf32>
    %625 = vector.shape_cast %624 : vector<1x16x128xf32> to vector<16x128xf32>
    %626 = vector.shape_cast %618 : vector<16x128xf32> to vector<1x16x128xf32>
    tpu.vector_store %arg13[%623, %c0_175, %c128_176], %626 {strides = array<i32>} : memref<8x16x256xf32, #tpu.memory_space<vmem>>, vector<1x16x128xf32>,
    %c8_i32 = arith.constant 8 : i32
    %c0_177 = arith.constant 0 : index
    %c0_178 = arith.constant 0 : index
    %c0_179 = arith.constant 0 : index
    %627 = vector.load %arg13[%c0_177, %c0_178, %c0_179] : memref<8x16x256xf32, #tpu.memory_space<vmem>>, vector<8x16x256xf32>
    %628 = vector.shape_cast %627 : vector<8x16x256xf32> to vector<128x256xf32>
    %629 = arith.truncf %628 : vector<128x256xf32> to vector<128x256xbf16>
    %c0_180 = arith.constant 0 : index
    %c0_181 = arith.constant 0 : index
    %630 = vector.load %arg6[%c0_180, %c0_181] : memref<256x256xbf16, #tpu.memory_space<vmem>>, vector<256x256xbf16>
    %cst_182 = arith.constant dense<0.000000e+00> : vector<128x256xf32>
    %631 = tpu.matmul %629, %630, %cst_182 {dimension_numbers = #tpu.dot_dimension_numbers<[1], [0], [0], [1], [0, 0, 1, 1], [], []>} : vector<128x256xbf16>, vector<256x256xbf16>, vector<128x256xf32> -> vector<128x256xf32>
    %c0_183 = arith.constant 0 : index
    %c0_184 = arith.constant 0 : index
    %632 = vector.load %arg7[%c0_183, %c0_184] : memref<1x256xf32, #tpu.memory_space<vmem>>, vector<1x256xf32>
    %633 = vector.broadcast %632 : vector<1x256xf32> to vector<128x256xf32>
    %634 = arith.addf %631, %633 : vector<128x256xf32>
    %635 = arith.negf %634 : vector<128x256xf32>
    %636 = math.exp %635 : vector<128x256xf32>
    %cst_185 = arith.constant 1.000000e+00 : f32
    %637 = vector.broadcast %cst_185 : f32 to vector<128x256xf32>
    %638 = arith.addf %637, %636 : vector<128x256xf32>
    %639 = arith.divf %637, %638 : vector<128x256xf32>
    %cst_186 = arith.constant 0.000000e+00 : f32
    %640 = vector.broadcast %cst_186 : f32 to vector<128x256xf32>
    %641 = arith.maximumf %634, %640 : vector<128x256xf32>
    %642 = arith.mulf %639, %641 : vector<128x256xf32>
    %cst_187 = arith.constant 1.000000e+00 : f32
    %643 = vector.broadcast %cst_187 : f32 to vector<128x256xf32>
    %644 = arith.subf %643, %639 : vector<128x256xf32>
    %645 = arith.mulf %644, %628 : vector<128x256xf32>
    %646 = arith.addf %642, %645 : vector<128x256xf32>
    %647 = arith.truncf %646 : vector<128x256xf32> to vector<128x256xbf16>
    %c0_188 = arith.constant 0 : index
    %c0_189 = arith.constant 0 : index
    %648 = vector.load %arg8[%c0_188, %c0_189] : memref<256x128xbf16, #tpu.memory_space<vmem>>, vector<256x128xbf16>
    %cst_190 = arith.constant dense<0.000000e+00> : vector<128x128xf32>
    %649 = tpu.matmul %647, %648, %cst_190 {dimension_numbers = #tpu.dot_dimension_numbers<[1], [0], [0], [1], [0, 0, 1, 1], [], []>} : vector<128x256xbf16>, vector<256x128xbf16>, vector<128x128xf32> -> vector<128x128xf32>
    %c0_191 = arith.constant 0 : index
    %c0_192 = arith.constant 0 : index
    %650 = vector.load %arg9[%c0_191, %c0_192] : memref<1x128xf32, #tpu.memory_space<vmem>>, vector<1x128xf32>
    %651 = vector.broadcast %650 : vector<1x128xf32> to vector<128x128xf32>
    %652 = arith.addf %649, %651 : vector<128x128xf32>
    %c0_193 = arith.constant 0 : index
    %c0_194 = arith.constant 0 : index
    %c0_195 = arith.constant 0 : index
    %653 = vector.load %arg10[%c0_193, %c0_194, %c0_195] : memref<8x16x128xf32, #tpu.memory_space<vmem>>, vector<8x16x128xf32>
    %654 = vector.shape_cast %653 : vector<8x16x128xf32> to vector<128x128xf32>
    %655 = arith.addf %652, %654 : vector<128x128xf32>
    %cst_196 = arith.constant 2.000000e+00 : f32
    %656 = vector.broadcast %cst_196 : f32 to vector<128x128xf32>
    %657 = arith.mulf %655, %656 : vector<128x128xf32>
    %cst_197 = arith.constant dense<0xFF800000> : vector<128xf32>
    %658 = vector.multi_reduction <maximumf>, %657, %cst_197 [1] : vector<128x128xf32> to vector<128xf32>
    %659 = vector.shape_cast %658 : vector<128xf32> to vector<128x1xf32>
    %660 = vector.broadcast %659 : vector<128x1xf32> to vector<128x128xf32>
    %661 = arith.subf %657, %660 : vector<128x128xf32>
    %662 = math.exp %661 : vector<128x128xf32>
    %cst_198 = arith.constant dense<0.000000e+00> : vector<128xf32>
    %663 = vector.multi_reduction <add>, %662, %cst_198 [1] : vector<128x128xf32> to vector<128xf32>
    %664 = vector.shape_cast %663 : vector<128xf32> to vector<128x1xf32>
    %665 = vector.broadcast %664 : vector<128x1xf32> to vector<128x128xf32>
    %666 = arith.divf %662, %665 : vector<128x128xf32>
    %667 = vector.shape_cast %666 : vector<128x128xf32> to vector<8x16x128xf32>
    %c0_199 = arith.constant 0 : index
    %c0_200 = arith.constant 0 : index
    %c0_201 = arith.constant 0 : index
    %668 = vector.load %arg11[%c0_199, %c0_200, %c0_201] : memref<8x16x128xf32, #tpu.memory_space<vmem>>, vector<8x16x128xf32>
    tpu.vector_store %arg11[%c0_199, %c0_200, %c0_201], %667 {strides = array<i32>} : memref<8x16x128xf32, #tpu.memory_space<vmem>>, vector<8x16x128xf32>,
    return
  }
  func.func @transform_0(%arg0: i32) -> (i32, i32, i32) {
    %c0_i32 = arith.constant 0 : i32
    %c0_i32_0 = arith.constant 0 : i32
    %c0_i32_1 = arith.constant 0 : i32
    return %c0_i32, %arg0, %c0_i32_0 : i32, i32, i32
  }
  func.func @transform_1(%arg0: i32) -> (i32, i32) {
    %c0_i32 = arith.constant 0 : i32
    %c0_i32_0 = arith.constant 0 : i32
    %c0_i32_1 = arith.constant 0 : i32
    return %c0_i32, %c0_i32_0 : i32, i32
  }
  func.func @transform_2(%arg0: i32) -> (i32, i32) {
    %c0_i32 = arith.constant 0 : i32
    %c0_i32_0 = arith.constant 0 : i32
    %c0_i32_1 = arith.constant 0 : i32
    return %c0_i32, %c0_i32_0 : i32, i32
  }
  func.func @transform_3(%arg0: i32) -> (i32, i32) {
    %c0_i32 = arith.constant 0 : i32
    %c0_i32_0 = arith.constant 0 : i32
    %c0_i32_1 = arith.constant 0 : i32
    return %c0_i32, %c0_i32_0 : i32, i32
  }
  func.func @transform_4(%arg0: i32) -> (i32, i32) {
    %c0_i32 = arith.constant 0 : i32
    %c0_i32_0 = arith.constant 0 : i32
    %c0_i32_1 = arith.constant 0 : i32
    return %c0_i32, %c0_i32_0 : i32, i32
  }
  func.func @transform_5(%arg0: i32) -> (i32, i32) {
    %c0_i32 = arith.constant 0 : i32
    %c0_i32_0 = arith.constant 0 : i32
    %c0_i32_1 = arith.constant 0 : i32
    return %c0_i32, %c0_i32_0 : i32, i32
  }
  func.func @transform_6(%arg0: i32) -> (i32, i32) {
    %c0_i32 = arith.constant 0 : i32
    %c0_i32_0 = arith.constant 0 : i32
    %c0_i32_1 = arith.constant 0 : i32
    return %c0_i32, %c0_i32_0 : i32, i32
  }
  func.func @transform_7(%arg0: i32) -> (i32, i32) {
    %c0_i32 = arith.constant 0 : i32
    %c0_i32_0 = arith.constant 0 : i32
    %c0_i32_1 = arith.constant 0 : i32
    return %c0_i32, %c0_i32_0 : i32, i32
  }
  func.func @transform_8(%arg0: i32) -> (i32, i32) {
    %c0_i32 = arith.constant 0 : i32
    %c0_i32_0 = arith.constant 0 : i32
    %c0_i32_1 = arith.constant 0 : i32
    return %c0_i32, %c0_i32_0 : i32, i32
  }
  func.func @transform_9(%arg0: i32) -> (i32, i32, i32) {
    %c0_i32 = arith.constant 0 : i32
    %c0_i32_0 = arith.constant 0 : i32
    %c0_i32_1 = arith.constant 0 : i32
    return %c0_i32, %arg0, %c0_i32_0 : i32, i32, i32
  }
  func.func @transform_10(%arg0: i32) -> (i32, i32, i32) {
    %c0_i32 = arith.constant 0 : i32
    %c0_i32_0 = arith.constant 0 : i32
    %c0_i32_1 = arith.constant 0 : i32
    return %c0_i32, %arg0, %c0_i32_0 : i32, i32, i32
  }
}

</mosaic_0001>

<llo_original>
// kernel: tpu_custom_call.1
$region0: #{tpu_custom_call.1}
  #allocation0 [shape = 'u32[]', space=smem, size = 0x4, offset = 0x4, fixed_abs, tag = 'smem constant byte address 0x4 - core index']
  #allocation1 [shape = 'u32[144,128]{1,0:T(1,128)}', space=vmem, size = 0x12000, scoped, tag = 'internal scratch']
  #allocation2 [shape = 'bf16[8,16,1024]{2,1,0:T(16,128)(2,1)}', space=vmem, size = 0x40000, scoped, tag = 'scratch operand']
  #allocation3 [shape = 'f32[8,16,256]{2,1,0:T(8,128)}', space=vmem, size = 0x20000, scoped, tag = 'scratch operand']
  %s0 = inlined_call_operand.hbm [shape: bf16[8,16,128], index: 0, kind: input, shape index: {}]
  %s1 = inlined_call_operand.hbm [shape: bf16[128,1024], index: 1, kind: input, shape index: {}]
  %s2 = inlined_call_operand.hbm [shape: f32[1,1024], index: 2, kind: input, shape index: {}]
  %s3 = inlined_call_operand.hbm [shape: bf16[128,512], index: 3, kind: input, shape index: {}]
  %s4 = inlined_call_operand.hbm [shape: bf16[128,512], index: 4, kind: input, shape index: {}]
  %s5 = inlined_call_operand.hbm [shape: bf16[256,256], index: 5, kind: input, shape index: {}]
  %s6 = inlined_call_operand.vmem [shape: f32[1,256], index: 6, kind: input, shape index: {}]
  %s7 = inlined_call_operand.hbm [shape: bf16[256,128], index: 7, kind: input, shape index: {}]
  %s8 = inlined_call_operand.vmem [shape: f32[1,128], index: 8, kind: input, shape index: {}]
  %s9 = inlined_call_operand.hbm [shape: f32[8,16,128], index: 9, kind: input, shape index: {}]
  %s10 = inlined_call_operand.hbm [shape: f32[8,16,128], index: 10, kind: output, shape index: {}]
  %s11 = sld [smem:[#allocation0]]
  $region82: #{tpu_custom_call.1} parent=0
    _
  %s13 = ssub.s32 1, %s11
  %s14 = scalar_select 0, %s13, %s11
  $region1: #{tpu_custom_call.1} parent=0
    #allocation4 [shape = 'u8[32768]{0}', space=vmem, size = 0x8000, scoped, tag = 'input window, operand 0, single buffered']
    #allocation5 [shape = 's32[1]{0}', space=sflag, size = 0x4, scoped, tag = 'scoped memory for tpu_custom_call.1']
    #allocation6 [shape = 's32[1]{0}', space=sflag, size = 0x4, scoped, tag = 'scoped memory for tpu_custom_call.1']
    #allocation7 [shape = 'u8[262144]{0}', space=vmem, size = 0x40000, scoped, tag = 'input window, operand 1, single buffered']
    #allocation8 [shape = 's32[1]{0}', space=sflag, size = 0x4, scoped, tag = 'scoped memory for tpu_custom_call.1']
    #allocation9 [shape = 'u8[4096]{0}', space=vmem, size = 0x1000, scoped, tag = 'input window, operand 2, single buffered']
    #allocation10 [shape = 'u8[131072]{0}', space=vmem, size = 0x20000, scoped, tag = 'input window, operand 3, single buffered']
    #allocation11 [shape = 's32[1]{0}', space=sflag, size = 0x4, scoped, tag = 'scoped memory for tpu_custom_call.1']
    #allocation12 [shape = 'u8[131072]{0}', space=vmem, size = 0x20000, scoped, tag = 'input window, operand 4, single buffered']
    #allocation13 [shape = 'u8[131072]{0}', space=vmem, size = 0x20000, scoped, tag = 'input window, operand 5, single buffered']
    #allocation14 [shape = 's32[1]{0}', space=sflag, size = 0x4, scoped, tag = 'scoped memory for tpu_custom_call.1']
    #allocation15 [shape = 'u8[65536]{0}', space=vmem, size = 0x10000, scoped, tag = 'input window, operand 7, single buffered']
    #allocation16 [shape = 'u8[65536]{0}', space=vmem, size = 0x10000, scoped, tag = 'input window, operand 9, single buffered']
    #allocation17 [shape = 's32[1]{0}', space=sflag, size = 0x4, scoped, tag = 'scoped memory for tpu_custom_call.1']
    #allocation18 [shape = 'u8[65536]{0}', space=vmem, size = 0x10000, scoped, tag = 'output window, operand 0, single buffered']
    %15 = vsyncpa [#allocation5], 0
    %16 = vsyncpa [#allocation8], 0
    %17 = vsyncpa [#allocation11], 0
    %18 = vsyncpa [#allocation14], 0
    %19 = vsyncpa [#allocation17], 0
    %20 = vsyncpa [#allocation6], 0
    // Predicated region
    $region2: #{tpu_custom_call.1} parent=1 // pred_check
      _
    $region3: #{tpu_custom_call.1} parent=1 // pred_check_branch
      %22 = sbr.rel (0) target = $region5
    $region4: #{tpu_custom_call.1} parent=1 // pred_region
      %s24 = ssub.s32 1024, 1024
      %25 = vsyncadd [#allocation5], %s24
      %s26 = sshll.u32 [#allocation4], 4
      %s27 = int_to_ptr.vmem [resolvable:$true] %s26
      %32 = dma.hbm_to_vmem [thread:$0]  %s0, 1024, %s27, [#allocation5], 64, 64, 4
    $region5: #{tpu_custom_call.1} parent=1 // pred_fallthru
      _
    // Predicated region
    $region6: #{tpu_custom_call.1} parent=1 // pred_check
      _
    $region7: #{tpu_custom_call.1} parent=1 // pred_check_branch
      %34 = sbr.rel (0) target = $region9
    $region8: #{tpu_custom_call.1} parent=1 // pred_region
      %s36 = ssub.s32 8192, 8192
      %37 = vsyncadd [#allocation8], %s36
      %s38 = sshll.u32 [#allocation7], 4
      %s39 = int_to_ptr.vmem [resolvable:$true] %s38
      %44 = dma.hbm_to_vmem [thread:$0]  %s1, 8192, %s39, [#allocation8], 512, 512, 32
    $region9: #{tpu_custom_call.1} parent=1 // pred_fallthru
      _
    // Predicated region
    $region10: #{tpu_custom_call.1} parent=1 // pred_check
      _
    $region11: #{tpu_custom_call.1} parent=1 // pred_check_branch
      %46 = sbr.rel (0) target = $region13
    $region12: #{tpu_custom_call.1} parent=1 // pred_region
      %s48 = ssub.s32 128, 128
      %49 = vsyncadd [#allocation8], %s48
      %s51 = sshll.u32 [#allocation9], 4
      %s52 = int_to_ptr.vmem [resolvable:$true] %s51
      %54 = dma.hbm_to_vmem [thread:$0]  %s2, 128, %s52, [#allocation8]
    $region13: #{tpu_custom_call.1} parent=1 // pred_fallthru
      _
    // Predicated region
    $region14: #{tpu_custom_call.1} parent=1 // pred_check
      _
    $region15: #{tpu_custom_call.1} parent=1 // pred_check_branch
      %56 = sbr.rel (0) target = $region17
    $region16: #{tpu_custom_call.1} parent=1 // pred_region
      %s58 = ssub.s32 4096, 4096
      %59 = vsyncadd [#allocation11], %s58
      %s60 = sshll.u32 [#allocation10], 4
      %s61 = int_to_ptr.vmem [resolvable:$true] %s60
      %66 = dma.hbm_to_vmem [thread:$0]  %s3, 4096, %s61, [#allocation11], 256, 256, 16
    $region17: #{tpu_custom_call.1} parent=1 // pred_fallthru
      _
    // Predicated region
    $region18: #{tpu_custom_call.1} parent=1 // pred_check
      _
    $region19: #{tpu_custom_call.1} parent=1 // pred_check_branch
      %68 = sbr.rel (0) target = $region21
    $region20: #{tpu_custom_call.1} parent=1 // pred_region
      %s70 = ssub.s32 4096, 4096
      %71 = vsyncadd [#allocation11], %s70
      %s72 = sshll.u32 [#allocation12], 4
      %s73 = int_to_ptr.vmem [resolvable:$true] %s72
      %78 = dma.hbm_to_vmem [thread:$0]  %s4, 4096, %s73, [#allocation11], 256, 256, 16
    $region21: #{tpu_custom_call.1} parent=1 // pred_fallthru
      _
    // Predicated region
    $region22: #{tpu_custom_call.1} parent=1 // pred_check
      _
    $region23: #{tpu_custom_call.1} parent=1 // pred_check_branch
      %80 = sbr.rel (0) target = $region25
    $region24: #{tpu_custom_call.1} parent=1 // pred_region
      %s82 = ssub.s32 4096, 4096
      %83 = vsyncadd [#allocation14], %s82
      %s84 = sshll.u32 [#allocation13], 4
      %s85 = int_to_ptr.vmem [resolvable:$true] %s84
      %90 = dma.hbm_to_vmem [thread:$0]  %s5, 4096, %s85, [#allocation14], 128, 128, 8
    $region25: #{tpu_custom_call.1} parent=1 // pred_fallthru
      _
    // Predicated region
    $region26: #{tpu_custom_call.1} parent=1 // pred_check
      _
    $region27: #{tpu_custom_call.1} parent=1 // pred_check_branch
      %92 = sbr.rel (0) target = $region29
    $region28: #{tpu_custom_call.1} parent=1 // pred_region
      _
    $region29: #{tpu_custom_call.1} parent=1 // pred_fallthru
      _
    // Predicated region
    $region30: #{tpu_custom_call.1} parent=1 // pred_check
      _
    $region31: #{tpu_custom_call.1} parent=1 // pred_check_branch
      %94 = sbr.rel (0) target = $region33
    $region32: #{tpu_custom_call.1} parent=1 // pred_region
      %s96 = ssub.s32 2048, 2048
      %97 = vsyncadd [#allocation14], %s96
      %s98 = sshll.u32 [#allocation15], 4
      %s99 = int_to_ptr.vmem [resolvable:$true] %s98
      %104 = dma.hbm_to_vmem [thread:$0]  %s7, 2048, %s99, [#allocation14], 64, 64, 4
    $region33: #{tpu_custom_call.1} parent=1 // pred_fallthru
      _
    // Predicated region
    $region34: #{tpu_custom_call.1} parent=1 // pred_check
      _
    $region35: #{tpu_custom_call.1} parent=1 // pred_check_branch
      %106 = sbr.rel (0) target = $region37
    $region36: #{tpu_custom_call.1} parent=1 // pred_region
      _
    $region37: #{tpu_custom_call.1} parent=1 // pred_fallthru
      _
    // Predicated region
    $region38: #{tpu_custom_call.1} parent=1 // pred_check
      _
    $region39: #{tpu_custom_call.1} parent=1 // pred_check_branch
      %108 = sbr.rel (0) target = $region41
    $region40: #{tpu_custom_call.1} parent=1 // pred_region
      %s110 = ssub.s32 2048, 2048
      %111 = vsyncadd [#allocation17], %s110
      %s112 = sshll.u32 [#allocation16], 4
      %s113 = int_to_ptr.vmem [resolvable:$true] %s112
      %118 = dma.hbm_to_vmem [thread:$0]  %s9, 2048, %s113, [#allocation17], 128, 128, 8
    $region41: #{tpu_custom_call.1} parent=1 // pred_fallthru
      _
    // Predicated region
    $region42: #{tpu_custom_call.1} parent=1 // pred_check
      _
    $region43: #{tpu_custom_call.1} parent=1 // pred_check_branch
      %120 = sbr.rel (0) target = $region45
    $region44: #{tpu_custom_call.1} parent=1 // pred_region
      %121 = dma.done [#allocation5], 1024
    $region45: #{tpu_custom_call.1} parent=1 // pred_fallthru
      _
    // Predicated region
    $region46: #{tpu_custom_call.1} parent=1 // pred_check
      _
    $region47: #{tpu_custom_call.1} parent=1 // pred_check_branch
      %123 = sbr.rel (0) target = $region49
    $region48: #{tpu_custom_call.1} parent=1 // pred_region
      %124 = dma.done [#allocation8], 8192
    $region49: #{tpu_custom_call.1} parent=1 // pred_fallthru
      _
    // Predicated region
    $region50: #{tpu_custom_call.1} parent=1 // pred_check
      _
    $region51: #{tpu_custom_call.1} parent=1 // pred_check_branch
      %126 = sbr.rel (0) target = $region53
    $region52: #{tpu_custom_call.1} parent=1 // pred_region
      %127 = dma.done [#allocation8], 128
    $region53: #{tpu_custom_call.1} parent=1 // pred_fallthru
      _
    // Predicated region
    $region54: #{tpu_custom_call.1} parent=1 // pred_check
      _
    $region55: #{tpu_custom_call.1} parent=1 // pred_check_branch
      %129 = sbr.rel (0) target = $region57
    $region56: #{tpu_custom_call.1} parent=1 // pred_region
      %130 = dma.done [#allocation11], 4096
    $region57: #{tpu_custom_call.1} parent=1 // pred_fallthru
      _
    // Predicated region
    $region58: #{tpu_custom_call.1} parent=1 // pred_check
      _
    $region59: #{tpu_custom_call.1} parent=1 // pred_check_branch
      %132 = sbr.rel (0) target = $region61
    $region60: #{tpu_custom_call.1} parent=1 // pred_region
      %133 = dma.done [#allocation11], 4096
    $region61: #{tpu_custom_call.1} parent=1 // pred_fallthru
      _
    // Predicated region
    $region62: #{tpu_custom_call.1} parent=1 // pred_check
      _
    $region63: #{tpu_custom_call.1} parent=1 // pred_check_branch
      %135 = sbr.rel (0) target = $region65
    $region64: #{tpu_custom_call.1} parent=1 // pred_region
      %136 = dma.done [#allocation14], 4096
    $region65: #{tpu_custom_call.1} parent=1 // pred_fallthru
      _
    // Predicated region
    $region66: #{tpu_custom_call.1} parent=1 // pred_check
      _
    $region67: #{tpu_custom_call.1} parent=1 // pred_check_branch
      %138 = sbr.rel (0) target = $region69
    $region68: #{tpu_custom_call.1} parent=1 // pred_region
      %139 = dma.done [#allocation14], 2048
    $region69: #{tpu_custom_call.1} parent=1 // pred_fallthru
      _
    // Predicated region
    $region70: #{tpu_custom_call.1} parent=1 // pred_check
      _
    $region71: #{tpu_custom_call.1} parent=1 // pred_check_branch
      %141 = sbr.rel (0) target = $region73
    $region72: #{tpu_custom_call.1} parent=1 // pred_region
      %142 = dma.done [#allocation17], 2048
    $region73: #{tpu_custom_call.1} parent=1 // pred_fallthru
      _
    %v144 = vld [vmem:[#allocation4] sm:$0xf]
    %v145 = vld [vmem:[#allocation4 + $0x4] sm:$0xf]
    %v146 = vld [vmem:[#allocation4 + $0x8] sm:$0xf]
    %v147 = vld [vmem:[#allocation4 + $0xc] sm:$0xf]
    %v148 = vld [vmem:[#allocation4 + $0x10] sm:$0xf]
    %v149 = vld [vmem:[#allocation4 + $0x14] sm:$0xf]
    %v150 = vld [vmem:[#allocation4 + $0x18] sm:$0xf]
    %v151 = vld [vmem:[#allocation4 + $0x1c] sm:$0xf]
    %v152 = vld [vmem:[#allocation4 + $0x20] sm:$0xf]
    %v153 = vld [vmem:[#allocation4 + $0x24] sm:$0xf]
    %v154 = vld [vmem:[#allocation4 + $0x28] sm:$0xf]
    %v155 = vld [vmem:[#allocation4 + $0x2c] sm:$0xf]
    %v156 = vld [vmem:[#allocation4 + $0x30] sm:$0xf]
    %v157 = vld [vmem:[#allocation4 + $0x34] sm:$0xf]
    %v158 = vld [vmem:[#allocation4 + $0x38] sm:$0xf]
    %v159 = vld [vmem:[#allocation4 + $0x3c] sm:$0xf]
    %v160 = vld [vmem:[#allocation7] sm:$0xff]
    %v161 = vld [vmem:[#allocation7 + $0x8] sm:$0xff]
    %v162 = vld [vmem:[#allocation7 + $0x10] sm:$0xff]
    %v163 = vld [vmem:[#allocation7 + $0x18] sm:$0xff]
    %v164 = vld [vmem:[#allocation7 + $0x20] sm:$0xff]
    %v165 = vld [vmem:[#allocation7 + $0x28] sm:$0xff]
    %v166 = vld [vmem:[#allocation7 + $0x30] sm:$0xff]
    %v167 = vld [vmem:[#allocation7 + $0x38] sm:$0xff]
    %v168 = vld [vmem:[#allocation7 + $0x40] sm:$0xff]
    %v169 = vld [vmem:[#allocation7 + $0x48] sm:$0xff]
    %v170 = vld [vmem:[#allocation7 + $0x50] sm:$0xff]
    %v171 = vld [vmem:[#allocation7 + $0x58] sm:$0xff]
    %v172 = vld [vmem:[#allocation7 + $0x60] sm:$0xff]
    %v173 = vld [vmem:[#allocation7 + $0x68] sm:$0xff]
    %v174 = vld [vmem:[#allocation7 + $0x70] sm:$0xff]
    %v175 = vld [vmem:[#allocation7 + $0x78] sm:$0xff]
    %v176 = vld [vmem:[#allocation7 + $0x80] sm:$0xff]
    %v177 = vld [vmem:[#allocation7 + $0x88] sm:$0xff]
    %v178 = vld [vmem:[#allocation7 + $0x90] sm:$0xff]
    %v179 = vld [vmem:[#allocation7 + $0x98] sm:$0xff]
    %v180 = vld [vmem:[#allocation7 + $0xa0] sm:$0xff]
    %v181 = vld [vmem:[#allocation7 + $0xa8] sm:$0xff]
    %v182 = vld [vmem:[#allocation7 + $0xb0] sm:$0xff]
    %v183 = vld [vmem:[#allocation7 + $0xb8] sm:$0xff]
    %v184 = vld [vmem:[#allocation7 + $0xc0] sm:$0xff]
    %v185 = vld [vmem:[#allocation7 + $0xc8] sm:$0xff]
    %v186 = vld [vmem:[#allocation7 + $0xd0] sm:$0xff]
    %v187 = vld [vmem:[#allocation7 + $0xd8] sm:$0xff]
    %v188 = vld [vmem:[#allocation7 + $0xe0] sm:$0xff]
    %v189 = vld [vmem:[#allocation7 + $0xe8] sm:$0xff]
    %v190 = vld [vmem:[#allocation7 + $0xf0] sm:$0xff]
    %v191 = vld [vmem:[#allocation7 + $0xf8] sm:$0xff]
    %v192 = vld [vmem:[#allocation7 + $0x100] sm:$0xff]
    %v193 = vld [vmem:[#allocation7 + $0x108] sm:$0xff]
    %v194 = vld [vmem:[#allocation7 + $0x110] sm:$0xff]
    %v195 = vld [vmem:[#allocation7 + $0x118] sm:$0xff]
    %v196 = vld [vmem:[#allocation7 + $0x120] sm:$0xff]
    %v197 = vld [vmem:[#allocation7 + $0x128] sm:$0xff]
    %v198 = vld [vmem:[#allocation7 + $0x130] sm:$0xff]
    %v199 = vld [vmem:[#allocation7 + $0x138] sm:$0xff]
    %v200 = vld [vmem:[#allocation7 + $0x140] sm:$0xff]
    %v201 = vld [vmem:[#allocation7 + $0x148] sm:$0xff]
    %v202 = vld [vmem:[#allocation7 + $0x150] sm:$0xff]
    %v203 = vld [vmem:[#allocation7 + $0x158] sm:$0xff]
    %v204 = vld [vmem:[#allocation7 + $0x160] sm:$0xff]
    %v205 = vld [vmem:[#allocation7 + $0x168] sm:$0xff]
    %v206 = vld [vmem:[#allocation7 + $0x170] sm:$0xff]
    %v207 = vld [vmem:[#allocation7 + $0x178] sm:$0xff]
    %v208 = vld [vmem:[#allocation7 + $0x180] sm:$0xff]
    %v209 = vld [vmem:[#allocation7 + $0x188] sm:$0xff]
    %v210 = vld [vmem:[#allocation7 + $0x190] sm:$0xff]
    %v211 = vld [vmem:[#allocation7 + $0x198] sm:$0xff]
    %v212 = vld [vmem:[#allocation7 + $0x1a0] sm:$0xff]
    %v213 = vld [vmem:[#allocation7 + $0x1a8] sm:$0xff]
    %v214 = vld [vmem:[#allocation7 + $0x1b0] sm:$0xff]
    %v215 = vld [vmem:[#allocation7 + $0x1b8] sm:$0xff]
    %v216 = vld [vmem:[#allocation7 + $0x1c0] sm:$0xff]
    %v217 = vld [vmem:[#allocation7 + $0x1c8] sm:$0xff]
    %v218 = vld [vmem:[#allocation7 + $0x1d0] sm:$0xff]
    %v219 = vld [vmem:[#allocation7 + $0x1d8] sm:$0xff]
    %v220 = vld [vmem:[#allocation7 + $0x1e0] sm:$0xff]
    %v221 = vld [vmem:[#allocation7 + $0x1e8] sm:$0xff]
    %v222 = vld [vmem:[#allocation7 + $0x1f0] sm:$0xff]
    %v223 = vld [vmem:[#allocation7 + $0x1f8] sm:$0xff]
    %v224 = vld [vmem:[#allocation9] sm:$0xff]
    %v226 = vlaneseq
    %v227 = vshrl.u32 %v226, 7
    %v228 = vsub.s32 0, %v227
    %v229 = vrot.slane %v224, %v228
    %v230 = vlaneseq
    %v231 = vshrl.u32 %v230, 7
    %v232 = vsub.s32 1, %v231
    %v233 = vrot.slane %v224, %v232
    %v234 = vlaneseq
    %v235 = vshrl.u32 %v234, 7
    %v236 = vsub.s32 2, %v235
    %v237 = vrot.slane %v224, %v236
    %v238 = vlaneseq
    %v239 = vshrl.u32 %v238, 7
    %v240 = vsub.s32 3, %v239
    %v241 = vrot.slane %v224, %v240
    %v242 = vlaneseq
    %v243 = vshrl.u32 %v242, 7
    %v244 = vsub.s32 4, %v243
    %v245 = vrot.slane %v224, %v244
    %v246 = vlaneseq
    %v247 = vshrl.u32 %v246, 7
    %v248 = vsub.s32 5, %v247
    %v249 = vrot.slane %v224, %v248
    %v250 = vlaneseq
    %v251 = vshrl.u32 %v250, 7
    %v252 = vsub.s32 6, %v251
    %v253 = vrot.slane %v224, %v252
    %v254 = vlaneseq
    %v255 = vshrl.u32 %v254, 7
    %v256 = vsub.s32 7, %v255
    %v257 = vrot.slane %v224, %v256
    %v282 = vunpack.c.l.b16 %v144
    %v283 = vunpack.c.l.b16 %v145
    %v284 = vunpack.c.l.b16 %v146
    %v285 = vunpack.c.l.b16 %v147
    %v286 = vunpack.c.l.b16 %v148
    %v287 = vunpack.c.l.b16 %v149
    %v288 = vunpack.c.l.b16 %v150
    %v289 = vunpack.c.l.b16 %v151
    %v290 = vunpack.c.l.b16 %v152
    %v291 = vunpack.c.l.b16 %v153
    %v292 = vunpack.c.l.b16 %v154
    %v293 = vunpack.c.l.b16 %v155
    %v294 = vunpack.c.l.b16 %v156
    %v295 = vunpack.c.l.b16 %v157
    %v296 = vunpack.c.l.b16 %v158
    %v297 = vunpack.c.l.b16 %v159
    %v298 = vpack.c.b16 %v283, %v282
    %v299 = vpack.c.b16 %v285, %v284
    %v300 = vpack.c.b16 %v287, %v286
    %v301 = vpack.c.b16 %v289, %v288
    %v302 = vpack.c.b16 %v291, %v290
    %v303 = vpack.c.b16 %v293, %v292
    %v304 = vpack.c.b16 %v295, %v294
    %v305 = vpack.c.b16 %v297, %v296
    %v378 = vunpack.c.l.b16 %v160
    %v379 = vunpack.c.h.b16 %v160
    %v380 = vunpack.c.l.b16 %v161
    %v381 = vunpack.c.h.b16 %v161
    %v382 = vunpack.c.l.b16 %v162
    %v383 = vunpack.c.h.b16 %v162
    %v384 = vunpack.c.l.b16 %v163
    %v385 = vunpack.c.h.b16 %v163
    %v386 = vunpack.c.l.b16 %v164
    %v387 = vunpack.c.h.b16 %v164
    %v388 = vunpack.c.l.b16 %v165
    %v389 = vunpack.c.h.b16 %v165
    %v390 = vunpack.c.l.b16 %v166
    %v391 = vunpack.c.h.b16 %v166
    %v392 = vunpack.c.l.b16 %v167
    %v393 = vunpack.c.h.b16 %v167
    %v394 = vunpack.c.l.b16 %v168
    %v395 = vunpack.c.h.b16 %v168
    %v396 = vunpack.c.l.b16 %v169
    %v397 = vunpack.c.h.b16 %v169
    %v398 = vunpack.c.l.b16 %v170
    %v399 = vunpack.c.h.b16 %v170
    %v400 = vunpack.c.l.b16 %v171
    %v401 = vunpack.c.h.b16 %v171
    %v402 = vunpack.c.l.b16 %v172
    %v403 = vunpack.c.h.b16 %v172
    %v404 = vunpack.c.l.b16 %v173
    %v405 = vunpack.c.h.b16 %v173
    %v406 = vunpack.c.l.b16 %v174
    %v407 = vunpack.c.h.b16 %v174
    %v408 = vunpack.c.l.b16 %v175
    %v409 = vunpack.c.h.b16 %v175
    %v410 = vunpack.c.l.b16 %v176
    %v411 = vunpack.c.h.b16 %v176
    %v412 = vunpack.c.l.b16 %v177
    %v413 = vunpack.c.h.b16 %v177
    %v414 = vunpack.c.l.b16 %v178
    %v415 = vunpack.c.h.b16 %v178
    %v416 = vunpack.c.l.b16 %v179
    %v417 = vunpack.c.h.b16 %v179
    %v418 = vunpack.c.l.b16 %v180
    %v419 = vunpack.c.h.b16 %v180
    %v420 = vunpack.c.l.b16 %v181
    %v421 = vunpack.c.h.b16 %v181
    %v422 = vunpack.c.l.b16 %v182
    %v423 = vunpack.c.h.b16 %v182
    %v424 = vunpack.c.l.b16 %v183
    %v425 = vunpack.c.h.b16 %v183
    %v426 = vunpack.c.l.b16 %v184
    %v427 = vunpack.c.h.b16 %v184
    %v428 = vunpack.c.l.b16 %v185
    %v429 = vunpack.c.h.b16 %v185
    %v430 = vunpack.c.l.b16 %v186
    %v431 = vunpack.c.h.b16 %v186
    %v432 = vunpack.c.l.b16 %v187
    %v433 = vunpack.c.h.b16 %v187
    %v434 = vunpack.c.l.b16 %v188
    %v435 = vunpack.c.h.b16 %v188
    %v436 = vunpack.c.l.b16 %v189
    %v437 = vunpack.c.h.b16 %v189
    %v438 = vunpack.c.l.b16 %v190
    %v439 = vunpack.c.h.b16 %v190
    %v440 = vunpack.c.l.b16 %v191
    %v441 = vunpack.c.h.b16 %v191
    %v442 = vunpack.c.l.b16 %v192
    %v443 = vunpack.c.h.b16 %v192
    %v444 = vunpack.c.l.b16 %v193
    %v445 = vunpack.c.h.b16 %v193
    %v446 = vunpack.c.l.b16 %v194
    %v447 = vunpack.c.h.b16 %v194
    %v448 = vunpack.c.l.b16 %v195
    %v449 = vunpack.c.h.b16 %v195
    %v450 = vunpack.c.l.b16 %v196
    %v451 = vunpack.c.h.b16 %v196
    %v452 = vunpack.c.l.b16 %v197
    %v453 = vunpack.c.h.b16 %v197
    %v454 = vunpack.c.l.b16 %v198
    %v455 = vunpack.c.h.b16 %v198
    %v456 = vunpack.c.l.b16 %v199
    %v457 = vunpack.c.h.b16 %v199
    %v458 = vunpack.c.l.b16 %v200
    %v459 = vunpack.c.h.b16 %v200
    %v460 = vunpack.c.l.b16 %v201
    %v461 = vunpack.c.h.b16 %v201
    %v462 = vunpack.c.l.b16 %v202
    %v463 = vunpack.c.h.b16 %v202
    %v464 = vunpack.c.l.b16 %v203
    %v465 = vunpack.c.h.b16 %v203
    %v466 = vunpack.c.l.b16 %v204
    %v467 = vunpack.c.h.b16 %v204
    %v468 = vunpack.c.l.b16 %v205
    %v469 = vunpack.c.h.b16 %v205
    %v470 = vunpack.c.l.b16 %v206
    %v471 = vunpack.c.h.b16 %v206
    %v472 = vunpack.c.l.b16 %v207
    %v473 = vunpack.c.h.b16 %v207
    %v474 = vunpack.c.l.b16 %v208
    %v475 = vunpack.c.h.b16 %v208
    %v476 = vunpack.c.l.b16 %v209
    %v477 = vunpack.c.h.b16 %v209
    %v478 = vunpack.c.l.b16 %v210
    %v479 = vunpack.c.h.b16 %v210
    %v480 = vunpack.c.l.b16 %v211
    %v481 = vunpack.c.h.b16 %v211
    %v482 = vunpack.c.l.b16 %v212
    %v483 = vunpack.c.h.b16 %v212
    %v484 = vunpack.c.l.b16 %v213
    %v485 = vunpack.c.h.b16 %v213
    %v486 = vunpack.c.l.b16 %v214
    %v487 = vunpack.c.h.b16 %v214
    %v488 = vunpack.c.l.b16 %v215
    %v489 = vunpack.c.h.b16 %v215
    %v490 = vunpack.c.l.b16 %v216
    %v491 = vunpack.c.h.b16 %v216
    %v492 = vunpack.c.l.b16 %v217
    %v493 = vunpack.c.h.b16 %v217
    %v494 = vunpack.c.l.b16 %v218
    %v495 = vunpack.c.h.b16 %v218
    %v496 = vunpack.c.l.b16 %v219
    %v497 = vunpack.c.h.b16 %v219
    %v498 = vunpack.c.l.b16 %v220
    %v499 = vunpack.c.h.b16 %v220
    %v500 = vunpack.c.l.b16 %v221
    %v501 = vunpack.c.h.b16 %v221
    %v502 = vunpack.c.l.b16 %v222
    %v503 = vunpack.c.h.b16 %v222
    %v504 = vunpack.c.l.b16 %v223
    %v505 = vunpack.c.h.b16 %v223
    %v506 = vpack.c.b16 %v386, %v378
    %v507 = vpack.c.b16 %v387, %v379
    %v508 = vpack.c.b16 %v388, %v380
    %v509 = vpack.c.b16 %v389, %v381
    %v510 = vpack.c.b16 %v390, %v382
    %v511 = vpack.c.b16 %v391, %v383
    %v512 = vpack.c.b16 %v392, %v384
    %v513 = vpack.c.b16 %v393, %v385
    %v514 = vpack.c.b16 %v402, %v394
    %v515 = vpack.c.b16 %v403, %v395
    %v516 = vpack.c.b16 %v404, %v396
    %v517 = vpack.c.b16 %v405, %v397
    %v518 = vpack.c.b16 %v406, %v398
    %v519 = vpack.c.b16 %v407, %v399
    %v520 = vpack.c.b16 %v408, %v400
    %v521 = vpack.c.b16 %v409, %v401
    %v522 = vpack.c.b16 %v418, %v410
    %v523 = vpack.c.b16 %v419, %v411
    %v524 = vpack.c.b16 %v420, %v412
    %v525 = vpack.c.b16 %v421, %v413
    %v526 = vpack.c.b16 %v422, %v414
    %v527 = vpack.c.b16 %v423, %v415
    %v528 = vpack.c.b16 %v424, %v416
    %v529 = vpack.c.b16 %v425, %v417
    %v530 = vpack.c.b16 %v434, %v426
    %v531 = vpack.c.b16 %v435, %v427
    %v532 = vpack.c.b16 %v436, %v428
    %v533 = vpack.c.b16 %v437, %v429
    %v534 = vpack.c.b16 %v438, %v430
    %v535 = vpack.c.b16 %v439, %v431
    %v536 = vpack.c.b16 %v440, %v432
    %v537 = vpack.c.b16 %v441, %v433
    %v538 = vpack.c.b16 %v450, %v442
    %v539 = vpack.c.b16 %v451, %v443
    %v540 = vpack.c.b16 %v452, %v444
    %v541 = vpack.c.b16 %v453, %v445
    %v542 = vpack.c.b16 %v454, %v446
    %v543 = vpack.c.b16 %v455, %v447
    %v544 = vpack.c.b16 %v456, %v448
    %v545 = vpack.c.b16 %v457, %v449
    %v546 = vpack.c.b16 %v466, %v458
    %v547 = vpack.c.b16 %v467, %v459
    %v548 = vpack.c.b16 %v468, %v460
    %v549 = vpack.c.b16 %v469, %v461
    %v550 = vpack.c.b16 %v470, %v462
    %v551 = vpack.c.b16 %v471, %v463
    %v552 = vpack.c.b16 %v472, %v464
    %v553 = vpack.c.b16 %v473, %v465
    %v554 = vpack.c.b16 %v482, %v474
    %v555 = vpack.c.b16 %v483, %v475
    %v556 = vpack.c.b16 %v484, %v476
    %v557 = vpack.c.b16 %v485, %v477
    %v558 = vpack.c.b16 %v486, %v478
    %v559 = vpack.c.b16 %v487, %v479
    %v560 = vpack.c.b16 %v488, %v480
    %v561 = vpack.c.b16 %v489, %v481
    %v562 = vpack.c.b16 %v498, %v490
    %v563 = vpack.c.b16 %v499, %v491
    %v564 = vpack.c.b16 %v500, %v492
    %v565 = vpack.c.b16 %v501, %v493
    %v566 = vpack.c.b16 %v502, %v494
    %v567 = vpack.c.b16 %v503, %v495
    %v568 = vpack.c.b16 %v504, %v496
    %v569 = vpack.c.b16 %v505, %v497
    %634 = vmatprep.subr.bf16.mxu0 %v507
    %635 = vmatpush1.bf16.msra.mxu0 %v506
    %636 = vmatprep.subr.bf16.mxu0 %v515
    %637 = vmatpush1.bf16.msra.mxu0 %v514
    %638 = vmatprep.subr.bf16.mxu0 %v523
    %639 = vmatpush1.bf16.msra.mxu0 %v522
    %640 = vmatprep.subr.bf16.mxu0 %v531
    %641 = vmatpush1.bf16.msra.mxu0 %v530
    %642 = vmatprep.subr.bf16.mxu0 %v539
    %643 = vmatpush1.bf16.msra.mxu0 %v538
    %644 = vmatprep.subr.bf16.mxu0 %v547
    %645 = vmatpush1.bf16.msra.mxu0 %v546
    %646 = vmatprep.subr.bf16.mxu0 %v555
    %647 = vmatpush1.bf16.msra.mxu0 %v554
    %648 = vmatprep.subr.bf16.mxu0 %v563
    %649 = vmatpush1.bf16.msra.mxu0 %v562
    %650 = vmatprep.subr.bf16.mxu0 0
    %651 = vmatpush1.bf16.msra.mxu0 0
    %652 = vmatprep.subr.bf16.mxu0 0
    %653 = vmatpush1.bf16.msra.mxu0 0
    %654 = vmatprep.subr.bf16.mxu0 0
    %655 = vmatpush1.bf16.msra.mxu0 0
    %656 = vmatprep.subr.bf16.mxu0 0
    %657 = vmatpush1.bf16.msra.mxu0 0
    %658 = vmatprep.subr.bf16.mxu0 0
    %659 = vmatpush1.bf16.msra.mxu0 0
    %660 = vmatprep.subr.bf16.mxu0 0
    %661 = vmatpush1.bf16.msra.mxu0 0
    %662 = vmatprep.subr.bf16.mxu0 0
    %663 = vmatpush1.bf16.msra.mxu0 0
    %664 = vmatprep.subr.bf16.mxu0 0
    %665 = vmatpush1.bf16.msra.mxu0 0
    %666 = vmatprep.mubr.bf16.mxu0 0
    %667 = vmatmul.mubr.bf16.gmra.mrb[0].mxu0 %v298
    %v668 = vpop.f32.mrb[0].mxu0
    %v669 = vadd.f32 %v229, %v668
    %v670 = vpop.f32.mrb[0].mxu0
    %v671 = vadd.f32 %v233, %v670
    %v672 = vpop.f32.mrb[0].mxu0
    %v673 = vadd.f32 %v229, %v672
    %v674 = vpop.f32.mrb[0].mxu0
    %v675 = vadd.f32 %v233, %v674
    %676 = vmatprep.mubr.bf16.mxu0 0
    %677 = vmatmul.mubr.bf16.gmra.mrb[0].mxu0 %v299
    %v678 = vpop.f32.mrb[0].mxu0
    %v679 = vadd.f32 %v229, %v678
    %v680 = vpop.f32.mrb[0].mxu0
    %v681 = vadd.f32 %v233, %v680
    %v682 = vpop.f32.mrb[0].mxu0
    %v683 = vadd.f32 %v229, %v682
    %v684 = vpop.f32.mrb[0].mxu0
    %v685 = vadd.f32 %v233, %v684
    %686 = vmatprep.mubr.bf16.mxu0 0
    %687 = vmatmul.mubr.bf16.gmra.mrb[0].mxu0 %v300
    %v688 = vpop.f32.mrb[0].mxu0
    %v689 = vadd.f32 %v229, %v688
    %v690 = vpop.f32.mrb[0].mxu0
    %v691 = vadd.f32 %v233, %v690
    %v692 = vpop.f32.mrb[0].mxu0
    %v693 = vadd.f32 %v229, %v692
    %v694 = vpop.f32.mrb[0].mxu0
    %v695 = vadd.f32 %v233, %v694
    %696 = vmatprep.mubr.bf16.mxu0 0
    %697 = vmatmul.mubr.bf16.gmra.mrb[0].mxu0 %v301
    %v698 = vpop.f32.mrb[0].mxu0
    %v699 = vadd.f32 %v229, %v698
    %v700 = vpop.f32.mrb[0].mxu0
    %v701 = vadd.f32 %v233, %v700
    %v702 = vpop.f32.mrb[0].mxu0
    %v703 = vadd.f32 %v229, %v702
    %v704 = vpop.f32.mrb[0].mxu0
    %v705 = vadd.f32 %v233, %v704
    %706 = vmatprep.mubr.bf16.mxu0 0
    %707 = vmatmul.mubr.bf16.gmra.mrb[0].mxu0 %v302
    %v708 = vpop.f32.mrb[0].mxu0
    %v709 = vadd.f32 %v229, %v708
    %v710 = vpop.f32.mrb[0].mxu0
    %v711 = vadd.f32 %v233, %v710
    %v712 = vpop.f32.mrb[0].mxu0
    %v713 = vadd.f32 %v229, %v712
    %v714 = vpop.f32.mrb[0].mxu0
    %v715 = vadd.f32 %v233, %v714
    %716 = vmatprep.mubr.bf16.mxu0 0
    %717 = vmatmul.mubr.bf16.gmra.mrb[0].mxu0 %v303
    %v718 = vpop.f32.mrb[0].mxu0
    %v719 = vadd.f32 %v229, %v718
    %v720 = vpop.f32.mrb[0].mxu0
    %v721 = vadd.f32 %v233, %v720
    %v722 = vpop.f32.mrb[0].mxu0
    %v723 = vadd.f32 %v229, %v722
    %v724 = vpop.f32.mrb[0].mxu0
    %v725 = vadd.f32 %v233, %v724
    %726 = vmatprep.mubr.bf16.mxu0 0
    %727 = vmatmul.mubr.bf16.gmra.mrb[0].mxu0 %v304
    %v728 = vpop.f32.mrb[0].mxu0
    %v729 = vadd.f32 %v229, %v728
    %v730 = vpop.f32.mrb[0].mxu0
    %v731 = vadd.f32 %v233, %v730
    %v732 = vpop.f32.mrb[0].mxu0
    %v733 = vadd.f32 %v229, %v732
    %v734 = vpop.f32.mrb[0].mxu0
    %v735 = vadd.f32 %v233, %v734
    %736 = vmatprep.mubr.bf16.mxu0 0
    %737 = vmatmul.mubr.bf16.gmra.mrb[0].mxu0 %v305
    %v738 = vpop.f32.mrb[0].mxu0
    %v739 = vadd.f32 %v229, %v738
    %v740 = vpop.f32.mrb[0].mxu0
    %v741 = vadd.f32 %v233, %v740
    %v742 = vpop.f32.mrb[0].mxu0
    %v743 = vadd.f32 %v229, %v742
    %v744 = vpop.f32.mrb[0].mxu0
    %v745 = vadd.f32 %v233, %v744
    %746 = vdwg.mxu0
    %747 = vmatprep.subr.bf16.mxu0 %v509
    %748 = vmatpush1.bf16.msra.mxu0 %v508
    %749 = vmatprep.subr.bf16.mxu0 %v517
    %750 = vmatpush1.bf16.msra.mxu0 %v516
    %751 = vmatprep.subr.bf16.mxu0 %v525
    %752 = vmatpush1.bf16.msra.mxu0 %v524
    %753 = vmatprep.subr.bf16.mxu0 %v533
    %754 = vmatpush1.bf16.msra.mxu0 %v532
    %755 = vmatprep.subr.bf16.mxu0 %v541
    %756 = vmatpush1.bf16.msra.mxu0 %v540
    %757 = vmatprep.subr.bf16.mxu0 %v549
    %758 = vmatpush1.bf16.msra.mxu0 %v548
    %759 = vmatprep.subr.bf16.mxu0 %v557
    %760 = vmatpush1.bf16.msra.mxu0 %v556
    %761 = vmatprep.subr.bf16.mxu0 %v565
    %762 = vmatpush1.bf16.msra.mxu0 %v564
    %763 = vmatprep.subr.bf16.mxu0 0
    %764 = vmatpush1.bf16.msra.mxu0 0
    %765 = vmatprep.subr.bf16.mxu0 0
    %766 = vmatpush1.bf16.msra.mxu0 0
    %767 = vmatprep.subr.bf16.mxu0 0
    %768 = vmatpush1.bf16.msra.mxu0 0
    %769 = vmatprep.subr.bf16.mxu0 0
    %770 = vmatpush1.bf16.msra.mxu0 0
    %771 = vmatprep.subr.bf16.mxu0 0
    %772 = vmatpush1.bf16.msra.mxu0 0
    %773 = vmatprep.subr.bf16.mxu0 0
    %774 = vmatpush1.bf16.msra.mxu0 0
    %775 = vmatprep.subr.bf16.mxu0 0
    %776 = vmatpush1.bf16.msra.mxu0 0
    %777 = vmatprep.subr.bf16.mxu0 0
    %778 = vmatpush1.bf16.msra.mxu0 0
    %779 = vmatprep.mubr.bf16.mxu0 0
    %780 = vmatmul.mubr.bf16.gmra.mrb[0].mxu0 %v298
    %v781 = vpop.f32.mrb[0].mxu0
    %v782 = vadd.f32 %v237, %v781
    %v783 = vpop.f32.mrb[0].mxu0
    %v784 = vadd.f32 %v241, %v783
    %v785 = vpop.f32.mrb[0].mxu0
    %v786 = vadd.f32 %v237, %v785
    %v787 = vpop.f32.mrb[0].mxu0
    %v788 = vadd.f32 %v241, %v787
    %789 = vmatprep.mubr.bf16.mxu0 0
    %790 = vmatmul.mubr.bf16.gmra.mrb[0].mxu0 %v299
    %v791 = vpop.f32.mrb[0].mxu0
    %v792 = vadd.f32 %v237, %v791
    %v793 = vpop.f32.mrb[0].mxu0
    %v794 = vadd.f32 %v241, %v793
    %v795 = vpop.f32.mrb[0].mxu0
    %v796 = vadd.f32 %v237, %v795
    %v797 = vpop.f32.mrb[0].mxu0
    %v798 = vadd.f32 %v241, %v797
    %799 = vmatprep.mubr.bf16.mxu0 0
    %800 = vmatmul.mubr.bf16.gmra.mrb[0].mxu0 %v300
    %v801 = vpop.f32.mrb[0].mxu0
    %v802 = vadd.f32 %v237, %v801
    %v803 = vpop.f32.mrb[0].mxu0
    %v804 = vadd.f32 %v241, %v803
    %v805 = vpop.f32.mrb[0].mxu0
    %v806 = vadd.f32 %v237, %v805
    %v807 = vpop.f32.mrb[0].mxu0
    %v808 = vadd.f32 %v241, %v807
    %809 = vmatprep.mubr.bf16.mxu0 0
    %810 = vmatmul.mubr.bf16.gmra.mrb[0].mxu0 %v301
    %v811 = vpop.f32.mrb[0].mxu0
    %v812 = vadd.f32 %v237, %v811
    %v813 = vpop.f32.mrb[0].mxu0
    %v814 = vadd.f32 %v241, %v813
    %v815 = vpop.f32.mrb[0].mxu0
    %v816 = vadd.f32 %v237, %v815
    %v817 = vpop.f32.mrb[0].mxu0
    %v818 = vadd.f32 %v241, %v817
    %819 = vmatprep.mubr.bf16.mxu0 0
    %820 = vmatmul.mubr.bf16.gmra.mrb[0].mxu0 %v302
    %v821 = vpop.f32.mrb[0].mxu0
    %v822 = vadd.f32 %v237, %v821
    %v823 = vpop.f32.mrb[0].mxu0
    %v824 = vadd.f32 %v241, %v823
    %v825 = vpop.f32.mrb[0].mxu0
    %v826 = vadd.f32 %v237, %v825
    %v827 = vpop.f32.mrb[0].mxu0
    %v828 = vadd.f32 %v241, %v827
    %829 = vmatprep.mubr.bf16.mxu0 0
    %830 = vmatmul.mubr.bf16.gmra.mrb[0].mxu0 %v303
    %v831 = vpop.f32.mrb[0].mxu0
    %v832 = vadd.f32 %v237, %v831
    %v833 = vpop.f32.mrb[0].mxu0
    %v834 = vadd.f32 %v241, %v833
    %v835 = vpop.f32.mrb[0].mxu0
    %v836 = vadd.f32 %v237, %v835
    %v837 = vpop.f32.mrb[0].mxu0
    %v838 = vadd.f32 %v241, %v837
    %839 = vmatprep.mubr.bf16.mxu0 0
    %840 = vmatmul.mubr.bf16.gmra.mrb[0].mxu0 %v304
    %v841 = vpop.f32.mrb[0].mxu0
    %v842 = vadd.f32 %v237, %v841
    %v843 = vpop.f32.mrb[0].mxu0
    %v844 = vadd.f32 %v241, %v843
    %v845 = vpop.f32.mrb[0].mxu0
    %v846 = vadd.f32 %v237, %v845
    %v847 = vpop.f32.mrb[0].mxu0
    %v848 = vadd.f32 %v241, %v847
    %849 = vmatprep.mubr.bf16.mxu0 0
    %850 = vmatmul.mubr.bf16.gmra.mrb[0].mxu0 %v305
    %v851 = vpop.f32.mrb[0].mxu0
    %v852 = vadd.f32 %v237, %v851
    %v853 = vpop.f32.mrb[0].mxu0
    %v854 = vadd.f32 %v241, %v853
    %v855 = vpop.f32.mrb[0].mxu0
    %v856 = vadd.f32 %v237, %v855
    %v857 = vpop.f32.mrb[0].mxu0
    %v858 = vadd.f32 %v241, %v857
    %859 = vdwg.mxu0
    %860 = vmatprep.subr.bf16.mxu0 %v511
    %861 = vmatpush1.bf16.msra.mxu0 %v510
    %862 = vmatprep.subr.bf16.mxu0 %v519
    %863 = vmatpush1.bf16.msra.mxu0 %v518
    %864 = vmatprep.subr.bf16.mxu0 %v527
    %865 = vmatpush1.bf16.msra.mxu0 %v526
    %866 = vmatprep.subr.bf16.mxu0 %v535
    %867 = vmatpush1.bf16.msra.mxu0 %v534
    %868 = vmatprep.subr.bf16.mxu0 %v543
    %869 = vmatpush1.bf16.msra.mxu0 %v542
    %870 = vmatprep.subr.bf16.mxu0 %v551
    %871 = vmatpush1.bf16.msra.mxu0 %v550
    %872 = vmatprep.subr.bf16.mxu0 %v559
    %873 = vmatpush1.bf16.msra.mxu0 %v558
    %874 = vmatprep.subr.bf16.mxu0 %v567
    %875 = vmatpush1.bf16.msra.mxu0 %v566
    %876 = vmatprep.subr.bf16.mxu0 0
    %877 = vmatpush1.bf16.msra.mxu0 0
    %878 = vmatprep.subr.bf16.mxu0 0
    %879 = vmatpush1.bf16.msra.mxu0 0
    %880 = vmatprep.subr.bf16.mxu0 0
    %881 = vmatpush1.bf16.msra.mxu0 0
    %882 = vmatprep.subr.bf16.mxu0 0
    %883 = vmatpush1.bf16.msra.mxu0 0
    %884 = vmatprep.subr.bf16.mxu0 0
    %885 = vmatpush1.bf16.msra.mxu0 0
    %886 = vmatprep.subr.bf16.mxu0 0
    %887 = vmatpush1.bf16.msra.mxu0 0
    %888 = vmatprep.subr.bf16.mxu0 0
    %889 = vmatpush1.bf16.msra.mxu0 0
    %890 = vmatprep.subr.bf16.mxu0 0
    %891 = vmatpush1.bf16.msra.mxu0 0
    %892 = vmatprep.mubr.bf16.mxu0 0
    %893 = vmatmul.mubr.bf16.gmra.mrb[0].mxu0 %v298
    %v894 = vpop.f32.mrb[0].mxu0
    %v895 = vadd.f32 %v245, %v894
    %v896 = vpop.f32.mrb[0].mxu0
    %v897 = vadd.f32 %v249, %v896
    %v898 = vpop.f32.mrb[0].mxu0
    %v899 = vadd.f32 %v245, %v898
    %v900 = vpop.f32.mrb[0].mxu0
    %v901 = vadd.f32 %v249, %v900
    %902 = vmatprep.mubr.bf16.mxu0 0
    %903 = vmatmul.mubr.bf16.gmra.mrb[0].mxu0 %v299
    %v904 = vpop.f32.mrb[0].mxu0
    %v905 = vadd.f32 %v245, %v904
    %v906 = vpop.f32.mrb[0].mxu0
    %v907 = vadd.f32 %v249, %v906
    %v908 = vpop.f32.mrb[0].mxu0
    %v909 = vadd.f32 %v245, %v908
    %v910 = vpop.f32.mrb[0].mxu0
    %v911 = vadd.f32 %v249, %v910
    %912 = vmatprep.mubr.bf16.mxu0 0
    %913 = vmatmul.mubr.bf16.gmra.mrb[0].mxu0 %v300
    %v914 = vpop.f32.mrb[0].mxu0
    %v915 = vadd.f32 %v245, %v914
    %v916 = vpop.f32.mrb[0].mxu0
    %v917 = vadd.f32 %v249, %v916
    %v918 = vpop.f32.mrb[0].mxu0
    %v919 = vadd.f32 %v245, %v918
    %v920 = vpop.f32.mrb[0].mxu0
    %v921 = vadd.f32 %v249, %v920
    %922 = vmatprep.mubr.bf16.mxu0 0
    %923 = vmatmul.mubr.bf16.gmra.mrb[0].mxu0 %v301
    %v924 = vpop.f32.mrb[0].mxu0
    %v925 = vadd.f32 %v245, %v924
    %v926 = vpop.f32.mrb[0].mxu0
    %v927 = vadd.f32 %v249, %v926
    %v928 = vpop.f32.mrb[0].mxu0
    %v929 = vadd.f32 %v245, %v928
    %v930 = vpop.f32.mrb[0].mxu0
    %v931 = vadd.f32 %v249, %v930
    %932 = vmatprep.mubr.bf16.mxu0 0
    %933 = vmatmul.mubr.bf16.gmra.mrb[0].mxu0 %v302
    %v934 = vpop.f32.mrb[0].mxu0
    %v935 = vadd.f32 %v245, %v934
    %v936 = vpop.f32.mrb[0].mxu0
    %v937 = vadd.f32 %v249, %v936
    %v938 = vpop.f32.mrb[0].mxu0
    %v939 = vadd.f32 %v245, %v938
    %v940 = vpop.f32.mrb[0].mxu0
    %v941 = vadd.f32 %v249, %v940
    %942 = vmatprep.mubr.bf16.mxu0 0
    %943 = vmatmul.mubr.bf16.gmra.mrb[0].mxu0 %v303
    %v944 = vpop.f32.mrb[0].mxu0
    %v945 = vadd.f32 %v245, %v944
    %v946 = vpop.f32.mrb[0].mxu0
    %v947 = vadd.f32 %v249, %v946
    %v948 = vpop.f32.mrb[0].mxu0
    %v949 = vadd.f32 %v245, %v948
    %v950 = vpop.f32.mrb[0].mxu0
    %v951 = vadd.f32 %v249, %v950
    %952 = vmatprep.mubr.bf16.mxu0 0
    %953 = vmatmul.mubr.bf16.gmra.mrb[0].mxu0 %v304
    %v954 = vpop.f32.mrb[0].mxu0
    %v955 = vadd.f32 %v245, %v954
    %v956 = vpop.f32.mrb[0].mxu0
    %v957 = vadd.f32 %v249, %v956
    %v958 = vpop.f32.mrb[0].mxu0
    %v959 = vadd.f32 %v245, %v958
    %v960 = vpop.f32.mrb[0].mxu0
    %v961 = vadd.f32 %v249, %v960
    %962 = vmatprep.mubr.bf16.mxu0 0
    %963 = vmatmul.mubr.bf16.gmra.mrb[0].mxu0 %v305
    %v964 = vpop.f32.mrb[0].mxu0
    %v965 = vadd.f32 %v245, %v964
    %v966 = vpop.f32.mrb[0].mxu0
    %v967 = vadd.f32 %v249, %v966
    %v968 = vpop.f32.mrb[0].mxu0
    %v969 = vadd.f32 %v245, %v968
    %v970 = vpop.f32.mrb[0].mxu0
    %v971 = vadd.f32 %v249, %v970
    %972 = vdwg.mxu0
    %973 = vmatprep.subr.bf16.mxu0 %v513
    %974 = vmatpush1.bf16.msra.mxu0 %v512
    %975 = vmatprep.subr.bf16.mxu0 %v521
    %976 = vmatpush1.bf16.msra.mxu0 %v520
    %977 = vmatprep.subr.bf16.mxu0 %v529
    %978 = vmatpush1.bf16.msra.mxu0 %v528
    %979 = vmatprep.subr.bf16.mxu0 %v537
    %980 = vmatpush1.bf16.msra.mxu0 %v536
    %981 = vmatprep.subr.bf16.mxu0 %v545
    %982 = vmatpush1.bf16.msra.mxu0 %v544
    %983 = vmatprep.subr.bf16.mxu0 %v553
    %984 = vmatpush1.bf16.msra.mxu0 %v552
    %985 = vmatprep.subr.bf16.mxu0 %v561
    %986 = vmatpush1.bf16.msra.mxu0 %v560
    %987 = vmatprep.subr.bf16.mxu0 %v569
    %988 = vmatpush1.bf16.msra.mxu0 %v568
    %989 = vmatprep.subr.bf16.mxu0 0
    %990 = vmatpush1.bf16.msra.mxu0 0
    %991 = vmatprep.subr.bf16.mxu0 0
    %992 = vmatpush1.bf16.msra.mxu0 0
    %993 = vmatprep.subr.bf16.mxu0 0
    %994 = vmatpush1.bf16.msra.mxu0 0
    %995 = vmatprep.subr.bf16.mxu0 0
    %996 = vmatpush1.bf16.msra.mxu0 0
    %997 = vmatprep.subr.bf16.mxu0 0
    %998 = vmatpush1.bf16.msra.mxu0 0
    %999 = vmatprep.subr.bf16.mxu0 0
    %1000 = vmatpush1.bf16.msra.mxu0 0
    %1001 = vmatprep.subr.bf16.mxu0 0
    %1002 = vmatpush1.bf16.msra.mxu0 0
    %1003 = vmatprep.subr.bf16.mxu0 0
    %1004 = vmatpush1.bf16.msra.mxu0 0
    %1005 = vmatprep.mubr.bf16.mxu0 0
    %1006 = vmatmul.mubr.bf16.gmra.mrb[0].mxu0 %v298
    %v1007 = vpop.f32.mrb[0].mxu0
    %v1008 = vadd.f32 %v253, %v1007
    %v1009 = vpop.f32.mrb[0].mxu0
    %v1010 = vadd.f32 %v257, %v1009
    %v1011 = vpop.f32.mrb[0].mxu0
    %v1012 = vadd.f32 %v253, %v1011
    %v1013 = vpop.f32.mrb[0].mxu0
    %v1014 = vadd.f32 %v257, %v1013
    %1015 = vmatprep.mubr.bf16.mxu0 0
    %1016 = vmatmul.mubr.bf16.gmra.mrb[0].mxu0 %v299
    %v1017 = vpop.f32.mrb[0].mxu0
    %v1018 = vadd.f32 %v253, %v1017
    %v1019 = vpop.f32.mrb[0].mxu0
    %v1020 = vadd.f32 %v257, %v1019
    %v1021 = vpop.f32.mrb[0].mxu0
    %v1022 = vadd.f32 %v253, %v1021
    %v1023 = vpop.f32.mrb[0].mxu0
    %v1024 = vadd.f32 %v257, %v1023
    %1025 = vmatprep.mubr.bf16.mxu0 0
    %1026 = vmatmul.mubr.bf16.gmra.mrb[0].mxu0 %v300
    %v1027 = vpop.f32.mrb[0].mxu0
    %v1028 = vadd.f32 %v253, %v1027
    %v1029 = vpop.f32.mrb[0].mxu0
    %v1030 = vadd.f32 %v257, %v1029
    %v1031 = vpop.f32.mrb[0].mxu0
    %v1032 = vadd.f32 %v253, %v1031
    %v1033 = vpop.f32.mrb[0].mxu0
    %v1034 = vadd.f32 %v257, %v1033
    %1035 = vmatprep.mubr.bf16.mxu0 0
    %1036 = vmatmul.mubr.bf16.gmra.mrb[0].mxu0 %v301
    %v1037 = vpop.f32.mrb[0].mxu0
    %v1038 = vadd.f32 %v253, %v1037
    %v1039 = vpop.f32.mrb[0].mxu0
    %v1040 = vadd.f32 %v257, %v1039
    %v1041 = vpop.f32.mrb[0].mxu0
    %v1042 = vadd.f32 %v253, %v1041
    %v1043 = vpop.f32.mrb[0].mxu0
    %v1044 = vadd.f32 %v257, %v1043
    %1045 = vmatprep.mubr.bf16.mxu0 0
    %1046 = vmatmul.mubr.bf16.gmra.mrb[0].mxu0 %v302
    %v1047 = vpop.f32.mrb[0].mxu0
    %v1048 = vadd.f32 %v253, %v1047
    %v1049 = vpop.f32.mrb[0].mxu0
    %v1050 = vadd.f32 %v257, %v1049
    %v1051 = vpop.f32.mrb[0].mxu0
    %v1052 = vadd.f32 %v253, %v1051
    %v1053 = vpop.f32.mrb[0].mxu0
    %v1054 = vadd.f32 %v257, %v1053
    %1055 = vmatprep.mubr.bf16.mxu0 0
    %1056 = vmatmul.mubr.bf16.gmra.mrb[0].mxu0 %v303
    %v1057 = vpop.f32.mrb[0].mxu0
    %v1058 = vadd.f32 %v253, %v1057
    %v1059 = vpop.f32.mrb[0].mxu0
    %v1060 = vadd.f32 %v257, %v1059
    %v1061 = vpop.f32.mrb[0].mxu0
    %v1062 = vadd.f32 %v253, %v1061
    %v1063 = vpop.f32.mrb[0].mxu0
    %v1064 = vadd.f32 %v257, %v1063
    %1065 = vmatprep.mubr.bf16.mxu0 0
    %1066 = vmatmul.mubr.bf16.gmra.mrb[0].mxu0 %v304
    %v1067 = vpop.f32.mrb[0].mxu0
    %v1068 = vadd.f32 %v253, %v1067
    %v1069 = vpop.f32.mrb[0].mxu0
    %v1070 = vadd.f32 %v257, %v1069
    %v1071 = vpop.f32.mrb[0].mxu0
    %v1072 = vadd.f32 %v253, %v1071
    %v1073 = vpop.f32.mrb[0].mxu0
    %v1074 = vadd.f32 %v257, %v1073
    %1075 = vmatprep.mubr.bf16.mxu0 0
    %1076 = vmatmul.mubr.bf16.gmra.mrb[0].mxu0 %v305
    %v1077 = vpop.f32.mrb[0].mxu0
    %v1078 = vadd.f32 %v253, %v1077
    %v1079 = vpop.f32.mrb[0].mxu0
    %v1080 = vadd.f32 %v257, %v1079
    %v1081 = vpop.f32.mrb[0].mxu0
    %v1082 = vadd.f32 %v253, %v1081
    %v1083 = vpop.f32.mrb[0].mxu0
    %v1084 = vadd.f32 %v257, %v1083
    %1085 = vdwg.mxu0
    %v1086 = vpack.c.bf16 %v673, %v669
    %v1087 = vpack.c.bf16 %v675, %v671
    %v1088 = vpack.c.bf16 %v786, %v782
    %v1089 = vpack.c.bf16 %v788, %v784
    %v1090 = vpack.c.bf16 %v899, %v895
    %v1091 = vpack.c.bf16 %v901, %v897
    %v1092 = vpack.c.bf16 %v1012, %v1008
    %v1093 = vpack.c.bf16 %v1014, %v1010
    %v1094 = vpack.c.bf16 %v683, %v679
    %v1095 = vpack.c.bf16 %v685, %v681
    %v1096 = vpack.c.bf16 %v796, %v792
    %v1097 = vpack.c.bf16 %v798, %v794
    %v1098 = vpack.c.bf16 %v909, %v905
    %v1099 = vpack.c.bf16 %v911, %v907
    %v1100 = vpack.c.bf16 %v1022, %v1018
    %v1101 = vpack.c.bf16 %v1024, %v1020
    %v1102 = vpack.c.bf16 %v693, %v689
    %v1103 = vpack.c.bf16 %v695, %v691
    %v1104 = vpack.c.bf16 %v806, %v802
    %v1105 = vpack.c.bf16 %v808, %v804
    %v1106 = vpack.c.bf16 %v919, %v915
    %v1107 = vpack.c.bf16 %v921, %v917
    %v1108 = vpack.c.bf16 %v1032, %v1028
    %v1109 = vpack.c.bf16 %v1034, %v1030
    %v1110 = vpack.c.bf16 %v703, %v699
    %v1111 = vpack.c.bf16 %v705, %v701
    %v1112 = vpack.c.bf16 %v816, %v812
    %v1113 = vpack.c.bf16 %v818, %v814
    %v1114 = vpack.c.bf16 %v929, %v925
    %v1115 = vpack.c.bf16 %v931, %v927
    %v1116 = vpack.c.bf16 %v1042, %v1038
    %v1117 = vpack.c.bf16 %v1044, %v1040
    %v1118 = vpack.c.bf16 %v713, %v709
    %v1119 = vpack.c.bf16 %v715, %v711
    %v1120 = vpack.c.bf16 %v826, %v822
    %v1121 = vpack.c.bf16 %v828, %v824
    %v1122 = vpack.c.bf16 %v939, %v935
    %v1123 = vpack.c.bf16 %v941, %v937
    %v1124 = vpack.c.bf16 %v1052, %v1048
    %v1125 = vpack.c.bf16 %v1054, %v1050
    %v1126 = vpack.c.bf16 %v723, %v719
    %v1127 = vpack.c.bf16 %v725, %v721
    %v1128 = vpack.c.bf16 %v836, %v832
    %v1129 = vpack.c.bf16 %v838, %v834
    %v1130 = vpack.c.bf16 %v949, %v945
    %v1131 = vpack.c.bf16 %v951, %v947
    %v1132 = vpack.c.bf16 %v1062, %v1058
    %v1133 = vpack.c.bf16 %v1064, %v1060
    %v1134 = vpack.c.bf16 %v733, %v729
    %v1135 = vpack.c.bf16 %v735, %v731
    %v1136 = vpack.c.bf16 %v846, %v842
    %v1137 = vpack.c.bf16 %v848, %v844
    %v1138 = vpack.c.bf16 %v959, %v955
    %v1139 = vpack.c.bf16 %v961, %v957
    %v1140 = vpack.c.bf16 %v1072, %v1068
    %v1141 = vpack.c.bf16 %v1074, %v1070
    %v1142 = vpack.c.bf16 %v743, %v739
    %v1143 = vpack.c.bf16 %v745, %v741
    %v1144 = vpack.c.bf16 %v856, %v852
    %v1145 = vpack.c.bf16 %v858, %v854
    %v1146 = vpack.c.bf16 %v969, %v965
    %v1147 = vpack.c.bf16 %v971, %v967
    %v1148 = vpack.c.bf16 %v1082, %v1078
    %v1149 = vpack.c.bf16 %v1084, %v1080
    %1150 = vst [vmem:[#allocation2] sm:$0xff] %v1086
    %1151 = vst [vmem:[#allocation2 + $0x8] sm:$0xff] %v1087
    %1152 = vst [vmem:[#allocation2 + $0x10] sm:$0xff] %v1088
    %1153 = vst [vmem:[#allocation2 + $0x18] sm:$0xff] %v1089
    %1154 = vst [vmem:[#allocation2 + $0x20] sm:$0xff] %v1090
    %1155 = vst [vmem:[#allocation2 + $0x28] sm:$0xff] %v1091
    %1156 = vst [vmem:[#allocation2 + $0x30] sm:$0xff] %v1092
    %1157 = vst [vmem:[#allocation2 + $0x38] sm:$0xff] %v1093
    %1158 = vst [vmem:[#allocation2 + $0x40] sm:$0xff] %v1094
    %1159 = vst [vmem:[#allocation2 + $0x48] sm:$0xff] %v1095
    %1160 = vst [vmem:[#allocation2 + $0x50] sm:$0xff] %v1096
    %1161 = vst [vmem:[#allocation2 + $0x58] sm:$0xff] %v1097
    %1162 = vst [vmem:[#allocation2 + $0x60] sm:$0xff] %v1098
    %1163 = vst [vmem:[#allocation2 + $0x68] sm:$0xff] %v1099
    %1164 = vst [vmem:[#allocation2 + $0x70] sm:$0xff] %v1100
    %1165 = vst [vmem:[#allocation2 + $0x78] sm:$0xff] %v1101
    %1166 = vst [vmem:[#allocation2 + $0x80] sm:$0xff] %v1102
    %1167 = vst [vmem:[#allocation2 + $0x88] sm:$0xff] %v1103
    %1168 = vst [vmem:[#allocation2 + $0x90] sm:$0xff] %v1104
    %1169 = vst [vmem:[#allocation2 + $0x98] sm:$0xff] %v1105
    %1170 = vst [vmem:[#allocation2 + $0xa0] sm:$0xff] %v1106
    %1171 = vst [vmem:[#allocation2 + $0xa8] sm:$0xff] %v1107
    %1172 = vst [vmem:[#allocation2 + $0xb0] sm:$0xff] %v1108
    %1173 = vst [vmem:[#allocation2 + $0xb8] sm:$0xff] %v1109
    %1174 = vst [vmem:[#allocation2 + $0xc0] sm:$0xff] %v1110
    %1175 = vst [vmem:[#allocation2 + $0xc8] sm:$0xff] %v1111
    %1176 = vst [vmem:[#allocation2 + $0xd0] sm:$0xff] %v1112
    %1177 = vst [vmem:[#allocation2 + $0xd8] sm:$0xff] %v1113
    %1178 = vst [vmem:[#allocation2 + $0xe0] sm:$0xff] %v1114
    %1179 = vst [vmem:[#allocation2 + $0xe8] sm:$0xff] %v1115
    %1180 = vst [vmem:[#allocation2 + $0xf0] sm:$0xff] %v1116
    %1181 = vst [vmem:[#allocation2 + $0xf8] sm:$0xff] %v1117
    %1182 = vst [vmem:[#allocation2 + $0x100] sm:$0xff] %v1118
    %1183 = vst [vmem:[#allocation2 + $0x108] sm:$0xff] %v1119
    %1184 = vst [vmem:[#allocation2 + $0x110] sm:$0xff] %v1120
    %1185 = vst [vmem:[#allocation2 + $0x118] sm:$0xff] %v1121
    %1186 = vst [vmem:[#allocation2 + $0x120] sm:$0xff] %v1122
    %1187 = vst [vmem:[#allocation2 + $0x128] sm:$0xff] %v1123
    %1188 = vst [vmem:[#allocation2 + $0x130] sm:$0xff] %v1124
    %1189 = vst [vmem:[#allocation2 + $0x138] sm:$0xff] %v1125
    %1190 = vst [vmem:[#allocation2 + $0x140] sm:$0xff] %v1126
    %1191 = vst [vmem:[#allocation2 + $0x148] sm:$0xff] %v1127
    %1192 = vst [vmem:[#allocation2 + $0x150] sm:$0xff] %v1128
    %1193 = vst [vmem:[#allocation2 + $0x158] sm:$0xff] %v1129
    %1194 = vst [vmem:[#allocation2 + $0x160] sm:$0xff] %v1130
    %1195 = vst [vmem:[#allocation2 + $0x168] sm:$0xff] %v1131
    %1196 = vst [vmem:[#allocation2 + $0x170] sm:$0xff] %v1132
    %1197 = vst [vmem:[#allocation2 + $0x178] sm:$0xff] %v1133
    %1198 = vst [vmem:[#allocation2 + $0x180] sm:$0xff] %v1134
    %1199 = vst [vmem:[#allocation2 + $0x188] sm:$0xff] %v1135
    %1200 = vst [vmem:[#allocation2 + $0x190] sm:$0xff] %v1136
    %1201 = vst [vmem:[#allocation2 + $0x198] sm:$0xff] %v1137
    %1202 = vst [vmem:[#allocation2 + $0x1a0] sm:$0xff] %v1138
    %1203 = vst [vmem:[#allocation2 + $0x1a8] sm:$0xff] %v1139
    %1204 = vst [vmem:[#allocation2 + $0x1b0] sm:$0xff] %v1140
    %1205 = vst [vmem:[#allocation2 + $0x1b8] sm:$0xff] %v1141
    %1206 = vst [vmem:[#allocation2 + $0x1c0] sm:$0xff] %v1142
    %1207 = vst [vmem:[#allocation2 + $0x1c8] sm:$0xff] %v1143
    %1208 = vst [vmem:[#allocation2 + $0x1d0] sm:$0xff] %v1144
    %1209 = vst [vmem:[#allocation2 + $0x1d8] sm:$0xff] %v1145
    %1210 = vst [vmem:[#allocation2 + $0x1e0] sm:$0xff] %v1146
    %1211 = vst [vmem:[#allocation2 + $0x1e8] sm:$0xff] %v1147
    %1212 = vst [vmem:[#allocation2 + $0x1f0] sm:$0xff] %v1148
    %1213 = vst [vmem:[#allocation2 + $0x1f8] sm:$0xff] %v1149
    %v1214 = vld [vmem:[#allocation2] sm:$0xff]
    %v1215 = vld [vmem:[#allocation2 + $0x8] sm:$0xff]
    %v1216 = vld [vmem:[#allocation2 + $0x10] sm:$0xff]
    %v1217 = vld [vmem:[#allocation2 + $0x18] sm:$0xff]
    %s1218 = scalar_lea.vmem [#allocation2], 448
    %v1219 = vld [vmem:[%s1218 + $0x20] sm:$0xff]
    %v1220 = vld [vmem:[%s1218 + $0x28] sm:$0xff]
    %v1221 = vld [vmem:[%s1218 + $0x30] sm:$0xff]
    %v1222 = vld [vmem:[%s1218 + $0x38] sm:$0xff]
    %v1223 = vunpack.c.l.bf16 %v1214
    %v1224 = vunpack.c.l.bf16 %v1215
    %v1225 = vunpack.c.l.bf16 %v1216
    %v1226 = vunpack.c.l.bf16 %v1217
    %v1227 = vunpack.c.h.bf16 %v1214
    %v1228 = vunpack.c.h.bf16 %v1215
    %v1229 = vunpack.c.h.bf16 %v1216
    %v1230 = vunpack.c.h.bf16 %v1217
    %v1231 = vld [vmem:[#allocation10] sm:$0xff]
    %v1232 = vld [vmem:[#allocation10 + $0x8] sm:$0xff]
    %v1233 = vld [vmem:[#allocation10 + $0x10] sm:$0xff]
    %v1234 = vld [vmem:[#allocation10 + $0x18] sm:$0xff]
    %v1235 = vld [vmem:[#allocation10 + $0x20] sm:$0xff]
    %v1236 = vld [vmem:[#allocation10 + $0x28] sm:$0xff]
    %v1237 = vld [vmem:[#allocation10 + $0x30] sm:$0xff]
    %v1238 = vld [vmem:[#allocation10 + $0x38] sm:$0xff]
    %v1239 = vld [vmem:[#allocation10 + $0x40] sm:$0xff]
    %v1240 = vld [vmem:[#allocation10 + $0x48] sm:$0xff]
    %v1241 = vld [vmem:[#allocation10 + $0x50] sm:$0xff]
    %v1242 = vld [vmem:[#allocation10 + $0x58] sm:$0xff]
    %v1243 = vld [vmem:[#allocation10 + $0x60] sm:$0xff]
    %v1244 = vld [vmem:[#allocation10 + $0x68] sm:$0xff]
    %v1245 = vld [vmem:[#allocation10 + $0x70] sm:$0xff]
    %v1246 = vld [vmem:[#allocation10 + $0x78] sm:$0xff]
    %v1247 = vld [vmem:[#allocation10 + $0x80] sm:$0xff]
    %v1248 = vld [vmem:[#allocation10 + $0x88] sm:$0xff]
    %v1249 = vld [vmem:[#allocation10 + $0x90] sm:$0xff]
    %v1250 = vld [vmem:[#allocation10 + $0x98] sm:$0xff]
    %v1251 = vld [vmem:[#allocation10 + $0xa0] sm:$0xff]
    %v1252 = vld [vmem:[#allocation10 + $0xa8] sm:$0xff]
    %v1253 = vld [vmem:[#allocation10 + $0xb0] sm:$0xff]
    %v1254 = vld [vmem:[#allocation10 + $0xb8] sm:$0xff]
    %v1255 = vld [vmem:[#allocation10 + $0xc0] sm:$0xff]
    %v1256 = vld [vmem:[#allocation10 + $0xc8] sm:$0xff]
    %v1257 = vld [vmem:[#allocation10 + $0xd0] sm:$0xff]
    %v1258 = vld [vmem:[#allocation10 + $0xd8] sm:$0xff]
    %v1259 = vld [vmem:[#allocation10 + $0xe0] sm:$0xff]
    %v1260 = vld [vmem:[#allocation10 + $0xe8] sm:$0xff]
    %v1261 = vld [vmem:[#allocation10 + $0xf0] sm:$0xff]
    %v1262 = vld [vmem:[#allocation10 + $0xf8] sm:$0xff]
    %v1295 = vunpack.c.l.b16 %v1231
    %v1296 = vunpack.c.h.b16 %v1231
    %v1297 = vunpack.c.l.b16 %v1232
    %v1298 = vunpack.c.h.b16 %v1232
    %v1299 = vunpack.c.l.b16 %v1233
    %v1300 = vunpack.c.h.b16 %v1233
    %v1301 = vunpack.c.l.b16 %v1234
    %v1302 = vunpack.c.h.b16 %v1234
    %v1303 = vunpack.c.l.b16 %v1235
    %v1304 = vunpack.c.h.b16 %v1235
    %v1305 = vunpack.c.l.b16 %v1236
    %v1306 = vunpack.c.h.b16 %v1236
    %v1307 = vunpack.c.l.b16 %v1237
    %v1308 = vunpack.c.h.b16 %v1237
    %v1309 = vunpack.c.l.b16 %v1238
    %v1310 = vunpack.c.h.b16 %v1238
    %v1311 = vunpack.c.l.b16 %v1239
    %v1312 = vunpack.c.h.b16 %v1239
    %v1313 = vunpack.c.l.b16 %v1240
    %v1314 = vunpack.c.h.b16 %v1240
    %v1315 = vunpack.c.l.b16 %v1241
    %v1316 = vunpack.c.h.b16 %v1241
    %v1317 = vunpack.c.l.b16 %v1242
    %v1318 = vunpack.c.h.b16 %v1242
    %v1319 = vunpack.c.l.b16 %v1243
    %v1320 = vunpack.c.h.b16 %v1243
    %v1321 = vunpack.c.l.b16 %v1244
    %v1322 = vunpack.c.h.b16 %v1244
    %v1323 = vunpack.c.l.b16 %v1245
    %v1324 = vunpack.c.h.b16 %v1245
    %v1325 = vunpack.c.l.b16 %v1246
    %v1326 = vunpack.c.h.b16 %v1246
    %v1327 = vunpack.c.l.b16 %v1247
    %v1328 = vunpack.c.h.b16 %v1247
    %v1329 = vunpack.c.l.b16 %v1248
    %v1330 = vunpack.c.h.b16 %v1248
    %v1331 = vunpack.c.l.b16 %v1249
    %v1332 = vunpack.c.h.b16 %v1249
    %v1333 = vunpack.c.l.b16 %v1250
    %v1334 = vunpack.c.h.b16 %v1250
    %v1335 = vunpack.c.l.b16 %v1251
    %v1336 = vunpack.c.h.b16 %v1251
    %v1337 = vunpack.c.l.b16 %v1252
    %v1338 = vunpack.c.h.b16 %v1252
    %v1339 = vunpack.c.l.b16 %v1253
    %v1340 = vunpack.c.h.b16 %v1253
    %v1341 = vunpack.c.l.b16 %v1254
    %v1342 = vunpack.c.h.b16 %v1254
    %v1343 = vunpack.c.l.b16 %v1255
    %v1344 = vunpack.c.h.b16 %v1255
    %v1345 = vunpack.c.l.b16 %v1256
    %v1346 = vunpack.c.h.b16 %v1256
    %v1347 = vunpack.c.l.b16 %v1257
    %v1348 = vunpack.c.h.b16 %v1257
    %v1349 = vunpack.c.l.b16 %v1258
    %v1350 = vunpack.c.h.b16 %v1258
    %v1351 = vunpack.c.l.b16 %v1259
    %v1352 = vunpack.c.h.b16 %v1259
    %v1353 = vunpack.c.l.b16 %v1260
    %v1354 = vunpack.c.h.b16 %v1260
    %v1355 = vunpack.c.l.b16 %v1261
    %v1356 = vunpack.c.h.b16 %v1261
    %v1357 = vunpack.c.l.b16 %v1262
    %v1358 = vunpack.c.h.b16 %v1262
    %v1359 = vpack.c.b16 %v1299, %v1295
    %v1360 = vpack.c.b16 %v1300, %v1296
    %v1361 = vpack.c.b16 %v1301, %v1297
    %v1362 = vpack.c.b16 %v1302, %v1298
    %v1363 = vpack.c.b16 %v1307, %v1303
    %v1364 = vpack.c.b16 %v1308, %v1304
    %v1365 = vpack.c.b16 %v1309, %v1305
    %v1366 = vpack.c.b16 %v1310, %v1306
    %v1367 = vpack.c.b16 %v1315, %v1311
    %v1368 = vpack.c.b16 %v1316, %v1312
    %v1369 = vpack.c.b16 %v1317, %v1313
    %v1370 = vpack.c.b16 %v1318, %v1314
    %v1371 = vpack.c.b16 %v1323, %v1319
    %v1372 = vpack.c.b16 %v1324, %v1320
    %v1373 = vpack.c.b16 %v1325, %v1321
    %v1374 = vpack.c.b16 %v1326, %v1322
    %v1375 = vpack.c.b16 %v1331, %v1327
    %v1376 = vpack.c.b16 %v1332, %v1328
    %v1377 = vpack.c.b16 %v1333, %v1329
    %v1378 = vpack.c.b16 %v1334, %v1330
    %v1379 = vpack.c.b16 %v1339, %v1335
    %v1380 = vpack.c.b16 %v1340, %v1336
    %v1381 = vpack.c.b16 %v1341, %v1337
    %v1382 = vpack.c.b16 %v1342, %v1338
    %v1383 = vpack.c.b16 %v1347, %v1343
    %v1384 = vpack.c.b16 %v1348, %v1344
    %v1385 = vpack.c.b16 %v1349, %v1345
    %v1386 = vpack.c.b16 %v1350, %v1346
    %v1387 = vpack.c.b16 %v1355, %v1351
    %v1388 = vpack.c.b16 %v1356, %v1352
    %v1389 = vpack.c.b16 %v1357, %v1353
    %v1390 = vpack.c.b16 %v1358, %v1354
    %1423 = vmatprep.subr.bf16.mxu0 %v1360
    %1424 = vmatpush1.bf16.msra.mxu0 %v1359
    %1425 = vmatprep.subr.bf16.mxu0 %v1364
    %1426 = vmatpush1.bf16.msra.mxu0 %v1363
    %1427 = vmatprep.subr.bf16.mxu0 %v1368
    %1428 = vmatpush1.bf16.msra.mxu0 %v1367
    %1429 = vmatprep.subr.bf16.mxu0 %v1372
    %1430 = vmatpush1.bf16.msra.mxu0 %v1371
    %1431 = vmatprep.subr.bf16.mxu0 %v1376
    %1432 = vmatpush1.bf16.msra.mxu0 %v1375
    %1433 = vmatprep.subr.bf16.mxu0 %v1380
    %1434 = vmatpush1.bf16.msra.mxu0 %v1379
    %1435 = vmatprep.subr.bf16.mxu0 %v1384
    %1436 = vmatpush1.bf16.msra.mxu0 %v1383
    %1437 = vmatprep.subr.bf16.mxu0 %v1388
    %1438 = vmatpush1.bf16.msra.mxu0 %v1387
    %1439 = vmatprep.subr.bf16.mxu0 0
    %1440 = vmatpush1.bf16.msra.mxu0 0
    %1441 = vmatprep.subr.bf16.mxu0 0
    %1442 = vmatpush1.bf16.msra.mxu0 0
    %1443 = vmatprep.subr.bf16.mxu0 0
    %1444 = vmatpush1.bf16.msra.mxu0 0
    %1445 = vmatprep.subr.bf16.mxu0 0
    %1446 = vmatpush1.bf16.msra.mxu0 0
    %1447 = vmatprep.subr.bf16.mxu0 0
    %1448 = vmatpush1.bf16.msra.mxu0 0
    %1449 = vmatprep.subr.bf16.mxu0 0
    %1450 = vmatpush1.bf16.msra.mxu0 0
    %1451 = vmatprep.subr.bf16.mxu0 0
    %1452 = vmatpush1.bf16.msra.mxu0 0
    %1453 = vmatprep.subr.bf16.mxu0 0
    %1454 = vmatpush1.bf16.msra.mxu0 0
    %1455 = vmatprep.mubr.bf16.mxu0 0
    %1456 = vmatmul.mubr.bf16.gmra.mrb[0].mxu0 0
    %v1457 = vpop.f32.mrb[0].mxu0
    %v1458 = vadd.f32 0.0, %v1457
    %v1459 = vpop.f32.mrb[0].mxu0
    %v1460 = vadd.f32 0.0, %v1459
    %v1461 = vpop.f32.mrb[0].mxu0
    %v1462 = vadd.f32 0.0, %v1461
    %v1463 = vpop.f32.mrb[0].mxu0
    %v1464 = vadd.f32 0.0, %v1463
    %1465 = vdwg.mxu0
    %1466 = vmatprep.subr.bf16.mxu0 %v1362
    %1467 = vmatpush1.bf16.msra.mxu0 %v1361
    %1468 = vmatprep.subr.bf16.mxu0 %v1366
    %1469 = vmatpush1.bf16.msra.mxu0 %v1365
    %1470 = vmatprep.subr.bf16.mxu0 %v1370
    %1471 = vmatpush1.bf16.msra.mxu0 %v1369
    %1472 = vmatprep.subr.bf16.mxu0 %v1374
    %1473 = vmatpush1.bf16.msra.mxu0 %v1373
    %1474 = vmatprep.subr.bf16.mxu0 %v1378
    %1475 = vmatpush1.bf16.msra.mxu0 %v1377
    %1476 = vmatprep.subr.bf16.mxu0 %v1382
    %1477 = vmatpush1.bf16.msra.mxu0 %v1381
    %1478 = vmatprep.subr.bf16.mxu0 %v1386
    %1479 = vmatpush1.bf16.msra.mxu0 %v1385
    %1480 = vmatprep.subr.bf16.mxu0 %v1390
    %1481 = vmatpush1.bf16.msra.mxu0 %v1389
    %1482 = vmatprep.subr.bf16.mxu0 0
    %1483 = vmatpush1.bf16.msra.mxu0 0
    %1484 = vmatprep.subr.bf16.mxu0 0
    %1485 = vmatpush1.bf16.msra.mxu0 0
    %1486 = vmatprep.subr.bf16.mxu0 0
    %1487 = vmatpush1.bf16.msra.mxu0 0
    %1488 = vmatprep.subr.bf16.mxu0 0
    %1489 = vmatpush1.bf16.msra.mxu0 0
    %1490 = vmatprep.subr.bf16.mxu0 0
    %1491 = vmatpush1.bf16.msra.mxu0 0
    %1492 = vmatprep.subr.bf16.mxu0 0
    %1493 = vmatpush1.bf16.msra.mxu0 0
    %1494 = vmatprep.subr.bf16.mxu0 0
    %1495 = vmatpush1.bf16.msra.mxu0 0
    %1496 = vmatprep.subr.bf16.mxu0 0
    %1497 = vmatpush1.bf16.msra.mxu0 0
    %1498 = vmatprep.mubr.bf16.mxu0 0
    %1499 = vmatmul.mubr.bf16.gmra.mrb[0].mxu0 0
    %v1500 = vpop.f32.mrb[0].mxu0
    %v1501 = vadd.f32 0.0, %v1500
    %v1502 = vpop.f32.mrb[0].mxu0
    %v1503 = vadd.f32 0.0, %v1502
    %v1504 = vpop.f32.mrb[0].mxu0
    %v1505 = vadd.f32 0.0, %v1504
    %v1506 = vpop.f32.mrb[0].mxu0
    %v1507 = vadd.f32 0.0, %v1506
    %1508 = vdwg.mxu0
    %v1509 = vadd.f32 %v1223, %v1458
    %v1510 = vadd.f32 %v1224, %v1460
    %v1511 = vadd.f32 %v1225, %v1501
    %v1512 = vadd.f32 %v1226, %v1503
    %v1513 = vadd.f32 %v1227, %v1462
    %v1514 = vadd.f32 %v1228, %v1464
    %v1515 = vadd.f32 %v1229, %v1505
    %v1516 = vadd.f32 %v1230, %v1507
    %v1517 = vxor.u32 %v1509, 2147483648
    %v1518 = vxor.u32 %v1513, 2147483648
    %v1519 = vmul.f32 %v1517, 1.442695
    %v1520 = vpow.pop %v1519
    %v1521 = vmul.f32 %v1518, 1.442695
    %v1522 = vpow.pop %v1521
    %v1523 = vadd.f32 %v1520, 1.0
    %v1524 = vadd.f32 %v1522, 1.0
    %v1525 = vrcp.pop %v1523
    %v1526 = vmul.f32 1.0, %v1525
    %v1527 = vrcp.pop %v1524
    %v1528 = vmul.f32 1.0, %v1527
    %v1529 = vxor.u32 %v1510, 2147483648
    %v1530 = vxor.u32 %v1514, 2147483648
    %v1531 = vmul.f32 %v1529, 1.442695
    %v1532 = vpow.pop %v1531
    %v1533 = vmul.f32 %v1530, 1.442695
    %v1534 = vpow.pop %v1533
    %v1535 = vadd.f32 %v1532, 1.0
    %v1536 = vadd.f32 %v1534, 1.0
    %v1537 = vrcp.pop %v1535
    %v1538 = vmul.f32 1.0, %v1537
    %v1539 = vrcp.pop %v1536
    %v1540 = vmul.f32 1.0, %v1539
    %v1541 = vtanh.pop %v1511
    %v1542 = vtanh.pop %v1515
    %v1543 = vxor.u32 %v1512, 2147483648
    %v1544 = vxor.u32 %v1516, 2147483648
    %v1545 = vmul.f32 %v1543, 1.442695
    %v1546 = vpow.pop %v1545
    %v1547 = vmul.f32 %v1544, 1.442695
    %v1548 = vpow.pop %v1547
    %v1549 = vadd.f32 %v1546, 1.0
    %v1550 = vadd.f32 %v1548, 1.0
    %v1551 = vrcp.pop %v1549
    %v1552 = vmul.f32 1.0, %v1551
    %v1553 = vrcp.pop %v1550
    %v1554 = vmul.f32 1.0, %v1553
    %v1555 = vmul.f32 %v1538, 0.0
    %v1556 = vmul.f32 %v1540, 0.0
    %v1557 = vmul.f32 %v1526, %v1541
    %v1558 = vmul.f32 %v1528, %v1542
    %v1559 = vadd.f32 %v1555, %v1557
    %v1560 = vadd.f32 %v1556, %v1558
    %v1561 = vtanh.pop %v1559
    %v1562 = vtanh.pop %v1560
    %v1563 = vmul.f32 %v1552, %v1561
    %v1564 = vmul.f32 %v1554, %v1562
    %v1565 = vunpack.c.l.bf16 %v1219
    %v1566 = vunpack.c.l.bf16 %v1220
    %v1567 = vunpack.c.l.bf16 %v1221
    %v1568 = vunpack.c.l.bf16 %v1222
    %v1569 = vunpack.c.h.bf16 %v1219
    %v1570 = vunpack.c.h.bf16 %v1220
    %v1571 = vunpack.c.h.bf16 %v1221
    %v1572 = vunpack.c.h.bf16 %v1222
    %v1573 = vld [vmem:[#allocation12] sm:$0xff]
    %v1574 = vld [vmem:[#allocation12 + $0x8] sm:$0xff]
    %v1575 = vld [vmem:[#allocation12 + $0x10] sm:$0xff]
    %v1576 = vld [vmem:[#allocation12 + $0x18] sm:$0xff]
    %v1577 = vld [vmem:[#allocation12 + $0x20] sm:$0xff]
    %v1578 = vld [vmem:[#allocation12 + $0x28] sm:$0xff]
    %v1579 = vld [vmem:[#allocation12 + $0x30] sm:$0xff]
    %v1580 = vld [vmem:[#allocation12 + $0x38] sm:$0xff]
    %v1581 = vld [vmem:[#allocation12 + $0x40] sm:$0xff]
    %v1582 = vld [vmem:[#allocation12 + $0x48] sm:$0xff]
    %v1583 = vld [vmem:[#allocation12 + $0x50] sm:$0xff]
    %v1584 = vld [vmem:[#allocation12 + $0x58] sm:$0xff]
    %v1585 = vld [vmem:[#allocation12 + $0x60] sm:$0xff]
    %v1586 = vld [vmem:[#allocation12 + $0x68] sm:$0xff]
    %v1587 = vld [vmem:[#allocation12 + $0x70] sm:$0xff]
    %v1588 = vld [vmem:[#allocation12 + $0x78] sm:$0xff]
    %v1589 = vld [vmem:[#allocation12 + $0x80] sm:$0xff]
    %v1590 = vld [vmem:[#allocation12 + $0x88] sm:$0xff]
    %v1591 = vld [vmem:[#allocation12 + $0x90] sm:$0xff]
    %v1592 = vld [vmem:[#allocation12 + $0x98] sm:$0xff]
    %v1593 = vld [vmem:[#allocation12 + $0xa0] sm:$0xff]
    %v1594 = vld [vmem:[#allocation12 + $0xa8] sm:$0xff]
    %v1595 = vld [vmem:[#allocation12 + $0xb0] sm:$0xff]
    %v1596 = vld [vmem:[#allocation12 + $0xb8] sm:$0xff]
    %v1597 = vld [vmem:[#allocation12 + $0xc0] sm:$0xff]
    %v1598 = vld [vmem:[#allocation12 + $0xc8] sm:$0xff]
    %v1599 = vld [vmem:[#allocation12 + $0xd0] sm:$0xff]
    %v1600 = vld [vmem:[#allocation12 + $0xd8] sm:$0xff]
    %v1601 = vld [vmem:[#allocation12 + $0xe0] sm:$0xff]
    %v1602 = vld [vmem:[#allocation12 + $0xe8] sm:$0xff]
    %v1603 = vld [vmem:[#allocation12 + $0xf0] sm:$0xff]
    %v1604 = vld [vmem:[#allocation12 + $0xf8] sm:$0xff]
    %v1637 = vunpack.c.l.b16 %v1573
    %v1638 = vunpack.c.h.b16 %v1573
    %v1639 = vunpack.c.l.b16 %v1574
    %v1640 = vunpack.c.h.b16 %v1574
    %v1641 = vunpack.c.l.b16 %v1575
    %v1642 = vunpack.c.h.b16 %v1575
    %v1643 = vunpack.c.l.b16 %v1576
    %v1644 = vunpack.c.h.b16 %v1576
    %v1645 = vunpack.c.l.b16 %v1577
    %v1646 = vunpack.c.h.b16 %v1577
    %v1647 = vunpack.c.l.b16 %v1578
    %v1648 = vunpack.c.h.b16 %v1578
    %v1649 = vunpack.c.l.b16 %v1579
    %v1650 = vunpack.c.h.b16 %v1579
    %v1651 = vunpack.c.l.b16 %v1580
    %v1652 = vunpack.c.h.b16 %v1580
    %v1653 = vunpack.c.l.b16 %v1581
    %v1654 = vunpack.c.h.b16 %v1581
    %v1655 = vunpack.c.l.b16 %v1582
    %v1656 = vunpack.c.h.b16 %v1582
    %v1657 = vunpack.c.l.b16 %v1583
    %v1658 = vunpack.c.h.b16 %v1583
    %v1659 = vunpack.c.l.b16 %v1584
    %v1660 = vunpack.c.h.b16 %v1584
    %v1661 = vunpack.c.l.b16 %v1585
    %v1662 = vunpack.c.h.b16 %v1585
    %v1663 = vunpack.c.l.b16 %v1586
    %v1664 = vunpack.c.h.b16 %v1586
    %v1665 = vunpack.c.l.b16 %v1587
    %v1666 = vunpack.c.h.b16 %v1587
    %v1667 = vunpack.c.l.b16 %v1588
    %v1668 = vunpack.c.h.b16 %v1588
    %v1669 = vunpack.c.l.b16 %v1589
    %v1670 = vunpack.c.h.b16 %v1589
    %v1671 = vunpack.c.l.b16 %v1590
    %v1672 = vunpack.c.h.b16 %v1590
    %v1673 = vunpack.c.l.b16 %v1591
    %v1674 = vunpack.c.h.b16 %v1591
    %v1675 = vunpack.c.l.b16 %v1592
    %v1676 = vunpack.c.h.b16 %v1592
    %v1677 = vunpack.c.l.b16 %v1593
    %v1678 = vunpack.c.h.b16 %v1593
    %v1679 = vunpack.c.l.b16 %v1594
    %v1680 = vunpack.c.h.b16 %v1594
    %v1681 = vunpack.c.l.b16 %v1595
    %v1682 = vunpack.c.h.b16 %v1595
    %v1683 = vunpack.c.l.b16 %v1596
    %v1684 = vunpack.c.h.b16 %v1596
    %v1685 = vunpack.c.l.b16 %v1597
    %v1686 = vunpack.c.h.b16 %v1597
    %v1687 = vunpack.c.l.b16 %v1598
    %v1688 = vunpack.c.h.b16 %v1598
    %v1689 = vunpack.c.l.b16 %v1599
    %v1690 = vunpack.c.h.b16 %v1599
    %v1691 = vunpack.c.l.b16 %v1600
    %v1692 = vunpack.c.h.b16 %v1600
    %v1693 = vunpack.c.l.b16 %v1601
    %v1694 = vunpack.c.h.b16 %v1601
    %v1695 = vunpack.c.l.b16 %v1602
    %v1696 = vunpack.c.h.b16 %v1602
    %v1697 = vunpack.c.l.b16 %v1603
    %v1698 = vunpack.c.h.b16 %v1603
    %v1699 = vunpack.c.l.b16 %v1604
    %v1700 = vunpack.c.h.b16 %v1604
    %v1701 = vpack.c.b16 %v1641, %v1637
    %v1702 = vpack.c.b16 %v1642, %v1638
    %v1703 = vpack.c.b16 %v1643, %v1639
    %v1704 = vpack.c.b16 %v1644, %v1640
    %v1705 = vpack.c.b16 %v1649, %v1645
    %v1706 = vpack.c.b16 %v1650, %v1646
    %v1707 = vpack.c.b16 %v1651, %v1647
    %v1708 = vpack.c.b16 %v1652, %v1648
    %v1709 = vpack.c.b16 %v1657, %v1653
    %v1710 = vpack.c.b16 %v1658, %v1654
    %v1711 = vpack.c.b16 %v1659, %v1655
    %v1712 = vpack.c.b16 %v1660, %v1656
    %v1713 = vpack.c.b16 %v1665, %v1661
    %v1714 = vpack.c.b16 %v1666, %v1662
    %v1715 = vpack.c.b16 %v1667, %v1663
    %v1716 = vpack.c.b16 %v1668, %v1664
    %v1717 = vpack.c.b16 %v1673, %v1669
    %v1718 = vpack.c.b16 %v1674, %v1670
    %v1719 = vpack.c.b16 %v1675, %v1671
    %v1720 = vpack.c.b16 %v1676, %v1672
    %v1721 = vpack.c.b16 %v1681, %v1677
    %v1722 = vpack.c.b16 %v1682, %v1678
    %v1723 = vpack.c.b16 %v1683, %v1679
    %v1724 = vpack.c.b16 %v1684, %v1680
    %v1725 = vpack.c.b16 %v1689, %v1685
    %v1726 = vpack.c.b16 %v1690, %v1686
    %v1727 = vpack.c.b16 %v1691, %v1687
    %v1728 = vpack.c.b16 %v1692, %v1688
    %v1729 = vpack.c.b16 %v1697, %v1693
    %v1730 = vpack.c.b16 %v1698, %v1694
    %v1731 = vpack.c.b16 %v1699, %v1695
    %v1732 = vpack.c.b16 %v1700, %v1696
    %1765 = vmatprep.subr.bf16.mxu0 %v1702
    %1766 = vmatpush1.bf16.msra.mxu0 %v1701
    %1767 = vmatprep.subr.bf16.mxu0 %v1706
    %1768 = vmatpush1.bf16.msra.mxu0 %v1705
    %1769 = vmatprep.subr.bf16.mxu0 %v1710
    %1770 = vmatpush1.bf16.msra.mxu0 %v1709
    %1771 = vmatprep.subr.bf16.mxu0 %v1714
    %1772 = vmatpush1.bf16.msra.mxu0 %v1713
    %1773 = vmatprep.subr.bf16.mxu0 %v1718
    %1774 = vmatpush1.bf16.msra.mxu0 %v1717
    %1775 = vmatprep.subr.bf16.mxu0 %v1722
    %1776 = vmatpush1.bf16.msra.mxu0 %v1721
    %1777 = vmatprep.subr.bf16.mxu0 %v1726
    %1778 = vmatpush1.bf16.msra.mxu0 %v1725
    %1779 = vmatprep.subr.bf16.mxu0 %v1730
    %1780 = vmatpush1.bf16.msra.mxu0 %v1729
    %1781 = vmatprep.subr.bf16.mxu0 0
    %1782 = vmatpush1.bf16.msra.mxu0 0
    %1783 = vmatprep.subr.bf16.mxu0 0
    %1784 = vmatpush1.bf16.msra.mxu0 0
    %1785 = vmatprep.subr.bf16.mxu0 0
    %1786 = vmatpush1.bf16.msra.mxu0 0
    %1787 = vmatprep.subr.bf16.mxu0 0
    %1788 = vmatpush1.bf16.msra.mxu0 0
    %1789 = vmatprep.subr.bf16.mxu0 0
    %1790 = vmatpush1.bf16.msra.mxu0 0
    %1791 = vmatprep.subr.bf16.mxu0 0
    %1792 = vmatpush1.bf16.msra.mxu0 0
    %1793 = vmatprep.subr.bf16.mxu0 0
    %1794 = vmatpush1.bf16.msra.mxu0 0
    %1795 = vmatprep.subr.bf16.mxu0 0
    %1796 = vmatpush1.bf16.msra.mxu0 0
    %1797 = vmatprep.mubr.bf16.mxu0 0
    %1798 = vmatmul.mubr.bf16.gmra.mrb[0].mxu0 0
    %v1799 = vpop.f32.mrb[0].mxu0
    %v1800 = vadd.f32 0.0, %v1799
    %v1801 = vpop.f32.mrb[0].mxu0
    %v1802 = vadd.f32 0.0, %v1801
    %v1803 = vpop.f32.mrb[0].mxu0
    %v1804 = vadd.f32 0.0, %v1803
    %v1805 = vpop.f32.mrb[0].mxu0
    %v1806 = vadd.f32 0.0, %v1805
    %1807 = vdwg.mxu0
    %1808 = vmatprep.subr.bf16.mxu0 %v1704
    %1809 = vmatpush1.bf16.msra.mxu0 %v1703
    %1810 = vmatprep.subr.bf16.mxu0 %v1708
    %1811 = vmatpush1.bf16.msra.mxu0 %v1707
    %1812 = vmatprep.subr.bf16.mxu0 %v1712
    %1813 = vmatpush1.bf16.msra.mxu0 %v1711
    %1814 = vmatprep.subr.bf16.mxu0 %v1716
    %1815 = vmatpush1.bf16.msra.mxu0 %v1715
    %1816 = vmatprep.subr.bf16.mxu0 %v1720
    %1817 = vmatpush1.bf16.msra.mxu0 %v1719
    %1818 = vmatprep.subr.bf16.mxu0 %v1724
    %1819 = vmatpush1.bf16.msra.mxu0 %v1723
    %1820 = vmatprep.subr.bf16.mxu0 %v1728
    %1821 = vmatpush1.bf16.msra.mxu0 %v1727
    %1822 = vmatprep.subr.bf16.mxu0 %v1732
    %1823 = vmatpush1.bf16.msra.mxu0 %v1731
    %1824 = vmatprep.subr.bf16.mxu0 0
    %1825 = vmatpush1.bf16.msra.mxu0 0
    %1826 = vmatprep.subr.bf16.mxu0 0
    %1827 = vmatpush1.bf16.msra.mxu0 0
    %1828 = vmatprep.subr.bf16.mxu0 0
    %1829 = vmatpush1.bf16.msra.mxu0 0
    %1830 = vmatprep.subr.bf16.mxu0 0
    %1831 = vmatpush1.bf16.msra.mxu0 0
    %1832 = vmatprep.subr.bf16.mxu0 0
    %1833 = vmatpush1.bf16.msra.mxu0 0
    %1834 = vmatprep.subr.bf16.mxu0 0
    %1835 = vmatpush1.bf16.msra.mxu0 0
    %1836 = vmatprep.subr.bf16.mxu0 0
    %1837 = vmatpush1.bf16.msra.mxu0 0
    %1838 = vmatprep.subr.bf16.mxu0 0
    %1839 = vmatpush1.bf16.msra.mxu0 0
    %1840 = vmatprep.mubr.bf16.mxu0 0
    %1841 = vmatmul.mubr.bf16.gmra.mrb[0].mxu0 0
    %v1842 = vpop.f32.mrb[0].mxu0
    %v1843 = vadd.f32 0.0, %v1842
    %v1844 = vpop.f32.mrb[0].mxu0
    %v1845 = vadd.f32 0.0, %v1844
    %v1846 = vpop.f32.mrb[0].mxu0
    %v1847 = vadd.f32 0.0, %v1846
    %v1848 = vpop.f32.mrb[0].mxu0
    %v1849 = vadd.f32 0.0, %v1848
    %1850 = vdwg.mxu0
    %v1851 = vadd.f32 %v1565, %v1800
    %v1852 = vadd.f32 %v1566, %v1802
    %v1853 = vadd.f32 %v1567, %v1843
    %v1854 = vadd.f32 %v1568, %v1845
    %v1855 = vadd.f32 %v1569, %v1804
    %v1856 = vadd.f32 %v1570, %v1806
    %v1857 = vadd.f32 %v1571, %v1847
    %v1858 = vadd.f32 %v1572, %v1849
    %v1859 = vxor.u32 %v1851, 2147483648
    %v1860 = vxor.u32 %v1855, 2147483648
    %v1861 = vmul.f32 %v1859, 1.442695
    %v1862 = vpow.pop %v1861
    %v1863 = vmul.f32 %v1860, 1.442695
    %v1864 = vpow.pop %v1863
    %v1865 = vadd.f32 %v1862, 1.0
    %v1866 = vadd.f32 %v1864, 1.0
    %v1867 = vrcp.pop %v1865
    %v1868 = vmul.f32 1.0, %v1867
    %v1869 = vrcp.pop %v1866
    %v1870 = vmul.f32 1.0, %v1869
    %v1871 = vxor.u32 %v1852, 2147483648
    %v1872 = vxor.u32 %v1856, 2147483648
    %v1873 = vmul.f32 %v1871, 1.442695
    %v1874 = vpow.pop %v1873
    %v1875 = vmul.f32 %v1872, 1.442695
    %v1876 = vpow.pop %v1875
    %v1877 = vadd.f32 %v1874, 1.0
    %v1878 = vadd.f32 %v1876, 1.0
    %v1879 = vrcp.pop %v1877
    %v1880 = vmul.f32 1.0, %v1879
    %v1881 = vrcp.pop %v1878
    %v1882 = vmul.f32 1.0, %v1881
    %v1883 = vtanh.pop %v1853
    %v1884 = vtanh.pop %v1857
    %v1885 = vxor.u32 %v1854, 2147483648
    %v1886 = vxor.u32 %v1858, 2147483648
    %v1887 = vmul.f32 %v1885, 1.442695
    %v1888 = vpow.pop %v1887
    %v1889 = vmul.f32 %v1886, 1.442695
    %v1890 = vpow.pop %v1889
    %v1891 = vadd.f32 %v1888, 1.0
    %v1892 = vadd.f32 %v1890, 1.0
    %v1893 = vrcp.pop %v1891
    %v1894 = vmul.f32 1.0, %v1893
    %v1895 = vrcp.pop %v1892
    %v1896 = vmul.f32 1.0, %v1895
    %v1897 = vmul.f32 %v1880, 0.0
    %v1898 = vmul.f32 %v1882, 0.0
    %v1899 = vmul.f32 %v1868, %v1883
    %v1900 = vmul.f32 %v1870, %v1884
    %v1901 = vadd.f32 %v1897, %v1899
    %v1902 = vadd.f32 %v1898, %v1900
    %v1903 = vtanh.pop %v1901
    %v1904 = vtanh.pop %v1902
    %v1905 = vmul.f32 %v1894, %v1903
    %v1906 = vmul.f32 %v1896, %v1904
    %1907 = vst [vmem:[#allocation3] sm:$0xff] %v1563
    %1908 = vst [vmem:[#allocation3 + $0x10] sm:$0xff] %v1564
    %s1909 = scalar_lea.vmem [#allocation3], 224
    %1910 = vst [vmem:[%s1909 + $0x8] sm:$0xff] %v1905
    %1911 = vst [vmem:[%s1909 + $0x18] sm:$0xff] %v1906
    %s1912 = scalar_lea.vmem [#allocation2], 64
    %v1913 = vld [vmem:[%s1912] sm:$0xff]
    %v1914 = vld [vmem:[%s1912 + $0x8] sm:$0xff]
    %v1915 = vld [vmem:[%s1912 + $0x10] sm:$0xff]
    %v1916 = vld [vmem:[%s1912 + $0x18] sm:$0xff]
    %s1917 = scalar_lea.vmem [#allocation2], 384
    %v1918 = vld [vmem:[%s1917 + $0x20] sm:$0xff]
    %v1919 = vld [vmem:[%s1917 + $0x28] sm:$0xff]
    %v1920 = vld [vmem:[%s1917 + $0x30] sm:$0xff]
    %v1921 = vld [vmem:[%s1917 + $0x38] sm:$0xff]
    %v1922 = vunpack.c.l.bf16 %v1913
    %v1923 = vunpack.c.l.bf16 %v1914
    %v1924 = vunpack.c.l.bf16 %v1915
    %v1925 = vunpack.c.l.bf16 %v1916
    %v1926 = vunpack.c.h.bf16 %v1913
    %v1927 = vunpack.c.h.bf16 %v1914
    %v1928 = vunpack.c.h.bf16 %v1915
    %v1929 = vunpack.c.h.bf16 %v1916
    %v1930 = vpack.c.bf16 %v1564, %v1563
    %v1931 = vld [vmem:[#allocation10] sm:$0xff]
    %v1932 = vld [vmem:[#allocation10 + $0x8] sm:$0xff]
    %v1933 = vld [vmem:[#allocation10 + $0x10] sm:$0xff]
    %v1934 = vld [vmem:[#allocation10 + $0x18] sm:$0xff]
    %v1935 = vld [vmem:[#allocation10 + $0x20] sm:$0xff]
    %v1936 = vld [vmem:[#allocation10 + $0x28] sm:$0xff]
    %v1937 = vld [vmem:[#allocation10 + $0x30] sm:$0xff]
    %v1938 = vld [vmem:[#allocation10 + $0x38] sm:$0xff]
    %v1939 = vld [vmem:[#allocation10 + $0x40] sm:$0xff]
    %v1940 = vld [vmem:[#allocation10 + $0x48] sm:$0xff]
    %v1941 = vld [vmem:[#allocation10 + $0x50] sm:$0xff]
    %v1942 = vld [vmem:[#allocation10 + $0x58] sm:$0xff]
    %v1943 = vld [vmem:[#allocation10 + $0x60] sm:$0xff]
    %v1944 = vld [vmem:[#allocation10 + $0x68] sm:$0xff]
    %v1945 = vld [vmem:[#allocation10 + $0x70] sm:$0xff]
    %v1946 = vld [vmem:[#allocation10 + $0x78] sm:$0xff]
    %v1947 = vld [vmem:[#allocation10 + $0x80] sm:$0xff]
    %v1948 = vld [vmem:[#allocation10 + $0x88] sm:$0xff]
    %v1949 = vld [vmem:[#allocation10 + $0x90] sm:$0xff]
    %v1950 = vld [vmem:[#allocation10 + $0x98] sm:$0xff]
    %v1951 = vld [vmem:[#allocation10 + $0xa0] sm:$0xff]
    %v1952 = vld [vmem:[#allocation10 + $0xa8] sm:$0xff]
    %v1953 = vld [vmem:[#allocation10 + $0xb0] sm:$0xff]
    %v1954 = vld [vmem:[#allocation10 + $0xb8] sm:$0xff]
    %v1955 = vld [vmem:[#allocation10 + $0xc0] sm:$0xff]
    %v1956 = vld [vmem:[#allocation10 + $0xc8] sm:$0xff]
    %v1957 = vld [vmem:[#allocation10 + $0xd0] sm:$0xff]
    %v1958 = vld [vmem:[#allocation10 + $0xd8] sm:$0xff]
    %v1959 = vld [vmem:[#allocation10 + $0xe0] sm:$0xff]
    %v1960 = vld [vmem:[#allocation10 + $0xe8] sm:$0xff]
    %v1961 = vld [vmem:[#allocation10 + $0xf0] sm:$0xff]
    %v1962 = vld [vmem:[#allocation10 + $0xf8] sm:$0xff]
    %v1995 = vunpack.c.l.b16 %v1931
    %v1996 = vunpack.c.h.b16 %v1931
    %v1997 = vunpack.c.l.b16 %v1932
    %v1998 = vunpack.c.h.b16 %v1932
    %v1999 = vunpack.c.l.b16 %v1933
    %v2000 = vunpack.c.h.b16 %v1933
    %v2001 = vunpack.c.l.b16 %v1934
    %v2002 = vunpack.c.h.b16 %v1934
    %v2003 = vunpack.c.l.b16 %v1935
    %v2004 = vunpack.c.h.b16 %v1935
    %v2005 = vunpack.c.l.b16 %v1936
    %v2006 = vunpack.c.h.b16 %v1936
    %v2007 = vunpack.c.l.b16 %v1937
    %v2008 = vunpack.c.h.b16 %v1937
    %v2009 = vunpack.c.l.b16 %v1938
    %v2010 = vunpack.c.h.b16 %v1938
    %v2011 = vunpack.c.l.b16 %v1939
    %v2012 = vunpack.c.h.b16 %v1939
    %v2013 = vunpack.c.l.b16 %v1940
    %v2014 = vunpack.c.h.b16 %v1940
    %v2015 = vunpack.c.l.b16 %v1941
    %v2016 = vunpack.c.h.b16 %v1941
    %v2017 = vunpack.c.l.b16 %v1942
    %v2018 = vunpack.c.h.b16 %v1942
    %v2019 = vunpack.c.l.b16 %v1943
    %v2020 = vunpack.c.h.b16 %v1943
    %v2021 = vunpack.c.l.b16 %v1944
    %v2022 = vunpack.c.h.b16 %v1944
    %v2023 = vunpack.c.l.b16 %v1945
    %v2024 = vunpack.c.h.b16 %v1945
    %v2025 = vunpack.c.l.b16 %v1946
    %v2026 = vunpack.c.h.b16 %v1946
    %v2027 = vunpack.c.l.b16 %v1947
    %v2028 = vunpack.c.h.b16 %v1947
    %v2029 = vunpack.c.l.b16 %v1948
    %v2030 = vunpack.c.h.b16 %v1948
    %v2031 = vunpack.c.l.b16 %v1949
    %v2032 = vunpack.c.h.b16 %v1949
    %v2033 = vunpack.c.l.b16 %v1950
    %v2034 = vunpack.c.h.b16 %v1950
    %v2035 = vunpack.c.l.b16 %v1951
    %v2036 = vunpack.c.h.b16 %v1951
    %v2037 = vunpack.c.l.b16 %v1952
    %v2038 = vunpack.c.h.b16 %v1952
    %v2039 = vunpack.c.l.b16 %v1953
    %v2040 = vunpack.c.h.b16 %v1953
    %v2041 = vunpack.c.l.b16 %v1954
    %v2042 = vunpack.c.h.b16 %v1954
    %v2043 = vunpack.c.l.b16 %v1955
    %v2044 = vunpack.c.h.b16 %v1955
    %v2045 = vunpack.c.l.b16 %v1956
    %v2046 = vunpack.c.h.b16 %v1956
    %v2047 = vunpack.c.l.b16 %v1957
    %v2048 = vunpack.c.h.b16 %v1957
    %v2049 = vunpack.c.l.b16 %v1958
    %v2050 = vunpack.c.h.b16 %v1958
    %v2051 = vunpack.c.l.b16 %v1959
    %v2052 = vunpack.c.h.b16 %v1959
    %v2053 = vunpack.c.l.b16 %v1960
    %v2054 = vunpack.c.h.b16 %v1960
    %v2055 = vunpack.c.l.b16 %v1961
    %v2056 = vunpack.c.h.b16 %v1961
    %v2057 = vunpack.c.l.b16 %v1962
    %v2058 = vunpack.c.h.b16 %v1962
    %v2059 = vpack.c.b16 %v1999, %v1995
    %v2060 = vpack.c.b16 %v2000, %v1996
    %v2061 = vpack.c.b16 %v2001, %v1997
    %v2062 = vpack.c.b16 %v2002, %v1998
    %v2063 = vpack.c.b16 %v2007, %v2003
    %v2064 = vpack.c.b16 %v2008, %v2004
    %v2065 = vpack.c.b16 %v2009, %v2005
    %v2066 = vpack.c.b16 %v2010, %v2006
    %v2067 = vpack.c.b16 %v2015, %v2011
    %v2068 = vpack.c.b16 %v2016, %v2012
    %v2069 = vpack.c.b16 %v2017, %v2013
    %v2070 = vpack.c.b16 %v2018, %v2014
    %v2071 = vpack.c.b16 %v2023, %v2019
    %v2072 = vpack.c.b16 %v2024, %v2020
    %v2073 = vpack.c.b16 %v2025, %v2021
    %v2074 = vpack.c.b16 %v2026, %v2022
    %v2075 = vpack.c.b16 %v2031, %v2027
    %v2076 = vpack.c.b16 %v2032, %v2028
    %v2077 = vpack.c.b16 %v2033, %v2029
    %v2078 = vpack.c.b16 %v2034, %v2030
    %v2079 = vpack.c.b16 %v2039, %v2035
    %v2080 = vpack.c.b16 %v2040, %v2036
    %v2081 = vpack.c.b16 %v2041, %v2037
    %v2082 = vpack.c.b16 %v2042, %v2038
    %v2083 = vpack.c.b16 %v2047, %v2043
    %v2084 = vpack.c.b16 %v2048, %v2044
    %v2085 = vpack.c.b16 %v2049, %v2045
    %v2086 = vpack.c.b16 %v2050, %v2046
    %v2087 = vpack.c.b16 %v2055, %v2051
    %v2088 = vpack.c.b16 %v2056, %v2052
    %v2089 = vpack.c.b16 %v2057, %v2053
    %v2090 = vpack.c.b16 %v2058, %v2054
    %2123 = vmatprep.subr.bf16.mxu0 %v2060
    %2124 = vmatpush1.bf16.msra.mxu0 %v2059
    %2125 = vmatprep.subr.bf16.mxu0 %v2064
    %2126 = vmatpush1.bf16.msra.mxu0 %v2063
    %2127 = vmatprep.subr.bf16.mxu0 %v2068
    %2128 = vmatpush1.bf16.msra.mxu0 %v2067
    %2129 = vmatprep.subr.bf16.mxu0 %v2072
    %2130 = vmatpush1.bf16.msra.mxu0 %v2071
    %2131 = vmatprep.subr.bf16.mxu0 %v2076
    %2132 = vmatpush1.bf16.msra.mxu0 %v2075
    %2133 = vmatprep.subr.bf16.mxu0 %v2080
    %2134 = vmatpush1.bf16.msra.mxu0 %v2079
    %2135 = vmatprep.subr.bf16.mxu0 %v2084
    %2136 = vmatpush1.bf16.msra.mxu0 %v2083
    %2137 = vmatprep.subr.bf16.mxu0 %v2088
    %2138 = vmatpush1.bf16.msra.mxu0 %v2087
    %2139 = vmatprep.subr.bf16.mxu0 0
    %2140 = vmatpush1.bf16.msra.mxu0 0
    %2141 = vmatprep.subr.bf16.mxu0 0
    %2142 = vmatpush1.bf16.msra.mxu0 0
    %2143 = vmatprep.subr.bf16.mxu0 0
    %2144 = vmatpush1.bf16.msra.mxu0 0
    %2145 = vmatprep.subr.bf16.mxu0 0
    %2146 = vmatpush1.bf16.msra.mxu0 0
    %2147 = vmatprep.subr.bf16.mxu0 0
    %2148 = vmatpush1.bf16.msra.mxu0 0
    %2149 = vmatprep.subr.bf16.mxu0 0
    %2150 = vmatpush1.bf16.msra.mxu0 0
    %2151 = vmatprep.subr.bf16.mxu0 0
    %2152 = vmatpush1.bf16.msra.mxu0 0
    %2153 = vmatprep.subr.bf16.mxu0 0
    %2154 = vmatpush1.bf16.msra.mxu0 0
    %2155 = vmatprep.mubr.bf16.mxu0 0
    %2156 = vmatmul.mubr.bf16.gmra.mrb[0].mxu0 %v1930
    %v2157 = vpop.f32.mrb[0].mxu0
    %v2158 = vadd.f32 0.0, %v2157
    %v2159 = vpop.f32.mrb[0].mxu0
    %v2160 = vadd.f32 0.0, %v2159
    %v2161 = vpop.f32.mrb[0].mxu0
    %v2162 = vadd.f32 0.0, %v2161
    %v2163 = vpop.f32.mrb[0].mxu0
    %v2164 = vadd.f32 0.0, %v2163
    %2165 = vdwg.mxu0
    %2166 = vmatprep.subr.bf16.mxu0 %v2062
    %2167 = vmatpush1.bf16.msra.mxu0 %v2061
    %2168 = vmatprep.subr.bf16.mxu0 %v2066
    %2169 = vmatpush1.bf16.msra.mxu0 %v2065
    %2170 = vmatprep.subr.bf16.mxu0 %v2070
    %2171 = vmatpush1.bf16.msra.mxu0 %v2069
    %2172 = vmatprep.subr.bf16.mxu0 %v2074
    %2173 = vmatpush1.bf16.msra.mxu0 %v2073
    %2174 = vmatprep.subr.bf16.mxu0 %v2078
    %2175 = vmatpush1.bf16.msra.mxu0 %v2077
    %2176 = vmatprep.subr.bf16.mxu0 %v2082
    %2177 = vmatpush1.bf16.msra.mxu0 %v2081
    %2178 = vmatprep.subr.bf16.mxu0 %v2086
    %2179 = vmatpush1.bf16.msra.mxu0 %v2085
    %2180 = vmatprep.subr.bf16.mxu0 %v2090
    %2181 = vmatpush1.bf16.msra.mxu0 %v2089
    %2182 = vmatprep.subr.bf16.mxu0 0
    %2183 = vmatpush1.bf16.msra.mxu0 0
    %2184 = vmatprep.subr.bf16.mxu0 0
    %2185 = vmatpush1.bf16.msra.mxu0 0
    %2186 = vmatprep.subr.bf16.mxu0 0
    %2187 = vmatpush1.bf16.msra.mxu0 0
    %2188 = vmatprep.subr.bf16.mxu0 0
    %2189 = vmatpush1.bf16.msra.mxu0 0
    %2190 = vmatprep.subr.bf16.mxu0 0
    %2191 = vmatpush1.bf16.msra.mxu0 0
    %2192 = vmatprep.subr.bf16.mxu0 0
    %2193 = vmatpush1.bf16.msra.mxu0 0
    %2194 = vmatprep.subr.bf16.mxu0 0
    %2195 = vmatpush1.bf16.msra.mxu0 0
    %2196 = vmatprep.subr.bf16.mxu0 0
    %2197 = vmatpush1.bf16.msra.mxu0 0
    %2198 = vmatprep.mubr.bf16.mxu0 0
    %2199 = vmatmul.mubr.bf16.gmra.mrb[0].mxu0 %v1930
    %v2200 = vpop.f32.mrb[0].mxu0
    %v2201 = vadd.f32 0.0, %v2200
    %v2202 = vpop.f32.mrb[0].mxu0
    %v2203 = vadd.f32 0.0, %v2202
    %v2204 = vpop.f32.mrb[0].mxu0
    %v2205 = vadd.f32 0.0, %v2204
    %v2206 = vpop.f32.mrb[0].mxu0
    %v2207 = vadd.f32 0.0, %v2206
    %2208 = vdwg.mxu0
    %v2209 = vadd.f32 %v1922, %v2158
    %v2210 = vadd.f32 %v1923, %v2160
    %v2211 = vadd.f32 %v1924, %v2201
    %v2212 = vadd.f32 %v1925, %v2203
    %v2213 = vadd.f32 %v1926, %v2162
    %v2214 = vadd.f32 %v1927, %v2164
    %v2215 = vadd.f32 %v1928, %v2205
    %v2216 = vadd.f32 %v1929, %v2207
    %v2217 = vxor.u32 %v2209, 2147483648
    %v2218 = vxor.u32 %v2213, 2147483648
    %v2219 = vmul.f32 %v2217, 1.442695
    %v2220 = vpow.pop %v2219
    %v2221 = vmul.f32 %v2218, 1.442695
    %v2222 = vpow.pop %v2221
    %v2223 = vadd.f32 %v2220, 1.0
    %v2224 = vadd.f32 %v2222, 1.0
    %v2225 = vrcp.pop %v2223
    %v2226 = vmul.f32 1.0, %v2225
    %v2227 = vrcp.pop %v2224
    %v2228 = vmul.f32 1.0, %v2227
    %v2229 = vxor.u32 %v2210, 2147483648
    %v2230 = vxor.u32 %v2214, 2147483648
    %v2231 = vmul.f32 %v2229, 1.442695
    %v2232 = vpow.pop %v2231
    %v2233 = vmul.f32 %v2230, 1.442695
    %v2234 = vpow.pop %v2233
    %v2235 = vadd.f32 %v2232, 1.0
    %v2236 = vadd.f32 %v2234, 1.0
    %v2237 = vrcp.pop %v2235
    %v2238 = vmul.f32 1.0, %v2237
    %v2239 = vrcp.pop %v2236
    %v2240 = vmul.f32 1.0, %v2239
    %v2241 = vtanh.pop %v2211
    %v2242 = vtanh.pop %v2215
    %v2243 = vxor.u32 %v2212, 2147483648
    %v2244 = vxor.u32 %v2216, 2147483648
    %v2245 = vmul.f32 %v2243, 1.442695
    %v2246 = vpow.pop %v2245
    %v2247 = vmul.f32 %v2244, 1.442695
    %v2248 = vpow.pop %v2247
    %v2249 = vadd.f32 %v2246, 1.0
    %v2250 = vadd.f32 %v2248, 1.0
    %v2251 = vrcp.pop %v2249
    %v2252 = vmul.f32 1.0, %v2251
    %v2253 = vrcp.pop %v2250
    %v2254 = vmul.f32 1.0, %v2253
    %v2255 = vmul.f32 %v2238, %v1559
    %v2256 = vmul.f32 %v2240, %v1560
    %v2257 = vmul.f32 %v2226, %v2241
    %v2258 = vmul.f32 %v2228, %v2242
    %v2259 = vadd.f32 %v2255, %v2257
    %v2260 = vadd.f32 %v2256, %v2258
    %v2261 = vtanh.pop %v2259
    %v2262 = vtanh.pop %v2260
    %v2263 = vmul.f32 %v2252, %v2261
    %v2264 = vmul.f32 %v2254, %v2262
    %v2265 = vunpack.c.l.bf16 %v1918
    %v2266 = vunpack.c.l.bf16 %v1919
    %v2267 = vunpack.c.l.bf16 %v1920
    %v2268 = vunpack.c.l.bf16 %v1921
    %v2269 = vunpack.c.h.bf16 %v1918
    %v2270 = vunpack.c.h.bf16 %v1919
    %v2271 = vunpack.c.h.bf16 %v1920
    %v2272 = vunpack.c.h.bf16 %v1921
    %v2273 = vpack.c.bf16 %v1906, %v1905
    %v2274 = vld [vmem:[#allocation12] sm:$0xff]
    %v2275 = vld [vmem:[#allocation12 + $0x8] sm:$0xff]
    %v2276 = vld [vmem:[#allocation12 + $0x10] sm:$0xff]
    %v2277 = vld [vmem:[#allocation12 + $0x18] sm:$0xff]
    %v2278 = vld [vmem:[#allocation12 + $0x20] sm:$0xff]
    %v2279 = vld [vmem:[#allocation12 + $0x28] sm:$0xff]
    %v2280 = vld [vmem:[#allocation12 + $0x30] sm:$0xff]
    %v2281 = vld [vmem:[#allocation12 + $0x38] sm:$0xff]
    %v2282 = vld [vmem:[#allocation12 + $0x40] sm:$0xff]
    %v2283 = vld [vmem:[#allocation12 + $0x48] sm:$0xff]
    %v2284 = vld [vmem:[#allocation12 + $0x50] sm:$0xff]
    %v2285 = vld [vmem:[#allocation12 + $0x58] sm:$0xff]
    %v2286 = vld [vmem:[#allocation12 + $0x60] sm:$0xff]
    %v2287 = vld [vmem:[#allocation12 + $0x68] sm:$0xff]
    %v2288 = vld [vmem:[#allocation12 + $0x70] sm:$0xff]
    %v2289 = vld [vmem:[#allocation12 + $0x78] sm:$0xff]
    %v2290 = vld [vmem:[#allocation12 + $0x80] sm:$0xff]
    %v2291 = vld [vmem:[#allocation12 + $0x88] sm:$0xff]
    %v2292 = vld [vmem:[#allocation12 + $0x90] sm:$0xff]
    %v2293 = vld [vmem:[#allocation12 + $0x98] sm:$0xff]
    %v2294 = vld [vmem:[#allocation12 + $0xa0] sm:$0xff]
    %v2295 = vld [vmem:[#allocation12 + $0xa8] sm:$0xff]
    %v2296 = vld [vmem:[#allocation12 + $0xb0] sm:$0xff]
    %v2297 = vld [vmem:[#allocation12 + $0xb8] sm:$0xff]
    %v2298 = vld [vmem:[#allocation12 + $0xc0] sm:$0xff]
    %v2299 = vld [vmem:[#allocation12 + $0xc8] sm:$0xff]
    %v2300 = vld [vmem:[#allocation12 + $0xd0] sm:$0xff]
    %v2301 = vld [vmem:[#allocation12 + $0xd8] sm:$0xff]
    %v2302 = vld [vmem:[#allocation12 + $0xe0] sm:$0xff]
    %v2303 = vld [vmem:[#allocation12 + $0xe8] sm:$0xff]
    %v2304 = vld [vmem:[#allocation12 + $0xf0] sm:$0xff]
    %v2305 = vld [vmem:[#allocation12 + $0xf8] sm:$0xff]
    %v2338 = vunpack.c.l.b16 %v2274
    %v2339 = vunpack.c.h.b16 %v2274
    %v2340 = vunpack.c.l.b16 %v2275
    %v2341 = vunpack.c.h.b16 %v2275
    %v2342 = vunpack.c.l.b16 %v2276
    %v2343 = vunpack.c.h.b16 %v2276
    %v2344 = vunpack.c.l.b16 %v2277
    %v2345 = vunpack.c.h.b16 %v2277
    %v2346 = vunpack.c.l.b16 %v2278
    %v2347 = vunpack.c.h.b16 %v2278
    %v2348 = vunpack.c.l.b16 %v2279
    %v2349 = vunpack.c.h.b16 %v2279
    %v2350 = vunpack.c.l.b16 %v2280
    %v2351 = vunpack.c.h.b16 %v2280
    %v2352 = vunpack.c.l.b16 %v2281
    %v2353 = vunpack.c.h.b16 %v2281
    %v2354 = vunpack.c.l.b16 %v2282
    %v2355 = vunpack.c.h.b16 %v2282
    %v2356 = vunpack.c.l.b16 %v2283
    %v2357 = vunpack.c.h.b16 %v2283
    %v2358 = vunpack.c.l.b16 %v2284
    %v2359 = vunpack.c.h.b16 %v2284
    %v2360 = vunpack.c.l.b16 %v2285
    %v2361 = vunpack.c.h.b16 %v2285
    %v2362 = vunpack.c.l.b16 %v2286
    %v2363 = vunpack.c.h.b16 %v2286
    %v2364 = vunpack.c.l.b16 %v2287
    %v2365 = vunpack.c.h.b16 %v2287
    %v2366 = vunpack.c.l.b16 %v2288
    %v2367 = vunpack.c.h.b16 %v2288
    %v2368 = vunpack.c.l.b16 %v2289
    %v2369 = vunpack.c.h.b16 %v2289
    %v2370 = vunpack.c.l.b16 %v2290
    %v2371 = vunpack.c.h.b16 %v2290
    %v2372 = vunpack.c.l.b16 %v2291
    %v2373 = vunpack.c.h.b16 %v2291
    %v2374 = vunpack.c.l.b16 %v2292
    %v2375 = vunpack.c.h.b16 %v2292
    %v2376 = vunpack.c.l.b16 %v2293
    %v2377 = vunpack.c.h.b16 %v2293
    %v2378 = vunpack.c.l.b16 %v2294
    %v2379 = vunpack.c.h.b16 %v2294
    %v2380 = vunpack.c.l.b16 %v2295
    %v2381 = vunpack.c.h.b16 %v2295
    %v2382 = vunpack.c.l.b16 %v2296
    %v2383 = vunpack.c.h.b16 %v2296
    %v2384 = vunpack.c.l.b16 %v2297
    %v2385 = vunpack.c.h.b16 %v2297
    %v2386 = vunpack.c.l.b16 %v2298
    %v2387 = vunpack.c.h.b16 %v2298
    %v2388 = vunpack.c.l.b16 %v2299
    %v2389 = vunpack.c.h.b16 %v2299
    %v2390 = vunpack.c.l.b16 %v2300
    %v2391 = vunpack.c.h.b16 %v2300
    %v2392 = vunpack.c.l.b16 %v2301
    %v2393 = vunpack.c.h.b16 %v2301
    %v2394 = vunpack.c.l.b16 %v2302
    %v2395 = vunpack.c.h.b16 %v2302
    %v2396 = vunpack.c.l.b16 %v2303
    %v2397 = vunpack.c.h.b16 %v2303
    %v2398 = vunpack.c.l.b16 %v2304
    %v2399 = vunpack.c.h.b16 %v2304
    %v2400 = vunpack.c.l.b16 %v2305
    %v2401 = vunpack.c.h.b16 %v2305
    %v2402 = vpack.c.b16 %v2342, %v2338
    %v2403 = vpack.c.b16 %v2343, %v2339
    %v2404 = vpack.c.b16 %v2344, %v2340
    %v2405 = vpack.c.b16 %v2345, %v2341
    %v2406 = vpack.c.b16 %v2350, %v2346
    %v2407 = vpack.c.b16 %v2351, %v2347
    %v2408 = vpack.c.b16 %v2352, %v2348
    %v2409 = vpack.c.b16 %v2353, %v2349
    %v2410 = vpack.c.b16 %v2358, %v2354
    %v2411 = vpack.c.b16 %v2359, %v2355
    %v2412 = vpack.c.b16 %v2360, %v2356
    %v2413 = vpack.c.b16 %v2361, %v2357
    %v2414 = vpack.c.b16 %v2366, %v2362
    %v2415 = vpack.c.b16 %v2367, %v2363
    %v2416 = vpack.c.b16 %v2368, %v2364
    %v2417 = vpack.c.b16 %v2369, %v2365
    %v2418 = vpack.c.b16 %v2374, %v2370
    %v2419 = vpack.c.b16 %v2375, %v2371
    %v2420 = vpack.c.b16 %v2376, %v2372
    %v2421 = vpack.c.b16 %v2377, %v2373
    %v2422 = vpack.c.b16 %v2382, %v2378
    %v2423 = vpack.c.b16 %v2383, %v2379
    %v2424 = vpack.c.b16 %v2384, %v2380
    %v2425 = vpack.c.b16 %v2385, %v2381
    %v2426 = vpack.c.b16 %v2390, %v2386
    %v2427 = vpack.c.b16 %v2391, %v2387
    %v2428 = vpack.c.b16 %v2392, %v2388
    %v2429 = vpack.c.b16 %v2393, %v2389
    %v2430 = vpack.c.b16 %v2398, %v2394
    %v2431 = vpack.c.b16 %v2399, %v2395
    %v2432 = vpack.c.b16 %v2400, %v2396
    %v2433 = vpack.c.b16 %v2401, %v2397
    %2466 = vmatprep.subr.bf16.mxu0 %v2403
    %2467 = vmatpush1.bf16.msra.mxu0 %v2402
    %2468 = vmatprep.subr.bf16.mxu0 %v2407
    %2469 = vmatpush1.bf16.msra.mxu0 %v2406
    %2470 = vmatprep.subr.bf16.mxu0 %v2411
    %2471 = vmatpush1.bf16.msra.mxu0 %v2410
    %2472 = vmatprep.subr.bf16.mxu0 %v2415
    %2473 = vmatpush1.bf16.msra.mxu0 %v2414
    %2474 = vmatprep.subr.bf16.mxu0 %v2419
    %2475 = vmatpush1.bf16.msra.mxu0 %v2418
    %2476 = vmatprep.subr.bf16.mxu0 %v2423
    %2477 = vmatpush1.bf16.msra.mxu0 %v2422
    %2478 = vmatprep.subr.bf16.mxu0 %v2427
    %2479 = vmatpush1.bf16.msra.mxu0 %v2426
    %2480 = vmatprep.subr.bf16.mxu0 %v2431
    %2481 = vmatpush1.bf16.msra.mxu0 %v2430
    %2482 = vmatprep.subr.bf16.mxu0 0
    %2483 = vmatpush1.bf16.msra.mxu0 0
    %2484 = vmatprep.subr.bf16.mxu0 0
    %2485 = vmatpush1.bf16.msra.mxu0 0
    %2486 = vmatprep.subr.bf16.mxu0 0
    %2487 = vmatpush1.bf16.msra.mxu0 0
    %2488 = vmatprep.subr.bf16.mxu0 0
    %2489 = vmatpush1.bf16.msra.mxu0 0
    %2490 = vmatprep.subr.bf16.mxu0 0
    %2491 = vmatpush1.bf16.msra.mxu0 0
    %2492 = vmatprep.subr.bf16.mxu0 0
    %2493 = vmatpush1.bf16.msra.mxu0 0
    %2494 = vmatprep.subr.bf16.mxu0 0
    %2495 = vmatpush1.bf16.msra.mxu0 0
    %2496 = vmatprep.subr.bf16.mxu0 0
    %2497 = vmatpush1.bf16.msra.mxu0 0
    %2498 = vmatprep.mubr.bf16.mxu0 0
    %2499 = vmatmul.mubr.bf16.gmra.mrb[0].mxu0 %v2273
    %v2500 = vpop.f32.mrb[0].mxu0
    %v2501 = vadd.f32 0.0, %v2500
    %v2502 = vpop.f32.mrb[0].mxu0
    %v2503 = vadd.f32 0.0, %v2502
    %v2504 = vpop.f32.mrb[0].mxu0
    %v2505 = vadd.f32 0.0, %v2504
    %v2506 = vpop.f32.mrb[0].mxu0
    %v2507 = vadd.f32 0.0, %v2506
    %2508 = vdwg.mxu0
    %2509 = vmatprep.subr.bf16.mxu0 %v2405
    %2510 = vmatpush1.bf16.msra.mxu0 %v2404
    %2511 = vmatprep.subr.bf16.mxu0 %v2409
    %2512 = vmatpush1.bf16.msra.mxu0 %v2408
    %2513 = vmatprep.subr.bf16.mxu0 %v2413
    %2514 = vmatpush1.bf16.msra.mxu0 %v2412
    %2515 = vmatprep.subr.bf16.mxu0 %v2417
    %2516 = vmatpush1.bf16.msra.mxu0 %v2416
    %2517 = vmatprep.subr.bf16.mxu0 %v2421
    %2518 = vmatpush1.bf16.msra.mxu0 %v2420
    %2519 = vmatprep.subr.bf16.mxu0 %v2425
    %2520 = vmatpush1.bf16.msra.mxu0 %v2424
    %2521 = vmatprep.subr.bf16.mxu0 %v2429
    %2522 = vmatpush1.bf16.msra.mxu0 %v2428
    %2523 = vmatprep.subr.bf16.mxu0 %v2433
    %2524 = vmatpush1.bf16.msra.mxu0 %v2432
    %2525 = vmatprep.subr.bf16.mxu0 0
    %2526 = vmatpush1.bf16.msra.mxu0 0
    %2527 = vmatprep.subr.bf16.mxu0 0
    %2528 = vmatpush1.bf16.msra.mxu0 0
    %2529 = vmatprep.subr.bf16.mxu0 0
    %2530 = vmatpush1.bf16.msra.mxu0 0
    %2531 = vmatprep.subr.bf16.mxu0 0
    %2532 = vmatpush1.bf16.msra.mxu0 0
    %2533 = vmatprep.subr.bf16.mxu0 0
    %2534 = vmatpush1.bf16.msra.mxu0 0
    %2535 = vmatprep.subr.bf16.mxu0 0
    %2536 = vmatpush1.bf16.msra.mxu0 0
    %2537 = vmatprep.subr.bf16.mxu0 0
    %2538 = vmatpush1.bf16.msra.mxu0 0
    %2539 = vmatprep.subr.bf16.mxu0 0
    %2540 = vmatpush1.bf16.msra.mxu0 0
    %2541 = vmatprep.mubr.bf16.mxu0 0
    %2542 = vmatmul.mubr.bf16.gmra.mrb[0].mxu0 %v2273
    %v2543 = vpop.f32.mrb[0].mxu0
    %v2544 = vadd.f32 0.0, %v2543
    %v2545 = vpop.f32.mrb[0].mxu0
    %v2546 = vadd.f32 0.0, %v2545
    %v2547 = vpop.f32.mrb[0].mxu0
    %v2548 = vadd.f32 0.0, %v2547
    %v2549 = vpop.f32.mrb[0].mxu0
    %v2550 = vadd.f32 0.0, %v2549
    %2551 = vdwg.mxu0
    %v2552 = vadd.f32 %v2265, %v2501
    %v2553 = vadd.f32 %v2266, %v2503
    %v2554 = vadd.f32 %v2267, %v2544
    %v2555 = vadd.f32 %v2268, %v2546
    %v2556 = vadd.f32 %v2269, %v2505
    %v2557 = vadd.f32 %v2270, %v2507
    %v2558 = vadd.f32 %v2271, %v2548
    %v2559 = vadd.f32 %v2272, %v2550
    %v2560 = vxor.u32 %v2552, 2147483648
    %v2561 = vxor.u32 %v2556, 2147483648
    %v2562 = vmul.f32 %v2560, 1.442695
    %v2563 = vpow.pop %v2562
    %v2564 = vmul.f32 %v2561, 1.442695
    %v2565 = vpow.pop %v2564
    %v2566 = vadd.f32 %v2563, 1.0
    %v2567 = vadd.f32 %v2565, 1.0
    %v2568 = vrcp.pop %v2566
    %v2569 = vmul.f32 1.0, %v2568
    %v2570 = vrcp.pop %v2567
    %v2571 = vmul.f32 1.0, %v2570
    %v2572 = vxor.u32 %v2553, 2147483648
    %v2573 = vxor.u32 %v2557, 2147483648
    %v2574 = vmul.f32 %v2572, 1.442695
    %v2575 = vpow.pop %v2574
    %v2576 = vmul.f32 %v2573, 1.442695
    %v2577 = vpow.pop %v2576
    %v2578 = vadd.f32 %v2575, 1.0
    %v2579 = vadd.f32 %v2577, 1.0
    %v2580 = vrcp.pop %v2578
    %v2581 = vmul.f32 1.0, %v2580
    %v2582 = vrcp.pop %v2579
    %v2583 = vmul.f32 1.0, %v2582
    %v2584 = vtanh.pop %v2554
    %v2585 = vtanh.pop %v2558
    %v2586 = vxor.u32 %v2555, 2147483648
    %v2587 = vxor.u32 %v2559, 2147483648
    %v2588 = vmul.f32 %v2586, 1.442695
    %v2589 = vpow.pop %v2588
    %v2590 = vmul.f32 %v2587, 1.442695
    %v2591 = vpow.pop %v2590
    %v2592 = vadd.f32 %v2589, 1.0
    %v2593 = vadd.f32 %v2591, 1.0
    %v2594 = vrcp.pop %v2592
    %v2595 = vmul.f32 1.0, %v2594
    %v2596 = vrcp.pop %v2593
    %v2597 = vmul.f32 1.0, %v2596
    %v2598 = vmul.f32 %v2581, %v1901
    %v2599 = vmul.f32 %v2583, %v1902
    %v2600 = vmul.f32 %v2569, %v2584
    %v2601 = vmul.f32 %v2571, %v2585
    %v2602 = vadd.f32 %v2598, %v2600
    %v2603 = vadd.f32 %v2599, %v2601
    %v2604 = vtanh.pop %v2602
    %v2605 = vtanh.pop %v2603
    %v2606 = vmul.f32 %v2595, %v2604
    %v2607 = vmul.f32 %v2597, %v2605
    %s2608 = scalar_lea.vmem [#allocation3], 32
    %2609 = vst [vmem:[%s2608] sm:$0xff] %v2263
    %2610 = vst [vmem:[%s2608 + $0x10] sm:$0xff] %v2264
    %s2611 = scalar_lea.vmem [#allocation3], 192
    %2612 = vst [vmem:[%s2611 + $0x8] sm:$0xff] %v2606
    %2613 = vst [vmem:[%s2611 + $0x18] sm:$0xff] %v2607
    %s2614 = scalar_lea.vmem [#allocation2], 128
    %v2615 = vld [vmem:[%s2614] sm:$0xff]
    %v2616 = vld [vmem:[%s2614 + $0x8] sm:$0xff]
    %v2617 = vld [vmem:[%s2614 + $0x10] sm:$0xff]
    %v2618 = vld [vmem:[%s2614 + $0x18] sm:$0xff]
    %s2619 = scalar_lea.vmem [#allocation2], 320
    %v2620 = vld [vmem:[%s2619 + $0x20] sm:$0xff]
    %v2621 = vld [vmem:[%s2619 + $0x28] sm:$0xff]
    %v2622 = vld [vmem:[%s2619 + $0x30] sm:$0xff]
    %v2623 = vld [vmem:[%s2619 + $0x38] sm:$0xff]
    %v2624 = vunpack.c.l.bf16 %v2615
    %v2625 = vunpack.c.l.bf16 %v2616
    %v2626 = vunpack.c.l.bf16 %v2617
    %v2627 = vunpack.c.l.bf16 %v2618
    %v2628 = vunpack.c.h.bf16 %v2615
    %v2629 = vunpack.c.h.bf16 %v2616
    %v2630 = vunpack.c.h.bf16 %v2617
    %v2631 = vunpack.c.h.bf16 %v2618
    %v2632 = vpack.c.bf16 %v2264, %v2263
    %v2633 = vld [vmem:[#allocation10] sm:$0xff]
    %v2634 = vld [vmem:[#allocation10 + $0x8] sm:$0xff]
    %v2635 = vld [vmem:[#allocation10 + $0x10] sm:$0xff]
    %v2636 = vld [vmem:[#allocation10 + $0x18] sm:$0xff]
    %v2637 = vld [vmem:[#allocation10 + $0x20] sm:$0xff]
    %v2638 = vld [vmem:[#allocation10 + $0x28] sm:$0xff]
    %v2639 = vld [vmem:[#allocation10 + $0x30] sm:$0xff]
    %v2640 = vld [vmem:[#allocation10 + $0x38] sm:$0xff]
    %v2641 = vld [vmem:[#allocation10 + $0x40] sm:$0xff]
    %v2642 = vld [vmem:[#allocation10 + $0x48] sm:$0xff]
    %v2643 = vld [vmem:[#allocation10 + $0x50] sm:$0xff]
    %v2644 = vld [vmem:[#allocation10 + $0x58] sm:$0xff]
    %v2645 = vld [vmem:[#allocation10 + $0x60] sm:$0xff]
    %v2646 = vld [vmem:[#allocation10 + $0x68] sm:$0xff]
    %v2647 = vld [vmem:[#allocation10 + $0x70] sm:$0xff]
    %v2648 = vld [vmem:[#allocation10 + $0x78] sm:$0xff]
    %v2649 = vld [vmem:[#allocation10 + $0x80] sm:$0xff]
    %v2650 = vld [vmem:[#allocation10 + $0x88] sm:$0xff]
    %v2651 = vld [vmem:[#allocation10 + $0x90] sm:$0xff]
    %v2652 = vld [vmem:[#allocation10 + $0x98] sm:$0xff]
    %v2653 = vld [vmem:[#allocation10 + $0xa0] sm:$0xff]
    %v2654 = vld [vmem:[#allocation10 + $0xa8] sm:$0xff]
    %v2655 = vld [vmem:[#allocation10 + $0xb0] sm:$0xff]
    %v2656 = vld [vmem:[#allocation10 + $0xb8] sm:$0xff]
    %v2657 = vld [vmem:[#allocation10 + $0xc0] sm:$0xff]
    %v2658 = vld [vmem:[#allocation10 + $0xc8] sm:$0xff]
    %v2659 = vld [vmem:[#allocation10 + $0xd0] sm:$0xff]
    %v2660 = vld [vmem:[#allocation10 + $0xd8] sm:$0xff]
    %v2661 = vld [vmem:[#allocation10 + $0xe0] sm:$0xff]
    %v2662 = vld [vmem:[#allocation10 + $0xe8] sm:$0xff]
    %v2663 = vld [vmem:[#allocation10 + $0xf0] sm:$0xff]
    %v2664 = vld [vmem:[#allocation10 + $0xf8] sm:$0xff]
    %v2697 = vunpack.c.l.b16 %v2633
    %v2698 = vunpack.c.h.b16 %v2633
    %v2699 = vunpack.c.l.b16 %v2634
    %v2700 = vunpack.c.h.b16 %v2634
    %v2701 = vunpack.c.l.b16 %v2635
    %v2702 = vunpack.c.h.b16 %v2635
    %v2703 = vunpack.c.l.b16 %v2636
    %v2704 = vunpack.c.h.b16 %v2636
    %v2705 = vunpack.c.l.b16 %v2637
    %v2706 = vunpack.c.h.b16 %v2637
    %v2707 = vunpack.c.l.b16 %v2638
    %v2708 = vunpack.c.h.b16 %v2638
    %v2709 = vunpack.c.l.b16 %v2639
    %v2710 = vunpack.c.h.b16 %v2639
    %v2711 = vunpack.c.l.b16 %v2640
    %v2712 = vunpack.c.h.b16 %v2640
    %v2713 = vunpack.c.l.b16 %v2641
    %v2714 = vunpack.c.h.b16 %v2641
    %v2715 = vunpack.c.l.b16 %v2642
    %v2716 = vunpack.c.h.b16 %v2642
    %v2717 = vunpack.c.l.b16 %v2643
    %v2718 = vunpack.c.h.b16 %v2643
    %v2719 = vunpack.c.l.b16 %v2644
    %v2720 = vunpack.c.h.b16 %v2644
    %v2721 = vunpack.c.l.b16 %v2645
    %v2722 = vunpack.c.h.b16 %v2645
    %v2723 = vunpack.c.l.b16 %v2646
    %v2724 = vunpack.c.h.b16 %v2646
    %v2725 = vunpack.c.l.b16 %v2647
    %v2726 = vunpack.c.h.b16 %v2647
    %v2727 = vunpack.c.l.b16 %v2648
    %v2728 = vunpack.c.h.b16 %v2648
    %v2729 = vunpack.c.l.b16 %v2649
    %v2730 = vunpack.c.h.b16 %v2649
    %v2731 = vunpack.c.l.b16 %v2650
    %v2732 = vunpack.c.h.b16 %v2650
    %v2733 = vunpack.c.l.b16 %v2651
    %v2734 = vunpack.c.h.b16 %v2651
    %v2735 = vunpack.c.l.b16 %v2652
    %v2736 = vunpack.c.h.b16 %v2652
    %v2737 = vunpack.c.l.b16 %v2653
    %v2738 = vunpack.c.h.b16 %v2653
    %v2739 = vunpack.c.l.b16 %v2654
    %v2740 = vunpack.c.h.b16 %v2654
    %v2741 = vunpack.c.l.b16 %v2655
    %v2742 = vunpack.c.h.b16 %v2655
    %v2743 = vunpack.c.l.b16 %v2656
    %v2744 = vunpack.c.h.b16 %v2656
    %v2745 = vunpack.c.l.b16 %v2657
    %v2746 = vunpack.c.h.b16 %v2657
    %v2747 = vunpack.c.l.b16 %v2658
    %v2748 = vunpack.c.h.b16 %v2658
    %v2749 = vunpack.c.l.b16 %v2659
    %v2750 = vunpack.c.h.b16 %v2659
    %v2751 = vunpack.c.l.b16 %v2660
    %v2752 = vunpack.c.h.b16 %v2660
    %v2753 = vunpack.c.l.b16 %v2661
    %v2754 = vunpack.c.h.b16 %v2661
    %v2755 = vunpack.c.l.b16 %v2662
    %v2756 = vunpack.c.h.b16 %v2662
    %v2757 = vunpack.c.l.b16 %v2663
    %v2758 = vunpack.c.h.b16 %v2663
    %v2759 = vunpack.c.l.b16 %v2664
    %v2760 = vunpack.c.h.b16 %v2664
    %v2761 = vpack.c.b16 %v2701, %v2697
    %v2762 = vpack.c.b16 %v2702, %v2698
    %v2763 = vpack.c.b16 %v2703, %v2699
    %v2764 = vpack.c.b16 %v2704, %v2700
    %v2765 = vpack.c.b16 %v2709, %v2705
    %v2766 = vpack.c.b16 %v2710, %v2706
    %v2767 = vpack.c.b16 %v2711, %v2707
    %v2768 = vpack.c.b16 %v2712, %v2708
    %v2769 = vpack.c.b16 %v2717, %v2713
    %v2770 = vpack.c.b16 %v2718, %v2714
    %v2771 = vpack.c.b16 %v2719, %v2715
    %v2772 = vpack.c.b16 %v2720, %v2716
    %v2773 = vpack.c.b16 %v2725, %v2721
    %v2774 = vpack.c.b16 %v2726, %v2722
    %v2775 = vpack.c.b16 %v2727, %v2723
    %v2776 = vpack.c.b16 %v2728, %v2724
    %v2777 = vpack.c.b16 %v2733, %v2729
    %v2778 = vpack.c.b16 %v2734, %v2730
    %v2779 = vpack.c.b16 %v2735, %v2731
    %v2780 = vpack.c.b16 %v2736, %v2732
    %v2781 = vpack.c.b16 %v2741, %v2737
    %v2782 = vpack.c.b16 %v2742, %v2738
    %v2783 = vpack.c.b16 %v2743, %v2739
    %v2784 = vpack.c.b16 %v2744, %v2740
    %v2785 = vpack.c.b16 %v2749, %v2745
    %v2786 = vpack.c.b16 %v2750, %v2746
    %v2787 = vpack.c.b16 %v2751, %v2747
    %v2788 = vpack.c.b16 %v2752, %v2748
    %v2789 = vpack.c.b16 %v2757, %v2753
    %v2790 = vpack.c.b16 %v2758, %v2754
    %v2791 = vpack.c.b16 %v2759, %v2755
    %v2792 = vpack.c.b16 %v2760, %v2756
    %2825 = vmatprep.subr.bf16.mxu0 %v2762
    %2826 = vmatpush1.bf16.msra.mxu0 %v2761
    %2827 = vmatprep.subr.bf16.mxu0 %v2766
    %2828 = vmatpush1.bf16.msra.mxu0 %v2765
    %2829 = vmatprep.subr.bf16.mxu0 %v2770
    %2830 = vmatpush1.bf16.msra.mxu0 %v2769
    %2831 = vmatprep.subr.bf16.mxu0 %v2774
    %2832 = vmatpush1.bf16.msra.mxu0 %v2773
    %2833 = vmatprep.subr.bf16.mxu0 %v2778
    %2834 = vmatpush1.bf16.msra.mxu0 %v2777
    %2835 = vmatprep.subr.bf16.mxu0 %v2782
    %2836 = vmatpush1.bf16.msra.mxu0 %v2781
    %2837 = vmatprep.subr.bf16.mxu0 %v2786
    %2838 = vmatpush1.bf16.msra.mxu0 %v2785
    %2839 = vmatprep.subr.bf16.mxu0 %v2790
    %2840 = vmatpush1.bf16.msra.mxu0 %v2789
    %2841 = vmatprep.subr.bf16.mxu0 0
    %2842 = vmatpush1.bf16.msra.mxu0 0
    %2843 = vmatprep.subr.bf16.mxu0 0
    %2844 = vmatpush1.bf16.msra.mxu0 0
    %2845 = vmatprep.subr.bf16.mxu0 0
    %2846 = vmatpush1.bf16.msra.mxu0 0
    %2847 = vmatprep.subr.bf16.mxu0 0
    %2848 = vmatpush1.bf16.msra.mxu0 0
    %2849 = vmatprep.subr.bf16.mxu0 0
    %2850 = vmatpush1.bf16.msra.mxu0 0
    %2851 = vmatprep.subr.bf16.mxu0 0
    %2852 = vmatpush1.bf16.msra.mxu0 0
    %2853 = vmatprep.subr.bf16.mxu0 0
    %2854 = vmatpush1.bf16.msra.mxu0 0
    %2855 = vmatprep.subr.bf16.mxu0 0
    %2856 = vmatpush1.bf16.msra.mxu0 0
    %2857 = vmatprep.mubr.bf16.mxu0 0
    %2858 = vmatmul.mubr.bf16.gmra.mrb[0].mxu0 %v2632
    %v2859 = vpop.f32.mrb[0].mxu0
    %v2860 = vadd.f32 0.0, %v2859
    %v2861 = vpop.f32.mrb[0].mxu0
    %v2862 = vadd.f32 0.0, %v2861
    %v2863 = vpop.f32.mrb[0].mxu0
    %v2864 = vadd.f32 0.0, %v2863
    %v2865 = vpop.f32.mrb[0].mxu0
    %v2866 = vadd.f32 0.0, %v2865
    %2867 = vdwg.mxu0
    %2868 = vmatprep.subr.bf16.mxu0 %v2764
    %2869 = vmatpush1.bf16.msra.mxu0 %v2763
    %2870 = vmatprep.subr.bf16.mxu0 %v2768
    %2871 = vmatpush1.bf16.msra.mxu0 %v2767
    %2872 = vmatprep.subr.bf16.mxu0 %v2772
    %2873 = vmatpush1.bf16.msra.mxu0 %v2771
    %2874 = vmatprep.subr.bf16.mxu0 %v2776
    %2875 = vmatpush1.bf16.msra.mxu0 %v2775
    %2876 = vmatprep.subr.bf16.mxu0 %v2780
    %2877 = vmatpush1.bf16.msra.mxu0 %v2779
    %2878 = vmatprep.subr.bf16.mxu0 %v2784
    %2879 = vmatpush1.bf16.msra.mxu0 %v2783
    %2880 = vmatprep.subr.bf16.mxu0 %v2788
    %2881 = vmatpush1.bf16.msra.mxu0 %v2787
    %2882 = vmatprep.subr.bf16.mxu0 %v2792
    %2883 = vmatpush1.bf16.msra.mxu0 %v2791
    %2884 = vmatprep.subr.bf16.mxu0 0
    %2885 = vmatpush1.bf16.msra.mxu0 0
    %2886 = vmatprep.subr.bf16.mxu0 0
    %2887 = vmatpush1.bf16.msra.mxu0 0
    %2888 = vmatprep.subr.bf16.mxu0 0
    %2889 = vmatpush1.bf16.msra.mxu0 0
    %2890 = vmatprep.subr.bf16.mxu0 0
    %2891 = vmatpush1.bf16.msra.mxu0 0
    %2892 = vmatprep.subr.bf16.mxu0 0
    %2893 = vmatpush1.bf16.msra.mxu0 0
    %2894 = vmatprep.subr.bf16.mxu0 0
    %2895 = vmatpush1.bf16.msra.mxu0 0
    %2896 = vmatprep.subr.bf16.mxu0 0
    %2897 = vmatpush1.bf16.msra.mxu0 0
    %2898 = vmatprep.subr.bf16.mxu0 0
    %2899 = vmatpush1.bf16.msra.mxu0 0
    %2900 = vmatprep.mubr.bf16.mxu0 0
    %2901 = vmatmul.mubr.bf16.gmra.mrb[0].mxu0 %v2632
    %v2902 = vpop.f32.mrb[0].mxu0
    %v2903 = vadd.f32 0.0, %v2902
    %v2904 = vpop.f32.mrb[0].mxu0
    %v2905 = vadd.f32 0.0, %v2904
    %v2906 = vpop.f32.mrb[0].mxu0
    %v2907 = vadd.f32 0.0, %v2906
    %v2908 = vpop.f32.mrb[0].mxu0
    %v2909 = vadd.f32 0.0, %v2908
    %2910 = vdwg.mxu0
    %v2911 = vadd.f32 %v2624, %v2860
    %v2912 = vadd.f32 %v2625, %v2862
    %v2913 = vadd.f32 %v2626, %v2903
    %v2914 = vadd.f32 %v2627, %v2905
    %v2915 = vadd.f32 %v2628, %v2864
    %v2916 = vadd.f32 %v2629, %v2866
    %v2917 = vadd.f32 %v2630, %v2907
    %v2918 = vadd.f32 %v2631, %v2909
    %v2919 = vxor.u32 %v2911, 2147483648
    %v2920 = vxor.u32 %v2915, 2147483648
    %v2921 = vmul.f32 %v2919, 1.442695
    %v2922 = vpow.pop %v2921
    %v2923 = vmul.f32 %v2920, 1.442695
    %v2924 = vpow.pop %v2923
    %v2925 = vadd.f32 %v2922, 1.0
    %v2926 = vadd.f32 %v2924, 1.0
    %v2927 = vrcp.pop %v2925
    %v2928 = vmul.f32 1.0, %v2927
    %v2929 = vrcp.pop %v2926
    %v2930 = vmul.f32 1.0, %v2929
    %v2931 = vxor.u32 %v2912, 2147483648
    %v2932 = vxor.u32 %v2916, 2147483648
    %v2933 = vmul.f32 %v2931, 1.442695
    %v2934 = vpow.pop %v2933
    %v2935 = vmul.f32 %v2932, 1.442695
    %v2936 = vpow.pop %v2935
    %v2937 = vadd.f32 %v2934, 1.0
    %v2938 = vadd.f32 %v2936, 1.0
    %v2939 = vrcp.pop %v2937
    %v2940 = vmul.f32 1.0, %v2939
    %v2941 = vrcp.pop %v2938
    %v2942 = vmul.f32 1.0, %v2941
    %v2943 = vtanh.pop %v2913
    %v2944 = vtanh.pop %v2917
    %v2945 = vxor.u32 %v2914, 2147483648
    %v2946 = vxor.u32 %v2918, 2147483648
    %v2947 = vmul.f32 %v2945, 1.442695
    %v2948 = vpow.pop %v2947
    %v2949 = vmul.f32 %v2946, 1.442695
    %v2950 = vpow.pop %v2949
    %v2951 = vadd.f32 %v2948, 1.0
    %v2952 = vadd.f32 %v2950, 1.0
    %v2953 = vrcp.pop %v2951
    %v2954 = vmul.f32 1.0, %v2953
    %v2955 = vrcp.pop %v2952
    %v2956 = vmul.f32 1.0, %v2955
    %v2957 = vmul.f32 %v2940, %v2259
    %v2958 = vmul.f32 %v2942, %v2260
    %v2959 = vmul.f32 %v2928, %v2943
    %v2960 = vmul.f32 %v2930, %v2944
    %v2961 = vadd.f32 %v2957, %v2959
    %v2962 = vadd.f32 %v2958, %v2960
    %v2963 = vtanh.pop %v2961
    %v2964 = vtanh.pop %v2962
    %v2965 = vmul.f32 %v2954, %v2963
    %v2966 = vmul.f32 %v2956, %v2964
    %v2967 = vunpack.c.l.bf16 %v2620
    %v2968 = vunpack.c.l.bf16 %v2621
    %v2969 = vunpack.c.l.bf16 %v2622
    %v2970 = vunpack.c.l.bf16 %v2623
    %v2971 = vunpack.c.h.bf16 %v2620
    %v2972 = vunpack.c.h.bf16 %v2621
    %v2973 = vunpack.c.h.bf16 %v2622
    %v2974 = vunpack.c.h.bf16 %v2623
    %v2975 = vpack.c.bf16 %v2607, %v2606
    %v2976 = vld [vmem:[#allocation12] sm:$0xff]
    %v2977 = vld [vmem:[#allocation12 + $0x8] sm:$0xff]
    %v2978 = vld [vmem:[#allocation12 + $0x10] sm:$0xff]
    %v2979 = vld [vmem:[#allocation12 + $0x18] sm:$0xff]
    %v2980 = vld [vmem:[#allocation12 + $0x20] sm:$0xff]
    %v2981 = vld [vmem:[#allocation12 + $0x28] sm:$0xff]
    %v2982 = vld [vmem:[#allocation12 + $0x30] sm:$0xff]
    %v2983 = vld [vmem:[#allocation12 + $0x38] sm:$0xff]
    %v2984 = vld [vmem:[#allocation12 + $0x40] sm:$0xff]
    %v2985 = vld [vmem:[#allocation12 + $0x48] sm:$0xff]
    %v2986 = vld [vmem:[#allocation12 + $0x50] sm:$0xff]
    %v2987 = vld [vmem:[#allocation12 + $0x58] sm:$0xff]
    %v2988 = vld [vmem:[#allocation12 + $0x60] sm:$0xff]
    %v2989 = vld [vmem:[#allocation12 + $0x68] sm:$0xff]
    %v2990 = vld [vmem:[#allocation12 + $0x70] sm:$0xff]
    %v2991 = vld [vmem:[#allocation12 + $0x78] sm:$0xff]
    %v2992 = vld [vmem:[#allocation12 + $0x80] sm:$0xff]
    %v2993 = vld [vmem:[#allocation12 + $0x88] sm:$0xff]
    %v2994 = vld [vmem:[#allocation12 + $0x90] sm:$0xff]
    %v2995 = vld [vmem:[#allocation12 + $0x98] sm:$0xff]
    %v2996 = vld [vmem:[#allocation12 + $0xa0] sm:$0xff]
    %v2997 = vld [vmem:[#allocation12 + $0xa8] sm:$0xff]
    %v2998 = vld [vmem:[#allocation12 + $0xb0] sm:$0xff]
    %v2999 = vld [vmem:[#allocation12 + $0xb8] sm:$0xff]
    %v3000 = vld [vmem:[#allocation12 + $0xc0] sm:$0xff]
    %v3001 = vld [vmem:[#allocation12 + $0xc8] sm:$0xff]
    %v3002 = vld [vmem:[#allocation12 + $0xd0] sm:$0xff]
    %v3003 = vld [vmem:[#allocation12 + $0xd8] sm:$0xff]
    %v3004 = vld [vmem:[#allocation12 + $0xe0] sm:$0xff]
    %v3005 = vld [vmem:[#allocation12 + $0xe8] sm:$0xff]
    %v3006 = vld [vmem:[#allocation12 + $0xf0] sm:$0xff]
    %v3007 = vld [vmem:[#allocation12 + $0xf8] sm:$0xff]
    %v3040 = vunpack.c.l.b16 %v2976
    %v3041 = vunpack.c.h.b16 %v2976
    %v3042 = vunpack.c.l.b16 %v2977
    %v3043 = vunpack.c.h.b16 %v2977
    %v3044 = vunpack.c.l.b16 %v2978
    %v3045 = vunpack.c.h.b16 %v2978
    %v3046 = vunpack.c.l.b16 %v2979
    %v3047 = vunpack.c.h.b16 %v2979
    %v3048 = vunpack.c.l.b16 %v2980
    %v3049 = vunpack.c.h.b16 %v2980
    %v3050 = vunpack.c.l.b16 %v2981
    %v3051 = vunpack.c.h.b16 %v2981
    %v3052 = vunpack.c.l.b16 %v2982
    %v3053 = vunpack.c.h.b16 %v2982
    %v3054 = vunpack.c.l.b16 %v2983
    %v3055 = vunpack.c.h.b16 %v2983
    %v3056 = vunpack.c.l.b16 %v2984
    %v3057 = vunpack.c.h.b16 %v2984
    %v3058 = vunpack.c.l.b16 %v2985
    %v3059 = vunpack.c.h.b16 %v2985
    %v3060 = vunpack.c.l.b16 %v2986
    %v3061 = vunpack.c.h.b16 %v2986
    %v3062 = vunpack.c.l.b16 %v2987
    %v3063 = vunpack.c.h.b16 %v2987
    %v3064 = vunpack.c.l.b16 %v2988
    %v3065 = vunpack.c.h.b16 %v2988
    %v3066 = vunpack.c.l.b16 %v2989
    %v3067 = vunpack.c.h.b16 %v2989
    %v3068 = vunpack.c.l.b16 %v2990
    %v3069 = vunpack.c.h.b16 %v2990
    %v3070 = vunpack.c.l.b16 %v2991
    %v3071 = vunpack.c.h.b16 %v2991
    %v3072 = vunpack.c.l.b16 %v2992
    %v3073 = vunpack.c.h.b16 %v2992
    %v3074 = vunpack.c.l.b16 %v2993
    %v3075 = vunpack.c.h.b16 %v2993
    %v3076 = vunpack.c.l.b16 %v2994
    %v3077 = vunpack.c.h.b16 %v2994
    %v3078 = vunpack.c.l.b16 %v2995
    %v3079 = vunpack.c.h.b16 %v2995
    %v3080 = vunpack.c.l.b16 %v2996
    %v3081 = vunpack.c.h.b16 %v2996
    %v3082 = vunpack.c.l.b16 %v2997
    %v3083 = vunpack.c.h.b16 %v2997
    %v3084 = vunpack.c.l.b16 %v2998
    %v3085 = vunpack.c.h.b16 %v2998
    %v3086 = vunpack.c.l.b16 %v2999
    %v3087 = vunpack.c.h.b16 %v2999
    %v3088 = vunpack.c.l.b16 %v3000
    %v3089 = vunpack.c.h.b16 %v3000
    %v3090 = vunpack.c.l.b16 %v3001
    %v3091 = vunpack.c.h.b16 %v3001
    %v3092 = vunpack.c.l.b16 %v3002
    %v3093 = vunpack.c.h.b16 %v3002
    %v3094 = vunpack.c.l.b16 %v3003
    %v3095 = vunpack.c.h.b16 %v3003
    %v3096 = vunpack.c.l.b16 %v3004
    %v3097 = vunpack.c.h.b16 %v3004
    %v3098 = vunpack.c.l.b16 %v3005
    %v3099 = vunpack.c.h.b16 %v3005
    %v3100 = vunpack.c.l.b16 %v3006
    %v3101 = vunpack.c.h.b16 %v3006
    %v3102 = vunpack.c.l.b16 %v3007
    %v3103 = vunpack.c.h.b16 %v3007
    %v3104 = vpack.c.b16 %v3044, %v3040
    %v3105 = vpack.c.b16 %v3045, %v3041
    %v3106 = vpack.c.b16 %v3046, %v3042
    %v3107 = vpack.c.b16 %v3047, %v3043
    %v3108 = vpack.c.b16 %v3052, %v3048
    %v3109 = vpack.c.b16 %v3053, %v3049
    %v3110 = vpack.c.b16 %v3054, %v3050
    %v3111 = vpack.c.b16 %v3055, %v3051
    %v3112 = vpack.c.b16 %v3060, %v3056
    %v3113 = vpack.c.b16 %v3061, %v3057
    %v3114 = vpack.c.b16 %v3062, %v3058
    %v3115 = vpack.c.b16 %v3063, %v3059
    %v3116 = vpack.c.b16 %v3068, %v3064
    %v3117 = vpack.c.b16 %v3069, %v3065
    %v3118 = vpack.c.b16 %v3070, %v3066
    %v3119 = vpack.c.b16 %v3071, %v3067
    %v3120 = vpack.c.b16 %v3076, %v3072
    %v3121 = vpack.c.b16 %v3077, %v3073
    %v3122 = vpack.c.b16 %v3078, %v3074
    %v3123 = vpack.c.b16 %v3079, %v3075
    %v3124 = vpack.c.b16 %v3084, %v3080
    %v3125 = vpack.c.b16 %v3085, %v3081
    %v3126 = vpack.c.b16 %v3086, %v3082
    %v3127 = vpack.c.b16 %v3087, %v3083
    %v3128 = vpack.c.b16 %v3092, %v3088
    %v3129 = vpack.c.b16 %v3093, %v3089
    %v3130 = vpack.c.b16 %v3094, %v3090
    %v3131 = vpack.c.b16 %v3095, %v3091
    %v3132 = vpack.c.b16 %v3100, %v3096
    %v3133 = vpack.c.b16 %v3101, %v3097
    %v3134 = vpack.c.b16 %v3102, %v3098
    %v3135 = vpack.c.b16 %v3103, %v3099
    %3168 = vmatprep.subr.bf16.mxu0 %v3105
    %3169 = vmatpush1.bf16.msra.mxu0 %v3104
    %3170 = vmatprep.subr.bf16.mxu0 %v3109
    %3171 = vmatpush1.bf16.msra.mxu0 %v3108
    %3172 = vmatprep.subr.bf16.mxu0 %v3113
    %3173 = vmatpush1.bf16.msra.mxu0 %v3112
    %3174 = vmatprep.subr.bf16.mxu0 %v3117
    %3175 = vmatpush1.bf16.msra.mxu0 %v3116
    %3176 = vmatprep.subr.bf16.mxu0 %v3121
    %3177 = vmatpush1.bf16.msra.mxu0 %v3120
    %3178 = vmatprep.subr.bf16.mxu0 %v3125
    %3179 = vmatpush1.bf16.msra.mxu0 %v3124
    %3180 = vmatprep.subr.bf16.mxu0 %v3129
    %3181 = vmatpush1.bf16.msra.mxu0 %v3128
    %3182 = vmatprep.subr.bf16.mxu0 %v3133
    %3183 = vmatpush1.bf16.msra.mxu0 %v3132
    %3184 = vmatprep.subr.bf16.mxu0 0
    %3185 = vmatpush1.bf16.msra.mxu0 0
    %3186 = vmatprep.subr.bf16.mxu0 0
    %3187 = vmatpush1.bf16.msra.mxu0 0
    %3188 = vmatprep.subr.bf16.mxu0 0
    %3189 = vmatpush1.bf16.msra.mxu0 0
    %3190 = vmatprep.subr.bf16.mxu0 0
    %3191 = vmatpush1.bf16.msra.mxu0 0
    %3192 = vmatprep.subr.bf16.mxu0 0
    %3193 = vmatpush1.bf16.msra.mxu0 0
    %3194 = vmatprep.subr.bf16.mxu0 0
    %3195 = vmatpush1.bf16.msra.mxu0 0
    %3196 = vmatprep.subr.bf16.mxu0 0
    %3197 = vmatpush1.bf16.msra.mxu0 0
    %3198 = vmatprep.subr.bf16.mxu0 0
    %3199 = vmatpush1.bf16.msra.mxu0 0
    %3200 = vmatprep.mubr.bf16.mxu0 0
    %3201 = vmatmul.mubr.bf16.gmra.mrb[0].mxu0 %v2975
    %v3202 = vpop.f32.mrb[0].mxu0
    %v3203 = vadd.f32 0.0, %v3202
    %v3204 = vpop.f32.mrb[0].mxu0
    %v3205 = vadd.f32 0.0, %v3204
    %v3206 = vpop.f32.mrb[0].mxu0
    %v3207 = vadd.f32 0.0, %v3206
    %v3208 = vpop.f32.mrb[0].mxu0
    %v3209 = vadd.f32 0.0, %v3208
    %3210 = vdwg.mxu0
    %3211 = vmatprep.subr.bf16.mxu0 %v3107
    %3212 = vmatpush1.bf16.msra.mxu0 %v3106
    %3213 = vmatprep.subr.bf16.mxu0 %v3111
    %3214 = vmatpush1.bf16.msra.mxu0 %v3110
    %3215 = vmatprep.subr.bf16.mxu0 %v3115
    %3216 = vmatpush1.bf16.msra.mxu0 %v3114
    %3217 = vmatprep.subr.bf16.mxu0 %v3119
    %3218 = vmatpush1.bf16.msra.mxu0 %v3118
    %3219 = vmatprep.subr.bf16.mxu0 %v3123
    %3220 = vmatpush1.bf16.msra.mxu0 %v3122
    %3221 = vmatprep.subr.bf16.mxu0 %v3127
    %3222 = vmatpush1.bf16.msra.mxu0 %v3126
    %3223 = vmatprep.subr.bf16.mxu0 %v3131
    %3224 = vmatpush1.bf16.msra.mxu0 %v3130
    %3225 = vmatprep.subr.bf16.mxu0 %v3135
    %3226 = vmatpush1.bf16.msra.mxu0 %v3134
    %3227 = vmatprep.subr.bf16.mxu0 0
    %3228 = vmatpush1.bf16.msra.mxu0 0
    %3229 = vmatprep.subr.bf16.mxu0 0
    %3230 = vmatpush1.bf16.msra.mxu0 0
    %3231 = vmatprep.subr.bf16.mxu0 0
    %3232 = vmatpush1.bf16.msra.mxu0 0
    %3233 = vmatprep.subr.bf16.mxu0 0
    %3234 = vmatpush1.bf16.msra.mxu0 0
    %3235 = vmatprep.subr.bf16.mxu0 0
    %3236 = vmatpush1.bf16.msra.mxu0 0
    %3237 = vmatprep.subr.bf16.mxu0 0
    %3238 = vmatpush1.bf16.msra.mxu0 0
    %3239 = vmatprep.subr.bf16.mxu0 0
    %3240 = vmatpush1.bf16.msra.mxu0 0
    %3241 = vmatprep.subr.bf16.mxu0 0
    %3242 = vmatpush1.bf16.msra.mxu0 0
    %3243 = vmatprep.mubr.bf16.mxu0 0
    %3244 = vmatmul.mubr.bf16.gmra.mrb[0].mxu0 %v2975
    %v3245 = vpop.f32.mrb[0].mxu0
    %v3246 = vadd.f32 0.0, %v3245
    %v3247 = vpop.f32.mrb[0].mxu0
    %v3248 = vadd.f32 0.0, %v3247
    %v3249 = vpop.f32.mrb[0].mxu0
    %v3250 = vadd.f32 0.0, %v3249
    %v3251 = vpop.f32.mrb[0].mxu0
    %v3252 = vadd.f32 0.0, %v3251
    %3253 = vdwg.mxu0
    %v3254 = vadd.f32 %v2967, %v3203
    %v3255 = vadd.f32 %v2968, %v3205
    %v3256 = vadd.f32 %v2969, %v3246
    %v3257 = vadd.f32 %v2970, %v3248
    %v3258 = vadd.f32 %v2971, %v3207
    %v3259 = vadd.f32 %v2972, %v3209
    %v3260 = vadd.f32 %v2973, %v3250
    %v3261 = vadd.f32 %v2974, %v3252
    %v3262 = vxor.u32 %v3254, 2147483648
    %v3263 = vxor.u32 %v3258, 2147483648
    %v3264 = vmul.f32 %v3262, 1.442695
    %v3265 = vpow.pop %v3264
    %v3266 = vmul.f32 %v3263, 1.442695
    %v3267 = vpow.pop %v3266
    %v3268 = vadd.f32 %v3265, 1.0
    %v3269 = vadd.f32 %v3267, 1.0
    %v3270 = vrcp.pop %v3268
    %v3271 = vmul.f32 1.0, %v3270
    %v3272 = vrcp.pop %v3269
    %v3273 = vmul.f32 1.0, %v3272
    %v3274 = vxor.u32 %v3255, 2147483648
    %v3275 = vxor.u32 %v3259, 2147483648
    %v3276 = vmul.f32 %v3274, 1.442695
    %v3277 = vpow.pop %v3276
    %v3278 = vmul.f32 %v3275, 1.442695
    %v3279 = vpow.pop %v3278
    %v3280 = vadd.f32 %v3277, 1.0
    %v3281 = vadd.f32 %v3279, 1.0
    %v3282 = vrcp.pop %v3280
    %v3283 = vmul.f32 1.0, %v3282
    %v3284 = vrcp.pop %v3281
    %v3285 = vmul.f32 1.0, %v3284
    %v3286 = vtanh.pop %v3256
    %v3287 = vtanh.pop %v3260
    %v3288 = vxor.u32 %v3257, 2147483648
    %v3289 = vxor.u32 %v3261, 2147483648
    %v3290 = vmul.f32 %v3288, 1.442695
    %v3291 = vpow.pop %v3290
    %v3292 = vmul.f32 %v3289, 1.442695
    %v3293 = vpow.pop %v3292
    %v3294 = vadd.f32 %v3291, 1.0
    %v3295 = vadd.f32 %v3293, 1.0
    %v3296 = vrcp.pop %v3294
    %v3297 = vmul.f32 1.0, %v3296
    %v3298 = vrcp.pop %v3295
    %v3299 = vmul.f32 1.0, %v3298
    %v3300 = vmul.f32 %v3283, %v2602
    %v3301 = vmul.f32 %v3285, %v2603
    %v3302 = vmul.f32 %v3271, %v3286
    %v3303 = vmul.f32 %v3273, %v3287
    %v3304 = vadd.f32 %v3300, %v3302
    %v3305 = vadd.f32 %v3301, %v3303
    %v3306 = vtanh.pop %v3304
    %v3307 = vtanh.pop %v3305
    %v3308 = vmul.f32 %v3297, %v3306
    %v3309 = vmul.f32 %v3299, %v3307
    %s3310 = scalar_lea.vmem [#allocation3], 64
    %3311 = vst [vmem:[%s3310] sm:$0xff] %v2965
    %3312 = vst [vmem:[%s3310 + $0x10] sm:$0xff] %v2966
    %s3313 = scalar_lea.vmem [#allocation3], 160
    %3314 = vst [vmem:[%s3313 + $0x8] sm:$0xff] %v3308
    %3315 = vst [vmem:[%s3313 + $0x18] sm:$0xff] %v3309
    %s3316 = scalar_lea.vmem [#allocation2], 192
    %v3317 = vld [vmem:[%s3316] sm:$0xff]
    %v3318 = vld [vmem:[%s3316 + $0x8] sm:$0xff]
    %v3319 = vld [vmem:[%s3316 + $0x10] sm:$0xff]
    %v3320 = vld [vmem:[%s3316 + $0x18] sm:$0xff]
    %s3321 = scalar_lea.vmem [#allocation2], 256
    %v3322 = vld [vmem:[%s3321 + $0x20] sm:$0xff]
    %v3323 = vld [vmem:[%s3321 + $0x28] sm:$0xff]
    %v3324 = vld [vmem:[%s3321 + $0x30] sm:$0xff]
    %v3325 = vld [vmem:[%s3321 + $0x38] sm:$0xff]
    %v3326 = vunpack.c.l.bf16 %v3317
    %v3327 = vunpack.c.l.bf16 %v3318
    %v3328 = vunpack.c.l.bf16 %v3319
    %v3329 = vunpack.c.l.bf16 %v3320
    %v3330 = vunpack.c.h.bf16 %v3317
    %v3331 = vunpack.c.h.bf16 %v3318
    %v3332 = vunpack.c.h.bf16 %v3319
    %v3333 = vunpack.c.h.bf16 %v3320
    %v3334 = vpack.c.bf16 %v2966, %v2965
    %v3335 = vld [vmem:[#allocation10] sm:$0xff]
    %v3336 = vld [vmem:[#allocation10 + $0x8] sm:$0xff]
    %v3337 = vld [vmem:[#allocation10 + $0x10] sm:$0xff]
    %v3338 = vld [vmem:[#allocation10 + $0x18] sm:$0xff]
    %v3339 = vld [vmem:[#allocation10 + $0x20] sm:$0xff]
    %v3340 = vld [vmem:[#allocation10 + $0x28] sm:$0xff]
    %v3341 = vld [vmem:[#allocation10 + $0x30] sm:$0xff]
    %v3342 = vld [vmem:[#allocation10 + $0x38] sm:$0xff]
    %v3343 = vld [vmem:[#allocation10 + $0x40] sm:$0xff]
    %v3344 = vld [vmem:[#allocation10 + $0x48] sm:$0xff]
    %v3345 = vld [vmem:[#allocation10 + $0x50] sm:$0xff]
    %v3346 = vld [vmem:[#allocation10 + $0x58] sm:$0xff]
    %v3347 = vld [vmem:[#allocation10 + $0x60] sm:$0xff]
    %v3348 = vld [vmem:[#allocation10 + $0x68] sm:$0xff]
    %v3349 = vld [vmem:[#allocation10 + $0x70] sm:$0xff]
    %v3350 = vld [vmem:[#allocation10 + $0x78] sm:$0xff]
    %v3351 = vld [vmem:[#allocation10 + $0x80] sm:$0xff]
    %v3352 = vld [vmem:[#allocation10 + $0x88] sm:$0xff]
    %v3353 = vld [vmem:[#allocation10 + $0x90] sm:$0xff]
    %v3354 = vld [vmem:[#allocation10 + $0x98] sm:$0xff]
    %v3355 = vld [vmem:[#allocation10 + $0xa0] sm:$0xff]
    %v3356 = vld [vmem:[#allocation10 + $0xa8] sm:$0xff]
    %v3357 = vld [vmem:[#allocation10 + $0xb0] sm:$0xff]
    %v3358 = vld [vmem:[#allocation10 + $0xb8] sm:$0xff]
    %v3359 = vld [vmem:[#allocation10 + $0xc0] sm:$0xff]
    %v3360 = vld [vmem:[#allocation10 + $0xc8] sm:$0xff]
    %v3361 = vld [vmem:[#allocation10 + $0xd0] sm:$0xff]
    %v3362 = vld [vmem:[#allocation10 + $0xd8] sm:$0xff]
    %v3363 = vld [vmem:[#allocation10 + $0xe0] sm:$0xff]
    %v3364 = vld [vmem:[#allocation10 + $0xe8] sm:$0xff]
    %v3365 = vld [vmem:[#allocation10 + $0xf0] sm:$0xff]
    %v3366 = vld [vmem:[#allocation10 + $0xf8] sm:$0xff]
    %v3399 = vunpack.c.l.b16 %v3335
    %v3400 = vunpack.c.h.b16 %v3335
    %v3401 = vunpack.c.l.b16 %v3336
    %v3402 = vunpack.c.h.b16 %v3336
    %v3403 = vunpack.c.l.b16 %v3337
    %v3404 = vunpack.c.h.b16 %v3337
    %v3405 = vunpack.c.l.b16 %v3338
    %v3406 = vunpack.c.h.b16 %v3338
    %v3407 = vunpack.c.l.b16 %v3339
    %v3408 = vunpack.c.h.b16 %v3339
    %v3409 = vunpack.c.l.b16 %v3340
    %v3410 = vunpack.c.h.b16 %v3340
    %v3411 = vunpack.c.l.b16 %v3341
    %v3412 = vunpack.c.h.b16 %v3341
    %v3413 = vunpack.c.l.b16 %v3342
    %v3414 = vunpack.c.h.b16 %v3342
    %v3415 = vunpack.c.l.b16 %v3343
    %v3416 = vunpack.c.h.b16 %v3343
    %v3417 = vunpack.c.l.b16 %v3344
    %v3418 = vunpack.c.h.b16 %v3344
    %v3419 = vunpack.c.l.b16 %v3345
    %v3420 = vunpack.c.h.b16 %v3345
    %v3421 = vunpack.c.l.b16 %v3346
    %v3422 = vunpack.c.h.b16 %v3346
    %v3423 = vunpack.c.l.b16 %v3347
    %v3424 = vunpack.c.h.b16 %v3347
    %v3425 = vunpack.c.l.b16 %v3348
    %v3426 = vunpack.c.h.b16 %v3348
    %v3427 = vunpack.c.l.b16 %v3349
    %v3428 = vunpack.c.h.b16 %v3349
    %v3429 = vunpack.c.l.b16 %v3350
    %v3430 = vunpack.c.h.b16 %v3350
    %v3431 = vunpack.c.l.b16 %v3351
    %v3432 = vunpack.c.h.b16 %v3351
    %v3433 = vunpack.c.l.b16 %v3352
    %v3434 = vunpack.c.h.b16 %v3352
    %v3435 = vunpack.c.l.b16 %v3353
    %v3436 = vunpack.c.h.b16 %v3353
    %v3437 = vunpack.c.l.b16 %v3354
    %v3438 = vunpack.c.h.b16 %v3354
    %v3439 = vunpack.c.l.b16 %v3355
    %v3440 = vunpack.c.h.b16 %v3355
    %v3441 = vunpack.c.l.b16 %v3356
    %v3442 = vunpack.c.h.b16 %v3356
    %v3443 = vunpack.c.l.b16 %v3357
    %v3444 = vunpack.c.h.b16 %v3357
    %v3445 = vunpack.c.l.b16 %v3358
    %v3446 = vunpack.c.h.b16 %v3358
    %v3447 = vunpack.c.l.b16 %v3359
    %v3448 = vunpack.c.h.b16 %v3359
    %v3449 = vunpack.c.l.b16 %v3360
    %v3450 = vunpack.c.h.b16 %v3360
    %v3451 = vunpack.c.l.b16 %v3361
    %v3452 = vunpack.c.h.b16 %v3361
    %v3453 = vunpack.c.l.b16 %v3362
    %v3454 = vunpack.c.h.b16 %v3362
    %v3455 = vunpack.c.l.b16 %v3363
    %v3456 = vunpack.c.h.b16 %v3363
    %v3457 = vunpack.c.l.b16 %v3364
    %v3458 = vunpack.c.h.b16 %v3364
    %v3459 = vunpack.c.l.b16 %v3365
    %v3460 = vunpack.c.h.b16 %v3365
    %v3461 = vunpack.c.l.b16 %v3366
    %v3462 = vunpack.c.h.b16 %v3366
    %v3463 = vpack.c.b16 %v3403, %v3399
    %v3464 = vpack.c.b16 %v3404, %v3400
    %v3465 = vpack.c.b16 %v3405, %v3401
    %v3466 = vpack.c.b16 %v3406, %v3402
    %v3467 = vpack.c.b16 %v3411, %v3407
    %v3468 = vpack.c.b16 %v3412, %v3408
    %v3469 = vpack.c.b16 %v3413, %v3409
    %v3470 = vpack.c.b16 %v3414, %v3410
    %v3471 = vpack.c.b16 %v3419, %v3415
    %v3472 = vpack.c.b16 %v3420, %v3416
    %v3473 = vpack.c.b16 %v3421, %v3417
    %v3474 = vpack.c.b16 %v3422, %v3418
    %v3475 = vpack.c.b16 %v3427, %v3423
    %v3476 = vpack.c.b16 %v3428, %v3424
    %v3477 = vpack.c.b16 %v3429, %v3425
    %v3478 = vpack.c.b16 %v3430, %v3426
    %v3479 = vpack.c.b16 %v3435, %v3431
    %v3480 = vpack.c.b16 %v3436, %v3432
    %v3481 = vpack.c.b16 %v3437, %v3433
    %v3482 = vpack.c.b16 %v3438, %v3434
    %v3483 = vpack.c.b16 %v3443, %v3439
    %v3484 = vpack.c.b16 %v3444, %v3440
    %v3485 = vpack.c.b16 %v3445, %v3441
    %v3486 = vpack.c.b16 %v3446, %v3442
    %v3487 = vpack.c.b16 %v3451, %v3447
    %v3488 = vpack.c.b16 %v3452, %v3448
    %v3489 = vpack.c.b16 %v3453, %v3449
    %v3490 = vpack.c.b16 %v3454, %v3450
    %v3491 = vpack.c.b16 %v3459, %v3455
    %v3492 = vpack.c.b16 %v3460, %v3456
    %v3493 = vpack.c.b16 %v3461, %v3457
    %v3494 = vpack.c.b16 %v3462, %v3458
    %3527 = vmatprep.subr.bf16.mxu0 %v3464
    %3528 = vmatpush1.bf16.msra.mxu0 %v3463
    %3529 = vmatprep.subr.bf16.mxu0 %v3468
    %3530 = vmatpush1.bf16.msra.mxu0 %v3467
    %3531 = vmatprep.subr.bf16.mxu0 %v3472
    %3532 = vmatpush1.bf16.msra.mxu0 %v3471
    %3533 = vmatprep.subr.bf16.mxu0 %v3476
    %3534 = vmatpush1.bf16.msra.mxu0 %v3475
    %3535 = vmatprep.subr.bf16.mxu0 %v3480
    %3536 = vmatpush1.bf16.msra.mxu0 %v3479
    %3537 = vmatprep.subr.bf16.mxu0 %v3484
    %3538 = vmatpush1.bf16.msra.mxu0 %v3483
    %3539 = vmatprep.subr.bf16.mxu0 %v3488
    %3540 = vmatpush1.bf16.msra.mxu0 %v3487
    %3541 = vmatprep.subr.bf16.mxu0 %v3492
    %3542 = vmatpush1.bf16.msra.mxu0 %v3491
    %3543 = vmatprep.subr.bf16.mxu0 0
    %3544 = vmatpush1.bf16.msra.mxu0 0
    %3545 = vmatprep.subr.bf16.mxu0 0
    %3546 = vmatpush1.bf16.msra.mxu0 0
    %3547 = vmatprep.subr.bf16.mxu0 0
    %3548 = vmatpush1.bf16.msra.mxu0 0
    %3549 = vmatprep.subr.bf16.mxu0 0
    %3550 = vmatpush1.bf16.msra.mxu0 0
    %3551 = vmatprep.subr.bf16.mxu0 0
    %3552 = vmatpush1.bf16.msra.mxu0 0
    %3553 = vmatprep.subr.bf16.mxu0 0
    %3554 = vmatpush1.bf16.msra.mxu0 0
    %3555 = vmatprep.subr.bf16.mxu0 0
    %3556 = vmatpush1.bf16.msra.mxu0 0
    %3557 = vmatprep.subr.bf16.mxu0 0
    %3558 = vmatpush1.bf16.msra.mxu0 0
    %3559 = vmatprep.mubr.bf16.mxu0 0
    %3560 = vmatmul.mubr.bf16.gmra.mrb[0].mxu0 %v3334
    %v3561 = vpop.f32.mrb[0].mxu0
    %v3562 = vadd.f32 0.0, %v3561
    %v3563 = vpop.f32.mrb[0].mxu0
    %v3564 = vadd.f32 0.0, %v3563
    %v3565 = vpop.f32.mrb[0].mxu0
    %v3566 = vadd.f32 0.0, %v3565
    %v3567 = vpop.f32.mrb[0].mxu0
    %v3568 = vadd.f32 0.0, %v3567
    %3569 = vdwg.mxu0
    %3570 = vmatprep.subr.bf16.mxu0 %v3466
    %3571 = vmatpush1.bf16.msra.mxu0 %v3465
    %3572 = vmatprep.subr.bf16.mxu0 %v3470
    %3573 = vmatpush1.bf16.msra.mxu0 %v3469
    %3574 = vmatprep.subr.bf16.mxu0 %v3474
    %3575 = vmatpush1.bf16.msra.mxu0 %v3473
    %3576 = vmatprep.subr.bf16.mxu0 %v3478
    %3577 = vmatpush1.bf16.msra.mxu0 %v3477
    %3578 = vmatprep.subr.bf16.mxu0 %v3482
    %3579 = vmatpush1.bf16.msra.mxu0 %v3481
    %3580 = vmatprep.subr.bf16.mxu0 %v3486
    %3581 = vmatpush1.bf16.msra.mxu0 %v3485
    %3582 = vmatprep.subr.bf16.mxu0 %v3490
    %3583 = vmatpush1.bf16.msra.mxu0 %v3489
    %3584 = vmatprep.subr.bf16.mxu0 %v3494
    %3585 = vmatpush1.bf16.msra.mxu0 %v3493
    %3586 = vmatprep.subr.bf16.mxu0 0
    %3587 = vmatpush1.bf16.msra.mxu0 0
    %3588 = vmatprep.subr.bf16.mxu0 0
    %3589 = vmatpush1.bf16.msra.mxu0 0
    %3590 = vmatprep.subr.bf16.mxu0 0
    %3591 = vmatpush1.bf16.msra.mxu0 0
    %3592 = vmatprep.subr.bf16.mxu0 0
    %3593 = vmatpush1.bf16.msra.mxu0 0
    %3594 = vmatprep.subr.bf16.mxu0 0
    %3595 = vmatpush1.bf16.msra.mxu0 0
    %3596 = vmatprep.subr.bf16.mxu0 0
    %3597 = vmatpush1.bf16.msra.mxu0 0
    %3598 = vmatprep.subr.bf16.mxu0 0
    %3599 = vmatpush1.bf16.msra.mxu0 0
    %3600 = vmatprep.subr.bf16.mxu0 0
    %3601 = vmatpush1.bf16.msra.mxu0 0
    %3602 = vmatprep.mubr.bf16.mxu0 0
    %3603 = vmatmul.mubr.bf16.gmra.mrb[0].mxu0 %v3334
    %v3604 = vpop.f32.mrb[0].mxu0
    %v3605 = vadd.f32 0.0, %v3604
    %v3606 = vpop.f32.mrb[0].mxu0
    %v3607 = vadd.f32 0.0, %v3606
    %v3608 = vpop.f32.mrb[0].mxu0
    %v3609 = vadd.f32 0.0, %v3608
    %v3610 = vpop.f32.mrb[0].mxu0
    %v3611 = vadd.f32 0.0, %v3610
    %3612 = vdwg.mxu0
    %v3613 = vadd.f32 %v3326, %v3562
    %v3614 = vadd.f32 %v3327, %v3564
    %v3615 = vadd.f32 %v3328, %v3605
    %v3616 = vadd.f32 %v3329, %v3607
    %v3617 = vadd.f32 %v3330, %v3566
    %v3618 = vadd.f32 %v3331, %v3568
    %v3619 = vadd.f32 %v3332, %v3609
    %v3620 = vadd.f32 %v3333, %v3611
    %v3621 = vxor.u32 %v3613, 2147483648
    %v3622 = vxor.u32 %v3617, 2147483648
    %v3623 = vmul.f32 %v3621, 1.442695
    %v3624 = vpow.pop %v3623
    %v3625 = vmul.f32 %v3622, 1.442695
    %v3626 = vpow.pop %v3625
    %v3627 = vadd.f32 %v3624, 1.0
    %v3628 = vadd.f32 %v3626, 1.0
    %v3629 = vrcp.pop %v3627
    %v3630 = vmul.f32 1.0, %v3629
    %v3631 = vrcp.pop %v3628
    %v3632 = vmul.f32 1.0, %v3631
    %v3633 = vxor.u32 %v3614, 2147483648
    %v3634 = vxor.u32 %v3618, 2147483648
    %v3635 = vmul.f32 %v3633, 1.442695
    %v3636 = vpow.pop %v3635
    %v3637 = vmul.f32 %v3634, 1.442695
    %v3638 = vpow.pop %v3637
    %v3639 = vadd.f32 %v3636, 1.0
    %v3640 = vadd.f32 %v3638, 1.0
    %v3641 = vrcp.pop %v3639
    %v3642 = vmul.f32 1.0, %v3641
    %v3643 = vrcp.pop %v3640
    %v3644 = vmul.f32 1.0, %v3643
    %v3645 = vtanh.pop %v3615
    %v3646 = vtanh.pop %v3619
    %v3647 = vxor.u32 %v3616, 2147483648
    %v3648 = vxor.u32 %v3620, 2147483648
    %v3649 = vmul.f32 %v3647, 1.442695
    %v3650 = vpow.pop %v3649
    %v3651 = vmul.f32 %v3648, 1.442695
    %v3652 = vpow.pop %v3651
    %v3653 = vadd.f32 %v3650, 1.0
    %v3654 = vadd.f32 %v3652, 1.0
    %v3655 = vrcp.pop %v3653
    %v3656 = vmul.f32 1.0, %v3655
    %v3657 = vrcp.pop %v3654
    %v3658 = vmul.f32 1.0, %v3657
    %v3659 = vmul.f32 %v3642, %v2961
    %v3660 = vmul.f32 %v3644, %v2962
    %v3661 = vmul.f32 %v3630, %v3645
    %v3662 = vmul.f32 %v3632, %v3646
    %v3663 = vadd.f32 %v3659, %v3661
    %v3664 = vadd.f32 %v3660, %v3662
    %v3665 = vtanh.pop %v3663
    %v3666 = vtanh.pop %v3664
    %v3667 = vmul.f32 %v3656, %v3665
    %v3668 = vmul.f32 %v3658, %v3666
    %v3669 = vunpack.c.l.bf16 %v3322
    %v3670 = vunpack.c.l.bf16 %v3323
    %v3671 = vunpack.c.l.bf16 %v3324
    %v3672 = vunpack.c.l.bf16 %v3325
    %v3673 = vunpack.c.h.bf16 %v3322
    %v3674 = vunpack.c.h.bf16 %v3323
    %v3675 = vunpack.c.h.bf16 %v3324
    %v3676 = vunpack.c.h.bf16 %v3325
    %v3677 = vpack.c.bf16 %v3309, %v3308
    %v3678 = vld [vmem:[#allocation12] sm:$0xff]
    %v3679 = vld [vmem:[#allocation12 + $0x8] sm:$0xff]
    %v3680 = vld [vmem:[#allocation12 + $0x10] sm:$0xff]
    %v3681 = vld [vmem:[#allocation12 + $0x18] sm:$0xff]
    %v3682 = vld [vmem:[#allocation12 + $0x20] sm:$0xff]
    %v3683 = vld [vmem:[#allocation12 + $0x28] sm:$0xff]
    %v3684 = vld [vmem:[#allocation12 + $0x30] sm:$0xff]
    %v3685 = vld [vmem:[#allocation12 + $0x38] sm:$0xff]
    %v3686 = vld [vmem:[#allocation12 + $0x40] sm:$0xff]
    %v3687 = vld [vmem:[#allocation12 + $0x48] sm:$0xff]
    %v3688 = vld [vmem:[#allocation12 + $0x50] sm:$0xff]
    %v3689 = vld [vmem:[#allocation12 + $0x58] sm:$0xff]
    %v3690 = vld [vmem:[#allocation12 + $0x60] sm:$0xff]
    %v3691 = vld [vmem:[#allocation12 + $0x68] sm:$0xff]
    %v3692 = vld [vmem:[#allocation12 + $0x70] sm:$0xff]
    %v3693 = vld [vmem:[#allocation12 + $0x78] sm:$0xff]
    %v3694 = vld [vmem:[#allocation12 + $0x80] sm:$0xff]
    %v3695 = vld [vmem:[#allocation12 + $0x88] sm:$0xff]
    %v3696 = vld [vmem:[#allocation12 + $0x90] sm:$0xff]
    %v3697 = vld [vmem:[#allocation12 + $0x98] sm:$0xff]
    %v3698 = vld [vmem:[#allocation12 + $0xa0] sm:$0xff]
    %v3699 = vld [vmem:[#allocation12 + $0xa8] sm:$0xff]
    %v3700 = vld [vmem:[#allocation12 + $0xb0] sm:$0xff]
    %v3701 = vld [vmem:[#allocation12 + $0xb8] sm:$0xff]
    %v3702 = vld [vmem:[#allocation12 + $0xc0] sm:$0xff]
    %v3703 = vld [vmem:[#allocation12 + $0xc8] sm:$0xff]
    %v3704 = vld [vmem:[#allocation12 + $0xd0] sm:$0xff]
    %v3705 = vld [vmem:[#allocation12 + $0xd8] sm:$0xff]
    %v3706 = vld [vmem:[#allocation12 + $0xe0] sm:$0xff]
    %v3707 = vld [vmem:[#allocation12 + $0xe8] sm:$0xff]
    %v3708 = vld [vmem:[#allocation12 + $0xf0] sm:$0xff]
    %v3709 = vld [vmem:[#allocation12 + $0xf8] sm:$0xff]
    %v3742 = vunpack.c.l.b16 %v3678
    %v3743 = vunpack.c.h.b16 %v3678
    %v3744 = vunpack.c.l.b16 %v3679
    %v3745 = vunpack.c.h.b16 %v3679
    %v3746 = vunpack.c.l.b16 %v3680
    %v3747 = vunpack.c.h.b16 %v3680
    %v3748 = vunpack.c.l.b16 %v3681
    %v3749 = vunpack.c.h.b16 %v3681
    %v3750 = vunpack.c.l.b16 %v3682
    %v3751 = vunpack.c.h.b16 %v3682
    %v3752 = vunpack.c.l.b16 %v3683
    %v3753 = vunpack.c.h.b16 %v3683
    %v3754 = vunpack.c.l.b16 %v3684
    %v3755 = vunpack.c.h.b16 %v3684
    %v3756 = vunpack.c.l.b16 %v3685
    %v3757 = vunpack.c.h.b16 %v3685
    %v3758 = vunpack.c.l.b16 %v3686
    %v3759 = vunpack.c.h.b16 %v3686
    %v3760 = vunpack.c.l.b16 %v3687
    %v3761 = vunpack.c.h.b16 %v3687
    %v3762 = vunpack.c.l.b16 %v3688
    %v3763 = vunpack.c.h.b16 %v3688
    %v3764 = vunpack.c.l.b16 %v3689
    %v3765 = vunpack.c.h.b16 %v3689
    %v3766 = vunpack.c.l.b16 %v3690
    %v3767 = vunpack.c.h.b16 %v3690
    %v3768 = vunpack.c.l.b16 %v3691
    %v3769 = vunpack.c.h.b16 %v3691
    %v3770 = vunpack.c.l.b16 %v3692
    %v3771 = vunpack.c.h.b16 %v3692
    %v3772 = vunpack.c.l.b16 %v3693
    %v3773 = vunpack.c.h.b16 %v3693
    %v3774 = vunpack.c.l.b16 %v3694
    %v3775 = vunpack.c.h.b16 %v3694
    %v3776 = vunpack.c.l.b16 %v3695
    %v3777 = vunpack.c.h.b16 %v3695
    %v3778 = vunpack.c.l.b16 %v3696
    %v3779 = vunpack.c.h.b16 %v3696
    %v3780 = vunpack.c.l.b16 %v3697
    %v3781 = vunpack.c.h.b16 %v3697
    %v3782 = vunpack.c.l.b16 %v3698
    %v3783 = vunpack.c.h.b16 %v3698
    %v3784 = vunpack.c.l.b16 %v3699
    %v3785 = vunpack.c.h.b16 %v3699
    %v3786 = vunpack.c.l.b16 %v3700
    %v3787 = vunpack.c.h.b16 %v3700
    %v3788 = vunpack.c.l.b16 %v3701
    %v3789 = vunpack.c.h.b16 %v3701
    %v3790 = vunpack.c.l.b16 %v3702
    %v3791 = vunpack.c.h.b16 %v3702
    %v3792 = vunpack.c.l.b16 %v3703
    %v3793 = vunpack.c.h.b16 %v3703
    %v3794 = vunpack.c.l.b16 %v3704
    %v3795 = vunpack.c.h.b16 %v3704
    %v3796 = vunpack.c.l.b16 %v3705
    %v3797 = vunpack.c.h.b16 %v3705
    %v3798 = vunpack.c.l.b16 %v3706
    %v3799 = vunpack.c.h.b16 %v3706
    %v3800 = vunpack.c.l.b16 %v3707
    %v3801 = vunpack.c.h.b16 %v3707
    %v3802 = vunpack.c.l.b16 %v3708
    %v3803 = vunpack.c.h.b16 %v3708
    %v3804 = vunpack.c.l.b16 %v3709
    %v3805 = vunpack.c.h.b16 %v3709
    %v3806 = vpack.c.b16 %v3746, %v3742
    %v3807 = vpack.c.b16 %v3747, %v3743
    %v3808 = vpack.c.b16 %v3748, %v3744
    %v3809 = vpack.c.b16 %v3749, %v3745
    %v3810 = vpack.c.b16 %v3754, %v3750
    %v3811 = vpack.c.b16 %v3755, %v3751
    %v3812 = vpack.c.b16 %v3756, %v3752
    %v3813 = vpack.c.b16 %v3757, %v3753
    %v3814 = vpack.c.b16 %v3762, %v3758
    %v3815 = vpack.c.b16 %v3763, %v3759
    %v3816 = vpack.c.b16 %v3764, %v3760
    %v3817 = vpack.c.b16 %v3765, %v3761
    %v3818 = vpack.c.b16 %v3770, %v3766
    %v3819 = vpack.c.b16 %v3771, %v3767
    %v3820 = vpack.c.b16 %v3772, %v3768
    %v3821 = vpack.c.b16 %v3773, %v3769
    %v3822 = vpack.c.b16 %v3778, %v3774
    %v3823 = vpack.c.b16 %v3779, %v3775
    %v3824 = vpack.c.b16 %v3780, %v3776
    %v3825 = vpack.c.b16 %v3781, %v3777
    %v3826 = vpack.c.b16 %v3786, %v3782
    %v3827 = vpack.c.b16 %v3787, %v3783
    %v3828 = vpack.c.b16 %v3788, %v3784
    %v3829 = vpack.c.b16 %v3789, %v3785
    %v3830 = vpack.c.b16 %v3794, %v3790
    %v3831 = vpack.c.b16 %v3795, %v3791
    %v3832 = vpack.c.b16 %v3796, %v3792
    %v3833 = vpack.c.b16 %v3797, %v3793
    %v3834 = vpack.c.b16 %v3802, %v3798
    %v3835 = vpack.c.b16 %v3803, %v3799
    %v3836 = vpack.c.b16 %v3804, %v3800
    %v3837 = vpack.c.b16 %v3805, %v3801
    %3870 = vmatprep.subr.bf16.mxu0 %v3807
    %3871 = vmatpush1.bf16.msra.mxu0 %v3806
    %3872 = vmatprep.subr.bf16.mxu0 %v3811
    %3873 = vmatpush1.bf16.msra.mxu0 %v3810
    %3874 = vmatprep.subr.bf16.mxu0 %v3815
    %3875 = vmatpush1.bf16.msra.mxu0 %v3814
    %3876 = vmatprep.subr.bf16.mxu0 %v3819
    %3877 = vmatpush1.bf16.msra.mxu0 %v3818
    %3878 = vmatprep.subr.bf16.mxu0 %v3823
    %3879 = vmatpush1.bf16.msra.mxu0 %v3822
    %3880 = vmatprep.subr.bf16.mxu0 %v3827
    %3881 = vmatpush1.bf16.msra.mxu0 %v3826
    %3882 = vmatprep.subr.bf16.mxu0 %v3831
    %3883 = vmatpush1.bf16.msra.mxu0 %v3830
    %3884 = vmatprep.subr.bf16.mxu0 %v3835
    %3885 = vmatpush1.bf16.msra.mxu0 %v3834
    %3886 = vmatprep.subr.bf16.mxu0 0
    %3887 = vmatpush1.bf16.msra.mxu0 0
    %3888 = vmatprep.subr.bf16.mxu0 0
    %3889 = vmatpush1.bf16.msra.mxu0 0
    %3890 = vmatprep.subr.bf16.mxu0 0
    %3891 = vmatpush1.bf16.msra.mxu0 0
    %3892 = vmatprep.subr.bf16.mxu0 0
    %3893 = vmatpush1.bf16.msra.mxu0 0
    %3894 = vmatprep.subr.bf16.mxu0 0
    %3895 = vmatpush1.bf16.msra.mxu0 0
    %3896 = vmatprep.subr.bf16.mxu0 0
    %3897 = vmatpush1.bf16.msra.mxu0 0
    %3898 = vmatprep.subr.bf16.mxu0 0
    %3899 = vmatpush1.bf16.msra.mxu0 0
    %3900 = vmatprep.subr.bf16.mxu0 0
    %3901 = vmatpush1.bf16.msra.mxu0 0
    %3902 = vmatprep.mubr.bf16.mxu0 0
    %3903 = vmatmul.mubr.bf16.gmra.mrb[0].mxu0 %v3677
    %v3904 = vpop.f32.mrb[0].mxu0
    %v3905 = vadd.f32 0.0, %v3904
    %v3906 = vpop.f32.mrb[0].mxu0
    %v3907 = vadd.f32 0.0, %v3906
    %v3908 = vpop.f32.mrb[0].mxu0
    %v3909 = vadd.f32 0.0, %v3908
    %v3910 = vpop.f32.mrb[0].mxu0
    %v3911 = vadd.f32 0.0, %v3910
    %3912 = vdwg.mxu0
    %3913 = vmatprep.subr.bf16.mxu0 %v3809
    %3914 = vmatpush1.bf16.msra.mxu0 %v3808
    %3915 = vmatprep.subr.bf16.mxu0 %v3813
    %3916 = vmatpush1.bf16.msra.mxu0 %v3812
    %3917 = vmatprep.subr.bf16.mxu0 %v3817
    %3918 = vmatpush1.bf16.msra.mxu0 %v3816
    %3919 = vmatprep.subr.bf16.mxu0 %v3821
    %3920 = vmatpush1.bf16.msra.mxu0 %v3820
    %3921 = vmatprep.subr.bf16.mxu0 %v3825
    %3922 = vmatpush1.bf16.msra.mxu0 %v3824
    %3923 = vmatprep.subr.bf16.mxu0 %v3829
    %3924 = vmatpush1.bf16.msra.mxu0 %v3828
    %3925 = vmatprep.subr.bf16.mxu0 %v3833
    %3926 = vmatpush1.bf16.msra.mxu0 %v3832
    %3927 = vmatprep.subr.bf16.mxu0 %v3837
    %3928 = vmatpush1.bf16.msra.mxu0 %v3836
    %3929 = vmatprep.subr.bf16.mxu0 0
    %3930 = vmatpush1.bf16.msra.mxu0 0
    %3931 = vmatprep.subr.bf16.mxu0 0
    %3932 = vmatpush1.bf16.msra.mxu0 0
    %3933 = vmatprep.subr.bf16.mxu0 0
    %3934 = vmatpush1.bf16.msra.mxu0 0
    %3935 = vmatprep.subr.bf16.mxu0 0
    %3936 = vmatpush1.bf16.msra.mxu0 0
    %3937 = vmatprep.subr.bf16.mxu0 0
    %3938 = vmatpush1.bf16.msra.mxu0 0
    %3939 = vmatprep.subr.bf16.mxu0 0
    %3940 = vmatpush1.bf16.msra.mxu0 0
    %3941 = vmatprep.subr.bf16.mxu0 0
    %3942 = vmatpush1.bf16.msra.mxu0 0
    %3943 = vmatprep.subr.bf16.mxu0 0
    %3944 = vmatpush1.bf16.msra.mxu0 0
    %3945 = vmatprep.mubr.bf16.mxu0 0
    %3946 = vmatmul.mubr.bf16.gmra.mrb[0].mxu0 %v3677
    %v3947 = vpop.f32.mrb[0].mxu0
    %v3948 = vadd.f32 0.0, %v3947
    %v3949 = vpop.f32.mrb[0].mxu0
    %v3950 = vadd.f32 0.0, %v3949
    %v3951 = vpop.f32.mrb[0].mxu0
    %v3952 = vadd.f32 0.0, %v3951
    %v3953 = vpop.f32.mrb[0].mxu0
    %v3954 = vadd.f32 0.0, %v3953
    %3955 = vdwg.mxu0
    %v3956 = vadd.f32 %v3669, %v3905
    %v3957 = vadd.f32 %v3670, %v3907
    %v3958 = vadd.f32 %v3671, %v3948
    %v3959 = vadd.f32 %v3672, %v3950
    %v3960 = vadd.f32 %v3673, %v3909
    %v3961 = vadd.f32 %v3674, %v3911
    %v3962 = vadd.f32 %v3675, %v3952
    %v3963 = vadd.f32 %v3676, %v3954
    %v3964 = vxor.u32 %v3956, 2147483648
    %v3965 = vxor.u32 %v3960, 2147483648
    %v3966 = vmul.f32 %v3964, 1.442695
    %v3967 = vpow.pop %v3966
    %v3968 = vmul.f32 %v3965, 1.442695
    %v3969 = vpow.pop %v3968
    %v3970 = vadd.f32 %v3967, 1.0
    %v3971 = vadd.f32 %v3969, 1.0
    %v3972 = vrcp.pop %v3970
    %v3973 = vmul.f32 1.0, %v3972
    %v3974 = vrcp.pop %v3971
    %v3975 = vmul.f32 1.0, %v3974
    %v3976 = vxor.u32 %v3957, 2147483648
    %v3977 = vxor.u32 %v3961, 2147483648
    %v3978 = vmul.f32 %v3976, 1.442695
    %v3979 = vpow.pop %v3978
    %v3980 = vmul.f32 %v3977, 1.442695
    %v3981 = vpow.pop %v3980
    %v3982 = vadd.f32 %v3979, 1.0
    %v3983 = vadd.f32 %v3981, 1.0
    %v3984 = vrcp.pop %v3982
    %v3985 = vmul.f32 1.0, %v3984
    %v3986 = vrcp.pop %v3983
    %v3987 = vmul.f32 1.0, %v3986
    %v3988 = vtanh.pop %v3958
    %v3989 = vtanh.pop %v3962
    %v3990 = vxor.u32 %v3959, 2147483648
    %v3991 = vxor.u32 %v3963, 2147483648
    %v3992 = vmul.f32 %v3990, 1.442695
    %v3993 = vpow.pop %v3992
    %v3994 = vmul.f32 %v3991, 1.442695
    %v3995 = vpow.pop %v3994
    %v3996 = vadd.f32 %v3993, 1.0
    %v3997 = vadd.f32 %v3995, 1.0
    %v3998 = vrcp.pop %v3996
    %v3999 = vmul.f32 1.0, %v3998
    %v4000 = vrcp.pop %v3997
    %v4001 = vmul.f32 1.0, %v4000
    %v4002 = vmul.f32 %v3985, %v3304
    %v4003 = vmul.f32 %v3987, %v3305
    %v4004 = vmul.f32 %v3973, %v3988
    %v4005 = vmul.f32 %v3975, %v3989
    %v4006 = vadd.f32 %v4002, %v4004
    %v4007 = vadd.f32 %v4003, %v4005
    %v4008 = vtanh.pop %v4006
    %v4009 = vtanh.pop %v4007
    %v4010 = vmul.f32 %v3999, %v4008
    %v4011 = vmul.f32 %v4001, %v4009
    %s4012 = scalar_lea.vmem [#allocation3], 96
    %4013 = vst [vmem:[%s4012] sm:$0xff] %v3667
    %4014 = vst [vmem:[%s4012 + $0x10] sm:$0xff] %v3668
    %s4015 = scalar_lea.vmem [#allocation3], 128
    %4016 = vst [vmem:[%s4015 + $0x8] sm:$0xff] %v4010
    %4017 = vst [vmem:[%s4015 + $0x18] sm:$0xff] %v4011
    %v4018 = vld [vmem:[%s3321] sm:$0xff]
    %v4019 = vld [vmem:[%s3321 + $0x8] sm:$0xff]
    %v4020 = vld [vmem:[%s3321 + $0x10] sm:$0xff]
    %v4021 = vld [vmem:[%s3321 + $0x18] sm:$0xff]
    %v4022 = vld [vmem:[%s3316 + $0x20] sm:$0xff]
    %v4023 = vld [vmem:[%s3316 + $0x28] sm:$0xff]
    %v4024 = vld [vmem:[%s3316 + $0x30] sm:$0xff]
    %v4025 = vld [vmem:[%s3316 + $0x38] sm:$0xff]
    %v4026 = vunpack.c.l.bf16 %v4018
    %v4027 = vunpack.c.l.bf16 %v4019
    %v4028 = vunpack.c.l.bf16 %v4020
    %v4029 = vunpack.c.l.bf16 %v4021
    %v4030 = vunpack.c.h.bf16 %v4018
    %v4031 = vunpack.c.h.bf16 %v4019
    %v4032 = vunpack.c.h.bf16 %v4020
    %v4033 = vunpack.c.h.bf16 %v4021
    %v4034 = vpack.c.bf16 %v3668, %v3667
    %v4035 = vld [vmem:[#allocation10] sm:$0xff]
    %v4036 = vld [vmem:[#allocation10 + $0x8] sm:$0xff]
    %v4037 = vld [vmem:[#allocation10 + $0x10] sm:$0xff]
    %v4038 = vld [vmem:[#allocation10 + $0x18] sm:$0xff]
    %v4039 = vld [vmem:[#allocation10 + $0x20] sm:$0xff]
    %v4040 = vld [vmem:[#allocation10 + $0x28] sm:$0xff]
    %v4041 = vld [vmem:[#allocation10 + $0x30] sm:$0xff]
    %v4042 = vld [vmem:[#allocation10 + $0x38] sm:$0xff]
    %v4043 = vld [vmem:[#allocation10 + $0x40] sm:$0xff]
    %v4044 = vld [vmem:[#allocation10 + $0x48] sm:$0xff]
    %v4045 = vld [vmem:[#allocation10 + $0x50] sm:$0xff]
    %v4046 = vld [vmem:[#allocation10 + $0x58] sm:$0xff]
    %v4047 = vld [vmem:[#allocation10 + $0x60] sm:$0xff]
    %v4048 = vld [vmem:[#allocation10 + $0x68] sm:$0xff]
    %v4049 = vld [vmem:[#allocation10 + $0x70] sm:$0xff]
    %v4050 = vld [vmem:[#allocation10 + $0x78] sm:$0xff]
    %v4051 = vld [vmem:[#allocation10 + $0x80] sm:$0xff]
    %v4052 = vld [vmem:[#allocation10 + $0x88] sm:$0xff]
    %v4053 = vld [vmem:[#allocation10 + $0x90] sm:$0xff]
    %v4054 = vld [vmem:[#allocation10 + $0x98] sm:$0xff]
    %v4055 = vld [vmem:[#allocation10 + $0xa0] sm:$0xff]
    %v4056 = vld [vmem:[#allocation10 + $0xa8] sm:$0xff]
    %v4057 = vld [vmem:[#allocation10 + $0xb0] sm:$0xff]
    %v4058 = vld [vmem:[#allocation10 + $0xb8] sm:$0xff]
    %v4059 = vld [vmem:[#allocation10 + $0xc0] sm:$0xff]
    %v4060 = vld [vmem:[#allocation10 + $0xc8] sm:$0xff]
    %v4061 = vld [vmem:[#allocation10 + $0xd0] sm:$0xff]
    %v4062 = vld [vmem:[#allocation10 + $0xd8] sm:$0xff]
    %v4063 = vld [vmem:[#allocation10 + $0xe0] sm:$0xff]
    %v4064 = vld [vmem:[#allocation10 + $0xe8] sm:$0xff]
    %v4065 = vld [vmem:[#allocation10 + $0xf0] sm:$0xff]
    %v4066 = vld [vmem:[#allocation10 + $0xf8] sm:$0xff]
    %v4099 = vunpack.c.l.b16 %v4035
    %v4100 = vunpack.c.h.b16 %v4035
    %v4101 = vunpack.c.l.b16 %v4036
    %v4102 = vunpack.c.h.b16 %v4036
    %v4103 = vunpack.c.l.b16 %v4037
    %v4104 = vunpack.c.h.b16 %v4037
    %v4105 = vunpack.c.l.b16 %v4038
    %v4106 = vunpack.c.h.b16 %v4038
    %v4107 = vunpack.c.l.b16 %v4039
    %v4108 = vunpack.c.h.b16 %v4039
    %v4109 = vunpack.c.l.b16 %v4040
    %v4110 = vunpack.c.h.b16 %v4040
    %v4111 = vunpack.c.l.b16 %v4041
    %v4112 = vunpack.c.h.b16 %v4041
    %v4113 = vunpack.c.l.b16 %v4042
    %v4114 = vunpack.c.h.b16 %v4042
    %v4115 = vunpack.c.l.b16 %v4043
    %v4116 = vunpack.c.h.b16 %v4043
    %v4117 = vunpack.c.l.b16 %v4044
    %v4118 = vunpack.c.h.b16 %v4044
    %v4119 = vunpack.c.l.b16 %v4045
    %v4120 = vunpack.c.h.b16 %v4045
    %v4121 = vunpack.c.l.b16 %v4046
    %v4122 = vunpack.c.h.b16 %v4046
    %v4123 = vunpack.c.l.b16 %v4047
    %v4124 = vunpack.c.h.b16 %v4047
    %v4125 = vunpack.c.l.b16 %v4048
    %v4126 = vunpack.c.h.b16 %v4048
    %v4127 = vunpack.c.l.b16 %v4049
    %v4128 = vunpack.c.h.b16 %v4049
    %v4129 = vunpack.c.l.b16 %v4050
    %v4130 = vunpack.c.h.b16 %v4050
    %v4131 = vunpack.c.l.b16 %v4051
    %v4132 = vunpack.c.h.b16 %v4051
    %v4133 = vunpack.c.l.b16 %v4052
    %v4134 = vunpack.c.h.b16 %v4052
    %v4135 = vunpack.c.l.b16 %v4053
    %v4136 = vunpack.c.h.b16 %v4053
    %v4137 = vunpack.c.l.b16 %v4054
    %v4138 = vunpack.c.h.b16 %v4054
    %v4139 = vunpack.c.l.b16 %v4055
    %v4140 = vunpack.c.h.b16 %v4055
    %v4141 = vunpack.c.l.b16 %v4056
    %v4142 = vunpack.c.h.b16 %v4056
    %v4143 = vunpack.c.l.b16 %v4057
    %v4144 = vunpack.c.h.b16 %v4057
    %v4145 = vunpack.c.l.b16 %v4058
    %v4146 = vunpack.c.h.b16 %v4058
    %v4147 = vunpack.c.l.b16 %v4059
    %v4148 = vunpack.c.h.b16 %v4059
    %v4149 = vunpack.c.l.b16 %v4060
    %v4150 = vunpack.c.h.b16 %v4060
    %v4151 = vunpack.c.l.b16 %v4061
    %v4152 = vunpack.c.h.b16 %v4061
    %v4153 = vunpack.c.l.b16 %v4062
    %v4154 = vunpack.c.h.b16 %v4062
    %v4155 = vunpack.c.l.b16 %v4063
    %v4156 = vunpack.c.h.b16 %v4063
    %v4157 = vunpack.c.l.b16 %v4064
    %v4158 = vunpack.c.h.b16 %v4064
    %v4159 = vunpack.c.l.b16 %v4065
    %v4160 = vunpack.c.h.b16 %v4065
    %v4161 = vunpack.c.l.b16 %v4066
    %v4162 = vunpack.c.h.b16 %v4066
    %v4163 = vpack.c.b16 %v4103, %v4099
    %v4164 = vpack.c.b16 %v4104, %v4100
    %v4165 = vpack.c.b16 %v4105, %v4101
    %v4166 = vpack.c.b16 %v4106, %v4102
    %v4167 = vpack.c.b16 %v4111, %v4107
    %v4168 = vpack.c.b16 %v4112, %v4108
    %v4169 = vpack.c.b16 %v4113, %v4109
    %v4170 = vpack.c.b16 %v4114, %v4110
    %v4171 = vpack.c.b16 %v4119, %v4115
    %v4172 = vpack.c.b16 %v4120, %v4116
    %v4173 = vpack.c.b16 %v4121, %v4117
    %v4174 = vpack.c.b16 %v4122, %v4118
    %v4175 = vpack.c.b16 %v4127, %v4123
    %v4176 = vpack.c.b16 %v4128, %v4124
    %v4177 = vpack.c.b16 %v4129, %v4125
    %v4178 = vpack.c.b16 %v4130, %v4126
    %v4179 = vpack.c.b16 %v4135, %v4131
    %v4180 = vpack.c.b16 %v4136, %v4132
    %v4181 = vpack.c.b16 %v4137, %v4133
    %v4182 = vpack.c.b16 %v4138, %v4134
    %v4183 = vpack.c.b16 %v4143, %v4139
    %v4184 = vpack.c.b16 %v4144, %v4140
    %v4185 = vpack.c.b16 %v4145, %v4141
    %v4186 = vpack.c.b16 %v4146, %v4142
    %v4187 = vpack.c.b16 %v4151, %v4147
    %v4188 = vpack.c.b16 %v4152, %v4148
    %v4189 = vpack.c.b16 %v4153, %v4149
    %v4190 = vpack.c.b16 %v4154, %v4150
    %v4191 = vpack.c.b16 %v4159, %v4155
    %v4192 = vpack.c.b16 %v4160, %v4156
    %v4193 = vpack.c.b16 %v4161, %v4157
    %v4194 = vpack.c.b16 %v4162, %v4158
    %4227 = vmatprep.subr.bf16.mxu0 %v4164
    %4228 = vmatpush1.bf16.msra.mxu0 %v4163
    %4229 = vmatprep.subr.bf16.mxu0 %v4168
    %4230 = vmatpush1.bf16.msra.mxu0 %v4167
    %4231 = vmatprep.subr.bf16.mxu0 %v4172
    %4232 = vmatpush1.bf16.msra.mxu0 %v4171
    %4233 = vmatprep.subr.bf16.mxu0 %v4176
    %4234 = vmatpush1.bf16.msra.mxu0 %v4175
    %4235 = vmatprep.subr.bf16.mxu0 %v4180
    %4236 = vmatpush1.bf16.msra.mxu0 %v4179
    %4237 = vmatprep.subr.bf16.mxu0 %v4184
    %4238 = vmatpush1.bf16.msra.mxu0 %v4183
    %4239 = vmatprep.subr.bf16.mxu0 %v4188
    %4240 = vmatpush1.bf16.msra.mxu0 %v4187
    %4241 = vmatprep.subr.bf16.mxu0 %v4192
    %4242 = vmatpush1.bf16.msra.mxu0 %v4191
    %4243 = vmatprep.subr.bf16.mxu0 0
    %4244 = vmatpush1.bf16.msra.mxu0 0
    %4245 = vmatprep.subr.bf16.mxu0 0
    %4246 = vmatpush1.bf16.msra.mxu0 0
    %4247 = vmatprep.subr.bf16.mxu0 0
    %4248 = vmatpush1.bf16.msra.mxu0 0
    %4249 = vmatprep.subr.bf16.mxu0 0
    %4250 = vmatpush1.bf16.msra.mxu0 0
    %4251 = vmatprep.subr.bf16.mxu0 0
    %4252 = vmatpush1.bf16.msra.mxu0 0
    %4253 = vmatprep.subr.bf16.mxu0 0
    %4254 = vmatpush1.bf16.msra.mxu0 0
    %4255 = vmatprep.subr.bf16.mxu0 0
    %4256 = vmatpush1.bf16.msra.mxu0 0
    %4257 = vmatprep.subr.bf16.mxu0 0
    %4258 = vmatpush1.bf16.msra.mxu0 0
    %4259 = vmatprep.mubr.bf16.mxu0 0
    %4260 = vmatmul.mubr.bf16.gmra.mrb[0].mxu0 %v4034
    %v4261 = vpop.f32.mrb[0].mxu0
    %v4262 = vadd.f32 0.0, %v4261
    %v4263 = vpop.f32.mrb[0].mxu0
    %v4264 = vadd.f32 0.0, %v4263
    %v4265 = vpop.f32.mrb[0].mxu0
    %v4266 = vadd.f32 0.0, %v4265
    %v4267 = vpop.f32.mrb[0].mxu0
    %v4268 = vadd.f32 0.0, %v4267
    %4269 = vdwg.mxu0
    %4270 = vmatprep.subr.bf16.mxu0 %v4166
    %4271 = vmatpush1.bf16.msra.mxu0 %v4165
    %4272 = vmatprep.subr.bf16.mxu0 %v4170
    %4273 = vmatpush1.bf16.msra.mxu0 %v4169
    %4274 = vmatprep.subr.bf16.mxu0 %v4174
    %4275 = vmatpush1.bf16.msra.mxu0 %v4173
    %4276 = vmatprep.subr.bf16.mxu0 %v4178
    %4277 = vmatpush1.bf16.msra.mxu0 %v4177
    %4278 = vmatprep.subr.bf16.mxu0 %v4182
    %4279 = vmatpush1.bf16.msra.mxu0 %v4181
    %4280 = vmatprep.subr.bf16.mxu0 %v4186
    %4281 = vmatpush1.bf16.msra.mxu0 %v4185
    %4282 = vmatprep.subr.bf16.mxu0 %v4190
    %4283 = vmatpush1.bf16.msra.mxu0 %v4189
    %4284 = vmatprep.subr.bf16.mxu0 %v4194
    %4285 = vmatpush1.bf16.msra.mxu0 %v4193
    %4286 = vmatprep.subr.bf16.mxu0 0
    %4287 = vmatpush1.bf16.msra.mxu0 0
    %4288 = vmatprep.subr.bf16.mxu0 0
    %4289 = vmatpush1.bf16.msra.mxu0 0
    %4290 = vmatprep.subr.bf16.mxu0 0
    %4291 = vmatpush1.bf16.msra.mxu0 0
    %4292 = vmatprep.subr.bf16.mxu0 0
    %4293 = vmatpush1.bf16.msra.mxu0 0
    %4294 = vmatprep.subr.bf16.mxu0 0
    %4295 = vmatpush1.bf16.msra.mxu0 0
    %4296 = vmatprep.subr.bf16.mxu0 0
    %4297 = vmatpush1.bf16.msra.mxu0 0
    %4298 = vmatprep.subr.bf16.mxu0 0
    %4299 = vmatpush1.bf16.msra.mxu0 0
    %4300 = vmatprep.subr.bf16.mxu0 0
    %4301 = vmatpush1.bf16.msra.mxu0 0
    %4302 = vmatprep.mubr.bf16.mxu0 0
    %4303 = vmatmul.mubr.bf16.gmra.mrb[0].mxu0 %v4034
    %v4304 = vpop.f32.mrb[0].mxu0
    %v4305 = vadd.f32 0.0, %v4304
    %v4306 = vpop.f32.mrb[0].mxu0
    %v4307 = vadd.f32 0.0, %v4306
    %v4308 = vpop.f32.mrb[0].mxu0
    %v4309 = vadd.f32 0.0, %v4308
    %v4310 = vpop.f32.mrb[0].mxu0
    %v4311 = vadd.f32 0.0, %v4310
    %4312 = vdwg.mxu0
    %v4313 = vadd.f32 %v4026, %v4262
    %v4314 = vadd.f32 %v4027, %v4264
    %v4315 = vadd.f32 %v4028, %v4305
    %v4316 = vadd.f32 %v4029, %v4307
    %v4317 = vadd.f32 %v4030, %v4266
    %v4318 = vadd.f32 %v4031, %v4268
    %v4319 = vadd.f32 %v4032, %v4309
    %v4320 = vadd.f32 %v4033, %v4311
    %v4321 = vxor.u32 %v4313, 2147483648
    %v4322 = vxor.u32 %v4317, 2147483648
    %v4323 = vmul.f32 %v4321, 1.442695
    %v4324 = vpow.pop %v4323
    %v4325 = vmul.f32 %v4322, 1.442695
    %v4326 = vpow.pop %v4325
    %v4327 = vadd.f32 %v4324, 1.0
    %v4328 = vadd.f32 %v4326, 1.0
    %v4329 = vrcp.pop %v4327
    %v4330 = vmul.f32 1.0, %v4329
    %v4331 = vrcp.pop %v4328
    %v4332 = vmul.f32 1.0, %v4331
    %v4333 = vxor.u32 %v4314, 2147483648
    %v4334 = vxor.u32 %v4318, 2147483648
    %v4335 = vmul.f32 %v4333, 1.442695
    %v4336 = vpow.pop %v4335
    %v4337 = vmul.f32 %v4334, 1.442695
    %v4338 = vpow.pop %v4337
    %v4339 = vadd.f32 %v4336, 1.0
    %v4340 = vadd.f32 %v4338, 1.0
    %v4341 = vrcp.pop %v4339
    %v4342 = vmul.f32 1.0, %v4341
    %v4343 = vrcp.pop %v4340
    %v4344 = vmul.f32 1.0, %v4343
    %v4345 = vtanh.pop %v4315
    %v4346 = vtanh.pop %v4319
    %v4347 = vxor.u32 %v4316, 2147483648
    %v4348 = vxor.u32 %v4320, 2147483648
    %v4349 = vmul.f32 %v4347, 1.442695
    %v4350 = vpow.pop %v4349
    %v4351 = vmul.f32 %v4348, 1.442695
    %v4352 = vpow.pop %v4351
    %v4353 = vadd.f32 %v4350, 1.0
    %v4354 = vadd.f32 %v4352, 1.0
    %v4355 = vrcp.pop %v4353
    %v4356 = vmul.f32 1.0, %v4355
    %v4357 = vrcp.pop %v4354
    %v4358 = vmul.f32 1.0, %v4357
    %v4359 = vmul.f32 %v4342, %v3663
    %v4360 = vmul.f32 %v4344, %v3664
    %v4361 = vmul.f32 %v4330, %v4345
    %v4362 = vmul.f32 %v4332, %v4346
    %v4363 = vadd.f32 %v4359, %v4361
    %v4364 = vadd.f32 %v4360, %v4362
    %v4365 = vtanh.pop %v4363
    %v4366 = vtanh.pop %v4364
    %v4367 = vmul.f32 %v4356, %v4365
    %v4368 = vmul.f32 %v4358, %v4366
    %v4369 = vunpack.c.l.bf16 %v4022
    %v4370 = vunpack.c.l.bf16 %v4023
    %v4371 = vunpack.c.l.bf16 %v4024
    %v4372 = vunpack.c.l.bf16 %v4025
    %v4373 = vunpack.c.h.bf16 %v4022
    %v4374 = vunpack.c.h.bf16 %v4023
    %v4375 = vunpack.c.h.bf16 %v4024
    %v4376 = vunpack.c.h.bf16 %v4025
    %v4377 = vpack.c.bf16 %v4011, %v4010
    %v4378 = vld [vmem:[#allocation12] sm:$0xff]
    %v4379 = vld [vmem:[#allocation12 + $0x8] sm:$0xff]
    %v4380 = vld [vmem:[#allocation12 + $0x10] sm:$0xff]
    %v4381 = vld [vmem:[#allocation12 + $0x18] sm:$0xff]
    %v4382 = vld [vmem:[#allocation12 + $0x20] sm:$0xff]
    %v4383 = vld [vmem:[#allocation12 + $0x28] sm:$0xff]
    %v4384 = vld [vmem:[#allocation12 + $0x30] sm:$0xff]
    %v4385 = vld [vmem:[#allocation12 + $0x38] sm:$0xff]
    %v4386 = vld [vmem:[#allocation12 + $0x40] sm:$0xff]
    %v4387 = vld [vmem:[#allocation12 + $0x48] sm:$0xff]
    %v4388 = vld [vmem:[#allocation12 + $0x50] sm:$0xff]
    %v4389 = vld [vmem:[#allocation12 + $0x58] sm:$0xff]
    %v4390 = vld [vmem:[#allocation12 + $0x60] sm:$0xff]
    %v4391 = vld [vmem:[#allocation12 + $0x68] sm:$0xff]
    %v4392 = vld [vmem:[#allocation12 + $0x70] sm:$0xff]
    %v4393 = vld [vmem:[#allocation12 + $0x78] sm:$0xff]
    %v4394 = vld [vmem:[#allocation12 + $0x80] sm:$0xff]
    %v4395 = vld [vmem:[#allocation12 + $0x88] sm:$0xff]
    %v4396 = vld [vmem:[#allocation12 + $0x90] sm:$0xff]
    %v4397 = vld [vmem:[#allocation12 + $0x98] sm:$0xff]
    %v4398 = vld [vmem:[#allocation12 + $0xa0] sm:$0xff]
    %v4399 = vld [vmem:[#allocation12 + $0xa8] sm:$0xff]
    %v4400 = vld [vmem:[#allocation12 + $0xb0] sm:$0xff]
    %v4401 = vld [vmem:[#allocation12 + $0xb8] sm:$0xff]
    %v4402 = vld [vmem:[#allocation12 + $0xc0] sm:$0xff]
    %v4403 = vld [vmem:[#allocation12 + $0xc8] sm:$0xff]
    %v4404 = vld [vmem:[#allocation12 + $0xd0] sm:$0xff]
    %v4405 = vld [vmem:[#allocation12 + $0xd8] sm:$0xff]
    %v4406 = vld [vmem:[#allocation12 + $0xe0] sm:$0xff]
    %v4407 = vld [vmem:[#allocation12 + $0xe8] sm:$0xff]
    %v4408 = vld [vmem:[#allocation12 + $0xf0] sm:$0xff]
    %v4409 = vld [vmem:[#allocation12 + $0xf8] sm:$0xff]
    %v4442 = vunpack.c.l.b16 %v4378
    %v4443 = vunpack.c.h.b16 %v4378
    %v4444 = vunpack.c.l.b16 %v4379
    %v4445 = vunpack.c.h.b16 %v4379
    %v4446 = vunpack.c.l.b16 %v4380
    %v4447 = vunpack.c.h.b16 %v4380
    %v4448 = vunpack.c.l.b16 %v4381
    %v4449 = vunpack.c.h.b16 %v4381
    %v4450 = vunpack.c.l.b16 %v4382
    %v4451 = vunpack.c.h.b16 %v4382
    %v4452 = vunpack.c.l.b16 %v4383
    %v4453 = vunpack.c.h.b16 %v4383
    %v4454 = vunpack.c.l.b16 %v4384
    %v4455 = vunpack.c.h.b16 %v4384
    %v4456 = vunpack.c.l.b16 %v4385
    %v4457 = vunpack.c.h.b16 %v4385
    %v4458 = vunpack.c.l.b16 %v4386
    %v4459 = vunpack.c.h.b16 %v4386
    %v4460 = vunpack.c.l.b16 %v4387
    %v4461 = vunpack.c.h.b16 %v4387
    %v4462 = vunpack.c.l.b16 %v4388
    %v4463 = vunpack.c.h.b16 %v4388
    %v4464 = vunpack.c.l.b16 %v4389
    %v4465 = vunpack.c.h.b16 %v4389
    %v4466 = vunpack.c.l.b16 %v4390
    %v4467 = vunpack.c.h.b16 %v4390
    %v4468 = vunpack.c.l.b16 %v4391
    %v4469 = vunpack.c.h.b16 %v4391
    %v4470 = vunpack.c.l.b16 %v4392
    %v4471 = vunpack.c.h.b16 %v4392
    %v4472 = vunpack.c.l.b16 %v4393
    %v4473 = vunpack.c.h.b16 %v4393
    %v4474 = vunpack.c.l.b16 %v4394
    %v4475 = vunpack.c.h.b16 %v4394
    %v4476 = vunpack.c.l.b16 %v4395
    %v4477 = vunpack.c.h.b16 %v4395
    %v4478 = vunpack.c.l.b16 %v4396
    %v4479 = vunpack.c.h.b16 %v4396
    %v4480 = vunpack.c.l.b16 %v4397
    %v4481 = vunpack.c.h.b16 %v4397
    %v4482 = vunpack.c.l.b16 %v4398
    %v4483 = vunpack.c.h.b16 %v4398
    %v4484 = vunpack.c.l.b16 %v4399
    %v4485 = vunpack.c.h.b16 %v4399
    %v4486 = vunpack.c.l.b16 %v4400
    %v4487 = vunpack.c.h.b16 %v4400
    %v4488 = vunpack.c.l.b16 %v4401
    %v4489 = vunpack.c.h.b16 %v4401
    %v4490 = vunpack.c.l.b16 %v4402
    %v4491 = vunpack.c.h.b16 %v4402
    %v4492 = vunpack.c.l.b16 %v4403
    %v4493 = vunpack.c.h.b16 %v4403
    %v4494 = vunpack.c.l.b16 %v4404
    %v4495 = vunpack.c.h.b16 %v4404
    %v4496 = vunpack.c.l.b16 %v4405
    %v4497 = vunpack.c.h.b16 %v4405
    %v4498 = vunpack.c.l.b16 %v4406
    %v4499 = vunpack.c.h.b16 %v4406
    %v4500 = vunpack.c.l.b16 %v4407
    %v4501 = vunpack.c.h.b16 %v4407
    %v4502 = vunpack.c.l.b16 %v4408
    %v4503 = vunpack.c.h.b16 %v4408
    %v4504 = vunpack.c.l.b16 %v4409
    %v4505 = vunpack.c.h.b16 %v4409
    %v4506 = vpack.c.b16 %v4446, %v4442
    %v4507 = vpack.c.b16 %v4447, %v4443
    %v4508 = vpack.c.b16 %v4448, %v4444
    %v4509 = vpack.c.b16 %v4449, %v4445
    %v4510 = vpack.c.b16 %v4454, %v4450
    %v4511 = vpack.c.b16 %v4455, %v4451
    %v4512 = vpack.c.b16 %v4456, %v4452
    %v4513 = vpack.c.b16 %v4457, %v4453
    %v4514 = vpack.c.b16 %v4462, %v4458
    %v4515 = vpack.c.b16 %v4463, %v4459
    %v4516 = vpack.c.b16 %v4464, %v4460
    %v4517 = vpack.c.b16 %v4465, %v4461
    %v4518 = vpack.c.b16 %v4470, %v4466
    %v4519 = vpack.c.b16 %v4471, %v4467
    %v4520 = vpack.c.b16 %v4472, %v4468
    %v4521 = vpack.c.b16 %v4473, %v4469
    %v4522 = vpack.c.b16 %v4478, %v4474
    %v4523 = vpack.c.b16 %v4479, %v4475
    %v4524 = vpack.c.b16 %v4480, %v4476
    %v4525 = vpack.c.b16 %v4481, %v4477
    %v4526 = vpack.c.b16 %v4486, %v4482
    %v4527 = vpack.c.b16 %v4487, %v4483
    %v4528 = vpack.c.b16 %v4488, %v4484
    %v4529 = vpack.c.b16 %v4489, %v4485
    %v4530 = vpack.c.b16 %v4494, %v4490
    %v4531 = vpack.c.b16 %v4495, %v4491
    %v4532 = vpack.c.b16 %v4496, %v4492
    %v4533 = vpack.c.b16 %v4497, %v4493
    %v4534 = vpack.c.b16 %v4502, %v4498
    %v4535 = vpack.c.b16 %v4503, %v4499
    %v4536 = vpack.c.b16 %v4504, %v4500
    %v4537 = vpack.c.b16 %v4505, %v4501
    %4570 = vmatprep.subr.bf16.mxu0 %v4507
    %4571 = vmatpush1.bf16.msra.mxu0 %v4506
    %4572 = vmatprep.subr.bf16.mxu0 %v4511
    %4573 = vmatpush1.bf16.msra.mxu0 %v4510
    %4574 = vmatprep.subr.bf16.mxu0 %v4515
    %4575 = vmatpush1.bf16.msra.mxu0 %v4514
    %4576 = vmatprep.subr.bf16.mxu0 %v4519
    %4577 = vmatpush1.bf16.msra.mxu0 %v4518
    %4578 = vmatprep.subr.bf16.mxu0 %v4523
    %4579 = vmatpush1.bf16.msra.mxu0 %v4522
    %4580 = vmatprep.subr.bf16.mxu0 %v4527
    %4581 = vmatpush1.bf16.msra.mxu0 %v4526
    %4582 = vmatprep.subr.bf16.mxu0 %v4531
    %4583 = vmatpush1.bf16.msra.mxu0 %v4530
    %4584 = vmatprep.subr.bf16.mxu0 %v4535
    %4585 = vmatpush1.bf16.msra.mxu0 %v4534
    %4586 = vmatprep.subr.bf16.mxu0 0
    %4587 = vmatpush1.bf16.msra.mxu0 0
    %4588 = vmatprep.subr.bf16.mxu0 0
    %4589 = vmatpush1.bf16.msra.mxu0 0
    %4590 = vmatprep.subr.bf16.mxu0 0
    %4591 = vmatpush1.bf16.msra.mxu0 0
    %4592 = vmatprep.subr.bf16.mxu0 0
    %4593 = vmatpush1.bf16.msra.mxu0 0
    %4594 = vmatprep.subr.bf16.mxu0 0
    %4595 = vmatpush1.bf16.msra.mxu0 0
    %4596 = vmatprep.subr.bf16.mxu0 0
    %4597 = vmatpush1.bf16.msra.mxu0 0
    %4598 = vmatprep.subr.bf16.mxu0 0
    %4599 = vmatpush1.bf16.msra.mxu0 0
    %4600 = vmatprep.subr.bf16.mxu0 0
    %4601 = vmatpush1.bf16.msra.mxu0 0
    %4602 = vmatprep.mubr.bf16.mxu0 0
    %4603 = vmatmul.mubr.bf16.gmra.mrb[0].mxu0 %v4377
    %v4604 = vpop.f32.mrb[0].mxu0
    %v4605 = vadd.f32 0.0, %v4604
    %v4606 = vpop.f32.mrb[0].mxu0
    %v4607 = vadd.f32 0.0, %v4606
    %v4608 = vpop.f32.mrb[0].mxu0
    %v4609 = vadd.f32 0.0, %v4608
    %v4610 = vpop.f32.mrb[0].mxu0
    %v4611 = vadd.f32 0.0, %v4610
    %4612 = vdwg.mxu0
    %4613 = vmatprep.subr.bf16.mxu0 %v4509
    %4614 = vmatpush1.bf16.msra.mxu0 %v4508
    %4615 = vmatprep.subr.bf16.mxu0 %v4513
    %4616 = vmatpush1.bf16.msra.mxu0 %v4512
    %4617 = vmatprep.subr.bf16.mxu0 %v4517
    %4618 = vmatpush1.bf16.msra.mxu0 %v4516
    %4619 = vmatprep.subr.bf16.mxu0 %v4521
    %4620 = vmatpush1.bf16.msra.mxu0 %v4520
    %4621 = vmatprep.subr.bf16.mxu0 %v4525
    %4622 = vmatpush1.bf16.msra.mxu0 %v4524
    %4623 = vmatprep.subr.bf16.mxu0 %v4529
    %4624 = vmatpush1.bf16.msra.mxu0 %v4528
    %4625 = vmatprep.subr.bf16.mxu0 %v4533
    %4626 = vmatpush1.bf16.msra.mxu0 %v4532
    %4627 = vmatprep.subr.bf16.mxu0 %v4537
    %4628 = vmatpush1.bf16.msra.mxu0 %v4536
    %4629 = vmatprep.subr.bf16.mxu0 0
    %4630 = vmatpush1.bf16.msra.mxu0 0
    %4631 = vmatprep.subr.bf16.mxu0 0
    %4632 = vmatpush1.bf16.msra.mxu0 0
    %4633 = vmatprep.subr.bf16.mxu0 0
    %4634 = vmatpush1.bf16.msra.mxu0 0
    %4635 = vmatprep.subr.bf16.mxu0 0
    %4636 = vmatpush1.bf16.msra.mxu0 0
    %4637 = vmatprep.subr.bf16.mxu0 0
    %4638 = vmatpush1.bf16.msra.mxu0 0
    %4639 = vmatprep.subr.bf16.mxu0 0
    %4640 = vmatpush1.bf16.msra.mxu0 0
    %4641 = vmatprep.subr.bf16.mxu0 0
    %4642 = vmatpush1.bf16.msra.mxu0 0
    %4643 = vmatprep.subr.bf16.mxu0 0
    %4644 = vmatpush1.bf16.msra.mxu0 0
    %4645 = vmatprep.mubr.bf16.mxu0 0
    %4646 = vmatmul.mubr.bf16.gmra.mrb[0].mxu0 %v4377
    %v4647 = vpop.f32.mrb[0].mxu0
    %v4648 = vadd.f32 0.0, %v4647
    %v4649 = vpop.f32.mrb[0].mxu0
    %v4650 = vadd.f32 0.0, %v4649
    %v4651 = vpop.f32.mrb[0].mxu0
    %v4652 = vadd.f32 0.0, %v4651
    %v4653 = vpop.f32.mrb[0].mxu0
    %v4654 = vadd.f32 0.0, %v4653
    %4655 = vdwg.mxu0
    %v4656 = vadd.f32 %v4369, %v4605
    %v4657 = vadd.f32 %v4370, %v4607
    %v4658 = vadd.f32 %v4371, %v4648
    %v4659 = vadd.f32 %v4372, %v4650
    %v4660 = vadd.f32 %v4373, %v4609
    %v4661 = vadd.f32 %v4374, %v4611
    %v4662 = vadd.f32 %v4375, %v4652
    %v4663 = vadd.f32 %v4376, %v4654
    %v4664 = vxor.u32 %v4656, 2147483648
    %v4665 = vxor.u32 %v4660, 2147483648
    %v4666 = vmul.f32 %v4664, 1.442695
    %v4667 = vpow.pop %v4666
    %v4668 = vmul.f32 %v4665, 1.442695
    %v4669 = vpow.pop %v4668
    %v4670 = vadd.f32 %v4667, 1.0
    %v4671 = vadd.f32 %v4669, 1.0
    %v4672 = vrcp.pop %v4670
    %v4673 = vmul.f32 1.0, %v4672
    %v4674 = vrcp.pop %v4671
    %v4675 = vmul.f32 1.0, %v4674
    %v4676 = vxor.u32 %v4657, 2147483648
    %v4677 = vxor.u32 %v4661, 2147483648
    %v4678 = vmul.f32 %v4676, 1.442695
    %v4679 = vpow.pop %v4678
    %v4680 = vmul.f32 %v4677, 1.442695
    %v4681 = vpow.pop %v4680
    %v4682 = vadd.f32 %v4679, 1.0
    %v4683 = vadd.f32 %v4681, 1.0
    %v4684 = vrcp.pop %v4682
    %v4685 = vmul.f32 1.0, %v4684
    %v4686 = vrcp.pop %v4683
    %v4687 = vmul.f32 1.0, %v4686
    %v4688 = vtanh.pop %v4658
    %v4689 = vtanh.pop %v4662
    %v4690 = vxor.u32 %v4659, 2147483648
    %v4691 = vxor.u32 %v4663, 2147483648
    %v4692 = vmul.f32 %v4690, 1.442695
    %v4693 = vpow.pop %v4692
    %v4694 = vmul.f32 %v4691, 1.442695
    %v4695 = vpow.pop %v4694
    %v4696 = vadd.f32 %v4693, 1.0
    %v4697 = vadd.f32 %v4695, 1.0
    %v4698 = vrcp.pop %v4696
    %v4699 = vmul.f32 1.0, %v4698
    %v4700 = vrcp.pop %v4697
    %v4701 = vmul.f32 1.0, %v4700
    %v4702 = vmul.f32 %v4685, %v4006
    %v4703 = vmul.f32 %v4687, %v4007
    %v4704 = vmul.f32 %v4673, %v4688
    %v4705 = vmul.f32 %v4675, %v4689
    %v4706 = vadd.f32 %v4702, %v4704
    %v4707 = vadd.f32 %v4703, %v4705
    %v4708 = vtanh.pop %v4706
    %v4709 = vtanh.pop %v4707
    %v4710 = vmul.f32 %v4699, %v4708
    %v4711 = vmul.f32 %v4701, %v4709
    %4712 = vst [vmem:[%s4015] sm:$0xff] %v4367
    %4713 = vst [vmem:[%s4015 + $0x10] sm:$0xff] %v4368
    %4714 = vst [vmem:[%s4012 + $0x8] sm:$0xff] %v4710
    %4715 = vst [vmem:[%s4012 + $0x18] sm:$0xff] %v4711
    %v4716 = vld [vmem:[%s2619] sm:$0xff]
    %v4717 = vld [vmem:[%s2619 + $0x8] sm:$0xff]
    %v4718 = vld [vmem:[%s2619 + $0x10] sm:$0xff]
    %v4719 = vld [vmem:[%s2619 + $0x18] sm:$0xff]
    %v4720 = vld [vmem:[%s2614 + $0x20] sm:$0xff]
    %v4721 = vld [vmem:[%s2614 + $0x28] sm:$0xff]
    %v4722 = vld [vmem:[%s2614 + $0x30] sm:$0xff]
    %v4723 = vld [vmem:[%s2614 + $0x38] sm:$0xff]
    %v4724 = vunpack.c.l.bf16 %v4716
    %v4725 = vunpack.c.l.bf16 %v4717
    %v4726 = vunpack.c.l.bf16 %v4718
    %v4727 = vunpack.c.l.bf16 %v4719
    %v4728 = vunpack.c.h.bf16 %v4716
    %v4729 = vunpack.c.h.bf16 %v4717
    %v4730 = vunpack.c.h.bf16 %v4718
    %v4731 = vunpack.c.h.bf16 %v4719
    %v4732 = vpack.c.bf16 %v4368, %v4367
    %v4733 = vld [vmem:[#allocation10] sm:$0xff]
    %v4734 = vld [vmem:[#allocation10 + $0x8] sm:$0xff]
    %v4735 = vld [vmem:[#allocation10 + $0x10] sm:$0xff]
    %v4736 = vld [vmem:[#allocation10 + $0x18] sm:$0xff]
    %v4737 = vld [vmem:[#allocation10 + $0x20] sm:$0xff]
    %v4738 = vld [vmem:[#allocation10 + $0x28] sm:$0xff]
    %v4739 = vld [vmem:[#allocation10 + $0x30] sm:$0xff]
    %v4740 = vld [vmem:[#allocation10 + $0x38] sm:$0xff]
    %v4741 = vld [vmem:[#allocation10 + $0x40] sm:$0xff]
    %v4742 = vld [vmem:[#allocation10 + $0x48] sm:$0xff]
    %v4743 = vld [vmem:[#allocation10 + $0x50] sm:$0xff]
    %v4744 = vld [vmem:[#allocation10 + $0x58] sm:$0xff]
    %v4745 = vld [vmem:[#allocation10 + $0x60] sm:$0xff]
    %v4746 = vld [vmem:[#allocation10 + $0x68] sm:$0xff]
    %v4747 = vld [vmem:[#allocation10 + $0x70] sm:$0xff]
    %v4748 = vld [vmem:[#allocation10 + $0x78] sm:$0xff]
    %v4749 = vld [vmem:[#allocation10 + $0x80] sm:$0xff]
    %v4750 = vld [vmem:[#allocation10 + $0x88] sm:$0xff]
    %v4751 = vld [vmem:[#allocation10 + $0x90] sm:$0xff]
    %v4752 = vld [vmem:[#allocation10 + $0x98] sm:$0xff]
    %v4753 = vld [vmem:[#allocation10 + $0xa0] sm:$0xff]
    %v4754 = vld [vmem:[#allocation10 + $0xa8] sm:$0xff]
    %v4755 = vld [vmem:[#allocation10 + $0xb0] sm:$0xff]
    %v4756 = vld [vmem:[#allocation10 + $0xb8] sm:$0xff]
    %v4757 = vld [vmem:[#allocation10 + $0xc0] sm:$0xff]
    %v4758 = vld [vmem:[#allocation10 + $0xc8] sm:$0xff]
    %v4759 = vld [vmem:[#allocation10 + $0xd0] sm:$0xff]
    %v4760 = vld [vmem:[#allocation10 + $0xd8] sm:$0xff]
    %v4761 = vld [vmem:[#allocation10 + $0xe0] sm:$0xff]
    %v4762 = vld [vmem:[#allocation10 + $0xe8] sm:$0xff]
    %v4763 = vld [vmem:[#allocation10 + $0xf0] sm:$0xff]
    %v4764 = vld [vmem:[#allocation10 + $0xf8] sm:$0xff]
    %v4797 = vunpack.c.l.b16 %v4733
    %v4798 = vunpack.c.h.b16 %v4733
    %v4799 = vunpack.c.l.b16 %v4734
    %v4800 = vunpack.c.h.b16 %v4734
    %v4801 = vunpack.c.l.b16 %v4735
    %v4802 = vunpack.c.h.b16 %v4735
    %v4803 = vunpack.c.l.b16 %v4736
    %v4804 = vunpack.c.h.b16 %v4736
    %v4805 = vunpack.c.l.b16 %v4737
    %v4806 = vunpack.c.h.b16 %v4737
    %v4807 = vunpack.c.l.b16 %v4738
    %v4808 = vunpack.c.h.b16 %v4738
    %v4809 = vunpack.c.l.b16 %v4739
    %v4810 = vunpack.c.h.b16 %v4739
    %v4811 = vunpack.c.l.b16 %v4740
    %v4812 = vunpack.c.h.b16 %v4740
    %v4813 = vunpack.c.l.b16 %v4741
    %v4814 = vunpack.c.h.b16 %v4741
    %v4815 = vunpack.c.l.b16 %v4742
    %v4816 = vunpack.c.h.b16 %v4742
    %v4817 = vunpack.c.l.b16 %v4743
    %v4818 = vunpack.c.h.b16 %v4743
    %v4819 = vunpack.c.l.b16 %v4744
    %v4820 = vunpack.c.h.b16 %v4744
    %v4821 = vunpack.c.l.b16 %v4745
    %v4822 = vunpack.c.h.b16 %v4745
    %v4823 = vunpack.c.l.b16 %v4746
    %v4824 = vunpack.c.h.b16 %v4746
    %v4825 = vunpack.c.l.b16 %v4747
    %v4826 = vunpack.c.h.b16 %v4747
    %v4827 = vunpack.c.l.b16 %v4748
    %v4828 = vunpack.c.h.b16 %v4748
    %v4829 = vunpack.c.l.b16 %v4749
    %v4830 = vunpack.c.h.b16 %v4749
    %v4831 = vunpack.c.l.b16 %v4750
    %v4832 = vunpack.c.h.b16 %v4750
    %v4833 = vunpack.c.l.b16 %v4751
    %v4834 = vunpack.c.h.b16 %v4751
    %v4835 = vunpack.c.l.b16 %v4752
    %v4836 = vunpack.c.h.b16 %v4752
    %v4837 = vunpack.c.l.b16 %v4753
    %v4838 = vunpack.c.h.b16 %v4753
    %v4839 = vunpack.c.l.b16 %v4754
    %v4840 = vunpack.c.h.b16 %v4754
    %v4841 = vunpack.c.l.b16 %v4755
    %v4842 = vunpack.c.h.b16 %v4755
    %v4843 = vunpack.c.l.b16 %v4756
    %v4844 = vunpack.c.h.b16 %v4756
    %v4845 = vunpack.c.l.b16 %v4757
    %v4846 = vunpack.c.h.b16 %v4757
    %v4847 = vunpack.c.l.b16 %v4758
    %v4848 = vunpack.c.h.b16 %v4758
    %v4849 = vunpack.c.l.b16 %v4759
    %v4850 = vunpack.c.h.b16 %v4759
    %v4851 = vunpack.c.l.b16 %v4760
    %v4852 = vunpack.c.h.b16 %v4760
    %v4853 = vunpack.c.l.b16 %v4761
    %v4854 = vunpack.c.h.b16 %v4761
    %v4855 = vunpack.c.l.b16 %v4762
    %v4856 = vunpack.c.h.b16 %v4762
    %v4857 = vunpack.c.l.b16 %v4763
    %v4858 = vunpack.c.h.b16 %v4763
    %v4859 = vunpack.c.l.b16 %v4764
    %v4860 = vunpack.c.h.b16 %v4764
    %v4861 = vpack.c.b16 %v4801, %v4797
    %v4862 = vpack.c.b16 %v4802, %v4798
    %v4863 = vpack.c.b16 %v4803, %v4799
    %v4864 = vpack.c.b16 %v4804, %v4800
    %v4865 = vpack.c.b16 %v4809, %v4805
    %v4866 = vpack.c.b16 %v4810, %v4806
    %v4867 = vpack.c.b16 %v4811, %v4807
    %v4868 = vpack.c.b16 %v4812, %v4808
    %v4869 = vpack.c.b16 %v4817, %v4813
    %v4870 = vpack.c.b16 %v4818, %v4814
    %v4871 = vpack.c.b16 %v4819, %v4815
    %v4872 = vpack.c.b16 %v4820, %v4816
    %v4873 = vpack.c.b16 %v4825, %v4821
    %v4874 = vpack.c.b16 %v4826, %v4822
    %v4875 = vpack.c.b16 %v4827, %v4823
    %v4876 = vpack.c.b16 %v4828, %v4824
    %v4877 = vpack.c.b16 %v4833, %v4829
    %v4878 = vpack.c.b16 %v4834, %v4830
    %v4879 = vpack.c.b16 %v4835, %v4831
    %v4880 = vpack.c.b16 %v4836, %v4832
    %v4881 = vpack.c.b16 %v4841, %v4837
    %v4882 = vpack.c.b16 %v4842, %v4838
    %v4883 = vpack.c.b16 %v4843, %v4839
    %v4884 = vpack.c.b16 %v4844, %v4840
    %v4885 = vpack.c.b16 %v4849, %v4845
    %v4886 = vpack.c.b16 %v4850, %v4846
    %v4887 = vpack.c.b16 %v4851, %v4847
    %v4888 = vpack.c.b16 %v4852, %v4848
    %v4889 = vpack.c.b16 %v4857, %v4853
    %v4890 = vpack.c.b16 %v4858, %v4854
    %v4891 = vpack.c.b16 %v4859, %v4855
    %v4892 = vpack.c.b16 %v4860, %v4856
    %4925 = vmatprep.subr.bf16.mxu0 %v4862
    %4926 = vmatpush1.bf16.msra.mxu0 %v4861
    %4927 = vmatprep.subr.bf16.mxu0 %v4866
    %4928 = vmatpush1.bf16.msra.mxu0 %v4865
    %4929 = vmatprep.subr.bf16.mxu0 %v4870
    %4930 = vmatpush1.bf16.msra.mxu0 %v4869
    %4931 = vmatprep.subr.bf16.mxu0 %v4874
    %4932 = vmatpush1.bf16.msra.mxu0 %v4873
    %4933 = vmatprep.subr.bf16.mxu0 %v4878
    %4934 = vmatpush1.bf16.msra.mxu0 %v4877
    %4935 = vmatprep.subr.bf16.mxu0 %v4882
    %4936 = vmatpush1.bf16.msra.mxu0 %v4881
    %4937 = vmatprep.subr.bf16.mxu0 %v4886
    %4938 = vmatpush1.bf16.msra.mxu0 %v4885
    %4939 = vmatprep.subr.bf16.mxu0 %v4890
    %4940 = vmatpush1.bf16.msra.mxu0 %v4889
    %4941 = vmatprep.subr.bf16.mxu0 0
    %4942 = vmatpush1.bf16.msra.mxu0 0
    %4943 = vmatprep.subr.bf16.mxu0 0
    %4944 = vmatpush1.bf16.msra.mxu0 0
    %4945 = vmatprep.subr.bf16.mxu0 0
    %4946 = vmatpush1.bf16.msra.mxu0 0
    %4947 = vmatprep.subr.bf16.mxu0 0
    %4948 = vmatpush1.bf16.msra.mxu0 0
    %4949 = vmatprep.subr.bf16.mxu0 0
    %4950 = vmatpush1.bf16.msra.mxu0 0
    %4951 = vmatprep.subr.bf16.mxu0 0
    %4952 = vmatpush1.bf16.msra.mxu0 0
    %4953 = vmatprep.subr.bf16.mxu0 0
    %4954 = vmatpush1.bf16.msra.mxu0 0
    %4955 = vmatprep.subr.bf16.mxu0 0
    %4956 = vmatpush1.bf16.msra.mxu0 0
    %4957 = vmatprep.mubr.bf16.mxu0 0
    %4958 = vmatmul.mubr.bf16.gmra.mrb[0].mxu0 %v4732
    %v4959 = vpop.f32.mrb[0].mxu0
    %v4960 = vadd.f32 0.0, %v4959
    %v4961 = vpop.f32.mrb[0].mxu0
    %v4962 = vadd.f32 0.0, %v4961
    %v4963 = vpop.f32.mrb[0].mxu0
    %v4964 = vadd.f32 0.0, %v4963
    %v4965 = vpop.f32.mrb[0].mxu0
    %v4966 = vadd.f32 0.0, %v4965
    %4967 = vdwg.mxu0
    %4968 = vmatprep.subr.bf16.mxu0 %v4864
    %4969 = vmatpush1.bf16.msra.mxu0 %v4863
    %4970 = vmatprep.subr.bf16.mxu0 %v4868
    %4971 = vmatpush1.bf16.msra.mxu0 %v4867
    %4972 = vmatprep.subr.bf16.mxu0 %v4872
    %4973 = vmatpush1.bf16.msra.mxu0 %v4871
    %4974 = vmatprep.subr.bf16.mxu0 %v4876
    %4975 = vmatpush1.bf16.msra.mxu0 %v4875
    %4976 = vmatprep.subr.bf16.mxu0 %v4880
    %4977 = vmatpush1.bf16.msra.mxu0 %v4879
    %4978 = vmatprep.subr.bf16.mxu0 %v4884
    %4979 = vmatpush1.bf16.msra.mxu0 %v4883
    %4980 = vmatprep.subr.bf16.mxu0 %v4888
    %4981 = vmatpush1.bf16.msra.mxu0 %v4887
    %4982 = vmatprep.subr.bf16.mxu0 %v4892
    %4983 = vmatpush1.bf16.msra.mxu0 %v4891
    %4984 = vmatprep.subr.bf16.mxu0 0
    %4985 = vmatpush1.bf16.msra.mxu0 0
    %4986 = vmatprep.subr.bf16.mxu0 0
    %4987 = vmatpush1.bf16.msra.mxu0 0
    %4988 = vmatprep.subr.bf16.mxu0 0
    %4989 = vmatpush1.bf16.msra.mxu0 0
    %4990 = vmatprep.subr.bf16.mxu0 0
    %4991 = vmatpush1.bf16.msra.mxu0 0
    %4992 = vmatprep.subr.bf16.mxu0 0
    %4993 = vmatpush1.bf16.msra.mxu0 0
    %4994 = vmatprep.subr.bf16.mxu0 0
    %4995 = vmatpush1.bf16.msra.mxu0 0
    %4996 = vmatprep.subr.bf16.mxu0 0
    %4997 = vmatpush1.bf16.msra.mxu0 0
    %4998 = vmatprep.subr.bf16.mxu0 0
    %4999 = vmatpush1.bf16.msra.mxu0 0
    %5000 = vmatprep.mubr.bf16.mxu0 0
    %5001 = vmatmul.mubr.bf16.gmra.mrb[0].mxu0 %v4732
    %v5002 = vpop.f32.mrb[0].mxu0
    %v5003 = vadd.f32 0.0, %v5002
    %v5004 = vpop.f32.mrb[0].mxu0
    %v5005 = vadd.f32 0.0, %v5004
    %v5006 = vpop.f32.mrb[0].mxu0
    %v5007 = vadd.f32 0.0, %v5006
    %v5008 = vpop.f32.mrb[0].mxu0
    %v5009 = vadd.f32 0.0, %v5008
    %5010 = vdwg.mxu0
    %v5011 = vadd.f32 %v4724, %v4960
    %v5012 = vadd.f32 %v4725, %v4962
    %v5013 = vadd.f32 %v4726, %v5003
    %v5014 = vadd.f32 %v4727, %v5005
    %v5015 = vadd.f32 %v4728, %v4964
    %v5016 = vadd.f32 %v4729, %v4966
    %v5017 = vadd.f32 %v4730, %v5007
    %v5018 = vadd.f32 %v4731, %v5009
    %v5019 = vxor.u32 %v5011, 2147483648
    %v5020 = vxor.u32 %v5015, 2147483648
    %v5021 = vmul.f32 %v5019, 1.442695
    %v5022 = vpow.pop %v5021
    %v5023 = vmul.f32 %v5020, 1.442695
    %v5024 = vpow.pop %v5023
    %v5025 = vadd.f32 %v5022, 1.0
    %v5026 = vadd.f32 %v5024, 1.0
    %v5027 = vrcp.pop %v5025
    %v5028 = vmul.f32 1.0, %v5027
    %v5029 = vrcp.pop %v5026
    %v5030 = vmul.f32 1.0, %v5029
    %v5031 = vxor.u32 %v5012, 2147483648
    %v5032 = vxor.u32 %v5016, 2147483648
    %v5033 = vmul.f32 %v5031, 1.442695
    %v5034 = vpow.pop %v5033
    %v5035 = vmul.f32 %v5032, 1.442695
    %v5036 = vpow.pop %v5035
    %v5037 = vadd.f32 %v5034, 1.0
    %v5038 = vadd.f32 %v5036, 1.0
    %v5039 = vrcp.pop %v5037
    %v5040 = vmul.f32 1.0, %v5039
    %v5041 = vrcp.pop %v5038
    %v5042 = vmul.f32 1.0, %v5041
    %v5043 = vtanh.pop %v5013
    %v5044 = vtanh.pop %v5017
    %v5045 = vxor.u32 %v5014, 2147483648
    %v5046 = vxor.u32 %v5018, 2147483648
    %v5047 = vmul.f32 %v5045, 1.442695
    %v5048 = vpow.pop %v5047
    %v5049 = vmul.f32 %v5046, 1.442695
    %v5050 = vpow.pop %v5049
    %v5051 = vadd.f32 %v5048, 1.0
    %v5052 = vadd.f32 %v5050, 1.0
    %v5053 = vrcp.pop %v5051
    %v5054 = vmul.f32 1.0, %v5053
    %v5055 = vrcp.pop %v5052
    %v5056 = vmul.f32 1.0, %v5055
    %v5057 = vmul.f32 %v5040, %v4363
    %v5058 = vmul.f32 %v5042, %v4364
    %v5059 = vmul.f32 %v5028, %v5043
    %v5060 = vmul.f32 %v5030, %v5044
    %v5061 = vadd.f32 %v5057, %v5059
    %v5062 = vadd.f32 %v5058, %v5060
    %v5063 = vtanh.pop %v5061
    %v5064 = vtanh.pop %v5062
    %v5065 = vmul.f32 %v5054, %v5063
    %v5066 = vmul.f32 %v5056, %v5064
    %v5067 = vunpack.c.l.bf16 %v4720
    %v5068 = vunpack.c.l.bf16 %v4721
    %v5069 = vunpack.c.l.bf16 %v4722
    %v5070 = vunpack.c.l.bf16 %v4723
    %v5071 = vunpack.c.h.bf16 %v4720
    %v5072 = vunpack.c.h.bf16 %v4721
    %v5073 = vunpack.c.h.bf16 %v4722
    %v5074 = vunpack.c.h.bf16 %v4723
    %v5075 = vpack.c.bf16 %v4711, %v4710
    %v5076 = vld [vmem:[#allocation12] sm:$0xff]
    %v5077 = vld [vmem:[#allocation12 + $0x8] sm:$0xff]
    %v5078 = vld [vmem:[#allocation12 + $0x10] sm:$0xff]
    %v5079 = vld [vmem:[#allocation12 + $0x18] sm:$0xff]
    %v5080 = vld [vmem:[#allocation12 + $0x20] sm:$0xff]
    %v5081 = vld [vmem:[#allocation12 + $0x28] sm:$0xff]
    %v5082 = vld [vmem:[#allocation12 + $0x30] sm:$0xff]
    %v5083 = vld [vmem:[#allocation12 + $0x38] sm:$0xff]
    %v5084 = vld [vmem:[#allocation12 + $0x40] sm:$0xff]
    %v5085 = vld [vmem:[#allocation12 + $0x48] sm:$0xff]
    %v5086 = vld [vmem:[#allocation12 + $0x50] sm:$0xff]
    %v5087 = vld [vmem:[#allocation12 + $0x58] sm:$0xff]
    %v5088 = vld [vmem:[#allocation12 + $0x60] sm:$0xff]
    %v5089 = vld [vmem:[#allocation12 + $0x68] sm:$0xff]
    %v5090 = vld [vmem:[#allocation12 + $0x70] sm:$0xff]
    %v5091 = vld [vmem:[#allocation12 + $0x78] sm:$0xff]
    %v5092 = vld [vmem:[#allocation12 + $0x80] sm:$0xff]
    %v5093 = vld [vmem:[#allocation12 + $0x88] sm:$0xff]
    %v5094 = vld [vmem:[#allocation12 + $0x90] sm:$0xff]
    %v5095 = vld [vmem:[#allocation12 + $0x98] sm:$0xff]
    %v5096 = vld [vmem:[#allocation12 + $0xa0] sm:$0xff]
    %v5097 = vld [vmem:[#allocation12 + $0xa8] sm:$0xff]
    %v5098 = vld [vmem:[#allocation12 + $0xb0] sm:$0xff]
    %v5099 = vld [vmem:[#allocation12 + $0xb8] sm:$0xff]
    %v5100 = vld [vmem:[#allocation12 + $0xc0] sm:$0xff]
    %v5101 = vld [vmem:[#allocation12 + $0xc8] sm:$0xff]
    %v5102 = vld [vmem:[#allocation12 + $0xd0] sm:$0xff]
    %v5103 = vld [vmem:[#allocation12 + $0xd8] sm:$0xff]
    %v5104 = vld [vmem:[#allocation12 + $0xe0] sm:$0xff]
    %v5105 = vld [vmem:[#allocation12 + $0xe8] sm:$0xff]
    %v5106 = vld [vmem:[#allocation12 + $0xf0] sm:$0xff]
    %v5107 = vld [vmem:[#allocation12 + $0xf8] sm:$0xff]
    %v5140 = vunpack.c.l.b16 %v5076
    %v5141 = vunpack.c.h.b16 %v5076
    %v5142 = vunpack.c.l.b16 %v5077
    %v5143 = vunpack.c.h.b16 %v5077
    %v5144 = vunpack.c.l.b16 %v5078
    %v5145 = vunpack.c.h.b16 %v5078
    %v5146 = vunpack.c.l.b16 %v5079
    %v5147 = vunpack.c.h.b16 %v5079
    %v5148 = vunpack.c.l.b16 %v5080
    %v5149 = vunpack.c.h.b16 %v5080
    %v5150 = vunpack.c.l.b16 %v5081
    %v5151 = vunpack.c.h.b16 %v5081
    %v5152 = vunpack.c.l.b16 %v5082
    %v5153 = vunpack.c.h.b16 %v5082
    %v5154 = vunpack.c.l.b16 %v5083
    %v5155 = vunpack.c.h.b16 %v5083
    %v5156 = vunpack.c.l.b16 %v5084
    %v5157 = vunpack.c.h.b16 %v5084
    %v5158 = vunpack.c.l.b16 %v5085
    %v5159 = vunpack.c.h.b16 %v5085
    %v5160 = vunpack.c.l.b16 %v5086
    %v5161 = vunpack.c.h.b16 %v5086
    %v5162 = vunpack.c.l.b16 %v5087
    %v5163 = vunpack.c.h.b16 %v5087
    %v5164 = vunpack.c.l.b16 %v5088
    %v5165 = vunpack.c.h.b16 %v5088
    %v5166 = vunpack.c.l.b16 %v5089
    %v5167 = vunpack.c.h.b16 %v5089
    %v5168 = vunpack.c.l.b16 %v5090
    %v5169 = vunpack.c.h.b16 %v5090
    %v5170 = vunpack.c.l.b16 %v5091
    %v5171 = vunpack.c.h.b16 %v5091
    %v5172 = vunpack.c.l.b16 %v5092
    %v5173 = vunpack.c.h.b16 %v5092
    %v5174 = vunpack.c.l.b16 %v5093
    %v5175 = vunpack.c.h.b16 %v5093
    %v5176 = vunpack.c.l.b16 %v5094
    %v5177 = vunpack.c.h.b16 %v5094
    %v5178 = vunpack.c.l.b16 %v5095
    %v5179 = vunpack.c.h.b16 %v5095
    %v5180 = vunpack.c.l.b16 %v5096
    %v5181 = vunpack.c.h.b16 %v5096
    %v5182 = vunpack.c.l.b16 %v5097
    %v5183 = vunpack.c.h.b16 %v5097
    %v5184 = vunpack.c.l.b16 %v5098
    %v5185 = vunpack.c.h.b16 %v5098
    %v5186 = vunpack.c.l.b16 %v5099
    %v5187 = vunpack.c.h.b16 %v5099
    %v5188 = vunpack.c.l.b16 %v5100
    %v5189 = vunpack.c.h.b16 %v5100
    %v5190 = vunpack.c.l.b16 %v5101
    %v5191 = vunpack.c.h.b16 %v5101
    %v5192 = vunpack.c.l.b16 %v5102
    %v5193 = vunpack.c.h.b16 %v5102
    %v5194 = vunpack.c.l.b16 %v5103
    %v5195 = vunpack.c.h.b16 %v5103
    %v5196 = vunpack.c.l.b16 %v5104
    %v5197 = vunpack.c.h.b16 %v5104
    %v5198 = vunpack.c.l.b16 %v5105
    %v5199 = vunpack.c.h.b16 %v5105
    %v5200 = vunpack.c.l.b16 %v5106
    %v5201 = vunpack.c.h.b16 %v5106
    %v5202 = vunpack.c.l.b16 %v5107
    %v5203 = vunpack.c.h.b16 %v5107
    %v5204 = vpack.c.b16 %v5144, %v5140
    %v5205 = vpack.c.b16 %v5145, %v5141
    %v5206 = vpack.c.b16 %v5146, %v5142
    %v5207 = vpack.c.b16 %v5147, %v5143
    %v5208 = vpack.c.b16 %v5152, %v5148
    %v5209 = vpack.c.b16 %v5153, %v5149
    %v5210 = vpack.c.b16 %v5154, %v5150
    %v5211 = vpack.c.b16 %v5155, %v5151
    %v5212 = vpack.c.b16 %v5160, %v5156
    %v5213 = vpack.c.b16 %v5161, %v5157
    %v5214 = vpack.c.b16 %v5162, %v5158
    %v5215 = vpack.c.b16 %v5163, %v5159
    %v5216 = vpack.c.b16 %v5168, %v5164
    %v5217 = vpack.c.b16 %v5169, %v5165
    %v5218 = vpack.c.b16 %v5170, %v5166
    %v5219 = vpack.c.b16 %v5171, %v5167
    %v5220 = vpack.c.b16 %v5176, %v5172
    %v5221 = vpack.c.b16 %v5177, %v5173
    %v5222 = vpack.c.b16 %v5178, %v5174
    %v5223 = vpack.c.b16 %v5179, %v5175
    %v5224 = vpack.c.b16 %v5184, %v5180
    %v5225 = vpack.c.b16 %v5185, %v5181
    %v5226 = vpack.c.b16 %v5186, %v5182
    %v5227 = vpack.c.b16 %v5187, %v5183
    %v5228 = vpack.c.b16 %v5192, %v5188
    %v5229 = vpack.c.b16 %v5193, %v5189
    %v5230 = vpack.c.b16 %v5194, %v5190
    %v5231 = vpack.c.b16 %v5195, %v5191
    %v5232 = vpack.c.b16 %v5200, %v5196
    %v5233 = vpack.c.b16 %v5201, %v5197
    %v5234 = vpack.c.b16 %v5202, %v5198
    %v5235 = vpack.c.b16 %v5203, %v5199
    %5268 = vmatprep.subr.bf16.mxu0 %v5205
    %5269 = vmatpush1.bf16.msra.mxu0 %v5204
    %5270 = vmatprep.subr.bf16.mxu0 %v5209
    %5271 = vmatpush1.bf16.msra.mxu0 %v5208
    %5272 = vmatprep.subr.bf16.mxu0 %v5213
    %5273 = vmatpush1.bf16.msra.mxu0 %v5212
    %5274 = vmatprep.subr.bf16.mxu0 %v5217
    %5275 = vmatpush1.bf16.msra.mxu0 %v5216
    %5276 = vmatprep.subr.bf16.mxu0 %v5221
    %5277 = vmatpush1.bf16.msra.mxu0 %v5220
    %5278 = vmatprep.subr.bf16.mxu0 %v5225
    %5279 = vmatpush1.bf16.msra.mxu0 %v5224
    %5280 = vmatprep.subr.bf16.mxu0 %v5229
    %5281 = vmatpush1.bf16.msra.mxu0 %v5228
    %5282 = vmatprep.subr.bf16.mxu0 %v5233
    %5283 = vmatpush1.bf16.msra.mxu0 %v5232
    %5284 = vmatprep.subr.bf16.mxu0 0
    %5285 = vmatpush1.bf16.msra.mxu0 0
    %5286 = vmatprep.subr.bf16.mxu0 0
    %5287 = vmatpush1.bf16.msra.mxu0 0
    %5288 = vmatprep.subr.bf16.mxu0 0
    %5289 = vmatpush1.bf16.msra.mxu0 0
    %5290 = vmatprep.subr.bf16.mxu0 0
    %5291 = vmatpush1.bf16.msra.mxu0 0
    %5292 = vmatprep.subr.bf16.mxu0 0
    %5293 = vmatpush1.bf16.msra.mxu0 0
    %5294 = vmatprep.subr.bf16.mxu0 0
    %5295 = vmatpush1.bf16.msra.mxu0 0
    %5296 = vmatprep.subr.bf16.mxu0 0
    %5297 = vmatpush1.bf16.msra.mxu0 0
    %5298 = vmatprep.subr.bf16.mxu0 0
    %5299 = vmatpush1.bf16.msra.mxu0 0
    %5300 = vmatprep.mubr.bf16.mxu0 0
    %5301 = vmatmul.mubr.bf16.gmra.mrb[0].mxu0 %v5075
    %v5302 = vpop.f32.mrb[0].mxu0
    %v5303 = vadd.f32 0.0, %v5302
    %v5304 = vpop.f32.mrb[0].mxu0
    %v5305 = vadd.f32 0.0, %v5304
    %v5306 = vpop.f32.mrb[0].mxu0
    %v5307 = vadd.f32 0.0, %v5306
    %v5308 = vpop.f32.mrb[0].mxu0
    %v5309 = vadd.f32 0.0, %v5308
    %5310 = vdwg.mxu0
    %5311 = vmatprep.subr.bf16.mxu0 %v5207
    %5312 = vmatpush1.bf16.msra.mxu0 %v5206
    %5313 = vmatprep.subr.bf16.mxu0 %v5211
    %5314 = vmatpush1.bf16.msra.mxu0 %v5210
    %5315 = vmatprep.subr.bf16.mxu0 %v5215
    %5316 = vmatpush1.bf16.msra.mxu0 %v5214
    %5317 = vmatprep.subr.bf16.mxu0 %v5219
    %5318 = vmatpush1.bf16.msra.mxu0 %v5218
    %5319 = vmatprep.subr.bf16.mxu0 %v5223
    %5320 = vmatpush1.bf16.msra.mxu0 %v5222
    %5321 = vmatprep.subr.bf16.mxu0 %v5227
    %5322 = vmatpush1.bf16.msra.mxu0 %v5226
    %5323 = vmatprep.subr.bf16.mxu0 %v5231
    %5324 = vmatpush1.bf16.msra.mxu0 %v5230
    %5325 = vmatprep.subr.bf16.mxu0 %v5235
    %5326 = vmatpush1.bf16.msra.mxu0 %v5234
    %5327 = vmatprep.subr.bf16.mxu0 0
    %5328 = vmatpush1.bf16.msra.mxu0 0
    %5329 = vmatprep.subr.bf16.mxu0 0
    %5330 = vmatpush1.bf16.msra.mxu0 0
    %5331 = vmatprep.subr.bf16.mxu0 0
    %5332 = vmatpush1.bf16.msra.mxu0 0
    %5333 = vmatprep.subr.bf16.mxu0 0
    %5334 = vmatpush1.bf16.msra.mxu0 0
    %5335 = vmatprep.subr.bf16.mxu0 0
    %5336 = vmatpush1.bf16.msra.mxu0 0
    %5337 = vmatprep.subr.bf16.mxu0 0
    %5338 = vmatpush1.bf16.msra.mxu0 0
    %5339 = vmatprep.subr.bf16.mxu0 0
    %5340 = vmatpush1.bf16.msra.mxu0 0
    %5341 = vmatprep.subr.bf16.mxu0 0
    %5342 = vmatpush1.bf16.msra.mxu0 0
    %5343 = vmatprep.mubr.bf16.mxu0 0
    %5344 = vmatmul.mubr.bf16.gmra.mrb[0].mxu0 %v5075
    %v5345 = vpop.f32.mrb[0].mxu0
    %v5346 = vadd.f32 0.0, %v5345
    %v5347 = vpop.f32.mrb[0].mxu0
    %v5348 = vadd.f32 0.0, %v5347
    %v5349 = vpop.f32.mrb[0].mxu0
    %v5350 = vadd.f32 0.0, %v5349
    %v5351 = vpop.f32.mrb[0].mxu0
    %v5352 = vadd.f32 0.0, %v5351
    %5353 = vdwg.mxu0
    %v5354 = vadd.f32 %v5067, %v5303
    %v5355 = vadd.f32 %v5068, %v5305
    %v5356 = vadd.f32 %v5069, %v5346
    %v5357 = vadd.f32 %v5070, %v5348
    %v5358 = vadd.f32 %v5071, %v5307
    %v5359 = vadd.f32 %v5072, %v5309
    %v5360 = vadd.f32 %v5073, %v5350
    %v5361 = vadd.f32 %v5074, %v5352
    %v5362 = vxor.u32 %v5354, 2147483648
    %v5363 = vxor.u32 %v5358, 2147483648
    %v5364 = vmul.f32 %v5362, 1.442695
    %v5365 = vpow.pop %v5364
    %v5366 = vmul.f32 %v5363, 1.442695
    %v5367 = vpow.pop %v5366
    %v5368 = vadd.f32 %v5365, 1.0
    %v5369 = vadd.f32 %v5367, 1.0
    %v5370 = vrcp.pop %v5368
    %v5371 = vmul.f32 1.0, %v5370
    %v5372 = vrcp.pop %v5369
    %v5373 = vmul.f32 1.0, %v5372
    %v5374 = vxor.u32 %v5355, 2147483648
    %v5375 = vxor.u32 %v5359, 2147483648
    %v5376 = vmul.f32 %v5374, 1.442695
    %v5377 = vpow.pop %v5376
    %v5378 = vmul.f32 %v5375, 1.442695
    %v5379 = vpow.pop %v5378
    %v5380 = vadd.f32 %v5377, 1.0
    %v5381 = vadd.f32 %v5379, 1.0
    %v5382 = vrcp.pop %v5380
    %v5383 = vmul.f32 1.0, %v5382
    %v5384 = vrcp.pop %v5381
    %v5385 = vmul.f32 1.0, %v5384
    %v5386 = vtanh.pop %v5356
    %v5387 = vtanh.pop %v5360
    %v5388 = vxor.u32 %v5357, 2147483648
    %v5389 = vxor.u32 %v5361, 2147483648
    %v5390 = vmul.f32 %v5388, 1.442695
    %v5391 = vpow.pop %v5390
    %v5392 = vmul.f32 %v5389, 1.442695
    %v5393 = vpow.pop %v5392
    %v5394 = vadd.f32 %v5391, 1.0
    %v5395 = vadd.f32 %v5393, 1.0
    %v5396 = vrcp.pop %v5394
    %v5397 = vmul.f32 1.0, %v5396
    %v5398 = vrcp.pop %v5395
    %v5399 = vmul.f32 1.0, %v5398
    %v5400 = vmul.f32 %v5383, %v4706
    %v5401 = vmul.f32 %v5385, %v4707
    %v5402 = vmul.f32 %v5371, %v5386
    %v5403 = vmul.f32 %v5373, %v5387
    %v5404 = vadd.f32 %v5400, %v5402
    %v5405 = vadd.f32 %v5401, %v5403
    %v5406 = vtanh.pop %v5404
    %v5407 = vtanh.pop %v5405
    %v5408 = vmul.f32 %v5397, %v5406
    %v5409 = vmul.f32 %v5399, %v5407
    %5410 = vst [vmem:[%s3313] sm:$0xff] %v5065
    %5411 = vst [vmem:[%s3313 + $0x10] sm:$0xff] %v5066
    %5412 = vst [vmem:[%s3310 + $0x8] sm:$0xff] %v5408
    %5413 = vst [vmem:[%s3310 + $0x18] sm:$0xff] %v5409
    %v5414 = vld [vmem:[%s1917] sm:$0xff]
    %v5415 = vld [vmem:[%s1917 + $0x8] sm:$0xff]
    %v5416 = vld [vmem:[%s1917 + $0x10] sm:$0xff]
    %v5417 = vld [vmem:[%s1917 + $0x18] sm:$0xff]
    %v5418 = vld [vmem:[%s1912 + $0x20] sm:$0xff]
    %v5419 = vld [vmem:[%s1912 + $0x28] sm:$0xff]
    %v5420 = vld [vmem:[%s1912 + $0x30] sm:$0xff]
    %v5421 = vld [vmem:[%s1912 + $0x38] sm:$0xff]
    %v5422 = vunpack.c.l.bf16 %v5414
    %v5423 = vunpack.c.l.bf16 %v5415
    %v5424 = vunpack.c.l.bf16 %v5416
    %v5425 = vunpack.c.l.bf16 %v5417
    %v5426 = vunpack.c.h.bf16 %v5414
    %v5427 = vunpack.c.h.bf16 %v5415
    %v5428 = vunpack.c.h.bf16 %v5416
    %v5429 = vunpack.c.h.bf16 %v5417
    %v5430 = vpack.c.bf16 %v5066, %v5065
    %v5431 = vld [vmem:[#allocation10] sm:$0xff]
    %v5432 = vld [vmem:[#allocation10 + $0x8] sm:$0xff]
    %v5433 = vld [vmem:[#allocation10 + $0x10] sm:$0xff]
    %v5434 = vld [vmem:[#allocation10 + $0x18] sm:$0xff]
    %v5435 = vld [vmem:[#allocation10 + $0x20] sm:$0xff]
    %v5436 = vld [vmem:[#allocation10 + $0x28] sm:$0xff]
    %v5437 = vld [vmem:[#allocation10 + $0x30] sm:$0xff]
    %v5438 = vld [vmem:[#allocation10 + $0x38] sm:$0xff]
    %v5439 = vld [vmem:[#allocation10 + $0x40] sm:$0xff]
    %v5440 = vld [vmem:[#allocation10 + $0x48] sm:$0xff]
    %v5441 = vld [vmem:[#allocation10 + $0x50] sm:$0xff]
    %v5442 = vld [vmem:[#allocation10 + $0x58] sm:$0xff]
    %v5443 = vld [vmem:[#allocation10 + $0x60] sm:$0xff]
    %v5444 = vld [vmem:[#allocation10 + $0x68] sm:$0xff]
    %v5445 = vld [vmem:[#allocation10 + $0x70] sm:$0xff]
    %v5446 = vld [vmem:[#allocation10 + $0x78] sm:$0xff]
    %v5447 = vld [vmem:[#allocation10 + $0x80] sm:$0xff]
    %v5448 = vld [vmem:[#allocation10 + $0x88] sm:$0xff]
    %v5449 = vld [vmem:[#allocation10 + $0x90] sm:$0xff]
    %v5450 = vld [vmem:[#allocation10 + $0x98] sm:$0xff]
    %v5451 = vld [vmem:[#allocation10 + $0xa0] sm:$0xff]
    %v5452 = vld [vmem:[#allocation10 + $0xa8] sm:$0xff]
    %v5453 = vld [vmem:[#allocation10 + $0xb0] sm:$0xff]
    %v5454 = vld [vmem:[#allocation10 + $0xb8] sm:$0xff]
    %v5455 = vld [vmem:[#allocation10 + $0xc0] sm:$0xff]
    %v5456 = vld [vmem:[#allocation10 + $0xc8] sm:$0xff]
    %v5457 = vld [vmem:[#allocation10 + $0xd0] sm:$0xff]
    %v5458 = vld [vmem:[#allocation10 + $0xd8] sm:$0xff]
    %v5459 = vld [vmem:[#allocation10 + $0xe0] sm:$0xff]
    %v5460 = vld [vmem:[#allocation10 + $0xe8] sm:$0xff]
    %v5461 = vld [vmem:[#allocation10 + $0xf0] sm:$0xff]
    %v5462 = vld [vmem:[#allocation10 + $0xf8] sm:$0xff]
    %v5495 = vunpack.c.l.b16 %v5431
    %v5496 = vunpack.c.h.b16 %v5431
    %v5497 = vunpack.c.l.b16 %v5432
    %v5498 = vunpack.c.h.b16 %v5432
    %v5499 = vunpack.c.l.b16 %v5433
    %v5500 = vunpack.c.h.b16 %v5433
    %v5501 = vunpack.c.l.b16 %v5434
    %v5502 = vunpack.c.h.b16 %v5434
    %v5503 = vunpack.c.l.b16 %v5435
    %v5504 = vunpack.c.h.b16 %v5435
    %v5505 = vunpack.c.l.b16 %v5436
    %v5506 = vunpack.c.h.b16 %v5436
    %v5507 = vunpack.c.l.b16 %v5437
    %v5508 = vunpack.c.h.b16 %v5437
    %v5509 = vunpack.c.l.b16 %v5438
    %v5510 = vunpack.c.h.b16 %v5438
    %v5511 = vunpack.c.l.b16 %v5439
    %v5512 = vunpack.c.h.b16 %v5439
    %v5513 = vunpack.c.l.b16 %v5440
    %v5514 = vunpack.c.h.b16 %v5440
    %v5515 = vunpack.c.l.b16 %v5441
    %v5516 = vunpack.c.h.b16 %v5441
    %v5517 = vunpack.c.l.b16 %v5442
    %v5518 = vunpack.c.h.b16 %v5442
    %v5519 = vunpack.c.l.b16 %v5443
    %v5520 = vunpack.c.h.b16 %v5443
    %v5521 = vunpack.c.l.b16 %v5444
    %v5522 = vunpack.c.h.b16 %v5444
    %v5523 = vunpack.c.l.b16 %v5445
    %v5524 = vunpack.c.h.b16 %v5445
    %v5525 = vunpack.c.l.b16 %v5446
    %v5526 = vunpack.c.h.b16 %v5446
    %v5527 = vunpack.c.l.b16 %v5447
    %v5528 = vunpack.c.h.b16 %v5447
    %v5529 = vunpack.c.l.b16 %v5448
    %v5530 = vunpack.c.h.b16 %v5448
    %v5531 = vunpack.c.l.b16 %v5449
    %v5532 = vunpack.c.h.b16 %v5449
    %v5533 = vunpack.c.l.b16 %v5450
    %v5534 = vunpack.c.h.b16 %v5450
    %v5535 = vunpack.c.l.b16 %v5451
    %v5536 = vunpack.c.h.b16 %v5451
    %v5537 = vunpack.c.l.b16 %v5452
    %v5538 = vunpack.c.h.b16 %v5452
    %v5539 = vunpack.c.l.b16 %v5453
    %v5540 = vunpack.c.h.b16 %v5453
    %v5541 = vunpack.c.l.b16 %v5454
    %v5542 = vunpack.c.h.b16 %v5454
    %v5543 = vunpack.c.l.b16 %v5455
    %v5544 = vunpack.c.h.b16 %v5455
    %v5545 = vunpack.c.l.b16 %v5456
    %v5546 = vunpack.c.h.b16 %v5456
    %v5547 = vunpack.c.l.b16 %v5457
    %v5548 = vunpack.c.h.b16 %v5457
    %v5549 = vunpack.c.l.b16 %v5458
    %v5550 = vunpack.c.h.b16 %v5458
    %v5551 = vunpack.c.l.b16 %v5459
    %v5552 = vunpack.c.h.b16 %v5459
    %v5553 = vunpack.c.l.b16 %v5460
    %v5554 = vunpack.c.h.b16 %v5460
    %v5555 = vunpack.c.l.b16 %v5461
    %v5556 = vunpack.c.h.b16 %v5461
    %v5557 = vunpack.c.l.b16 %v5462
    %v5558 = vunpack.c.h.b16 %v5462
    %v5559 = vpack.c.b16 %v5499, %v5495
    %v5560 = vpack.c.b16 %v5500, %v5496
    %v5561 = vpack.c.b16 %v5501, %v5497
    %v5562 = vpack.c.b16 %v5502, %v5498
    %v5563 = vpack.c.b16 %v5507, %v5503
    %v5564 = vpack.c.b16 %v5508, %v5504
    %v5565 = vpack.c.b16 %v5509, %v5505
    %v5566 = vpack.c.b16 %v5510, %v5506
    %v5567 = vpack.c.b16 %v5515, %v5511
    %v5568 = vpack.c.b16 %v5516, %v5512
    %v5569 = vpack.c.b16 %v5517, %v5513
    %v5570 = vpack.c.b16 %v5518, %v5514
    %v5571 = vpack.c.b16 %v5523, %v5519
    %v5572 = vpack.c.b16 %v5524, %v5520
    %v5573 = vpack.c.b16 %v5525, %v5521
    %v5574 = vpack.c.b16 %v5526, %v5522
    %v5575 = vpack.c.b16 %v5531, %v5527
    %v5576 = vpack.c.b16 %v5532, %v5528
    %v5577 = vpack.c.b16 %v5533, %v5529
    %v5578 = vpack.c.b16 %v5534, %v5530
    %v5579 = vpack.c.b16 %v5539, %v5535
    %v5580 = vpack.c.b16 %v5540, %v5536
    %v5581 = vpack.c.b16 %v5541, %v5537
    %v5582 = vpack.c.b16 %v5542, %v5538
    %v5583 = vpack.c.b16 %v5547, %v5543
    %v5584 = vpack.c.b16 %v5548, %v5544
    %v5585 = vpack.c.b16 %v5549, %v5545
    %v5586 = vpack.c.b16 %v5550, %v5546
    %v5587 = vpack.c.b16 %v5555, %v5551
    %v5588 = vpack.c.b16 %v5556, %v5552
    %v5589 = vpack.c.b16 %v5557, %v5553
    %v5590 = vpack.c.b16 %v5558, %v5554
    %5623 = vmatprep.subr.bf16.mxu0 %v5560
    %5624 = vmatpush1.bf16.msra.mxu0 %v5559
    %5625 = vmatprep.subr.bf16.mxu0 %v5564
    %5626 = vmatpush1.bf16.msra.mxu0 %v5563
    %5627 = vmatprep.subr.bf16.mxu0 %v5568
    %5628 = vmatpush1.bf16.msra.mxu0 %v5567
    %5629 = vmatprep.subr.bf16.mxu0 %v5572
    %5630 = vmatpush1.bf16.msra.mxu0 %v5571
    %5631 = vmatprep.subr.bf16.mxu0 %v5576
    %5632 = vmatpush1.bf16.msra.mxu0 %v5575
    %5633 = vmatprep.subr.bf16.mxu0 %v5580
    %5634 = vmatpush1.bf16.msra.mxu0 %v5579
    %5635 = vmatprep.subr.bf16.mxu0 %v5584
    %5636 = vmatpush1.bf16.msra.mxu0 %v5583
    %5637 = vmatprep.subr.bf16.mxu0 %v5588
    %5638 = vmatpush1.bf16.msra.mxu0 %v5587
    %5639 = vmatprep.subr.bf16.mxu0 0
    %5640 = vmatpush1.bf16.msra.mxu0 0
    %5641 = vmatprep.subr.bf16.mxu0 0
    %5642 = vmatpush1.bf16.msra.mxu0 0
    %5643 = vmatprep.subr.bf16.mxu0 0
    %5644 = vmatpush1.bf16.msra.mxu0 0
    %5645 = vmatprep.subr.bf16.mxu0 0
    %5646 = vmatpush1.bf16.msra.mxu0 0
    %5647 = vmatprep.subr.bf16.mxu0 0
    %5648 = vmatpush1.bf16.msra.mxu0 0
    %5649 = vmatprep.subr.bf16.mxu0 0
    %5650 = vmatpush1.bf16.msra.mxu0 0
    %5651 = vmatprep.subr.bf16.mxu0 0
    %5652 = vmatpush1.bf16.msra.mxu0 0
    %5653 = vmatprep.subr.bf16.mxu0 0
    %5654 = vmatpush1.bf16.msra.mxu0 0
    %5655 = vmatprep.mubr.bf16.mxu0 0
    %5656 = vmatmul.mubr.bf16.gmra.mrb[0].mxu0 %v5430
    %v5657 = vpop.f32.mrb[0].mxu0
    %v5658 = vadd.f32 0.0, %v5657
    %v5659 = vpop.f32.mrb[0].mxu0
    %v5660 = vadd.f32 0.0, %v5659
    %v5661 = vpop.f32.mrb[0].mxu0
    %v5662 = vadd.f32 0.0, %v5661
    %v5663 = vpop.f32.mrb[0].mxu0
    %v5664 = vadd.f32 0.0, %v5663
    %5665 = vdwg.mxu0
    %5666 = vmatprep.subr.bf16.mxu0 %v5562
    %5667 = vmatpush1.bf16.msra.mxu0 %v5561
    %5668 = vmatprep.subr.bf16.mxu0 %v5566
    %5669 = vmatpush1.bf16.msra.mxu0 %v5565
    %5670 = vmatprep.subr.bf16.mxu0 %v5570
    %5671 = vmatpush1.bf16.msra.mxu0 %v5569
    %5672 = vmatprep.subr.bf16.mxu0 %v5574
    %5673 = vmatpush1.bf16.msra.mxu0 %v5573
    %5674 = vmatprep.subr.bf16.mxu0 %v5578
    %5675 = vmatpush1.bf16.msra.mxu0 %v5577
    %5676 = vmatprep.subr.bf16.mxu0 %v5582
    %5677 = vmatpush1.bf16.msra.mxu0 %v5581
    %5678 = vmatprep.subr.bf16.mxu0 %v5586
    %5679 = vmatpush1.bf16.msra.mxu0 %v5585
    %5680 = vmatprep.subr.bf16.mxu0 %v5590
    %5681 = vmatpush1.bf16.msra.mxu0 %v5589
    %5682 = vmatprep.subr.bf16.mxu0 0
    %5683 = vmatpush1.bf16.msra.mxu0 0
    %5684 = vmatprep.subr.bf16.mxu0 0
    %5685 = vmatpush1.bf16.msra.mxu0 0
    %5686 = vmatprep.subr.bf16.mxu0 0
    %5687 = vmatpush1.bf16.msra.mxu0 0
    %5688 = vmatprep.subr.bf16.mxu0 0
    %5689 = vmatpush1.bf16.msra.mxu0 0
    %5690 = vmatprep.subr.bf16.mxu0 0
    %5691 = vmatpush1.bf16.msra.mxu0 0
    %5692 = vmatprep.subr.bf16.mxu0 0
    %5693 = vmatpush1.bf16.msra.mxu0 0
    %5694 = vmatprep.subr.bf16.mxu0 0
    %5695 = vmatpush1.bf16.msra.mxu0 0
    %5696 = vmatprep.subr.bf16.mxu0 0
    %5697 = vmatpush1.bf16.msra.mxu0 0
    %5698 = vmatprep.mubr.bf16.mxu0 0
    %5699 = vmatmul.mubr.bf16.gmra.mrb[0].mxu0 %v5430
    %v5700 = vpop.f32.mrb[0].mxu0
    %v5701 = vadd.f32 0.0, %v5700
    %v5702 = vpop.f32.mrb[0].mxu0
    %v5703 = vadd.f32 0.0, %v5702
    %v5704 = vpop.f32.mrb[0].mxu0
    %v5705 = vadd.f32 0.0, %v5704
    %v5706 = vpop.f32.mrb[0].mxu0
    %v5707 = vadd.f32 0.0, %v5706
    %5708 = vdwg.mxu0
    %v5709 = vadd.f32 %v5422, %v5658
    %v5710 = vadd.f32 %v5423, %v5660
    %v5711 = vadd.f32 %v5424, %v5701
    %v5712 = vadd.f32 %v5425, %v5703
    %v5713 = vadd.f32 %v5426, %v5662
    %v5714 = vadd.f32 %v5427, %v5664
    %v5715 = vadd.f32 %v5428, %v5705
    %v5716 = vadd.f32 %v5429, %v5707
    %v5717 = vxor.u32 %v5709, 2147483648
    %v5718 = vxor.u32 %v5713, 2147483648
    %v5719 = vmul.f32 %v5717, 1.442695
    %v5720 = vpow.pop %v5719
    %v5721 = vmul.f32 %v5718, 1.442695
    %v5722 = vpow.pop %v5721
    %v5723 = vadd.f32 %v5720, 1.0
    %v5724 = vadd.f32 %v5722, 1.0
    %v5725 = vrcp.pop %v5723
    %v5726 = vmul.f32 1.0, %v5725
    %v5727 = vrcp.pop %v5724
    %v5728 = vmul.f32 1.0, %v5727
    %v5729 = vxor.u32 %v5710, 2147483648
    %v5730 = vxor.u32 %v5714, 2147483648
    %v5731 = vmul.f32 %v5729, 1.442695
    %v5732 = vpow.pop %v5731
    %v5733 = vmul.f32 %v5730, 1.442695
    %v5734 = vpow.pop %v5733
    %v5735 = vadd.f32 %v5732, 1.0
    %v5736 = vadd.f32 %v5734, 1.0
    %v5737 = vrcp.pop %v5735
    %v5738 = vmul.f32 1.0, %v5737
    %v5739 = vrcp.pop %v5736
    %v5740 = vmul.f32 1.0, %v5739
    %v5741 = vtanh.pop %v5711
    %v5742 = vtanh.pop %v5715
    %v5743 = vxor.u32 %v5712, 2147483648
    %v5744 = vxor.u32 %v5716, 2147483648
    %v5745 = vmul.f32 %v5743, 1.442695
    %v5746 = vpow.pop %v5745
    %v5747 = vmul.f32 %v5744, 1.442695
    %v5748 = vpow.pop %v5747
    %v5749 = vadd.f32 %v5746, 1.0
    %v5750 = vadd.f32 %v5748, 1.0
    %v5751 = vrcp.pop %v5749
    %v5752 = vmul.f32 1.0, %v5751
    %v5753 = vrcp.pop %v5750
    %v5754 = vmul.f32 1.0, %v5753
    %v5755 = vmul.f32 %v5738, %v5061
    %v5756 = vmul.f32 %v5740, %v5062
    %v5757 = vmul.f32 %v5726, %v5741
    %v5758 = vmul.f32 %v5728, %v5742
    %v5759 = vadd.f32 %v5755, %v5757
    %v5760 = vadd.f32 %v5756, %v5758
    %v5761 = vtanh.pop %v5759
    %v5762 = vtanh.pop %v5760
    %v5763 = vmul.f32 %v5752, %v5761
    %v5764 = vmul.f32 %v5754, %v5762
    %v5765 = vunpack.c.l.bf16 %v5418
    %v5766 = vunpack.c.l.bf16 %v5419
    %v5767 = vunpack.c.l.bf16 %v5420
    %v5768 = vunpack.c.l.bf16 %v5421
    %v5769 = vunpack.c.h.bf16 %v5418
    %v5770 = vunpack.c.h.bf16 %v5419
    %v5771 = vunpack.c.h.bf16 %v5420
    %v5772 = vunpack.c.h.bf16 %v5421
    %v5773 = vpack.c.bf16 %v5409, %v5408
    %v5774 = vld [vmem:[#allocation12] sm:$0xff]
    %v5775 = vld [vmem:[#allocation12 + $0x8] sm:$0xff]
    %v5776 = vld [vmem:[#allocation12 + $0x10] sm:$0xff]
    %v5777 = vld [vmem:[#allocation12 + $0x18] sm:$0xff]
    %v5778 = vld [vmem:[#allocation12 + $0x20] sm:$0xff]
    %v5779 = vld [vmem:[#allocation12 + $0x28] sm:$0xff]
    %v5780 = vld [vmem:[#allocation12 + $0x30] sm:$0xff]
    %v5781 = vld [vmem:[#allocation12 + $0x38] sm:$0xff]
    %v5782 = vld [vmem:[#allocation12 + $0x40] sm:$0xff]
    %v5783 = vld [vmem:[#allocation12 + $0x48] sm:$0xff]
    %v5784 = vld [vmem:[#allocation12 + $0x50] sm:$0xff]
    %v5785 = vld [vmem:[#allocation12 + $0x58] sm:$0xff]
    %v5786 = vld [vmem:[#allocation12 + $0x60] sm:$0xff]
    %v5787 = vld [vmem:[#allocation12 + $0x68] sm:$0xff]
    %v5788 = vld [vmem:[#allocation12 + $0x70] sm:$0xff]
    %v5789 = vld [vmem:[#allocation12 + $0x78] sm:$0xff]
    %v5790 = vld [vmem:[#allocation12 + $0x80] sm:$0xff]
    %v5791 = vld [vmem:[#allocation12 + $0x88] sm:$0xff]
    %v5792 = vld [vmem:[#allocation12 + $0x90] sm:$0xff]
    %v5793 = vld [vmem:[#allocation12 + $0x98] sm:$0xff]
    %v5794 = vld [vmem:[#allocation12 + $0xa0] sm:$0xff]
    %v5795 = vld [vmem:[#allocation12 + $0xa8] sm:$0xff]
    %v5796 = vld [vmem:[#allocation12 + $0xb0] sm:$0xff]
    %v5797 = vld [vmem:[#allocation12 + $0xb8] sm:$0xff]
    %v5798 = vld [vmem:[#allocation12 + $0xc0] sm:$0xff]
    %v5799 = vld [vmem:[#allocation12 + $0xc8] sm:$0xff]
    %v5800 = vld [vmem:[#allocation12 + $0xd0] sm:$0xff]
    %v5801 = vld [vmem:[#allocation12 + $0xd8] sm:$0xff]
    %v5802 = vld [vmem:[#allocation12 + $0xe0] sm:$0xff]
    %v5803 = vld [vmem:[#allocation12 + $0xe8] sm:$0xff]
    %v5804 = vld [vmem:[#allocation12 + $0xf0] sm:$0xff]
    %v5805 = vld [vmem:[#allocation12 + $0xf8] sm:$0xff]
    %v5838 = vunpack.c.l.b16 %v5774
    %v5839 = vunpack.c.h.b16 %v5774
    %v5840 = vunpack.c.l.b16 %v5775
    %v5841 = vunpack.c.h.b16 %v5775
    %v5842 = vunpack.c.l.b16 %v5776
    %v5843 = vunpack.c.h.b16 %v5776
    %v5844 = vunpack.c.l.b16 %v5777
    %v5845 = vunpack.c.h.b16 %v5777
    %v5846 = vunpack.c.l.b16 %v5778
    %v5847 = vunpack.c.h.b16 %v5778
    %v5848 = vunpack.c.l.b16 %v5779
    %v5849 = vunpack.c.h.b16 %v5779
    %v5850 = vunpack.c.l.b16 %v5780
    %v5851 = vunpack.c.h.b16 %v5780
    %v5852 = vunpack.c.l.b16 %v5781
    %v5853 = vunpack.c.h.b16 %v5781
    %v5854 = vunpack.c.l.b16 %v5782
    %v5855 = vunpack.c.h.b16 %v5782
    %v5856 = vunpack.c.l.b16 %v5783
    %v5857 = vunpack.c.h.b16 %v5783
    %v5858 = vunpack.c.l.b16 %v5784
    %v5859 = vunpack.c.h.b16 %v5784
    %v5860 = vunpack.c.l.b16 %v5785
    %v5861 = vunpack.c.h.b16 %v5785
    %v5862 = vunpack.c.l.b16 %v5786
    %v5863 = vunpack.c.h.b16 %v5786
    %v5864 = vunpack.c.l.b16 %v5787
    %v5865 = vunpack.c.h.b16 %v5787
    %v5866 = vunpack.c.l.b16 %v5788
    %v5867 = vunpack.c.h.b16 %v5788
    %v5868 = vunpack.c.l.b16 %v5789
    %v5869 = vunpack.c.h.b16 %v5789
    %v5870 = vunpack.c.l.b16 %v5790
    %v5871 = vunpack.c.h.b16 %v5790
    %v5872 = vunpack.c.l.b16 %v5791
    %v5873 = vunpack.c.h.b16 %v5791
    %v5874 = vunpack.c.l.b16 %v5792
    %v5875 = vunpack.c.h.b16 %v5792
    %v5876 = vunpack.c.l.b16 %v5793
    %v5877 = vunpack.c.h.b16 %v5793
    %v5878 = vunpack.c.l.b16 %v5794
    %v5879 = vunpack.c.h.b16 %v5794
    %v5880 = vunpack.c.l.b16 %v5795
    %v5881 = vunpack.c.h.b16 %v5795
    %v5882 = vunpack.c.l.b16 %v5796
    %v5883 = vunpack.c.h.b16 %v5796
    %v5884 = vunpack.c.l.b16 %v5797
    %v5885 = vunpack.c.h.b16 %v5797
    %v5886 = vunpack.c.l.b16 %v5798
    %v5887 = vunpack.c.h.b16 %v5798
    %v5888 = vunpack.c.l.b16 %v5799
    %v5889 = vunpack.c.h.b16 %v5799
    %v5890 = vunpack.c.l.b16 %v5800
    %v5891 = vunpack.c.h.b16 %v5800
    %v5892 = vunpack.c.l.b16 %v5801
    %v5893 = vunpack.c.h.b16 %v5801
    %v5894 = vunpack.c.l.b16 %v5802
    %v5895 = vunpack.c.h.b16 %v5802
    %v5896 = vunpack.c.l.b16 %v5803
    %v5897 = vunpack.c.h.b16 %v5803
    %v5898 = vunpack.c.l.b16 %v5804
    %v5899 = vunpack.c.h.b16 %v5804
    %v5900 = vunpack.c.l.b16 %v5805
    %v5901 = vunpack.c.h.b16 %v5805
    %v5902 = vpack.c.b16 %v5842, %v5838
    %v5903 = vpack.c.b16 %v5843, %v5839
    %v5904 = vpack.c.b16 %v5844, %v5840
    %v5905 = vpack.c.b16 %v5845, %v5841
    %v5906 = vpack.c.b16 %v5850, %v5846
    %v5907 = vpack.c.b16 %v5851, %v5847
    %v5908 = vpack.c.b16 %v5852, %v5848
    %v5909 = vpack.c.b16 %v5853, %v5849
    %v5910 = vpack.c.b16 %v5858, %v5854
    %v5911 = vpack.c.b16 %v5859, %v5855
    %v5912 = vpack.c.b16 %v5860, %v5856
    %v5913 = vpack.c.b16 %v5861, %v5857
    %v5914 = vpack.c.b16 %v5866, %v5862
    %v5915 = vpack.c.b16 %v5867, %v5863
    %v5916 = vpack.c.b16 %v5868, %v5864
    %v5917 = vpack.c.b16 %v5869, %v5865
    %v5918 = vpack.c.b16 %v5874, %v5870
    %v5919 = vpack.c.b16 %v5875, %v5871
    %v5920 = vpack.c.b16 %v5876, %v5872
    %v5921 = vpack.c.b16 %v5877, %v5873
    %v5922 = vpack.c.b16 %v5882, %v5878
    %v5923 = vpack.c.b16 %v5883, %v5879
    %v5924 = vpack.c.b16 %v5884, %v5880
    %v5925 = vpack.c.b16 %v5885, %v5881
    %v5926 = vpack.c.b16 %v5890, %v5886
    %v5927 = vpack.c.b16 %v5891, %v5887
    %v5928 = vpack.c.b16 %v5892, %v5888
    %v5929 = vpack.c.b16 %v5893, %v5889
    %v5930 = vpack.c.b16 %v5898, %v5894
    %v5931 = vpack.c.b16 %v5899, %v5895
    %v5932 = vpack.c.b16 %v5900, %v5896
    %v5933 = vpack.c.b16 %v5901, %v5897
    %5966 = vmatprep.subr.bf16.mxu0 %v5903
    %5967 = vmatpush1.bf16.msra.mxu0 %v5902
    %5968 = vmatprep.subr.bf16.mxu0 %v5907
    %5969 = vmatpush1.bf16.msra.mxu0 %v5906
    %5970 = vmatprep.subr.bf16.mxu0 %v5911
    %5971 = vmatpush1.bf16.msra.mxu0 %v5910
    %5972 = vmatprep.subr.bf16.mxu0 %v5915
    %5973 = vmatpush1.bf16.msra.mxu0 %v5914
    %5974 = vmatprep.subr.bf16.mxu0 %v5919
    %5975 = vmatpush1.bf16.msra.mxu0 %v5918
    %5976 = vmatprep.subr.bf16.mxu0 %v5923
    %5977 = vmatpush1.bf16.msra.mxu0 %v5922
    %5978 = vmatprep.subr.bf16.mxu0 %v5927
    %5979 = vmatpush1.bf16.msra.mxu0 %v5926
    %5980 = vmatprep.subr.bf16.mxu0 %v5931
    %5981 = vmatpush1.bf16.msra.mxu0 %v5930
    %5982 = vmatprep.subr.bf16.mxu0 0
    %5983 = vmatpush1.bf16.msra.mxu0 0
    %5984 = vmatprep.subr.bf16.mxu0 0
    %5985 = vmatpush1.bf16.msra.mxu0 0
    %5986 = vmatprep.subr.bf16.mxu0 0
    %5987 = vmatpush1.bf16.msra.mxu0 0
    %5988 = vmatprep.subr.bf16.mxu0 0
    %5989 = vmatpush1.bf16.msra.mxu0 0
    %5990 = vmatprep.subr.bf16.mxu0 0
    %5991 = vmatpush1.bf16.msra.mxu0 0
    %5992 = vmatprep.subr.bf16.mxu0 0
    %5993 = vmatpush1.bf16.msra.mxu0 0
    %5994 = vmatprep.subr.bf16.mxu0 0
    %5995 = vmatpush1.bf16.msra.mxu0 0
    %5996 = vmatprep.subr.bf16.mxu0 0
    %5997 = vmatpush1.bf16.msra.mxu0 0
    %5998 = vmatprep.mubr.bf16.mxu0 0
    %5999 = vmatmul.mubr.bf16.gmra.mrb[0].mxu0 %v5773
    %v6000 = vpop.f32.mrb[0].mxu0
    %v6001 = vadd.f32 0.0, %v6000
    %v6002 = vpop.f32.mrb[0].mxu0
    %v6003 = vadd.f32 0.0, %v6002
    %v6004 = vpop.f32.mrb[0].mxu0
    %v6005 = vadd.f32 0.0, %v6004
    %v6006 = vpop.f32.mrb[0].mxu0
    %v6007 = vadd.f32 0.0, %v6006
    %6008 = vdwg.mxu0
    %6009 = vmatprep.subr.bf16.mxu0 %v5905
    %6010 = vmatpush1.bf16.msra.mxu0 %v5904
    %6011 = vmatprep.subr.bf16.mxu0 %v5909
    %6012 = vmatpush1.bf16.msra.mxu0 %v5908
    %6013 = vmatprep.subr.bf16.mxu0 %v5913
    %6014 = vmatpush1.bf16.msra.mxu0 %v5912
    %6015 = vmatprep.subr.bf16.mxu0 %v5917
    %6016 = vmatpush1.bf16.msra.mxu0 %v5916
    %6017 = vmatprep.subr.bf16.mxu0 %v5921
    %6018 = vmatpush1.bf16.msra.mxu0 %v5920
    %6019 = vmatprep.subr.bf16.mxu0 %v5925
    %6020 = vmatpush1.bf16.msra.mxu0 %v5924
    %6021 = vmatprep.subr.bf16.mxu0 %v5929
    %6022 = vmatpush1.bf16.msra.mxu0 %v5928
    %6023 = vmatprep.subr.bf16.mxu0 %v5933
    %6024 = vmatpush1.bf16.msra.mxu0 %v5932
    %6025 = vmatprep.subr.bf16.mxu0 0
    %6026 = vmatpush1.bf16.msra.mxu0 0
    %6027 = vmatprep.subr.bf16.mxu0 0
    %6028 = vmatpush1.bf16.msra.mxu0 0
    %6029 = vmatprep.subr.bf16.mxu0 0
    %6030 = vmatpush1.bf16.msra.mxu0 0
    %6031 = vmatprep.subr.bf16.mxu0 0
    %6032 = vmatpush1.bf16.msra.mxu0 0
    %6033 = vmatprep.subr.bf16.mxu0 0
    %6034 = vmatpush1.bf16.msra.mxu0 0
    %6035 = vmatprep.subr.bf16.mxu0 0
    %6036 = vmatpush1.bf16.msra.mxu0 0
    %6037 = vmatprep.subr.bf16.mxu0 0
    %6038 = vmatpush1.bf16.msra.mxu0 0
    %6039 = vmatprep.subr.bf16.mxu0 0
    %6040 = vmatpush1.bf16.msra.mxu0 0
    %6041 = vmatprep.mubr.bf16.mxu0 0
    %6042 = vmatmul.mubr.bf16.gmra.mrb[0].mxu0 %v5773
    %v6043 = vpop.f32.mrb[0].mxu0
    %v6044 = vadd.f32 0.0, %v6043
    %v6045 = vpop.f32.mrb[0].mxu0
    %v6046 = vadd.f32 0.0, %v6045
    %v6047 = vpop.f32.mrb[0].mxu0
    %v6048 = vadd.f32 0.0, %v6047
    %v6049 = vpop.f32.mrb[0].mxu0
    %v6050 = vadd.f32 0.0, %v6049
    %6051 = vdwg.mxu0
    %v6052 = vadd.f32 %v5765, %v6001
    %v6053 = vadd.f32 %v5766, %v6003
    %v6054 = vadd.f32 %v5767, %v6044
    %v6055 = vadd.f32 %v5768, %v6046
    %v6056 = vadd.f32 %v5769, %v6005
    %v6057 = vadd.f32 %v5770, %v6007
    %v6058 = vadd.f32 %v5771, %v6048
    %v6059 = vadd.f32 %v5772, %v6050
    %v6060 = vxor.u32 %v6052, 2147483648
    %v6061 = vxor.u32 %v6056, 2147483648
    %v6062 = vmul.f32 %v6060, 1.442695
    %v6063 = vpow.pop %v6062
    %v6064 = vmul.f32 %v6061, 1.442695
    %v6065 = vpow.pop %v6064
    %v6066 = vadd.f32 %v6063, 1.0
    %v6067 = vadd.f32 %v6065, 1.0
    %v6068 = vrcp.pop %v6066
    %v6069 = vmul.f32 1.0, %v6068
    %v6070 = vrcp.pop %v6067
    %v6071 = vmul.f32 1.0, %v6070
    %v6072 = vxor.u32 %v6053, 2147483648
    %v6073 = vxor.u32 %v6057, 2147483648
    %v6074 = vmul.f32 %v6072, 1.442695
    %v6075 = vpow.pop %v6074
    %v6076 = vmul.f32 %v6073, 1.442695
    %v6077 = vpow.pop %v6076
    %v6078 = vadd.f32 %v6075, 1.0
    %v6079 = vadd.f32 %v6077, 1.0
    %v6080 = vrcp.pop %v6078
    %v6081 = vmul.f32 1.0, %v6080
    %v6082 = vrcp.pop %v6079
    %v6083 = vmul.f32 1.0, %v6082
    %v6084 = vtanh.pop %v6054
    %v6085 = vtanh.pop %v6058
    %v6086 = vxor.u32 %v6055, 2147483648
    %v6087 = vxor.u32 %v6059, 2147483648
    %v6088 = vmul.f32 %v6086, 1.442695
    %v6089 = vpow.pop %v6088
    %v6090 = vmul.f32 %v6087, 1.442695
    %v6091 = vpow.pop %v6090
    %v6092 = vadd.f32 %v6089, 1.0
    %v6093 = vadd.f32 %v6091, 1.0
    %v6094 = vrcp.pop %v6092
    %v6095 = vmul.f32 1.0, %v6094
    %v6096 = vrcp.pop %v6093
    %v6097 = vmul.f32 1.0, %v6096
    %v6098 = vmul.f32 %v6081, %v5404
    %v6099 = vmul.f32 %v6083, %v5405
    %v6100 = vmul.f32 %v6069, %v6084
    %v6101 = vmul.f32 %v6071, %v6085
    %v6102 = vadd.f32 %v6098, %v6100
    %v6103 = vadd.f32 %v6099, %v6101
    %v6104 = vtanh.pop %v6102
    %v6105 = vtanh.pop %v6103
    %v6106 = vmul.f32 %v6095, %v6104
    %v6107 = vmul.f32 %v6097, %v6105
    %6108 = vst [vmem:[%s2611] sm:$0xff] %v5763
    %6109 = vst [vmem:[%s2611 + $0x10] sm:$0xff] %v5764
    %6110 = vst [vmem:[%s2608 + $0x8] sm:$0xff] %v6106
    %6111 = vst [vmem:[%s2608 + $0x18] sm:$0xff] %v6107
    %v6112 = vld [vmem:[%s1218] sm:$0xff]
    %v6113 = vld [vmem:[%s1218 + $0x8] sm:$0xff]
    %v6114 = vld [vmem:[%s1218 + $0x10] sm:$0xff]
    %v6115 = vld [vmem:[%s1218 + $0x18] sm:$0xff]
    %v6116 = vld [vmem:[#allocation2 + $0x20] sm:$0xff]
    %v6117 = vld [vmem:[#allocation2 + $0x28] sm:$0xff]
    %v6118 = vld [vmem:[#allocation2 + $0x30] sm:$0xff]
    %v6119 = vld [vmem:[#allocation2 + $0x38] sm:$0xff]
    %v6120 = vunpack.c.l.bf16 %v6112
    %v6121 = vunpack.c.l.bf16 %v6113
    %v6122 = vunpack.c.l.bf16 %v6114
    %v6123 = vunpack.c.l.bf16 %v6115
    %v6124 = vunpack.c.h.bf16 %v6112
    %v6125 = vunpack.c.h.bf16 %v6113
    %v6126 = vunpack.c.h.bf16 %v6114
    %v6127 = vunpack.c.h.bf16 %v6115
    %v6128 = vpack.c.bf16 %v5764, %v5763
    %v6129 = vld [vmem:[#allocation10] sm:$0xff]
    %v6130 = vld [vmem:[#allocation10 + $0x8] sm:$0xff]
    %v6131 = vld [vmem:[#allocation10 + $0x10] sm:$0xff]
    %v6132 = vld [vmem:[#allocation10 + $0x18] sm:$0xff]
    %v6133 = vld [vmem:[#allocation10 + $0x20] sm:$0xff]
    %v6134 = vld [vmem:[#allocation10 + $0x28] sm:$0xff]
    %v6135 = vld [vmem:[#allocation10 + $0x30] sm:$0xff]
    %v6136 = vld [vmem:[#allocation10 + $0x38] sm:$0xff]
    %v6137 = vld [vmem:[#allocation10 + $0x40] sm:$0xff]
    %v6138 = vld [vmem:[#allocation10 + $0x48] sm:$0xff]
    %v6139 = vld [vmem:[#allocation10 + $0x50] sm:$0xff]
    %v6140 = vld [vmem:[#allocation10 + $0x58] sm:$0xff]
    %v6141 = vld [vmem:[#allocation10 + $0x60] sm:$0xff]
    %v6142 = vld [vmem:[#allocation10 + $0x68] sm:$0xff]
    %v6143 = vld [vmem:[#allocation10 + $0x70] sm:$0xff]
    %v6144 = vld [vmem:[#allocation10 + $0x78] sm:$0xff]
    %v6145 = vld [vmem:[#allocation10 + $0x80] sm:$0xff]
    %v6146 = vld [vmem:[#allocation10 + $0x88] sm:$0xff]
    %v6147 = vld [vmem:[#allocation10 + $0x90] sm:$0xff]
    %v6148 = vld [vmem:[#allocation10 + $0x98] sm:$0xff]
    %v6149 = vld [vmem:[#allocation10 + $0xa0] sm:$0xff]
    %v6150 = vld [vmem:[#allocation10 + $0xa8] sm:$0xff]
    %v6151 = vld [vmem:[#allocation10 + $0xb0] sm:$0xff]
    %v6152 = vld [vmem:[#allocation10 + $0xb8] sm:$0xff]
    %v6153 = vld [vmem:[#allocation10 + $0xc0] sm:$0xff]
    %v6154 = vld [vmem:[#allocation10 + $0xc8] sm:$0xff]
    %v6155 = vld [vmem:[#allocation10 + $0xd0] sm:$0xff]
    %v6156 = vld [vmem:[#allocation10 + $0xd8] sm:$0xff]
    %v6157 = vld [vmem:[#allocation10 + $0xe0] sm:$0xff]
    %v6158 = vld [vmem:[#allocation10 + $0xe8] sm:$0xff]
    %v6159 = vld [vmem:[#allocation10 + $0xf0] sm:$0xff]
    %v6160 = vld [vmem:[#allocation10 + $0xf8] sm:$0xff]
    %v6193 = vunpack.c.l.b16 %v6129
    %v6194 = vunpack.c.h.b16 %v6129
    %v6195 = vunpack.c.l.b16 %v6130
    %v6196 = vunpack.c.h.b16 %v6130
    %v6197 = vunpack.c.l.b16 %v6131
    %v6198 = vunpack.c.h.b16 %v6131
    %v6199 = vunpack.c.l.b16 %v6132
    %v6200 = vunpack.c.h.b16 %v6132
    %v6201 = vunpack.c.l.b16 %v6133
    %v6202 = vunpack.c.h.b16 %v6133
    %v6203 = vunpack.c.l.b16 %v6134
    %v6204 = vunpack.c.h.b16 %v6134
    %v6205 = vunpack.c.l.b16 %v6135
    %v6206 = vunpack.c.h.b16 %v6135
    %v6207 = vunpack.c.l.b16 %v6136
    %v6208 = vunpack.c.h.b16 %v6136
    %v6209 = vunpack.c.l.b16 %v6137
    %v6210 = vunpack.c.h.b16 %v6137
    %v6211 = vunpack.c.l.b16 %v6138
    %v6212 = vunpack.c.h.b16 %v6138
    %v6213 = vunpack.c.l.b16 %v6139
    %v6214 = vunpack.c.h.b16 %v6139
    %v6215 = vunpack.c.l.b16 %v6140
    %v6216 = vunpack.c.h.b16 %v6140
    %v6217 = vunpack.c.l.b16 %v6141
    %v6218 = vunpack.c.h.b16 %v6141
    %v6219 = vunpack.c.l.b16 %v6142
    %v6220 = vunpack.c.h.b16 %v6142
    %v6221 = vunpack.c.l.b16 %v6143
    %v6222 = vunpack.c.h.b16 %v6143
    %v6223 = vunpack.c.l.b16 %v6144
    %v6224 = vunpack.c.h.b16 %v6144
    %v6225 = vunpack.c.l.b16 %v6145
    %v6226 = vunpack.c.h.b16 %v6145
    %v6227 = vunpack.c.l.b16 %v6146
    %v6228 = vunpack.c.h.b16 %v6146
    %v6229 = vunpack.c.l.b16 %v6147
    %v6230 = vunpack.c.h.b16 %v6147
    %v6231 = vunpack.c.l.b16 %v6148
    %v6232 = vunpack.c.h.b16 %v6148
    %v6233 = vunpack.c.l.b16 %v6149
    %v6234 = vunpack.c.h.b16 %v6149
    %v6235 = vunpack.c.l.b16 %v6150
    %v6236 = vunpack.c.h.b16 %v6150
    %v6237 = vunpack.c.l.b16 %v6151
    %v6238 = vunpack.c.h.b16 %v6151
    %v6239 = vunpack.c.l.b16 %v6152
    %v6240 = vunpack.c.h.b16 %v6152
    %v6241 = vunpack.c.l.b16 %v6153
    %v6242 = vunpack.c.h.b16 %v6153
    %v6243 = vunpack.c.l.b16 %v6154
    %v6244 = vunpack.c.h.b16 %v6154
    %v6245 = vunpack.c.l.b16 %v6155
    %v6246 = vunpack.c.h.b16 %v6155
    %v6247 = vunpack.c.l.b16 %v6156
    %v6248 = vunpack.c.h.b16 %v6156
    %v6249 = vunpack.c.l.b16 %v6157
    %v6250 = vunpack.c.h.b16 %v6157
    %v6251 = vunpack.c.l.b16 %v6158
    %v6252 = vunpack.c.h.b16 %v6158
    %v6253 = vunpack.c.l.b16 %v6159
    %v6254 = vunpack.c.h.b16 %v6159
    %v6255 = vunpack.c.l.b16 %v6160
    %v6256 = vunpack.c.h.b16 %v6160
    %v6257 = vpack.c.b16 %v6197, %v6193
    %v6258 = vpack.c.b16 %v6198, %v6194
    %v6259 = vpack.c.b16 %v6199, %v6195
    %v6260 = vpack.c.b16 %v6200, %v6196
    %v6261 = vpack.c.b16 %v6205, %v6201
    %v6262 = vpack.c.b16 %v6206, %v6202
    %v6263 = vpack.c.b16 %v6207, %v6203
    %v6264 = vpack.c.b16 %v6208, %v6204
    %v6265 = vpack.c.b16 %v6213, %v6209
    %v6266 = vpack.c.b16 %v6214, %v6210
    %v6267 = vpack.c.b16 %v6215, %v6211
    %v6268 = vpack.c.b16 %v6216, %v6212
    %v6269 = vpack.c.b16 %v6221, %v6217
    %v6270 = vpack.c.b16 %v6222, %v6218
    %v6271 = vpack.c.b16 %v6223, %v6219
    %v6272 = vpack.c.b16 %v6224, %v6220
    %v6273 = vpack.c.b16 %v6229, %v6225
    %v6274 = vpack.c.b16 %v6230, %v6226
    %v6275 = vpack.c.b16 %v6231, %v6227
    %v6276 = vpack.c.b16 %v6232, %v6228
    %v6277 = vpack.c.b16 %v6237, %v6233
    %v6278 = vpack.c.b16 %v6238, %v6234
    %v6279 = vpack.c.b16 %v6239, %v6235
    %v6280 = vpack.c.b16 %v6240, %v6236
    %v6281 = vpack.c.b16 %v6245, %v6241
    %v6282 = vpack.c.b16 %v6246, %v6242
    %v6283 = vpack.c.b16 %v6247, %v6243
    %v6284 = vpack.c.b16 %v6248, %v6244
    %v6285 = vpack.c.b16 %v6253, %v6249
    %v6286 = vpack.c.b16 %v6254, %v6250
    %v6287 = vpack.c.b16 %v6255, %v6251
    %v6288 = vpack.c.b16 %v6256, %v6252
    %6321 = vmatprep.subr.bf16.mxu0 %v6258
    %6322 = vmatpush1.bf16.msra.mxu0 %v6257
    %6323 = vmatprep.subr.bf16.mxu0 %v6262
    %6324 = vmatpush1.bf16.msra.mxu0 %v6261
    %6325 = vmatprep.subr.bf16.mxu0 %v6266
    %6326 = vmatpush1.bf16.msra.mxu0 %v6265
    %6327 = vmatprep.subr.bf16.mxu0 %v6270
    %6328 = vmatpush1.bf16.msra.mxu0 %v6269
    %6329 = vmatprep.subr.bf16.mxu0 %v6274
    %6330 = vmatpush1.bf16.msra.mxu0 %v6273
    %6331 = vmatprep.subr.bf16.mxu0 %v6278
    %6332 = vmatpush1.bf16.msra.mxu0 %v6277
    %6333 = vmatprep.subr.bf16.mxu0 %v6282
    %6334 = vmatpush1.bf16.msra.mxu0 %v6281
    %6335 = vmatprep.subr.bf16.mxu0 %v6286
    %6336 = vmatpush1.bf16.msra.mxu0 %v6285
    %6337 = vmatprep.subr.bf16.mxu0 0
    %6338 = vmatpush1.bf16.msra.mxu0 0
    %6339 = vmatprep.subr.bf16.mxu0 0
    %6340 = vmatpush1.bf16.msra.mxu0 0
    %6341 = vmatprep.subr.bf16.mxu0 0
    %6342 = vmatpush1.bf16.msra.mxu0 0
    %6343 = vmatprep.subr.bf16.mxu0 0
    %6344 = vmatpush1.bf16.msra.mxu0 0
    %6345 = vmatprep.subr.bf16.mxu0 0
    %6346 = vmatpush1.bf16.msra.mxu0 0
    %6347 = vmatprep.subr.bf16.mxu0 0
    %6348 = vmatpush1.bf16.msra.mxu0 0
    %6349 = vmatprep.subr.bf16.mxu0 0
    %6350 = vmatpush1.bf16.msra.mxu0 0
    %6351 = vmatprep.subr.bf16.mxu0 0
    %6352 = vmatpush1.bf16.msra.mxu0 0
    %6353 = vmatprep.mubr.bf16.mxu0 0
    %6354 = vmatmul.mubr.bf16.gmra.mrb[0].mxu0 %v6128
    %v6355 = vpop.f32.mrb[0].mxu0
    %v6356 = vadd.f32 0.0, %v6355
    %v6357 = vpop.f32.mrb[0].mxu0
    %v6358 = vadd.f32 0.0, %v6357
    %v6359 = vpop.f32.mrb[0].mxu0
    %v6360 = vadd.f32 0.0, %v6359
    %v6361 = vpop.f32.mrb[0].mxu0
    %v6362 = vadd.f32 0.0, %v6361
    %6363 = vdwg.mxu0
    %6364 = vmatprep.subr.bf16.mxu0 %v6260
    %6365 = vmatpush1.bf16.msra.mxu0 %v6259
    %6366 = vmatprep.subr.bf16.mxu0 %v6264
    %6367 = vmatpush1.bf16.msra.mxu0 %v6263
    %6368 = vmatprep.subr.bf16.mxu0 %v6268
    %6369 = vmatpush1.bf16.msra.mxu0 %v6267
    %6370 = vmatprep.subr.bf16.mxu0 %v6272
    %6371 = vmatpush1.bf16.msra.mxu0 %v6271
    %6372 = vmatprep.subr.bf16.mxu0 %v6276
    %6373 = vmatpush1.bf16.msra.mxu0 %v6275
    %6374 = vmatprep.subr.bf16.mxu0 %v6280
    %6375 = vmatpush1.bf16.msra.mxu0 %v6279
    %6376 = vmatprep.subr.bf16.mxu0 %v6284
    %6377 = vmatpush1.bf16.msra.mxu0 %v6283
    %6378 = vmatprep.subr.bf16.mxu0 %v6288
    %6379 = vmatpush1.bf16.msra.mxu0 %v6287
    %6380 = vmatprep.subr.bf16.mxu0 0
    %6381 = vmatpush1.bf16.msra.mxu0 0
    %6382 = vmatprep.subr.bf16.mxu0 0
    %6383 = vmatpush1.bf16.msra.mxu0 0
    %6384 = vmatprep.subr.bf16.mxu0 0
    %6385 = vmatpush1.bf16.msra.mxu0 0
    %6386 = vmatprep.subr.bf16.mxu0 0
    %6387 = vmatpush1.bf16.msra.mxu0 0
    %6388 = vmatprep.subr.bf16.mxu0 0
    %6389 = vmatpush1.bf16.msra.mxu0 0
    %6390 = vmatprep.subr.bf16.mxu0 0
    %6391 = vmatpush1.bf16.msra.mxu0 0
    %6392 = vmatprep.subr.bf16.mxu0 0
    %6393 = vmatpush1.bf16.msra.mxu0 0
    %6394 = vmatprep.subr.bf16.mxu0 0
    %6395 = vmatpush1.bf16.msra.mxu0 0
    %6396 = vmatprep.mubr.bf16.mxu0 0
    %6397 = vmatmul.mubr.bf16.gmra.mrb[0].mxu0 %v6128
    %v6398 = vpop.f32.mrb[0].mxu0
    %v6399 = vadd.f32 0.0, %v6398
    %v6400 = vpop.f32.mrb[0].mxu0
    %v6401 = vadd.f32 0.0, %v6400
    %v6402 = vpop.f32.mrb[0].mxu0
    %v6403 = vadd.f32 0.0, %v6402
    %v6404 = vpop.f32.mrb[0].mxu0
    %v6405 = vadd.f32 0.0, %v6404
    %6406 = vdwg.mxu0
    %v6407 = vadd.f32 %v6120, %v6356
    %v6408 = vadd.f32 %v6121, %v6358
    %v6409 = vadd.f32 %v6122, %v6399
    %v6410 = vadd.f32 %v6123, %v6401
    %v6411 = vadd.f32 %v6124, %v6360
    %v6412 = vadd.f32 %v6125, %v6362
    %v6413 = vadd.f32 %v6126, %v6403
    %v6414 = vadd.f32 %v6127, %v6405
    %v6415 = vxor.u32 %v6407, 2147483648
    %v6416 = vxor.u32 %v6411, 2147483648
    %v6417 = vmul.f32 %v6415, 1.442695
    %v6418 = vpow.pop %v6417
    %v6419 = vmul.f32 %v6416, 1.442695
    %v6420 = vpow.pop %v6419
    %v6421 = vadd.f32 %v6418, 1.0
    %v6422 = vadd.f32 %v6420, 1.0
    %v6423 = vrcp.pop %v6421
    %v6424 = vmul.f32 1.0, %v6423
    %v6425 = vrcp.pop %v6422
    %v6426 = vmul.f32 1.0, %v6425
    %v6427 = vxor.u32 %v6408, 2147483648
    %v6428 = vxor.u32 %v6412, 2147483648
    %v6429 = vmul.f32 %v6427, 1.442695
    %v6430 = vpow.pop %v6429
    %v6431 = vmul.f32 %v6428, 1.442695
    %v6432 = vpow.pop %v6431
    %v6433 = vadd.f32 %v6430, 1.0
    %v6434 = vadd.f32 %v6432, 1.0
    %v6435 = vrcp.pop %v6433
    %v6436 = vmul.f32 1.0, %v6435
    %v6437 = vrcp.pop %v6434
    %v6438 = vmul.f32 1.0, %v6437
    %v6439 = vtanh.pop %v6409
    %v6440 = vtanh.pop %v6413
    %v6441 = vxor.u32 %v6410, 2147483648
    %v6442 = vxor.u32 %v6414, 2147483648
    %v6443 = vmul.f32 %v6441, 1.442695
    %v6444 = vpow.pop %v6443
    %v6445 = vmul.f32 %v6442, 1.442695
    %v6446 = vpow.pop %v6445
    %v6447 = vadd.f32 %v6444, 1.0
    %v6448 = vadd.f32 %v6446, 1.0
    %v6449 = vrcp.pop %v6447
    %v6450 = vmul.f32 1.0, %v6449
    %v6451 = vrcp.pop %v6448
    %v6452 = vmul.f32 1.0, %v6451
    %v6453 = vmul.f32 %v6436, %v5759
    %v6454 = vmul.f32 %v6438, %v5760
    %v6455 = vmul.f32 %v6424, %v6439
    %v6456 = vmul.f32 %v6426, %v6440
    %v6457 = vadd.f32 %v6453, %v6455
    %v6458 = vadd.f32 %v6454, %v6456
    %v6459 = vtanh.pop %v6457
    %v6460 = vtanh.pop %v6458
    %v6461 = vmul.f32 %v6450, %v6459
    %v6462 = vmul.f32 %v6452, %v6460
    %v6463 = vunpack.c.l.bf16 %v6116
    %v6464 = vunpack.c.l.bf16 %v6117
    %v6465 = vunpack.c.l.bf16 %v6118
    %v6466 = vunpack.c.l.bf16 %v6119
    %v6467 = vunpack.c.h.bf16 %v6116
    %v6468 = vunpack.c.h.bf16 %v6117
    %v6469 = vunpack.c.h.bf16 %v6118
    %v6470 = vunpack.c.h.bf16 %v6119
    %v6471 = vpack.c.bf16 %v6107, %v6106
    %v6472 = vld [vmem:[#allocation12] sm:$0xff]
    %v6473 = vld [vmem:[#allocation12 + $0x8] sm:$0xff]
    %v6474 = vld [vmem:[#allocation12 + $0x10] sm:$0xff]
    %v6475 = vld [vmem:[#allocation12 + $0x18] sm:$0xff]
    %v6476 = vld [vmem:[#allocation12 + $0x20] sm:$0xff]
    %v6477 = vld [vmem:[#allocation12 + $0x28] sm:$0xff]
    %v6478 = vld [vmem:[#allocation12 + $0x30] sm:$0xff]
    %v6479 = vld [vmem:[#allocation12 + $0x38] sm:$0xff]
    %v6480 = vld [vmem:[#allocation12 + $0x40] sm:$0xff]
    %v6481 = vld [vmem:[#allocation12 + $0x48] sm:$0xff]
    %v6482 = vld [vmem:[#allocation12 + $0x50] sm:$0xff]
    %v6483 = vld [vmem:[#allocation12 + $0x58] sm:$0xff]
    %v6484 = vld [vmem:[#allocation12 + $0x60] sm:$0xff]
    %v6485 = vld [vmem:[#allocation12 + $0x68] sm:$0xff]
    %v6486 = vld [vmem:[#allocation12 + $0x70] sm:$0xff]
    %v6487 = vld [vmem:[#allocation12 + $0x78] sm:$0xff]
    %v6488 = vld [vmem:[#allocation12 + $0x80] sm:$0xff]
    %v6489 = vld [vmem:[#allocation12 + $0x88] sm:$0xff]
    %v6490 = vld [vmem:[#allocation12 + $0x90] sm:$0xff]
    %v6491 = vld [vmem:[#allocation12 + $0x98] sm:$0xff]
    %v6492 = vld [vmem:[#allocation12 + $0xa0] sm:$0xff]
    %v6493 = vld [vmem:[#allocation12 + $0xa8] sm:$0xff]
    %v6494 = vld [vmem:[#allocation12 + $0xb0] sm:$0xff]
    %v6495 = vld [vmem:[#allocation12 + $0xb8] sm:$0xff]
    %v6496 = vld [vmem:[#allocation12 + $0xc0] sm:$0xff]
    %v6497 = vld [vmem:[#allocation12 + $0xc8] sm:$0xff]
    %v6498 = vld [vmem:[#allocation12 + $0xd0] sm:$0xff]
    %v6499 = vld [vmem:[#allocation12 + $0xd8] sm:$0xff]
    %v6500 = vld [vmem:[#allocation12 + $0xe0] sm:$0xff]
    %v6501 = vld [vmem:[#allocation12 + $0xe8] sm:$0xff]
    %v6502 = vld [vmem:[#allocation12 + $0xf0] sm:$0xff]
    %v6503 = vld [vmem:[#allocation12 + $0xf8] sm:$0xff]
    %v6536 = vunpack.c.l.b16 %v6472
    %v6537 = vunpack.c.h.b16 %v6472
    %v6538 = vunpack.c.l.b16 %v6473
    %v6539 = vunpack.c.h.b16 %v6473
    %v6540 = vunpack.c.l.b16 %v6474
    %v6541 = vunpack.c.h.b16 %v6474
    %v6542 = vunpack.c.l.b16 %v6475
    %v6543 = vunpack.c.h.b16 %v6475
    %v6544 = vunpack.c.l.b16 %v6476
    %v6545 = vunpack.c.h.b16 %v6476
    %v6546 = vunpack.c.l.b16 %v6477
    %v6547 = vunpack.c.h.b16 %v6477
    %v6548 = vunpack.c.l.b16 %v6478
    %v6549 = vunpack.c.h.b16 %v6478
    %v6550 = vunpack.c.l.b16 %v6479
    %v6551 = vunpack.c.h.b16 %v6479
    %v6552 = vunpack.c.l.b16 %v6480
    %v6553 = vunpack.c.h.b16 %v6480
    %v6554 = vunpack.c.l.b16 %v6481
    %v6555 = vunpack.c.h.b16 %v6481
    %v6556 = vunpack.c.l.b16 %v6482
    %v6557 = vunpack.c.h.b16 %v6482
    %v6558 = vunpack.c.l.b16 %v6483
    %v6559 = vunpack.c.h.b16 %v6483
    %v6560 = vunpack.c.l.b16 %v6484
    %v6561 = vunpack.c.h.b16 %v6484
    %v6562 = vunpack.c.l.b16 %v6485
    %v6563 = vunpack.c.h.b16 %v6485
    %v6564 = vunpack.c.l.b16 %v6486
    %v6565 = vunpack.c.h.b16 %v6486
    %v6566 = vunpack.c.l.b16 %v6487
    %v6567 = vunpack.c.h.b16 %v6487
    %v6568 = vunpack.c.l.b16 %v6488
    %v6569 = vunpack.c.h.b16 %v6488
    %v6570 = vunpack.c.l.b16 %v6489
    %v6571 = vunpack.c.h.b16 %v6489
    %v6572 = vunpack.c.l.b16 %v6490
    %v6573 = vunpack.c.h.b16 %v6490
    %v6574 = vunpack.c.l.b16 %v6491
    %v6575 = vunpack.c.h.b16 %v6491
    %v6576 = vunpack.c.l.b16 %v6492
    %v6577 = vunpack.c.h.b16 %v6492
    %v6578 = vunpack.c.l.b16 %v6493
    %v6579 = vunpack.c.h.b16 %v6493
    %v6580 = vunpack.c.l.b16 %v6494
    %v6581 = vunpack.c.h.b16 %v6494
    %v6582 = vunpack.c.l.b16 %v6495
    %v6583 = vunpack.c.h.b16 %v6495
    %v6584 = vunpack.c.l.b16 %v6496
    %v6585 = vunpack.c.h.b16 %v6496
    %v6586 = vunpack.c.l.b16 %v6497
    %v6587 = vunpack.c.h.b16 %v6497
    %v6588 = vunpack.c.l.b16 %v6498
    %v6589 = vunpack.c.h.b16 %v6498
    %v6590 = vunpack.c.l.b16 %v6499
    %v6591 = vunpack.c.h.b16 %v6499
    %v6592 = vunpack.c.l.b16 %v6500
    %v6593 = vunpack.c.h.b16 %v6500
    %v6594 = vunpack.c.l.b16 %v6501
    %v6595 = vunpack.c.h.b16 %v6501
    %v6596 = vunpack.c.l.b16 %v6502
    %v6597 = vunpack.c.h.b16 %v6502
    %v6598 = vunpack.c.l.b16 %v6503
    %v6599 = vunpack.c.h.b16 %v6503
    %v6600 = vpack.c.b16 %v6540, %v6536
    %v6601 = vpack.c.b16 %v6541, %v6537
    %v6602 = vpack.c.b16 %v6542, %v6538
    %v6603 = vpack.c.b16 %v6543, %v6539
    %v6604 = vpack.c.b16 %v6548, %v6544
    %v6605 = vpack.c.b16 %v6549, %v6545
    %v6606 = vpack.c.b16 %v6550, %v6546
    %v6607 = vpack.c.b16 %v6551, %v6547
    %v6608 = vpack.c.b16 %v6556, %v6552
    %v6609 = vpack.c.b16 %v6557, %v6553
    %v6610 = vpack.c.b16 %v6558, %v6554
    %v6611 = vpack.c.b16 %v6559, %v6555
    %v6612 = vpack.c.b16 %v6564, %v6560
    %v6613 = vpack.c.b16 %v6565, %v6561
    %v6614 = vpack.c.b16 %v6566, %v6562
    %v6615 = vpack.c.b16 %v6567, %v6563
    %v6616 = vpack.c.b16 %v6572, %v6568
    %v6617 = vpack.c.b16 %v6573, %v6569
    %v6618 = vpack.c.b16 %v6574, %v6570
    %v6619 = vpack.c.b16 %v6575, %v6571
    %v6620 = vpack.c.b16 %v6580, %v6576
    %v6621 = vpack.c.b16 %v6581, %v6577
    %v6622 = vpack.c.b16 %v6582, %v6578
    %v6623 = vpack.c.b16 %v6583, %v6579
    %v6624 = vpack.c.b16 %v6588, %v6584
    %v6625 = vpack.c.b16 %v6589, %v6585
    %v6626 = vpack.c.b16 %v6590, %v6586
    %v6627 = vpack.c.b16 %v6591, %v6587
    %v6628 = vpack.c.b16 %v6596, %v6592
    %v6629 = vpack.c.b16 %v6597, %v6593
    %v6630 = vpack.c.b16 %v6598, %v6594
    %v6631 = vpack.c.b16 %v6599, %v6595
    %6664 = vmatprep.subr.bf16.mxu0 %v6601
    %6665 = vmatpush1.bf16.msra.mxu0 %v6600
    %6666 = vmatprep.subr.bf16.mxu0 %v6605
    %6667 = vmatpush1.bf16.msra.mxu0 %v6604
    %6668 = vmatprep.subr.bf16.mxu0 %v6609
    %6669 = vmatpush1.bf16.msra.mxu0 %v6608
    %6670 = vmatprep.subr.bf16.mxu0 %v6613
    %6671 = vmatpush1.bf16.msra.mxu0 %v6612
    %6672 = vmatprep.subr.bf16.mxu0 %v6617
    %6673 = vmatpush1.bf16.msra.mxu0 %v6616
    %6674 = vmatprep.subr.bf16.mxu0 %v6621
    %6675 = vmatpush1.bf16.msra.mxu0 %v6620
    %6676 = vmatprep.subr.bf16.mxu0 %v6625
    %6677 = vmatpush1.bf16.msra.mxu0 %v6624
    %6678 = vmatprep.subr.bf16.mxu0 %v6629
    %6679 = vmatpush1.bf16.msra.mxu0 %v6628
    %6680 = vmatprep.subr.bf16.mxu0 0
    %6681 = vmatpush1.bf16.msra.mxu0 0
    %6682 = vmatprep.subr.bf16.mxu0 0
    %6683 = vmatpush1.bf16.msra.mxu0 0
    %6684 = vmatprep.subr.bf16.mxu0 0
    %6685 = vmatpush1.bf16.msra.mxu0 0
    %6686 = vmatprep.subr.bf16.mxu0 0
    %6687 = vmatpush1.bf16.msra.mxu0 0
    %6688 = vmatprep.subr.bf16.mxu0 0
    %6689 = vmatpush1.bf16.msra.mxu0 0
    %6690 = vmatprep.subr.bf16.mxu0 0
    %6691 = vmatpush1.bf16.msra.mxu0 0
    %6692 = vmatprep.subr.bf16.mxu0 0
    %6693 = vmatpush1.bf16.msra.mxu0 0
    %6694 = vmatprep.subr.bf16.mxu0 0
    %6695 = vmatpush1.bf16.msra.mxu0 0
    %6696 = vmatprep.mubr.bf16.mxu0 0
    %6697 = vmatmul.mubr.bf16.gmra.mrb[0].mxu0 %v6471
    %v6698 = vpop.f32.mrb[0].mxu0
    %v6699 = vadd.f32 0.0, %v6698
    %v6700 = vpop.f32.mrb[0].mxu0
    %v6701 = vadd.f32 0.0, %v6700
    %v6702 = vpop.f32.mrb[0].mxu0
    %v6703 = vadd.f32 0.0, %v6702
    %v6704 = vpop.f32.mrb[0].mxu0
    %v6705 = vadd.f32 0.0, %v6704
    %6706 = vdwg.mxu0
    %6707 = vmatprep.subr.bf16.mxu0 %v6603
    %6708 = vmatpush1.bf16.msra.mxu0 %v6602
    %6709 = vmatprep.subr.bf16.mxu0 %v6607
    %6710 = vmatpush1.bf16.msra.mxu0 %v6606
    %6711 = vmatprep.subr.bf16.mxu0 %v6611
    %6712 = vmatpush1.bf16.msra.mxu0 %v6610
    %6713 = vmatprep.subr.bf16.mxu0 %v6615
    %6714 = vmatpush1.bf16.msra.mxu0 %v6614
    %6715 = vmatprep.subr.bf16.mxu0 %v6619
    %6716 = vmatpush1.bf16.msra.mxu0 %v6618
    %6717 = vmatprep.subr.bf16.mxu0 %v6623
    %6718 = vmatpush1.bf16.msra.mxu0 %v6622
    %6719 = vmatprep.subr.bf16.mxu0 %v6627
    %6720 = vmatpush1.bf16.msra.mxu0 %v6626
    %6721 = vmatprep.subr.bf16.mxu0 %v6631
    %6722 = vmatpush1.bf16.msra.mxu0 %v6630
    %6723 = vmatprep.subr.bf16.mxu0 0
    %6724 = vmatpush1.bf16.msra.mxu0 0
    %6725 = vmatprep.subr.bf16.mxu0 0
    %6726 = vmatpush1.bf16.msra.mxu0 0
    %6727 = vmatprep.subr.bf16.mxu0 0
    %6728 = vmatpush1.bf16.msra.mxu0 0
    %6729 = vmatprep.subr.bf16.mxu0 0
    %6730 = vmatpush1.bf16.msra.mxu0 0
    %6731 = vmatprep.subr.bf16.mxu0 0
    %6732 = vmatpush1.bf16.msra.mxu0 0
    %6733 = vmatprep.subr.bf16.mxu0 0
    %6734 = vmatpush1.bf16.msra.mxu0 0
    %6735 = vmatprep.subr.bf16.mxu0 0
    %6736 = vmatpush1.bf16.msra.mxu0 0
    %6737 = vmatprep.subr.bf16.mxu0 0
    %6738 = vmatpush1.bf16.msra.mxu0 0
    %6739 = vmatprep.mubr.bf16.mxu0 0
    %6740 = vmatmul.mubr.bf16.gmra.mrb[0].mxu0 %v6471
    %v6741 = vpop.f32.mrb[0].mxu0
    %v6742 = vadd.f32 0.0, %v6741
    %v6743 = vpop.f32.mrb[0].mxu0
    %v6744 = vadd.f32 0.0, %v6743
    %v6745 = vpop.f32.mrb[0].mxu0
    %v6746 = vadd.f32 0.0, %v6745
    %v6747 = vpop.f32.mrb[0].mxu0
    %v6748 = vadd.f32 0.0, %v6747
    %6749 = vdwg.mxu0
    %v6750 = vadd.f32 %v6463, %v6699
    %v6751 = vadd.f32 %v6464, %v6701
    %v6752 = vadd.f32 %v6465, %v6742
    %v6753 = vadd.f32 %v6466, %v6744
    %v6754 = vadd.f32 %v6467, %v6703
    %v6755 = vadd.f32 %v6468, %v6705
    %v6756 = vadd.f32 %v6469, %v6746
    %v6757 = vadd.f32 %v6470, %v6748
    %v6758 = vxor.u32 %v6750, 2147483648
    %v6759 = vxor.u32 %v6754, 2147483648
    %v6760 = vmul.f32 %v6758, 1.442695
    %v6761 = vpow.pop %v6760
    %v6762 = vmul.f32 %v6759, 1.442695
    %v6763 = vpow.pop %v6762
    %v6764 = vadd.f32 %v6761, 1.0
    %v6765 = vadd.f32 %v6763, 1.0
    %v6766 = vrcp.pop %v6764
    %v6767 = vmul.f32 1.0, %v6766
    %v6768 = vrcp.pop %v6765
    %v6769 = vmul.f32 1.0, %v6768
    %v6770 = vxor.u32 %v6751, 2147483648
    %v6771 = vxor.u32 %v6755, 2147483648
    %v6772 = vmul.f32 %v6770, 1.442695
    %v6773 = vpow.pop %v6772
    %v6774 = vmul.f32 %v6771, 1.442695
    %v6775 = vpow.pop %v6774
    %v6776 = vadd.f32 %v6773, 1.0
    %v6777 = vadd.f32 %v6775, 1.0
    %v6778 = vrcp.pop %v6776
    %v6779 = vmul.f32 1.0, %v6778
    %v6780 = vrcp.pop %v6777
    %v6781 = vmul.f32 1.0, %v6780
    %v6782 = vtanh.pop %v6752
    %v6783 = vtanh.pop %v6756
    %v6784 = vxor.u32 %v6753, 2147483648
    %v6785 = vxor.u32 %v6757, 2147483648
    %v6786 = vmul.f32 %v6784, 1.442695
    %v6787 = vpow.pop %v6786
    %v6788 = vmul.f32 %v6785, 1.442695
    %v6789 = vpow.pop %v6788
    %v6790 = vadd.f32 %v6787, 1.0
    %v6791 = vadd.f32 %v6789, 1.0
    %v6792 = vrcp.pop %v6790
    %v6793 = vmul.f32 1.0, %v6792
    %v6794 = vrcp.pop %v6791
    %v6795 = vmul.f32 1.0, %v6794
    %v6796 = vmul.f32 %v6779, %v6102
    %v6797 = vmul.f32 %v6781, %v6103
    %v6798 = vmul.f32 %v6767, %v6782
    %v6799 = vmul.f32 %v6769, %v6783
    %v6800 = vadd.f32 %v6796, %v6798
    %v6801 = vadd.f32 %v6797, %v6799
    %v6802 = vtanh.pop %v6800
    %v6803 = vtanh.pop %v6801
    %v6804 = vmul.f32 %v6793, %v6802
    %v6805 = vmul.f32 %v6795, %v6803
    %6806 = vst [vmem:[%s1909] sm:$0xff] %v6461
    %6807 = vst [vmem:[%s1909 + $0x10] sm:$0xff] %v6462
    %6808 = vst [vmem:[#allocation3 + $0x8] sm:$0xff] %v6804
    %6809 = vst [vmem:[#allocation3 + $0x18] sm:$0xff] %v6805
    %v6810 = vld [vmem:[#allocation3] sm:$0xff]
    %v6811 = vld [vmem:[#allocation3 + $0x8] sm:$0xff]
    %v6812 = vld [vmem:[#allocation3 + $0x10] sm:$0xff]
    %v6813 = vld [vmem:[#allocation3 + $0x18] sm:$0xff]
    %v6814 = vld [vmem:[#allocation3 + $0x20] sm:$0xff]
    %v6815 = vld [vmem:[#allocation3 + $0x28] sm:$0xff]
    %v6816 = vld [vmem:[#allocation3 + $0x30] sm:$0xff]
    %v6817 = vld [vmem:[#allocation3 + $0x38] sm:$0xff]
    %v6818 = vld [vmem:[#allocation3 + $0x40] sm:$0xff]
    %v6819 = vld [vmem:[#allocation3 + $0x48] sm:$0xff]
    %v6820 = vld [vmem:[#allocation3 + $0x50] sm:$0xff]
    %v6821 = vld [vmem:[#allocation3 + $0x58] sm:$0xff]
    %v6822 = vld [vmem:[#allocation3 + $0x60] sm:$0xff]
    %v6823 = vld [vmem:[#allocation3 + $0x68] sm:$0xff]
    %v6824 = vld [vmem:[#allocation3 + $0x70] sm:$0xff]
    %v6825 = vld [vmem:[#allocation3 + $0x78] sm:$0xff]
    %v6826 = vld [vmem:[#allocation3 + $0x80] sm:$0xff]
    %v6827 = vld [vmem:[#allocation3 + $0x88] sm:$0xff]
    %v6828 = vld [vmem:[#allocation3 + $0x90] sm:$0xff]
    %v6829 = vld [vmem:[#allocation3 + $0x98] sm:$0xff]
    %v6830 = vld [vmem:[#allocation3 + $0xa0] sm:$0xff]
    %v6831 = vld [vmem:[#allocation3 + $0xa8] sm:$0xff]
    %v6832 = vld [vmem:[#allocation3 + $0xb0] sm:$0xff]
    %v6833 = vld [vmem:[#allocation3 + $0xb8] sm:$0xff]
    %v6834 = vld [vmem:[#allocation3 + $0xc0] sm:$0xff]
    %v6835 = vld [vmem:[#allocation3 + $0xc8] sm:$0xff]
    %v6836 = vld [vmem:[#allocation3 + $0xd0] sm:$0xff]
    %v6837 = vld [vmem:[#allocation3 + $0xd8] sm:$0xff]
    %v6838 = vld [vmem:[#allocation3 + $0xe0] sm:$0xff]
    %v6839 = vld [vmem:[#allocation3 + $0xe8] sm:$0xff]
    %v6840 = vld [vmem:[#allocation3 + $0xf0] sm:$0xff]
    %v6841 = vld [vmem:[#allocation3 + $0xf8] sm:$0xff]
    %v6842 = vpack.c.bf16 %v6812, %v6810
    %v6843 = vpack.c.bf16 %v6813, %v6811
    %v6844 = vpack.c.bf16 %v6816, %v6814
    %v6845 = vpack.c.bf16 %v6817, %v6815
    %v6846 = vpack.c.bf16 %v6820, %v6818
    %v6847 = vpack.c.bf16 %v6821, %v6819
    %v6848 = vpack.c.bf16 %v6824, %v6822
    %v6849 = vpack.c.bf16 %v6825, %v6823
    %v6850 = vpack.c.bf16 %v6828, %v6826
    %v6851 = vpack.c.bf16 %v6829, %v6827
    %v6852 = vpack.c.bf16 %v6832, %v6830
    %v6853 = vpack.c.bf16 %v6833, %v6831
    %v6854 = vpack.c.bf16 %v6836, %v6834
    %v6855 = vpack.c.bf16 %v6837, %v6835
    %v6856 = vpack.c.bf16 %v6840, %v6838
    %v6857 = vpack.c.bf16 %v6841, %v6839
    %v6858 = vld [vmem:[#allocation13] sm:$0xff]
    %v6859 = vld [vmem:[#allocation13 + $0x8] sm:$0xff]
    %v6860 = vld [vmem:[#allocation13 + $0x10] sm:$0xff]
    %v6861 = vld [vmem:[#allocation13 + $0x18] sm:$0xff]
    %v6862 = vld [vmem:[#allocation13 + $0x20] sm:$0xff]
    %v6863 = vld [vmem:[#allocation13 + $0x28] sm:$0xff]
    %v6864 = vld [vmem:[#allocation13 + $0x30] sm:$0xff]
    %v6865 = vld [vmem:[#allocation13 + $0x38] sm:$0xff]
    %v6866 = vld [vmem:[#allocation13 + $0x40] sm:$0xff]
    %v6867 = vld [vmem:[#allocation13 + $0x48] sm:$0xff]
    %v6868 = vld [vmem:[#allocation13 + $0x50] sm:$0xff]
    %v6869 = vld [vmem:[#allocation13 + $0x58] sm:$0xff]
    %v6870 = vld [vmem:[#allocation13 + $0x60] sm:$0xff]
    %v6871 = vld [vmem:[#allocation13 + $0x68] sm:$0xff]
    %v6872 = vld [vmem:[#allocation13 + $0x70] sm:$0xff]
    %v6873 = vld [vmem:[#allocation13 + $0x78] sm:$0xff]
    %v6874 = vld [vmem:[#allocation13 + $0x80] sm:$0xff]
    %v6875 = vld [vmem:[#allocation13 + $0x88] sm:$0xff]
    %v6876 = vld [vmem:[#allocation13 + $0x90] sm:$0xff]
    %v6877 = vld [vmem:[#allocation13 + $0x98] sm:$0xff]
    %v6878 = vld [vmem:[#allocation13 + $0xa0] sm:$0xff]
    %v6879 = vld [vmem:[#allocation13 + $0xa8] sm:$0xff]
    %v6880 = vld [vmem:[#allocation13 + $0xb0] sm:$0xff]
    %v6881 = vld [vmem:[#allocation13 + $0xb8] sm:$0xff]
    %v6882 = vld [vmem:[#allocation13 + $0xc0] sm:$0xff]
    %v6883 = vld [vmem:[#allocation13 + $0xc8] sm:$0xff]
    %v6884 = vld [vmem:[#allocation13 + $0xd0] sm:$0xff]
    %v6885 = vld [vmem:[#allocation13 + $0xd8] sm:$0xff]
    %v6886 = vld [vmem:[#allocation13 + $0xe0] sm:$0xff]
    %v6887 = vld [vmem:[#allocation13 + $0xe8] sm:$0xff]
    %v6888 = vld [vmem:[#allocation13 + $0xf0] sm:$0xff]
    %v6889 = vld [vmem:[#allocation13 + $0xf8] sm:$0xff]
    %v6890 = vld [vmem:[%s6] sm:$0x3]
    %v6892 = vlaneseq
    %v6893 = vshrl.u32 %v6892, 7
    %v6894 = vsub.s32 0, %v6893
    %v6895 = vrot.slane %v6890, %v6894
    %v6896 = vlaneseq
    %v6897 = vshrl.u32 %v6896, 7
    %v6898 = vsub.s32 1, %v6897
    %v6899 = vrot.slane %v6890, %v6898
    %v6934 = vunpack.c.l.b16 %v6858
    %v6935 = vunpack.c.h.b16 %v6858
    %v6936 = vunpack.c.l.b16 %v6859
    %v6937 = vunpack.c.h.b16 %v6859
    %v6938 = vunpack.c.l.b16 %v6860
    %v6939 = vunpack.c.h.b16 %v6860
    %v6940 = vunpack.c.l.b16 %v6861
    %v6941 = vunpack.c.h.b16 %v6861
    %v6942 = vunpack.c.l.b16 %v6862
    %v6943 = vunpack.c.h.b16 %v6862
    %v6944 = vunpack.c.l.b16 %v6863
    %v6945 = vunpack.c.h.b16 %v6863
    %v6946 = vunpack.c.l.b16 %v6864
    %v6947 = vunpack.c.h.b16 %v6864
    %v6948 = vunpack.c.l.b16 %v6865
    %v6949 = vunpack.c.h.b16 %v6865
    %v6950 = vunpack.c.l.b16 %v6866
    %v6951 = vunpack.c.h.b16 %v6866
    %v6952 = vunpack.c.l.b16 %v6867
    %v6953 = vunpack.c.h.b16 %v6867
    %v6954 = vunpack.c.l.b16 %v6868
    %v6955 = vunpack.c.h.b16 %v6868
    %v6956 = vunpack.c.l.b16 %v6869
    %v6957 = vunpack.c.h.b16 %v6869
    %v6958 = vunpack.c.l.b16 %v6870
    %v6959 = vunpack.c.h.b16 %v6870
    %v6960 = vunpack.c.l.b16 %v6871
    %v6961 = vunpack.c.h.b16 %v6871
    %v6962 = vunpack.c.l.b16 %v6872
    %v6963 = vunpack.c.h.b16 %v6872
    %v6964 = vunpack.c.l.b16 %v6873
    %v6965 = vunpack.c.h.b16 %v6873
    %v6966 = vunpack.c.l.b16 %v6874
    %v6967 = vunpack.c.h.b16 %v6874
    %v6968 = vunpack.c.l.b16 %v6875
    %v6969 = vunpack.c.h.b16 %v6875
    %v6970 = vunpack.c.l.b16 %v6876
    %v6971 = vunpack.c.h.b16 %v6876
    %v6972 = vunpack.c.l.b16 %v6877
    %v6973 = vunpack.c.h.b16 %v6877
    %v6974 = vunpack.c.l.b16 %v6878
    %v6975 = vunpack.c.h.b16 %v6878
    %v6976 = vunpack.c.l.b16 %v6879
    %v6977 = vunpack.c.h.b16 %v6879
    %v6978 = vunpack.c.l.b16 %v6880
    %v6979 = vunpack.c.h.b16 %v6880
    %v6980 = vunpack.c.l.b16 %v6881
    %v6981 = vunpack.c.h.b16 %v6881
    %v6982 = vunpack.c.l.b16 %v6882
    %v6983 = vunpack.c.h.b16 %v6882
    %v6984 = vunpack.c.l.b16 %v6883
    %v6985 = vunpack.c.h.b16 %v6883
    %v6986 = vunpack.c.l.b16 %v6884
    %v6987 = vunpack.c.h.b16 %v6884
    %v6988 = vunpack.c.l.b16 %v6885
    %v6989 = vunpack.c.h.b16 %v6885
    %v6990 = vunpack.c.l.b16 %v6886
    %v6991 = vunpack.c.h.b16 %v6886
    %v6992 = vunpack.c.l.b16 %v6887
    %v6993 = vunpack.c.h.b16 %v6887
    %v6994 = vunpack.c.l.b16 %v6888
    %v6995 = vunpack.c.h.b16 %v6888
    %v6996 = vunpack.c.l.b16 %v6889
    %v6997 = vunpack.c.h.b16 %v6889
    %v6998 = vpack.c.b16 %v6936, %v6934
    %v6999 = vpack.c.b16 %v6937, %v6935
    %v7000 = vpack.c.b16 %v6940, %v6938
    %v7001 = vpack.c.b16 %v6941, %v6939
    %v7002 = vpack.c.b16 %v6944, %v6942
    %v7003 = vpack.c.b16 %v6945, %v6943
    %v7004 = vpack.c.b16 %v6948, %v6946
    %v7005 = vpack.c.b16 %v6949, %v6947
    %v7006 = vpack.c.b16 %v6952, %v6950
    %v7007 = vpack.c.b16 %v6953, %v6951
    %v7008 = vpack.c.b16 %v6956, %v6954
    %v7009 = vpack.c.b16 %v6957, %v6955
    %v7010 = vpack.c.b16 %v6960, %v6958
    %v7011 = vpack.c.b16 %v6961, %v6959
    %v7012 = vpack.c.b16 %v6964, %v6962
    %v7013 = vpack.c.b16 %v6965, %v6963
    %v7014 = vpack.c.b16 %v6968, %v6966
    %v7015 = vpack.c.b16 %v6969, %v6967
    %v7016 = vpack.c.b16 %v6972, %v6970
    %v7017 = vpack.c.b16 %v6973, %v6971
    %v7018 = vpack.c.b16 %v6976, %v6974
    %v7019 = vpack.c.b16 %v6977, %v6975
    %v7020 = vpack.c.b16 %v6980, %v6978
    %v7021 = vpack.c.b16 %v6981, %v6979
    %v7022 = vpack.c.b16 %v6984, %v6982
    %v7023 = vpack.c.b16 %v6985, %v6983
    %v7024 = vpack.c.b16 %v6988, %v6986
    %v7025 = vpack.c.b16 %v6989, %v6987
    %v7026 = vpack.c.b16 %v6992, %v6990
    %v7027 = vpack.c.b16 %v6993, %v6991
    %v7028 = vpack.c.b16 %v6996, %v6994
    %v7029 = vpack.c.b16 %v6997, %v6995
    %7062 = vmatprep.subr.bf16.mxu0 %v6999
    %7063 = vmatpush1.bf16.msra.mxu0 %v6998
    %7064 = vmatprep.subr.bf16.mxu0 %v7001
    %7065 = vmatpush1.bf16.msra.mxu0 %v7000
    %7066 = vmatprep.subr.bf16.mxu0 %v7003
    %7067 = vmatpush1.bf16.msra.mxu0 %v7002
    %7068 = vmatprep.subr.bf16.mxu0 %v7005
    %7069 = vmatpush1.bf16.msra.mxu0 %v7004
    %7070 = vmatprep.subr.bf16.mxu0 %v7007
    %7071 = vmatpush1.bf16.msra.mxu0 %v7006
    %7072 = vmatprep.subr.bf16.mxu0 %v7009
    %7073 = vmatpush1.bf16.msra.mxu0 %v7008
    %7074 = vmatprep.subr.bf16.mxu0 %v7011
    %7075 = vmatpush1.bf16.msra.mxu0 %v7010
    %7076 = vmatprep.subr.bf16.mxu0 %v7013
    %7077 = vmatpush1.bf16.msra.mxu0 %v7012
    %7078 = vmatprep.subr.bf16.mxu0 %v7015
    %7079 = vmatpush1.bf16.msra.mxu0 %v7014
    %7080 = vmatprep.subr.bf16.mxu0 %v7017
    %7081 = vmatpush1.bf16.msra.mxu0 %v7016
    %7082 = vmatprep.subr.bf16.mxu0 %v7019
    %7083 = vmatpush1.bf16.msra.mxu0 %v7018
    %7084 = vmatprep.subr.bf16.mxu0 %v7021
    %7085 = vmatpush1.bf16.msra.mxu0 %v7020
    %7086 = vmatprep.subr.bf16.mxu0 %v7023
    %7087 = vmatpush1.bf16.msra.mxu0 %v7022
    %7088 = vmatprep.subr.bf16.mxu0 %v7025
    %7089 = vmatpush1.bf16.msra.mxu0 %v7024
    %7090 = vmatprep.subr.bf16.mxu0 %v7027
    %7091 = vmatpush1.bf16.msra.mxu0 %v7026
    %7092 = vmatprep.subr.bf16.mxu0 %v7029
    %7093 = vmatpush1.bf16.msra.mxu0 %v7028
    %7094 = vmatprep.mubr.bf16.mxu0 %v6843
    %7095 = vmatmul.mubr.bf16.gmra.mrb[0].mxu0 %v6842
    %v7096 = vpop.f32.mrb[0].mxu0
    %v7097 = vadd.f32 %v6895, %v7096
    %v7098 = vpop.f32.mrb[0].mxu0
    %v7099 = vadd.f32 %v6899, %v7098
    %v7100 = vpop.f32.mrb[0].mxu0
    %v7101 = vadd.f32 %v6895, %v7100
    %v7102 = vpop.f32.mrb[0].mxu0
    %v7103 = vadd.f32 %v6899, %v7102
    %7104 = vmatprep.mubr.bf16.mxu0 %v6845
    %7105 = vmatmul.mubr.bf16.gmra.mrb[0].mxu0 %v6844
    %v7106 = vpop.f32.mrb[0].mxu0
    %v7107 = vadd.f32 %v6895, %v7106
    %v7108 = vpop.f32.mrb[0].mxu0
    %v7109 = vadd.f32 %v6899, %v7108
    %v7110 = vpop.f32.mrb[0].mxu0
    %v7111 = vadd.f32 %v6895, %v7110
    %v7112 = vpop.f32.mrb[0].mxu0
    %v7113 = vadd.f32 %v6899, %v7112
    %7114 = vmatprep.mubr.bf16.mxu0 %v6847
    %7115 = vmatmul.mubr.bf16.gmra.mrb[0].mxu0 %v6846
    %v7116 = vpop.f32.mrb[0].mxu0
    %v7117 = vadd.f32 %v6895, %v7116
    %v7118 = vpop.f32.mrb[0].mxu0
    %v7119 = vadd.f32 %v6899, %v7118
    %v7120 = vpop.f32.mrb[0].mxu0
    %v7121 = vadd.f32 %v6895, %v7120
    %v7122 = vpop.f32.mrb[0].mxu0
    %v7123 = vadd.f32 %v6899, %v7122
    %7124 = vmatprep.mubr.bf16.mxu0 %v6849
    %7125 = vmatmul.mubr.bf16.gmra.mrb[0].mxu0 %v6848
    %v7126 = vpop.f32.mrb[0].mxu0
    %v7127 = vadd.f32 %v6895, %v7126
    %v7128 = vpop.f32.mrb[0].mxu0
    %v7129 = vadd.f32 %v6899, %v7128
    %v7130 = vpop.f32.mrb[0].mxu0
    %v7131 = vadd.f32 %v6895, %v7130
    %v7132 = vpop.f32.mrb[0].mxu0
    %v7133 = vadd.f32 %v6899, %v7132
    %7134 = vmatprep.mubr.bf16.mxu0 %v6851
    %7135 = vmatmul.mubr.bf16.gmra.mrb[0].mxu0 %v6850
    %v7136 = vpop.f32.mrb[0].mxu0
    %v7137 = vadd.f32 %v6895, %v7136
    %v7138 = vpop.f32.mrb[0].mxu0
    %v7139 = vadd.f32 %v6899, %v7138
    %v7140 = vpop.f32.mrb[0].mxu0
    %v7141 = vadd.f32 %v6895, %v7140
    %v7142 = vpop.f32.mrb[0].mxu0
    %v7143 = vadd.f32 %v6899, %v7142
    %7144 = vmatprep.mubr.bf16.mxu0 %v6853
    %7145 = vmatmul.mubr.bf16.gmra.mrb[0].mxu0 %v6852
    %v7146 = vpop.f32.mrb[0].mxu0
    %v7147 = vadd.f32 %v6895, %v7146
    %v7148 = vpop.f32.mrb[0].mxu0
    %v7149 = vadd.f32 %v6899, %v7148
    %v7150 = vpop.f32.mrb[0].mxu0
    %v7151 = vadd.f32 %v6895, %v7150
    %v7152 = vpop.f32.mrb[0].mxu0
    %v7153 = vadd.f32 %v6899, %v7152
    %7154 = vmatprep.mubr.bf16.mxu0 %v6855
    %7155 = vmatmul.mubr.bf16.gmra.mrb[0].mxu0 %v6854
    %v7156 = vpop.f32.mrb[0].mxu0
    %v7157 = vadd.f32 %v6895, %v7156
    %v7158 = vpop.f32.mrb[0].mxu0
    %v7159 = vadd.f32 %v6899, %v7158
    %v7160 = vpop.f32.mrb[0].mxu0
    %v7161 = vadd.f32 %v6895, %v7160
    %v7162 = vpop.f32.mrb[0].mxu0
    %v7163 = vadd.f32 %v6899, %v7162
    %7164 = vmatprep.mubr.bf16.mxu0 %v6857
    %7165 = vmatmul.mubr.bf16.gmra.mrb[0].mxu0 %v6856
    %v7166 = vpop.f32.mrb[0].mxu0
    %v7167 = vadd.f32 %v6895, %v7166
    %v7168 = vpop.f32.mrb[0].mxu0
    %v7169 = vadd.f32 %v6899, %v7168
    %v7170 = vpop.f32.mrb[0].mxu0
    %v7171 = vadd.f32 %v6895, %v7170
    %v7172 = vpop.f32.mrb[0].mxu0
    %v7173 = vadd.f32 %v6899, %v7172
    %7174 = vdwg.mxu0
    %v7175 = vxor.u32 %v7097, 2147483648
    %v7176 = vxor.u32 %v7099, 2147483648
    %v7177 = vxor.u32 %v7101, 2147483648
    %v7178 = vxor.u32 %v7103, 2147483648
    %v7179 = vxor.u32 %v7107, 2147483648
    %v7180 = vxor.u32 %v7109, 2147483648
    %v7181 = vxor.u32 %v7111, 2147483648
    %v7182 = vxor.u32 %v7113, 2147483648
    %v7183 = vxor.u32 %v7117, 2147483648
    %v7184 = vxor.u32 %v7119, 2147483648
    %v7185 = vxor.u32 %v7121, 2147483648
    %v7186 = vxor.u32 %v7123, 2147483648
    %v7187 = vxor.u32 %v7127, 2147483648
    %v7188 = vxor.u32 %v7129, 2147483648
    %v7189 = vxor.u32 %v7131, 2147483648
    %v7190 = vxor.u32 %v7133, 2147483648
    %v7191 = vxor.u32 %v7137, 2147483648
    %v7192 = vxor.u32 %v7139, 2147483648
    %v7193 = vxor.u32 %v7141, 2147483648
    %v7194 = vxor.u32 %v7143, 2147483648
    %v7195 = vxor.u32 %v7147, 2147483648
    %v7196 = vxor.u32 %v7149, 2147483648
    %v7197 = vxor.u32 %v7151, 2147483648
    %v7198 = vxor.u32 %v7153, 2147483648
    %v7199 = vxor.u32 %v7157, 2147483648
    %v7200 = vxor.u32 %v7159, 2147483648
    %v7201 = vxor.u32 %v7161, 2147483648
    %v7202 = vxor.u32 %v7163, 2147483648
    %v7203 = vxor.u32 %v7167, 2147483648
    %v7204 = vxor.u32 %v7169, 2147483648
    %v7205 = vxor.u32 %v7171, 2147483648
    %v7206 = vxor.u32 %v7173, 2147483648
    %v7207 = vmul.f32 %v7175, 1.442695
    %v7208 = vpow.pop %v7207
    %v7209 = vmul.f32 %v7176, 1.442695
    %v7210 = vpow.pop %v7209
    %v7211 = vmul.f32 %v7177, 1.442695
    %v7212 = vpow.pop %v7211
    %v7213 = vmul.f32 %v7178, 1.442695
    %v7214 = vpow.pop %v7213
    %v7215 = vmul.f32 %v7179, 1.442695
    %v7216 = vpow.pop %v7215
    %v7217 = vmul.f32 %v7180, 1.442695
    %v7218 = vpow.pop %v7217
    %v7219 = vmul.f32 %v7181, 1.442695
    %v7220 = vpow.pop %v7219
    %v7221 = vmul.f32 %v7182, 1.442695
    %v7222 = vpow.pop %v7221
    %v7223 = vmul.f32 %v7183, 1.442695
    %v7224 = vpow.pop %v7223
    %v7225 = vmul.f32 %v7184, 1.442695
    %v7226 = vpow.pop %v7225
    %v7227 = vmul.f32 %v7185, 1.442695
    %v7228 = vpow.pop %v7227
    %v7229 = vmul.f32 %v7186, 1.442695
    %v7230 = vpow.pop %v7229
    %v7231 = vmul.f32 %v7187, 1.442695
    %v7232 = vpow.pop %v7231
    %v7233 = vmul.f32 %v7188, 1.442695
    %v7234 = vpow.pop %v7233
    %v7235 = vmul.f32 %v7189, 1.442695
    %v7236 = vpow.pop %v7235
    %v7237 = vmul.f32 %v7190, 1.442695
    %v7238 = vpow.pop %v7237
    %v7239 = vmul.f32 %v7191, 1.442695
    %v7240 = vpow.pop %v7239
    %v7241 = vmul.f32 %v7192, 1.442695
    %v7242 = vpow.pop %v7241
    %v7243 = vmul.f32 %v7193, 1.442695
    %v7244 = vpow.pop %v7243
    %v7245 = vmul.f32 %v7194, 1.442695
    %v7246 = vpow.pop %v7245
    %v7247 = vmul.f32 %v7195, 1.442695
    %v7248 = vpow.pop %v7247
    %v7249 = vmul.f32 %v7196, 1.442695
    %v7250 = vpow.pop %v7249
    %v7251 = vmul.f32 %v7197, 1.442695
    %v7252 = vpow.pop %v7251
    %v7253 = vmul.f32 %v7198, 1.442695
    %v7254 = vpow.pop %v7253
    %v7255 = vmul.f32 %v7199, 1.442695
    %v7256 = vpow.pop %v7255
    %v7257 = vmul.f32 %v7200, 1.442695
    %v7258 = vpow.pop %v7257
    %v7259 = vmul.f32 %v7201, 1.442695
    %v7260 = vpow.pop %v7259
    %v7261 = vmul.f32 %v7202, 1.442695
    %v7262 = vpow.pop %v7261
    %v7263 = vmul.f32 %v7203, 1.442695
    %v7264 = vpow.pop %v7263
    %v7265 = vmul.f32 %v7204, 1.442695
    %v7266 = vpow.pop %v7265
    %v7267 = vmul.f32 %v7205, 1.442695
    %v7268 = vpow.pop %v7267
    %v7269 = vmul.f32 %v7206, 1.442695
    %v7270 = vpow.pop %v7269
    %v7271 = vadd.f32 %v7208, 1.0
    %v7272 = vadd.f32 %v7210, 1.0
    %v7273 = vadd.f32 %v7212, 1.0
    %v7274 = vadd.f32 %v7214, 1.0
    %v7275 = vadd.f32 %v7216, 1.0
    %v7276 = vadd.f32 %v7218, 1.0
    %v7277 = vadd.f32 %v7220, 1.0
    %v7278 = vadd.f32 %v7222, 1.0
    %v7279 = vadd.f32 %v7224, 1.0
    %v7280 = vadd.f32 %v7226, 1.0
    %v7281 = vadd.f32 %v7228, 1.0
    %v7282 = vadd.f32 %v7230, 1.0
    %v7283 = vadd.f32 %v7232, 1.0
    %v7284 = vadd.f32 %v7234, 1.0
    %v7285 = vadd.f32 %v7236, 1.0
    %v7286 = vadd.f32 %v7238, 1.0
    %v7287 = vadd.f32 %v7240, 1.0
    %v7288 = vadd.f32 %v7242, 1.0
    %v7289 = vadd.f32 %v7244, 1.0
    %v7290 = vadd.f32 %v7246, 1.0
    %v7291 = vadd.f32 %v7248, 1.0
    %v7292 = vadd.f32 %v7250, 1.0
    %v7293 = vadd.f32 %v7252, 1.0
    %v7294 = vadd.f32 %v7254, 1.0
    %v7295 = vadd.f32 %v7256, 1.0
    %v7296 = vadd.f32 %v7258, 1.0
    %v7297 = vadd.f32 %v7260, 1.0
    %v7298 = vadd.f32 %v7262, 1.0
    %v7299 = vadd.f32 %v7264, 1.0
    %v7300 = vadd.f32 %v7266, 1.0
    %v7301 = vadd.f32 %v7268, 1.0
    %v7302 = vadd.f32 %v7270, 1.0
    %v7303 = vrcp.pop %v7271
    %v7304 = vmul.f32 1.0, %v7303
    %v7305 = vrcp.pop %v7272
    %v7306 = vmul.f32 1.0, %v7305
    %v7307 = vrcp.pop %v7273
    %v7308 = vmul.f32 1.0, %v7307
    %v7309 = vrcp.pop %v7274
    %v7310 = vmul.f32 1.0, %v7309
    %v7311 = vrcp.pop %v7275
    %v7312 = vmul.f32 1.0, %v7311
    %v7313 = vrcp.pop %v7276
    %v7314 = vmul.f32 1.0, %v7313
    %v7315 = vrcp.pop %v7277
    %v7316 = vmul.f32 1.0, %v7315
    %v7317 = vrcp.pop %v7278
    %v7318 = vmul.f32 1.0, %v7317
    %v7319 = vrcp.pop %v7279
    %v7320 = vmul.f32 1.0, %v7319
    %v7321 = vrcp.pop %v7280
    %v7322 = vmul.f32 1.0, %v7321
    %v7323 = vrcp.pop %v7281
    %v7324 = vmul.f32 1.0, %v7323
    %v7325 = vrcp.pop %v7282
    %v7326 = vmul.f32 1.0, %v7325
    %v7327 = vrcp.pop %v7283
    %v7328 = vmul.f32 1.0, %v7327
    %v7329 = vrcp.pop %v7284
    %v7330 = vmul.f32 1.0, %v7329
    %v7331 = vrcp.pop %v7285
    %v7332 = vmul.f32 1.0, %v7331
    %v7333 = vrcp.pop %v7286
    %v7334 = vmul.f32 1.0, %v7333
    %v7335 = vrcp.pop %v7287
    %v7336 = vmul.f32 1.0, %v7335
    %v7337 = vrcp.pop %v7288
    %v7338 = vmul.f32 1.0, %v7337
    %v7339 = vrcp.pop %v7289
    %v7340 = vmul.f32 1.0, %v7339
    %v7341 = vrcp.pop %v7290
    %v7342 = vmul.f32 1.0, %v7341
    %v7343 = vrcp.pop %v7291
    %v7344 = vmul.f32 1.0, %v7343
    %v7345 = vrcp.pop %v7292
    %v7346 = vmul.f32 1.0, %v7345
    %v7347 = vrcp.pop %v7293
    %v7348 = vmul.f32 1.0, %v7347
    %v7349 = vrcp.pop %v7294
    %v7350 = vmul.f32 1.0, %v7349
    %v7351 = vrcp.pop %v7295
    %v7352 = vmul.f32 1.0, %v7351
    %v7353 = vrcp.pop %v7296
    %v7354 = vmul.f32 1.0, %v7353
    %v7355 = vrcp.pop %v7297
    %v7356 = vmul.f32 1.0, %v7355
    %v7357 = vrcp.pop %v7298
    %v7358 = vmul.f32 1.0, %v7357
    %v7359 = vrcp.pop %v7299
    %v7360 = vmul.f32 1.0, %v7359
    %v7361 = vrcp.pop %v7300
    %v7362 = vmul.f32 1.0, %v7361
    %v7363 = vrcp.pop %v7301
    %v7364 = vmul.f32 1.0, %v7363
    %v7365 = vrcp.pop %v7302
    %v7366 = vmul.f32 1.0, %v7365
    %v7367 = vmax.f32 %v7097, 0.0
    %v7368 = vmax.f32 %v7099, 0.0
    %v7369 = vmax.f32 %v7101, 0.0
    %v7370 = vmax.f32 %v7103, 0.0
    %v7371 = vmax.f32 %v7107, 0.0
    %v7372 = vmax.f32 %v7109, 0.0
    %v7373 = vmax.f32 %v7111, 0.0
    %v7374 = vmax.f32 %v7113, 0.0
    %v7375 = vmax.f32 %v7117, 0.0
    %v7376 = vmax.f32 %v7119, 0.0
    %v7377 = vmax.f32 %v7121, 0.0
    %v7378 = vmax.f32 %v7123, 0.0
    %v7379 = vmax.f32 %v7127, 0.0
    %v7380 = vmax.f32 %v7129, 0.0
    %v7381 = vmax.f32 %v7131, 0.0
    %v7382 = vmax.f32 %v7133, 0.0
    %v7383 = vmax.f32 %v7137, 0.0
    %v7384 = vmax.f32 %v7139, 0.0
    %v7385 = vmax.f32 %v7141, 0.0
    %v7386 = vmax.f32 %v7143, 0.0
    %v7387 = vmax.f32 %v7147, 0.0
    %v7388 = vmax.f32 %v7149, 0.0
    %v7389 = vmax.f32 %v7151, 0.0
    %v7390 = vmax.f32 %v7153, 0.0
    %v7391 = vmax.f32 %v7157, 0.0
    %v7392 = vmax.f32 %v7159, 0.0
    %v7393 = vmax.f32 %v7161, 0.0
    %v7394 = vmax.f32 %v7163, 0.0
    %v7395 = vmax.f32 %v7167, 0.0
    %v7396 = vmax.f32 %v7169, 0.0
    %v7397 = vmax.f32 %v7171, 0.0
    %v7398 = vmax.f32 %v7173, 0.0
    %v7399 = vmul.f32 %v7304, %v7367
    %v7400 = vmul.f32 %v7306, %v7368
    %v7401 = vmul.f32 %v7308, %v7369
    %v7402 = vmul.f32 %v7310, %v7370
    %v7403 = vmul.f32 %v7312, %v7371
    %v7404 = vmul.f32 %v7314, %v7372
    %v7405 = vmul.f32 %v7316, %v7373
    %v7406 = vmul.f32 %v7318, %v7374
    %v7407 = vmul.f32 %v7320, %v7375
    %v7408 = vmul.f32 %v7322, %v7376
    %v7409 = vmul.f32 %v7324, %v7377
    %v7410 = vmul.f32 %v7326, %v7378
    %v7411 = vmul.f32 %v7328, %v7379
    %v7412 = vmul.f32 %v7330, %v7380
    %v7413 = vmul.f32 %v7332, %v7381
    %v7414 = vmul.f32 %v7334, %v7382
    %v7415 = vmul.f32 %v7336, %v7383
    %v7416 = vmul.f32 %v7338, %v7384
    %v7417 = vmul.f32 %v7340, %v7385
    %v7418 = vmul.f32 %v7342, %v7386
    %v7419 = vmul.f32 %v7344, %v7387
    %v7420 = vmul.f32 %v7346, %v7388
    %v7421 = vmul.f32 %v7348, %v7389
    %v7422 = vmul.f32 %v7350, %v7390
    %v7423 = vmul.f32 %v7352, %v7391
    %v7424 = vmul.f32 %v7354, %v7392
    %v7425 = vmul.f32 %v7356, %v7393
    %v7426 = vmul.f32 %v7358, %v7394
    %v7427 = vmul.f32 %v7360, %v7395
    %v7428 = vmul.f32 %v7362, %v7396
    %v7429 = vmul.f32 %v7364, %v7397
    %v7430 = vmul.f32 %v7366, %v7398
    %v7431 = vsub.f32 1.0, %v7304
    %v7432 = vsub.f32 1.0, %v7306
    %v7433 = vsub.f32 1.0, %v7308
    %v7434 = vsub.f32 1.0, %v7310
    %v7435 = vsub.f32 1.0, %v7312
    %v7436 = vsub.f32 1.0, %v7314
    %v7437 = vsub.f32 1.0, %v7316
    %v7438 = vsub.f32 1.0, %v7318
    %v7439 = vsub.f32 1.0, %v7320
    %v7440 = vsub.f32 1.0, %v7322
    %v7441 = vsub.f32 1.0, %v7324
    %v7442 = vsub.f32 1.0, %v7326
    %v7443 = vsub.f32 1.0, %v7328
    %v7444 = vsub.f32 1.0, %v7330
    %v7445 = vsub.f32 1.0, %v7332
    %v7446 = vsub.f32 1.0, %v7334
    %v7447 = vsub.f32 1.0, %v7336
    %v7448 = vsub.f32 1.0, %v7338
    %v7449 = vsub.f32 1.0, %v7340
    %v7450 = vsub.f32 1.0, %v7342
    %v7451 = vsub.f32 1.0, %v7344
    %v7452 = vsub.f32 1.0, %v7346
    %v7453 = vsub.f32 1.0, %v7348
    %v7454 = vsub.f32 1.0, %v7350
    %v7455 = vsub.f32 1.0, %v7352
    %v7456 = vsub.f32 1.0, %v7354
    %v7457 = vsub.f32 1.0, %v7356
    %v7458 = vsub.f32 1.0, %v7358
    %v7459 = vsub.f32 1.0, %v7360
    %v7460 = vsub.f32 1.0, %v7362
    %v7461 = vsub.f32 1.0, %v7364
    %v7462 = vsub.f32 1.0, %v7366
    %v7463 = vmul.f32 %v7431, %v6810
    %v7464 = vmul.f32 %v7432, %v6811
    %v7465 = vmul.f32 %v7433, %v6812
    %v7466 = vmul.f32 %v7434, %v6813
    %v7467 = vmul.f32 %v7435, %v6814
    %v7468 = vmul.f32 %v7436, %v6815
    %v7469 = vmul.f32 %v7437, %v6816
    %v7470 = vmul.f32 %v7438, %v6817
    %v7471 = vmul.f32 %v7439, %v6818
    %v7472 = vmul.f32 %v7440, %v6819
    %v7473 = vmul.f32 %v7441, %v6820
    %v7474 = vmul.f32 %v7442, %v6821
    %v7475 = vmul.f32 %v7443, %v6822
    %v7476 = vmul.f32 %v7444, %v6823
    %v7477 = vmul.f32 %v7445, %v6824
    %v7478 = vmul.f32 %v7446, %v6825
    %v7479 = vmul.f32 %v7447, %v6826
    %v7480 = vmul.f32 %v7448, %v6827
    %v7481 = vmul.f32 %v7449, %v6828
    %v7482 = vmul.f32 %v7450, %v6829
    %v7483 = vmul.f32 %v7451, %v6830
    %v7484 = vmul.f32 %v7452, %v6831
    %v7485 = vmul.f32 %v7453, %v6832
    %v7486 = vmul.f32 %v7454, %v6833
    %v7487 = vmul.f32 %v7455, %v6834
    %v7488 = vmul.f32 %v7456, %v6835
    %v7489 = vmul.f32 %v7457, %v6836
    %v7490 = vmul.f32 %v7458, %v6837
    %v7491 = vmul.f32 %v7459, %v6838
    %v7492 = vmul.f32 %v7460, %v6839
    %v7493 = vmul.f32 %v7461, %v6840
    %v7494 = vmul.f32 %v7462, %v6841
    %v7495 = vadd.f32 %v7399, %v7463
    %v7496 = vadd.f32 %v7400, %v7464
    %v7497 = vadd.f32 %v7401, %v7465
    %v7498 = vadd.f32 %v7402, %v7466
    %v7499 = vadd.f32 %v7403, %v7467
    %v7500 = vadd.f32 %v7404, %v7468
    %v7501 = vadd.f32 %v7405, %v7469
    %v7502 = vadd.f32 %v7406, %v7470
    %v7503 = vadd.f32 %v7407, %v7471
    %v7504 = vadd.f32 %v7408, %v7472
    %v7505 = vadd.f32 %v7409, %v7473
    %v7506 = vadd.f32 %v7410, %v7474
    %v7507 = vadd.f32 %v7411, %v7475
    %v7508 = vadd.f32 %v7412, %v7476
    %v7509 = vadd.f32 %v7413, %v7477
    %v7510 = vadd.f32 %v7414, %v7478
    %v7511 = vadd.f32 %v7415, %v7479
    %v7512 = vadd.f32 %v7416, %v7480
    %v7513 = vadd.f32 %v7417, %v7481
    %v7514 = vadd.f32 %v7418, %v7482
    %v7515 = vadd.f32 %v7419, %v7483
    %v7516 = vadd.f32 %v7420, %v7484
    %v7517 = vadd.f32 %v7421, %v7485
    %v7518 = vadd.f32 %v7422, %v7486
    %v7519 = vadd.f32 %v7423, %v7487
    %v7520 = vadd.f32 %v7424, %v7488
    %v7521 = vadd.f32 %v7425, %v7489
    %v7522 = vadd.f32 %v7426, %v7490
    %v7523 = vadd.f32 %v7427, %v7491
    %v7524 = vadd.f32 %v7428, %v7492
    %v7525 = vadd.f32 %v7429, %v7493
    %v7526 = vadd.f32 %v7430, %v7494
    %v7527 = vpack.c.bf16 %v7497, %v7495
    %v7528 = vpack.c.bf16 %v7498, %v7496
    %v7529 = vpack.c.bf16 %v7501, %v7499
    %v7530 = vpack.c.bf16 %v7502, %v7500
    %v7531 = vpack.c.bf16 %v7505, %v7503
    %v7532 = vpack.c.bf16 %v7506, %v7504
    %v7533 = vpack.c.bf16 %v7509, %v7507
    %v7534 = vpack.c.bf16 %v7510, %v7508
    %v7535 = vpack.c.bf16 %v7513, %v7511
    %v7536 = vpack.c.bf16 %v7514, %v7512
    %v7537 = vpack.c.bf16 %v7517, %v7515
    %v7538 = vpack.c.bf16 %v7518, %v7516
    %v7539 = vpack.c.bf16 %v7521, %v7519
    %v7540 = vpack.c.bf16 %v7522, %v7520
    %v7541 = vpack.c.bf16 %v7525, %v7523
    %v7542 = vpack.c.bf16 %v7526, %v7524
    %v7543 = vld [vmem:[#allocation15] sm:$0xf]
    %v7544 = vld [vmem:[#allocation15 + $0x4] sm:$0xf]
    %v7545 = vld [vmem:[#allocation15 + $0x8] sm:$0xf]
    %v7546 = vld [vmem:[#allocation15 + $0xc] sm:$0xf]
    %v7547 = vld [vmem:[#allocation15 + $0x10] sm:$0xf]
    %v7548 = vld [vmem:[#allocation15 + $0x14] sm:$0xf]
    %v7549 = vld [vmem:[#allocation15 + $0x18] sm:$0xf]
    %v7550 = vld [vmem:[#allocation15 + $0x1c] sm:$0xf]
    %v7551 = vld [vmem:[#allocation15 + $0x20] sm:$0xf]
    %v7552 = vld [vmem:[#allocation15 + $0x24] sm:$0xf]
    %v7553 = vld [vmem:[#allocation15 + $0x28] sm:$0xf]
    %v7554 = vld [vmem:[#allocation15 + $0x2c] sm:$0xf]
    %v7555 = vld [vmem:[#allocation15 + $0x30] sm:$0xf]
    %v7556 = vld [vmem:[#allocation15 + $0x34] sm:$0xf]
    %v7557 = vld [vmem:[#allocation15 + $0x38] sm:$0xf]
    %v7558 = vld [vmem:[#allocation15 + $0x3c] sm:$0xf]
    %v7559 = vld [vmem:[#allocation15 + $0x40] sm:$0xf]
    %v7560 = vld [vmem:[#allocation15 + $0x44] sm:$0xf]
    %v7561 = vld [vmem:[#allocation15 + $0x48] sm:$0xf]
    %v7562 = vld [vmem:[#allocation15 + $0x4c] sm:$0xf]
    %v7563 = vld [vmem:[#allocation15 + $0x50] sm:$0xf]
    %v7564 = vld [vmem:[#allocation15 + $0x54] sm:$0xf]
    %v7565 = vld [vmem:[#allocation15 + $0x58] sm:$0xf]
    %v7566 = vld [vmem:[#allocation15 + $0x5c] sm:$0xf]
    %v7567 = vld [vmem:[#allocation15 + $0x60] sm:$0xf]
    %v7568 = vld [vmem:[#allocation15 + $0x64] sm:$0xf]
    %v7569 = vld [vmem:[#allocation15 + $0x68] sm:$0xf]
    %v7570 = vld [vmem:[#allocation15 + $0x6c] sm:$0xf]
    %v7571 = vld [vmem:[#allocation15 + $0x70] sm:$0xf]
    %v7572 = vld [vmem:[#allocation15 + $0x74] sm:$0xf]
    %v7573 = vld [vmem:[#allocation15 + $0x78] sm:$0xf]
    %v7574 = vld [vmem:[#allocation15 + $0x7c] sm:$0xf]
    %v7575 = vld [vmem:[%s8] sm:$0x1]
    %v7577 = vlaneseq
    %v7578 = vshrl.u32 %v7577, 7
    %v7579 = vsub.s32 0, %v7578
    %v7580 = vrot.slane %v7575, %v7579
    %v7614 = vunpack.c.l.b16 %v7543
    %v7615 = vunpack.c.l.b16 %v7544
    %v7616 = vunpack.c.l.b16 %v7545
    %v7617 = vunpack.c.l.b16 %v7546
    %v7618 = vunpack.c.l.b16 %v7547
    %v7619 = vunpack.c.l.b16 %v7548
    %v7620 = vunpack.c.l.b16 %v7549
    %v7621 = vunpack.c.l.b16 %v7550
    %v7622 = vunpack.c.l.b16 %v7551
    %v7623 = vunpack.c.l.b16 %v7552
    %v7624 = vunpack.c.l.b16 %v7553
    %v7625 = vunpack.c.l.b16 %v7554
    %v7626 = vunpack.c.l.b16 %v7555
    %v7627 = vunpack.c.l.b16 %v7556
    %v7628 = vunpack.c.l.b16 %v7557
    %v7629 = vunpack.c.l.b16 %v7558
    %v7630 = vunpack.c.l.b16 %v7559
    %v7631 = vunpack.c.l.b16 %v7560
    %v7632 = vunpack.c.l.b16 %v7561
    %v7633 = vunpack.c.l.b16 %v7562
    %v7634 = vunpack.c.l.b16 %v7563
    %v7635 = vunpack.c.l.b16 %v7564
    %v7636 = vunpack.c.l.b16 %v7565
    %v7637 = vunpack.c.l.b16 %v7566
    %v7638 = vunpack.c.l.b16 %v7567
    %v7639 = vunpack.c.l.b16 %v7568
    %v7640 = vunpack.c.l.b16 %v7569
    %v7641 = vunpack.c.l.b16 %v7570
    %v7642 = vunpack.c.l.b16 %v7571
    %v7643 = vunpack.c.l.b16 %v7572
    %v7644 = vunpack.c.l.b16 %v7573
    %v7645 = vunpack.c.l.b16 %v7574
    %v7646 = vpack.c.b16 %v7615, %v7614
    %v7647 = vpack.c.b16 %v7617, %v7616
    %v7648 = vpack.c.b16 %v7619, %v7618
    %v7649 = vpack.c.b16 %v7621, %v7620
    %v7650 = vpack.c.b16 %v7623, %v7622
    %v7651 = vpack.c.b16 %v7625, %v7624
    %v7652 = vpack.c.b16 %v7627, %v7626
    %v7653 = vpack.c.b16 %v7629, %v7628
    %v7654 = vpack.c.b16 %v7631, %v7630
    %v7655 = vpack.c.b16 %v7633, %v7632
    %v7656 = vpack.c.b16 %v7635, %v7634
    %v7657 = vpack.c.b16 %v7637, %v7636
    %v7658 = vpack.c.b16 %v7639, %v7638
    %v7659 = vpack.c.b16 %v7641, %v7640
    %v7660 = vpack.c.b16 %v7643, %v7642
    %v7661 = vpack.c.b16 %v7645, %v7644
    %7678 = vmatprep.subr.bf16.mxu0 0
    %7679 = vmatpush1.bf16.msra.mxu0 %v7646
    %7680 = vmatprep.subr.bf16.mxu0 0
    %7681 = vmatpush1.bf16.msra.mxu0 %v7647
    %7682 = vmatprep.subr.bf16.mxu0 0
    %7683 = vmatpush1.bf16.msra.mxu0 %v7648
    %7684 = vmatprep.subr.bf16.mxu0 0
    %7685 = vmatpush1.bf16.msra.mxu0 %v7649
    %7686 = vmatprep.subr.bf16.mxu0 0
    %7687 = vmatpush1.bf16.msra.mxu0 %v7650
    %7688 = vmatprep.subr.bf16.mxu0 0
    %7689 = vmatpush1.bf16.msra.mxu0 %v7651
    %7690 = vmatprep.subr.bf16.mxu0 0
    %7691 = vmatpush1.bf16.msra.mxu0 %v7652
    %7692 = vmatprep.subr.bf16.mxu0 0
    %7693 = vmatpush1.bf16.msra.mxu0 %v7653
    %7694 = vmatprep.subr.bf16.mxu0 0
    %7695 = vmatpush1.bf16.msra.mxu0 %v7654
    %7696 = vmatprep.subr.bf16.mxu0 0
    %7697 = vmatpush1.bf16.msra.mxu0 %v7655
    %7698 = vmatprep.subr.bf16.mxu0 0
    %7699 = vmatpush1.bf16.msra.mxu0 %v7656
    %7700 = vmatprep.subr.bf16.mxu0 0
    %7701 = vmatpush1.bf16.msra.mxu0 %v7657
    %7702 = vmatprep.subr.bf16.mxu0 0
    %7703 = vmatpush1.bf16.msra.mxu0 %v7658
    %7704 = vmatprep.subr.bf16.mxu0 0
    %7705 = vmatpush1.bf16.msra.mxu0 %v7659
    %7706 = vmatprep.subr.bf16.mxu0 0
    %7707 = vmatpush1.bf16.msra.mxu0 %v7660
    %7708 = vmatprep.subr.bf16.mxu0 0
    %7709 = vmatpush1.bf16.msra.mxu0 %v7661
    %7710 = vmatprep.mubr.bf16.mxu0 %v7528
    %7711 = vmatmul.mubr.bf16.gmra.mrb[0].mxu0 %v7527
    %v7712 = vpop.f32.mrb[0].mxu0
    %v7713 = vadd.f32 %v7580, %v7712
    %v7714 = vpop.f32.mrb[0].mxu0
    %v7715 = vpop.f32.mrb[0].mxu0
    %v7716 = vadd.f32 %v7580, %v7715
    %v7717 = vpop.f32.mrb[0].mxu0
    %7718 = vmatprep.mubr.bf16.mxu0 %v7530
    %7719 = vmatmul.mubr.bf16.gmra.mrb[0].mxu0 %v7529
    %v7720 = vpop.f32.mrb[0].mxu0
    %v7721 = vadd.f32 %v7580, %v7720
    %v7722 = vpop.f32.mrb[0].mxu0
    %v7723 = vpop.f32.mrb[0].mxu0
    %v7724 = vadd.f32 %v7580, %v7723
    %v7725 = vpop.f32.mrb[0].mxu0
    %7726 = vmatprep.mubr.bf16.mxu0 %v7532
    %7727 = vmatmul.mubr.bf16.gmra.mrb[0].mxu0 %v7531
    %v7728 = vpop.f32.mrb[0].mxu0
    %v7729 = vadd.f32 %v7580, %v7728
    %v7730 = vpop.f32.mrb[0].mxu0
    %v7731 = vpop.f32.mrb[0].mxu0
    %v7732 = vadd.f32 %v7580, %v7731
    %v7733 = vpop.f32.mrb[0].mxu0
    %7734 = vmatprep.mubr.bf16.mxu0 %v7534
    %7735 = vmatmul.mubr.bf16.gmra.mrb[0].mxu0 %v7533
    %v7736 = vpop.f32.mrb[0].mxu0
    %v7737 = vadd.f32 %v7580, %v7736
    %v7738 = vpop.f32.mrb[0].mxu0
    %v7739 = vpop.f32.mrb[0].mxu0
    %v7740 = vadd.f32 %v7580, %v7739
    %v7741 = vpop.f32.mrb[0].mxu0
    %7742 = vmatprep.mubr.bf16.mxu0 %v7536
    %7743 = vmatmul.mubr.bf16.gmra.mrb[0].mxu0 %v7535
    %v7744 = vpop.f32.mrb[0].mxu0
    %v7745 = vadd.f32 %v7580, %v7744
    %v7746 = vpop.f32.mrb[0].mxu0
    %v7747 = vpop.f32.mrb[0].mxu0
    %v7748 = vadd.f32 %v7580, %v7747
    %v7749 = vpop.f32.mrb[0].mxu0
    %7750 = vmatprep.mubr.bf16.mxu0 %v7538
    %7751 = vmatmul.mubr.bf16.gmra.mrb[0].mxu0 %v7537
    %v7752 = vpop.f32.mrb[0].mxu0
    %v7753 = vadd.f32 %v7580, %v7752
    %v7754 = vpop.f32.mrb[0].mxu0
    %v7755 = vpop.f32.mrb[0].mxu0
    %v7756 = vadd.f32 %v7580, %v7755
    %v7757 = vpop.f32.mrb[0].mxu0
    %7758 = vmatprep.mubr.bf16.mxu0 %v7540
    %7759 = vmatmul.mubr.bf16.gmra.mrb[0].mxu0 %v7539
    %v7760 = vpop.f32.mrb[0].mxu0
    %v7761 = vadd.f32 %v7580, %v7760
    %v7762 = vpop.f32.mrb[0].mxu0
    %v7763 = vpop.f32.mrb[0].mxu0
    %v7764 = vadd.f32 %v7580, %v7763
    %v7765 = vpop.f32.mrb[0].mxu0
    %7766 = vmatprep.mubr.bf16.mxu0 %v7542
    %7767 = vmatmul.mubr.bf16.gmra.mrb[0].mxu0 %v7541
    %v7768 = vpop.f32.mrb[0].mxu0
    %v7769 = vadd.f32 %v7580, %v7768
    %v7770 = vpop.f32.mrb[0].mxu0
    %v7771 = vpop.f32.mrb[0].mxu0
    %v7772 = vadd.f32 %v7580, %v7771
    %v7773 = vpop.f32.mrb[0].mxu0
    %7774 = vdwg.mxu0
    %v7775 = vld [vmem:[#allocation16] sm:$0xff]
    %v7776 = vld [vmem:[#allocation16 + $0x8] sm:$0xff]
    %v7777 = vld [vmem:[#allocation16 + $0x10] sm:$0xff]
    %v7778 = vld [vmem:[#allocation16 + $0x18] sm:$0xff]
    %v7779 = vld [vmem:[#allocation16 + $0x20] sm:$0xff]
    %v7780 = vld [vmem:[#allocation16 + $0x28] sm:$0xff]
    %v7781 = vld [vmem:[#allocation16 + $0x30] sm:$0xff]
    %v7782 = vld [vmem:[#allocation16 + $0x38] sm:$0xff]
    %v7783 = vld [vmem:[#allocation16 + $0x40] sm:$0xff]
    %v7784 = vld [vmem:[#allocation16 + $0x48] sm:$0xff]
    %v7785 = vld [vmem:[#allocation16 + $0x50] sm:$0xff]
    %v7786 = vld [vmem:[#allocation16 + $0x58] sm:$0xff]
    %v7787 = vld [vmem:[#allocation16 + $0x60] sm:$0xff]
    %v7788 = vld [vmem:[#allocation16 + $0x68] sm:$0xff]
    %v7789 = vld [vmem:[#allocation16 + $0x70] sm:$0xff]
    %v7790 = vld [vmem:[#allocation16 + $0x78] sm:$0xff]
    %v7791 = vadd.f32 %v7713, %v7775
    %v7792 = vadd.f32 %v7716, %v7776
    %v7793 = vadd.f32 %v7721, %v7777
    %v7794 = vadd.f32 %v7724, %v7778
    %v7795 = vadd.f32 %v7729, %v7779
    %v7796 = vadd.f32 %v7732, %v7780
    %v7797 = vadd.f32 %v7737, %v7781
    %v7798 = vadd.f32 %v7740, %v7782
    %v7799 = vadd.f32 %v7745, %v7783
    %v7800 = vadd.f32 %v7748, %v7784
    %v7801 = vadd.f32 %v7753, %v7785
    %v7802 = vadd.f32 %v7756, %v7786
    %v7803 = vadd.f32 %v7761, %v7787
    %v7804 = vadd.f32 %v7764, %v7788
    %v7805 = vadd.f32 %v7769, %v7789
    %v7806 = vadd.f32 %v7772, %v7790
    %v7807 = vmul.f32 %v7791, 2.0
    %v7808 = vmul.f32 %v7792, 2.0
    %v7809 = vmul.f32 %v7793, 2.0
    %v7810 = vmul.f32 %v7794, 2.0
    %v7811 = vmul.f32 %v7795, 2.0
    %v7812 = vmul.f32 %v7796, 2.0
    %v7813 = vmul.f32 %v7797, 2.0
    %v7814 = vmul.f32 %v7798, 2.0
    %v7815 = vmul.f32 %v7799, 2.0
    %v7816 = vmul.f32 %v7800, 2.0
    %v7817 = vmul.f32 %v7801, 2.0
    %v7818 = vmul.f32 %v7802, 2.0
    %v7819 = vmul.f32 %v7803, 2.0
    %v7820 = vmul.f32 %v7804, 2.0
    %v7821 = vmul.f32 %v7805, 2.0
    %v7822 = vmul.f32 %v7806, 2.0
    %7823 = vmax.xlane.f32.xlu0 %v7807
    %v7824 = vpop.xlane.xlu0 %7823
    %7825 = vmax.xlane.f32.xlu0 %v7808
    %v7826 = vpop.xlane.xlu0 %7825
    %7827 = vmax.xlane.f32.xlu0 %v7809
    %v7828 = vpop.xlane.xlu0 %7827
    %7829 = vmax.xlane.f32.xlu0 %v7810
    %v7830 = vpop.xlane.xlu0 %7829
    %7831 = vmax.xlane.f32.xlu0 %v7811
    %v7832 = vpop.xlane.xlu0 %7831
    %7833 = vmax.xlane.f32.xlu0 %v7812
    %v7834 = vpop.xlane.xlu0 %7833
    %7835 = vmax.xlane.f32.xlu0 %v7813
    %v7836 = vpop.xlane.xlu0 %7835
    %7837 = vmax.xlane.f32.xlu0 %v7814
    %v7838 = vpop.xlane.xlu0 %7837
    %7839 = vmax.xlane.f32.xlu0 %v7815
    %v7840 = vpop.xlane.xlu0 %7839
    %7841 = vmax.xlane.f32.xlu0 %v7816
    %v7842 = vpop.xlane.xlu0 %7841
    %7843 = vmax.xlane.f32.xlu0 %v7817
    %v7844 = vpop.xlane.xlu0 %7843
    %7845 = vmax.xlane.f32.xlu0 %v7818
    %v7846 = vpop.xlane.xlu0 %7845
    %7847 = vmax.xlane.f32.xlu0 %v7819
    %v7848 = vpop.xlane.xlu0 %7847
    %7849 = vmax.xlane.f32.xlu0 %v7820
    %v7850 = vpop.xlane.xlu0 %7849
    %7851 = vmax.xlane.f32.xlu0 %v7821
    %v7852 = vpop.xlane.xlu0 %7851
    %7853 = vmax.xlane.f32.xlu0 %v7822
    %v7854 = vpop.xlane.xlu0 %7853
    %v7855 = vsub.f32 %v7807, %v7824
    %v7856 = vsub.f32 %v7808, %v7826
    %v7857 = vsub.f32 %v7809, %v7828
    %v7858 = vsub.f32 %v7810, %v7830
    %v7859 = vsub.f32 %v7811, %v7832
    %v7860 = vsub.f32 %v7812, %v7834
    %v7861 = vsub.f32 %v7813, %v7836
    %v7862 = vsub.f32 %v7814, %v7838
    %v7863 = vsub.f32 %v7815, %v7840
    %v7864 = vsub.f32 %v7816, %v7842
    %v7865 = vsub.f32 %v7817, %v7844
    %v7866 = vsub.f32 %v7818, %v7846
    %v7867 = vsub.f32 %v7819, %v7848
    %v7868 = vsub.f32 %v7820, %v7850
    %v7869 = vsub.f32 %v7821, %v7852
    %v7870 = vsub.f32 %v7822, %v7854
    %v7871 = vmul.f32 %v7855, 1.442695
    %v7872 = vpow.pop %v7871
    %v7873 = vmul.f32 %v7856, 1.442695
    %v7874 = vpow.pop %v7873
    %v7875 = vmul.f32 %v7857, 1.442695
    %v7876 = vpow.pop %v7875
    %v7877 = vmul.f32 %v7858, 1.442695
    %v7878 = vpow.pop %v7877
    %v7879 = vmul.f32 %v7859, 1.442695
    %v7880 = vpow.pop %v7879
    %v7881 = vmul.f32 %v7860, 1.442695
    %v7882 = vpow.pop %v7881
    %v7883 = vmul.f32 %v7861, 1.442695
    %v7884 = vpow.pop %v7883
    %v7885 = vmul.f32 %v7862, 1.442695
    %v7886 = vpow.pop %v7885
    %v7887 = vmul.f32 %v7863, 1.442695
    %v7888 = vpow.pop %v7887
    %v7889 = vmul.f32 %v7864, 1.442695
    %v7890 = vpow.pop %v7889
    %v7891 = vmul.f32 %v7865, 1.442695
    %v7892 = vpow.pop %v7891
    %v7893 = vmul.f32 %v7866, 1.442695
    %v7894 = vpow.pop %v7893
    %v7895 = vmul.f32 %v7867, 1.442695
    %v7896 = vpow.pop %v7895
    %v7897 = vmul.f32 %v7868, 1.442695
    %v7898 = vpow.pop %v7897
    %v7899 = vmul.f32 %v7869, 1.442695
    %v7900 = vpow.pop %v7899
    %v7901 = vmul.f32 %v7870, 1.442695
    %v7902 = vpow.pop %v7901
    %7903 = vadd.xlane.f32.xlu0 %v7872
    %v7904 = vpop.xlane.xlu0 %7903
    %7905 = vadd.xlane.f32.xlu0 %v7874
    %v7906 = vpop.xlane.xlu0 %7905
    %7907 = vadd.xlane.f32.xlu0 %v7876
    %v7908 = vpop.xlane.xlu0 %7907
    %7909 = vadd.xlane.f32.xlu0 %v7878
    %v7910 = vpop.xlane.xlu0 %7909
    %7911 = vadd.xlane.f32.xlu0 %v7880
    %v7912 = vpop.xlane.xlu0 %7911
    %7913 = vadd.xlane.f32.xlu0 %v7882
    %v7914 = vpop.xlane.xlu0 %7913
    %7915 = vadd.xlane.f32.xlu0 %v7884
    %v7916 = vpop.xlane.xlu0 %7915
    %7917 = vadd.xlane.f32.xlu0 %v7886
    %v7918 = vpop.xlane.xlu0 %7917
    %7919 = vadd.xlane.f32.xlu0 %v7888
    %v7920 = vpop.xlane.xlu0 %7919
    %7921 = vadd.xlane.f32.xlu0 %v7890
    %v7922 = vpop.xlane.xlu0 %7921
    %7923 = vadd.xlane.f32.xlu0 %v7892
    %v7924 = vpop.xlane.xlu0 %7923
    %7925 = vadd.xlane.f32.xlu0 %v7894
    %v7926 = vpop.xlane.xlu0 %7925
    %7927 = vadd.xlane.f32.xlu0 %v7896
    %v7928 = vpop.xlane.xlu0 %7927
    %7929 = vadd.xlane.f32.xlu0 %v7898
    %v7930 = vpop.xlane.xlu0 %7929
    %7931 = vadd.xlane.f32.xlu0 %v7900
    %v7932 = vpop.xlane.xlu0 %7931
    %7933 = vadd.xlane.f32.xlu0 %v7902
    %v7934 = vpop.xlane.xlu0 %7933
    %v7935 = vrcp.pop %v7904
    %v7936 = vmul.f32 %v7872, %v7935
    %v7937 = vrcp.pop %v7906
    %v7938 = vmul.f32 %v7874, %v7937
    %v7939 = vrcp.pop %v7908
    %v7940 = vmul.f32 %v7876, %v7939
    %v7941 = vrcp.pop %v7910
    %v7942 = vmul.f32 %v7878, %v7941
    %v7943 = vrcp.pop %v7912
    %v7944 = vmul.f32 %v7880, %v7943
    %v7945 = vrcp.pop %v7914
    %v7946 = vmul.f32 %v7882, %v7945
    %v7947 = vrcp.pop %v7916
    %v7948 = vmul.f32 %v7884, %v7947
    %v7949 = vrcp.pop %v7918
    %v7950 = vmul.f32 %v7886, %v7949
    %v7951 = vrcp.pop %v7920
    %v7952 = vmul.f32 %v7888, %v7951
    %v7953 = vrcp.pop %v7922
    %v7954 = vmul.f32 %v7890, %v7953
    %v7955 = vrcp.pop %v7924
    %v7956 = vmul.f32 %v7892, %v7955
    %v7957 = vrcp.pop %v7926
    %v7958 = vmul.f32 %v7894, %v7957
    %v7959 = vrcp.pop %v7928
    %v7960 = vmul.f32 %v7896, %v7959
    %v7961 = vrcp.pop %v7930
    %v7962 = vmul.f32 %v7898, %v7961
    %v7963 = vrcp.pop %v7932
    %v7964 = vmul.f32 %v7900, %v7963
    %v7965 = vrcp.pop %v7934
    %v7966 = vmul.f32 %v7902, %v7965
    %7967 = vst [vmem:[#allocation18] sm:$0xff] %v7936
    %7968 = vst [vmem:[#allocation18 + $0x8] sm:$0xff] %v7938
    %7969 = vst [vmem:[#allocation18 + $0x10] sm:$0xff] %v7940
    %7970 = vst [vmem:[#allocation18 + $0x18] sm:$0xff] %v7942
    %7971 = vst [vmem:[#allocation18 + $0x20] sm:$0xff] %v7944
    %7972 = vst [vmem:[#allocation18 + $0x28] sm:$0xff] %v7946
    %7973 = vst [vmem:[#allocation18 + $0x30] sm:$0xff] %v7948
    %7974 = vst [vmem:[#allocation18 + $0x38] sm:$0xff] %v7950
    %7975 = vst [vmem:[#allocation18 + $0x40] sm:$0xff] %v7952
    %7976 = vst [vmem:[#allocation18 + $0x48] sm:$0xff] %v7954
    %7977 = vst [vmem:[#allocation18 + $0x50] sm:$0xff] %v7956
    %7978 = vst [vmem:[#allocation18 + $0x58] sm:$0xff] %v7958
    %7979 = vst [vmem:[#allocation18 + $0x60] sm:$0xff] %v7960
    %7980 = vst [vmem:[#allocation18 + $0x68] sm:$0xff] %v7962
    %7981 = vst [vmem:[#allocation18 + $0x70] sm:$0xff] %v7964
    %7982 = vst [vmem:[#allocation18 + $0x78] sm:$0xff] %v7966
    // Predicated region
    $region74: #{tpu_custom_call.1} parent=1 // pred_check
      _
    $region75: #{tpu_custom_call.1} parent=1 // pred_check_branch
      %7984 = sbr.rel (0) target = $region77
    $region76: #{tpu_custom_call.1} parent=1 // pred_region
      %s7986 = ssub.s32 2048, 2048
      %7987 = vsyncadd [#allocation6], %s7986
      %s7988 = sshll.u32 [#allocation18], 4
      %s7989 = int_to_ptr.vmem [resolvable:$true] %s7988
      %7994 = dma.vmem_to_hbm [thread:$0]  %s7989, 2048, %s10, [#allocation6], 128, 128, 8
    $region77: #{tpu_custom_call.1} parent=1 // pred_fallthru
      _
    // Predicated region
    $region78: #{tpu_custom_call.1} parent=1 // pred_check
      _
    $region79: #{tpu_custom_call.1} parent=1 // pred_check_branch
      %7996 = sbr.rel (0) target = $region81
    $region80: #{tpu_custom_call.1} parent=1 // pred_region
      %7997 = dma.done [#allocation6], 2048
    $region81: #{tpu_custom_call.1} parent=1 // pred_fallthru
      _
    %7998 = vsyncpa [#allocation5], 1
    %7999 = vsyncpa [#allocation8], 1
    %8000 = vsyncpa [#allocation11], 1
    %8001 = vsyncpa [#allocation14], 1
    %8002 = vsyncpa [#allocation17], 1
    %8003 = vsyncpa [#allocation6], 1

</llo_original>
